<compile_context>
chip_gen: v6e
topology: v6e:2x2x1
jax: 0.10.0
libtpu: 0.0.40
codegen_flags: <defaults>
</compile_context>

<pallas_src>
import numpy as np
import jax
import jax.numpy as jnp
from jax.experimental import pallas as pl
from jax.experimental.pallas import tpu as pltpu


def _rle_al_decoder_kernel(x0_ref, h0_ref, c0_ref, k_ref, v_ref, sbias_ref,
                           wcat_ref, bg_ref, wq_ref, bq_ref, wl_ref, bl_ref,
                           out_ref, att_ref):
    """Whole decode loop in one kernel invocation; everything VMEM-resident."""
    B, H = h0_ref.shape
    L = k_ref.shape[1]
    G = wcat_ref.shape[1]          # 4H
    I = wl_ref.shape[1]

    k_all = k_ref[...]             # (B, L, H) keys, pre-projected & pre-scaled 1/sqrt(H)
    v_all = v_ref[...]             # (B, L, H) values, pre-projected
    sbias = sbias_ref[...]         # (B, L)    additive attention mask (0 / -1e30)
    wcat = wcat_ref[...]           # (I+H, 4H) fused [Wih^T ; Whh^T]
    wq = wq_ref[...]               # (H, H)
    wl = wl_ref[...]               # (H, I)

    # Hoist bias broadcasts out of the recurrence (broadcast_in_dim is not CSE'd).
    bg = jnp.broadcast_to(bg_ref[...], (B, G))                   # (B, 4H)
    bq = jnp.broadcast_to(bq_ref[...], (B, H))                   # (B, H)
    bl = jnp.broadcast_to(bl_ref[...], (B, I))                   # (B, I)

    def step(t, carry):
        x_t, h_prev, c_prev = carry

        # ---- LSTM cell: single fused MXU push per step.
        z = jnp.concatenate([x_t, h_prev], axis=-1)                        # (B, I+H)
        gates = jnp.dot(z, wcat, preferred_element_type=jnp.float32) + bg  # (B, 4H)
        i_g = jax.nn.sigmoid(gates[:, 0 * H:1 * H])
        f_g = jax.nn.sigmoid(gates[:, 1 * H:2 * H])
        g_g = jnp.tanh(gates[:, 2 * H:3 * H])
        o_g = jax.nn.sigmoid(gates[:, 3 * H:4 * H])
        c_new = f_g * c_prev + i_g * g_g
        h_new = o_g * jnp.tanh(c_new)

        # ---- Scaled dot-product attention over hid_r.
        # Keys already carry the 1/sqrt(H) scale; mask is an additive bias.
        q = jnp.dot(h_new, wq, preferred_element_type=jnp.float32) + bq    # (B, H)
        scores = jnp.sum(q[:, None, :] * k_all, axis=-1) + sbias           # (B, L)
        m = jnp.max(scores, axis=-1, keepdims=True)
        e = jnp.exp(scores - m)
        attn = e / jnp.sum(e, axis=-1, keepdims=True)                      # (B, L)
        ctx = jnp.sum(attn[:, :, None] * v_all, axis=1)                    # (B, H)

        # ---- LinearPack (Linear + ReLU); its output feeds back as next input.
        y = jnp.maximum(
            jnp.dot(ctx, wl, preferred_element_type=jnp.float32) + bl, 0.0)  # (B, I)

        out_ref[t] = y.astype(out_ref.dtype)
        att_ref[t] = attn.astype(att_ref.dtype)
        return (y, h_new, c_new)

    # Fully unrolled: gives the LLO scheduler full visibility at small/medium L.
    # For very long sequences, switch to a fixed integer unroll factor.
    jax.lax.fori_loop(0, L, step,
                      (x0_ref[...], h0_ref[...], c0_ref[...]),
                      unroll=True)


def rle_al_decoder_forward(hid_r, in_mask, init_in, hidden, params):
    """hid_r: (B, L, H); in_mask: (B, L); init_in: (B, 1, H); hidden: (h0, c0) (1, B, H).
    Returns (outputs (B, L, I), attention_weights (B, L, L))."""
    f32 = jnp.float32
    hid_r = jnp.asarray(hid_r, f32)
    B, L, H = hid_r.shape
    Wih, Whh = jnp.asarray(params["Wih"], f32), jnp.asarray(params["Whh"], f32)
    b_ih, b_hh = jnp.asarray(params["b_ih"], f32), jnp.asarray(params["b_hh"], f32)
    Wq, bq = jnp.asarray(params["Wq"], f32), jnp.asarray(params["bq"], f32)
    Wk, bk = jnp.asarray(params["Wk"], f32), jnp.asarray(params["bk"], f32)
    Wv, bv = jnp.asarray(params["Wv"], f32), jnp.asarray(params["bv"], f32)
    Wl, bl = jnp.asarray(params["Wl"], f32), jnp.asarray(params["bl"], f32)
    I = Wl.shape[0]

    h0 = jnp.asarray(hidden[0], f32).reshape(B, H)
    c0 = jnp.asarray(hidden[1], f32).reshape(B, H)

    # Hoisted non-recurrent projections (one big MXU matmul each, plain XLA).
    inv_sqrt_h = np.float32(1.0 / np.sqrt(H))
    k_all = (hid_r @ Wk.T + bk) * inv_sqrt_h                          # (B, L, H) pre-scaled
    v_all = hid_r @ Wv.T + bv                                         # (B, L, H)
    x0 = jnp.maximum(jnp.asarray(init_in, f32).reshape(B, H) @ Wl.T + bl, 0.0)  # (B, I)

    # Key mask pre-folded into an additive score bias (0 valid / -1e30 masked).
    mask_f = jnp.asarray(in_mask, f32)                                # (B, L)
    score_bias = jnp.where(mask_f > 0.0, 0.0, -1e30).astype(f32)      # (B, L)

    # Fused LSTM weights -> one MXU push per step inside the kernel.
    wcat = jnp.concatenate([Wih.T, Whh.T], axis=0)                    # (I+H, 4H)
    bg = (b_ih + b_hh).reshape(1, 4 * H)
    wq_t, bq_r = Wq.T, bq.reshape(1, H)
    wl_t, bl_r = Wl.T, bl.reshape(1, I)

    # Pad the batch (sublane) dim to a multiple of 8.
    B_pad = int(-(-B // 8) * 8)
    pad = B_pad - B
    if pad:
        x0 = jnp.pad(x0, ((0, pad), (0, 0)))
        h0 = jnp.pad(h0, ((0, pad), (0, 0)))
        c0 = jnp.pad(c0, ((0, pad), (0, 0)))
        k_all = jnp.pad(k_all, ((0, pad), (0, 0), (0, 0)))
        v_all = jnp.pad(v_all, ((0, pad), (0, 0), (0, 0)))
        score_bias = jnp.pad(score_bias, ((0, pad), (0, 0)))

    vmem = pl.BlockSpec(memory_space=pltpu.MemorySpace.VMEM)
    out_tm, att_tm = pl.pallas_call(
        _rle_al_decoder_kernel,
        out_shape=(jax.ShapeDtypeStruct((L, B_pad, I), f32),
                   jax.ShapeDtypeStruct((L, B_pad, L), f32)),
        in_specs=[vmem] * 12,
        out_specs=(vmem, vmem),
    )(x0, h0, c0, k_all, v_all, score_bias, wcat, bg, wq_t, bq_r, wl_t, bl_r)

    # Tiny transpose + mask_it + batch-unpad; XLA fuses these into one fusion.
    outputs = jnp.transpose(out_tm, (1, 0, 2))[:B]                    # (B, L, I)
    att_w = jnp.transpose(att_tm, (1, 0, 2))[:B]                      # (B, L, L)
    outputs = outputs * jnp.asarray(in_mask, f32)[:, :, None]         # mask_it
    return outputs, att_w


def _ref_forward(hid_r, in_mask, init_in, hidden, params):
    """Pure-JAX reference with identical assumed sub-module semantics."""
    f32 = jnp.float32
    hid_r = jnp.asarray(hid_r, f32)
    B, L, H = hid_r.shape
    Wih, Whh = jnp.asarray(params["Wih"], f32), jnp.asarray(params["Whh"], f32)
    b_ih, b_hh = jnp.asarray(params["b_ih"], f32), jnp.asarray(params["b_hh"], f32)
    Wq, bq = jnp.asarray(params["Wq"], f32), jnp.asarray(params["bq"], f32)
    Wk, bk = jnp.asarray(params["Wk"], f32), jnp.asarray(params["bk"], f32)
    Wv, bv = jnp.asarray(params["Wv"], f32), jnp.asarray(params["bv"], f32)
    Wl, bl = jnp.asarray(params["Wl"], f32), jnp.asarray(params["bl"], f32)

    def lin3(x):
        return jnp.maximum(x @ Wl.T + bl, 0.0)

    k_all = hid_r @ Wk.T + bk
    v_all = hid_r @ Wv.T + bv
    valid = jnp.asarray(in_mask, f32) > 0
    scale = 1.0 / np.sqrt(H)
    h = jnp.asarray(hidden[0], f32).reshape(B, H)
    c = jnp.asarray(hidden[1], f32).reshape(B, H)
    x = lin3(jnp.asarray(init_in, f32).reshape(B, H))

    def step(carry, _):
        x, h, c = carry
        gates = x @ Wih.T + h @ Whh.T + b_ih + b_hh
        i_g, f_g, g_g, o_g = jnp.split(gates, 4, axis=-1)
        i_g, f_g, o_g = jax.nn.sigmoid(i_g), jax.nn.sigmoid(f_g), jax.nn.sigmoid(o_g)
        g_g = jnp.tanh(g_g)
        c = f_g * c + i_g * g_g
        h = o_g * jnp.tanh(c)
        q = h @ Wq.T + bq
        scores = jnp.einsum('bh,blh->bl', q, k_all) * scale
        scores = jnp.where(valid, scores, -1e30)
        attn = jax.nn.softmax(scores, axis=-1)
        ctx = jnp.einsum('bl,blh->bh', attn, v_all)
        y = lin3(ctx)
        return (y, h, c), (y, attn)

    _, (ys, attns) = jax.lax.scan(step, (x, h, c), None, length=L)
    outputs = jnp.transpose(ys, (1, 0, 2)) * jnp.asarray(in_mask, f32)[:, :, None]
    att_w = jnp.transpose(attns, (1, 0, 2))
    return outputs, att_w


if __name__ == "__main__":
    # size_list = [I, _, _, H]
    I, H = 16, 32
    B, L = 2, 8

    key = jax.random.PRNGKey(0)
    ks = jax.random.split(key, 16)
    s = 1.0 / np.sqrt(H)
    u = lambda k, shape: jax.random.uniform(k, shape, jnp.float32, -s, s)
    params = {
        "Wih": u(ks[0], (4 * H, I)), "Whh": u(ks[1], (4 * H, H)),
        "b_ih": u(ks[2], (4 * H,)), "b_hh": u(ks[3], (4 * H,)),
        "Wq": u(ks[4], (H, H)), "bq": u(ks[5], (H,)),
        "Wk": u(ks[6], (H, H)), "bk": u(ks[7], (H,)),
        "Wv": u(ks[8], (H, H)), "bv": u(ks[9], (H,)),
        "Wl": u(ks[10], (I, H)), "bl": u(ks[11], (I,)),
    }

    hid_r = jax.random.normal(ks[12], (B, L, H), jnp.float32)         # encoder states
    lens = np.array([L, L - 3], dtype=np.int32)                       # variable lengths
    in_mask = (jnp.arange(L)[None, :] < jnp.asarray(lens)[:, None]).astype(jnp.float32)
    init_in = jax.random.normal(ks[13], (B, 1, H), jnp.float32)
    h0 = jnp.zeros((1, B, H), jnp.float32)
    c0 = jnp.zeros((1, B, H), jnp.float32)

    out, attw = rle_al_decoder_forward(hid_r, in_mask, init_in, (h0, c0), params)
    out = jax.block_until_ready(out)
    attw = jax.block_until_ready(attw)

    ref_out, ref_attw = _ref_forward(hid_r, in_mask, init_in, (h0, c0), params)
    ref_out = jax.block_until_ready(ref_out)
    ref_attw = jax.block_until_ready(ref_attw)

    np.testing.assert_allclose(np.asarray(out), np.asarray(ref_out), rtol=1e-4, atol=2e-5)
    np.testing.assert_allclose(np.asarray(attw), np.asarray(ref_attw), rtol=1e-4, atol=2e-5)

    print("KERNEL_OK")
</pallas_src>

<mosaic_0001>
module attributes {stable_mosaic.version = 11 : i64} {
  func.func @_rle_al_decoder_kernel(%arg0: memref<8x16xf32, #tpu.memory_space<vmem>>, %arg1: memref<8x32xf32, #tpu.memory_space<vmem>>, %arg2: memref<8x32xf32, #tpu.memory_space<vmem>>, %arg3: memref<8x8x32xf32, #tpu.memory_space<vmem>>, %arg4: memref<8x8x32xf32, #tpu.memory_space<vmem>>, %arg5: memref<8x8xf32, #tpu.memory_space<vmem>>, %arg6: memref<48x128xf32, #tpu.memory_space<vmem>>, %arg7: memref<1x128xf32, #tpu.memory_space<vmem>>, %arg8: memref<32x32xf32, #tpu.memory_space<vmem>>, %arg9: memref<1x32xf32, #tpu.memory_space<vmem>>, %arg10: memref<32x16xf32, #tpu.memory_space<vmem>>, %arg11: memref<1x16xf32, #tpu.memory_space<vmem>>, %arg12: memref<8x8x16xf32, #tpu.memory_space<vmem>>, %arg13: memref<8x8x8xf32, #tpu.memory_space<vmem>>) attributes {dimension_semantics = [], scalar_prefetch = 0 : i64, scratch_operands = 0 : i64, tpu.core_type = #tpu.core_type<tc>} {
    %c0 = arith.constant 0 : index
    %c0_0 = arith.constant 0 : index
    %c0_1 = arith.constant 0 : index
    %0 = vector.load %arg3[%c0, %c0_0, %c0_1] : memref<8x8x32xf32, #tpu.memory_space<vmem>>, vector<8x8x32xf32>
    %c0_2 = arith.constant 0 : index
    %c0_3 = arith.constant 0 : index
    %c0_4 = arith.constant 0 : index
    %1 = vector.load %arg4[%c0_2, %c0_3, %c0_4] : memref<8x8x32xf32, #tpu.memory_space<vmem>>, vector<8x8x32xf32>
    %c0_5 = arith.constant 0 : index
    %c0_6 = arith.constant 0 : index
    %2 = vector.load %arg5[%c0_5, %c0_6] : memref<8x8xf32, #tpu.memory_space<vmem>>, vector<8x8xf32>
    %c0_7 = arith.constant 0 : index
    %c0_8 = arith.constant 0 : index
    %3 = vector.load %arg6[%c0_7, %c0_8] : memref<48x128xf32, #tpu.memory_space<vmem>>, vector<48x128xf32>
    %c0_9 = arith.constant 0 : index
    %c0_10 = arith.constant 0 : index
    %4 = vector.load %arg8[%c0_9, %c0_10] : memref<32x32xf32, #tpu.memory_space<vmem>>, vector<32x32xf32>
    %c0_11 = arith.constant 0 : index
    %c0_12 = arith.constant 0 : index
    %5 = vector.load %arg10[%c0_11, %c0_12] : memref<32x16xf32, #tpu.memory_space<vmem>>, vector<32x16xf32>
    %c0_13 = arith.constant 0 : index
    %c0_14 = arith.constant 0 : index
    %6 = vector.load %arg7[%c0_13, %c0_14] : memref<1x128xf32, #tpu.memory_space<vmem>>, vector<1x128xf32>
    %7 = vector.shape_cast %6 : vector<1x128xf32> to vector<1x128xf32>
    %8 = vector.broadcast %7 : vector<1x128xf32> to vector<8x128xf32>
    %c0_15 = arith.constant 0 : index
    %c0_16 = arith.constant 0 : index
    %9 = vector.load %arg9[%c0_15, %c0_16] : memref<1x32xf32, #tpu.memory_space<vmem>>, vector<1x32xf32>
    %10 = vector.shape_cast %9 : vector<1x32xf32> to vector<1x32xf32>
    %11 = vector.broadcast %10 : vector<1x32xf32> to vector<8x32xf32>
    %c0_17 = arith.constant 0 : index
    %c0_18 = arith.constant 0 : index
    %12 = vector.load %arg11[%c0_17, %c0_18] : memref<1x16xf32, #tpu.memory_space<vmem>>, vector<1x16xf32>
    %13 = vector.shape_cast %12 : vector<1x16xf32> to vector<1x16xf32>
    %14 = vector.broadcast %13 : vector<1x16xf32> to vector<8x16xf32>
    %c0_19 = arith.constant 0 : index
    %c0_20 = arith.constant 0 : index
    %15 = vector.load %arg0[%c0_19, %c0_20] : memref<8x16xf32, #tpu.memory_space<vmem>>, vector<8x16xf32>
    %c0_21 = arith.constant 0 : index
    %c0_22 = arith.constant 0 : index
    %16 = vector.load %arg1[%c0_21, %c0_22] : memref<8x32xf32, #tpu.memory_space<vmem>>, vector<8x32xf32>
    %c0_23 = arith.constant 0 : index
    %c0_24 = arith.constant 0 : index
    %17 = vector.load %arg2[%c0_23, %c0_24] : memref<8x32xf32, #tpu.memory_space<vmem>>, vector<8x32xf32>
    %c0_i32 = arith.constant 0 : i32
    %18 = tpu.concatenate %15, %16 in 1 : vector<8x16xf32>, vector<8x32xf32> -> vector<8x48xf32>
    %cst = arith.constant dense<0.000000e+00> : vector<8x128xf32>
    %19 = tpu.matmul %18, %3, %cst {dimension_numbers = #tpu.dot_dimension_numbers<[1], [0], [0], [1], [0, 0, 1, 1], [], []>} : vector<8x48xf32>, vector<48x128xf32>, vector<8x128xf32> -> vector<8x128xf32>
    %20 = arith.addf %19, %8 : vector<8x128xf32>
    %21 = vector.extract_strided_slice %20 {offsets = [0, 0], sizes = [8, 32], strides = [1, 1]} : vector<8x128xf32> to vector<8x32xf32>
    %22 = arith.negf %21 : vector<8x32xf32>
    %23 = math.exp %22 : vector<8x32xf32>
    %cst_25 = arith.constant 1.000000e+00 : f32
    %24 = vector.broadcast %cst_25 : f32 to vector<8x32xf32>
    %25 = arith.addf %24, %23 : vector<8x32xf32>
    %26 = arith.divf %24, %25 : vector<8x32xf32>
    %27 = vector.extract_strided_slice %20 {offsets = [0, 32], sizes = [8, 32], strides = [1, 1]} : vector<8x128xf32> to vector<8x32xf32>
    %28 = arith.negf %27 : vector<8x32xf32>
    %29 = math.exp %28 : vector<8x32xf32>
    %cst_26 = arith.constant 1.000000e+00 : f32
    %30 = vector.broadcast %cst_26 : f32 to vector<8x32xf32>
    %31 = arith.addf %30, %29 : vector<8x32xf32>
    %32 = arith.divf %30, %31 : vector<8x32xf32>
    %33 = vector.extract_strided_slice %20 {offsets = [0, 64], sizes = [8, 32], strides = [1, 1]} : vector<8x128xf32> to vector<8x32xf32>
    %34 = math.tanh %33 : vector<8x32xf32>
    %35 = vector.extract_strided_slice %20 {offsets = [0, 96], sizes = [8, 32], strides = [1, 1]} : vector<8x128xf32> to vector<8x32xf32>
    %36 = arith.negf %35 : vector<8x32xf32>
    %37 = math.exp %36 : vector<8x32xf32>
    %cst_27 = arith.constant 1.000000e+00 : f32
    %38 = vector.broadcast %cst_27 : f32 to vector<8x32xf32>
    %39 = arith.addf %38, %37 : vector<8x32xf32>
    %40 = arith.divf %38, %39 : vector<8x32xf32>
    %41 = arith.mulf %32, %17 : vector<8x32xf32>
    %42 = arith.mulf %26, %34 : vector<8x32xf32>
    %43 = arith.addf %41, %42 : vector<8x32xf32>
    %44 = math.tanh %43 : vector<8x32xf32>
    %45 = arith.mulf %40, %44 : vector<8x32xf32>
    %cst_28 = arith.constant dense<0.000000e+00> : vector<8x32xf32>
    %46 = tpu.matmul %45, %4, %cst_28 {dimension_numbers = #tpu.dot_dimension_numbers<[1], [0], [0], [1], [0, 0, 1, 1], [], []>} : vector<8x32xf32>, vector<32x32xf32>, vector<8x32xf32> -> vector<8x32xf32>
    %47 = arith.addf %46, %11 : vector<8x32xf32>
    %48 = vector.shape_cast %47 : vector<8x32xf32> to vector<8x1x32xf32>
    %49 = vector.broadcast %48 : vector<8x1x32xf32> to vector<8x8x32xf32>
    %50 = arith.mulf %49, %0 : vector<8x8x32xf32>
    %cst_29 = arith.constant dense<0.000000e+00> : vector<8x8xf32>
    %51 = vector.multi_reduction <add>, %50, %cst_29 [2] : vector<8x8x32xf32> to vector<8x8xf32>
    %52 = arith.addf %51, %2 : vector<8x8xf32>
    %cst_30 = arith.constant dense<0xFF800000> : vector<8xf32>
    %53 = vector.multi_reduction <maximumf>, %52, %cst_30 [1] : vector<8x8xf32> to vector<8xf32>
    %54 = vector.shape_cast %53 : vector<8xf32> to vector<8x1xf32>
    %55 = vector.broadcast %54 : vector<8x1xf32> to vector<8x8xf32>
    %56 = arith.subf %52, %55 : vector<8x8xf32>
    %57 = math.exp %56 : vector<8x8xf32>
    %cst_31 = arith.constant dense<0.000000e+00> : vector<8xf32>
    %58 = vector.multi_reduction <add>, %57, %cst_31 [1] : vector<8x8xf32> to vector<8xf32>
    %59 = vector.shape_cast %58 : vector<8xf32> to vector<8x1xf32>
    %60 = vector.broadcast %59 : vector<8x1xf32> to vector<8x8xf32>
    %61 = arith.divf %57, %60 : vector<8x8xf32>
    %62 = vector.shape_cast %61 : vector<8x8xf32> to vector<8x8x1xf32>
    %63 = vector.broadcast %62 : vector<8x8x1xf32> to vector<8x8x32xf32>
    %64 = arith.mulf %63, %1 : vector<8x8x32xf32>
    %cst_32 = arith.constant dense<0.000000e+00> : vector<8x32xf32>
    %65 = vector.multi_reduction <add>, %64, %cst_32 [1] : vector<8x8x32xf32> to vector<8x32xf32>
    %cst_33 = arith.constant dense<0.000000e+00> : vector<8x16xf32>
    %66 = tpu.matmul %65, %5, %cst_33 {dimension_numbers = #tpu.dot_dimension_numbers<[1], [0], [0], [1], [0, 0, 1, 1], [], []>} : vector<8x32xf32>, vector<32x16xf32>, vector<8x16xf32> -> vector<8x16xf32>
    %67 = arith.addf %66, %14 : vector<8x16xf32>
    %cst_34 = arith.constant 0.000000e+00 : f32
    %68 = vector.broadcast %cst_34 : f32 to vector<8x16xf32>
    %69 = arith.maximumf %67, %68 : vector<8x16xf32>
    %70 = arith.index_cast %c0_i32 : i32 to index
    %c0_35 = arith.constant 0 : index
    %c0_36 = arith.constant 0 : index
    %71 = vector.load %arg12[%70, %c0_35, %c0_36] : memref<8x8x16xf32, #tpu.memory_space<vmem>>, vector<1x8x16xf32>
    %72 = vector.shape_cast %71 : vector<1x8x16xf32> to vector<8x16xf32>
    %73 = vector.shape_cast %69 : vector<8x16xf32> to vector<1x8x16xf32>
    tpu.vector_store %arg12[%70, %c0_35, %c0_36], %73 {strides = array<i32>} : memref<8x8x16xf32, #tpu.memory_space<vmem>>, vector<1x8x16xf32>,
    %74 = arith.index_cast %c0_i32 : i32 to index
    %c0_37 = arith.constant 0 : index
    %c0_38 = arith.constant 0 : index
    %75 = vector.load %arg13[%74, %c0_37, %c0_38] : memref<8x8x8xf32, #tpu.memory_space<vmem>>, vector<1x8x8xf32>
    %76 = vector.shape_cast %75 : vector<1x8x8xf32> to vector<8x8xf32>
    %77 = vector.shape_cast %61 : vector<8x8xf32> to vector<1x8x8xf32>
    tpu.vector_store %arg13[%74, %c0_37, %c0_38], %77 {strides = array<i32>} : memref<8x8x8xf32, #tpu.memory_space<vmem>>, vector<1x8x8xf32>,
    %c1_i32 = arith.constant 1 : i32
    %78 = tpu.concatenate %69, %45 in 1 : vector<8x16xf32>, vector<8x32xf32> -> vector<8x48xf32>
    %cst_39 = arith.constant dense<0.000000e+00> : vector<8x128xf32>
    %79 = tpu.matmul %78, %3, %cst_39 {dimension_numbers = #tpu.dot_dimension_numbers<[1], [0], [0], [1], [0, 0, 1, 1], [], []>} : vector<8x48xf32>, vector<48x128xf32>, vector<8x128xf32> -> vector<8x128xf32>
    %80 = arith.addf %79, %8 : vector<8x128xf32>
    %81 = vector.extract_strided_slice %80 {offsets = [0, 0], sizes = [8, 32], strides = [1, 1]} : vector<8x128xf32> to vector<8x32xf32>
    %82 = arith.negf %81 : vector<8x32xf32>
    %83 = math.exp %82 : vector<8x32xf32>
    %cst_40 = arith.constant 1.000000e+00 : f32
    %84 = vector.broadcast %cst_40 : f32 to vector<8x32xf32>
    %85 = arith.addf %84, %83 : vector<8x32xf32>
    %86 = arith.divf %84, %85 : vector<8x32xf32>
    %87 = vector.extract_strided_slice %80 {offsets = [0, 32], sizes = [8, 32], strides = [1, 1]} : vector<8x128xf32> to vector<8x32xf32>
    %88 = arith.negf %87 : vector<8x32xf32>
    %89 = math.exp %88 : vector<8x32xf32>
    %cst_41 = arith.constant 1.000000e+00 : f32
    %90 = vector.broadcast %cst_41 : f32 to vector<8x32xf32>
    %91 = arith.addf %90, %89 : vector<8x32xf32>
    %92 = arith.divf %90, %91 : vector<8x32xf32>
    %93 = vector.extract_strided_slice %80 {offsets = [0, 64], sizes = [8, 32], strides = [1, 1]} : vector<8x128xf32> to vector<8x32xf32>
    %94 = math.tanh %93 : vector<8x32xf32>
    %95 = vector.extract_strided_slice %80 {offsets = [0, 96], sizes = [8, 32], strides = [1, 1]} : vector<8x128xf32> to vector<8x32xf32>
    %96 = arith.negf %95 : vector<8x32xf32>
    %97 = math.exp %96 : vector<8x32xf32>
    %cst_42 = arith.constant 1.000000e+00 : f32
    %98 = vector.broadcast %cst_42 : f32 to vector<8x32xf32>
    %99 = arith.addf %98, %97 : vector<8x32xf32>
    %100 = arith.divf %98, %99 : vector<8x32xf32>
    %101 = arith.mulf %92, %43 : vector<8x32xf32>
    %102 = arith.mulf %86, %94 : vector<8x32xf32>
    %103 = arith.addf %101, %102 : vector<8x32xf32>
    %104 = math.tanh %103 : vector<8x32xf32>
    %105 = arith.mulf %100, %104 : vector<8x32xf32>
    %cst_43 = arith.constant dense<0.000000e+00> : vector<8x32xf32>
    %106 = tpu.matmul %105, %4, %cst_43 {dimension_numbers = #tpu.dot_dimension_numbers<[1], [0], [0], [1], [0, 0, 1, 1], [], []>} : vector<8x32xf32>, vector<32x32xf32>, vector<8x32xf32> -> vector<8x32xf32>
    %107 = arith.addf %106, %11 : vector<8x32xf32>
    %108 = vector.shape_cast %107 : vector<8x32xf32> to vector<8x1x32xf32>
    %109 = vector.broadcast %108 : vector<8x1x32xf32> to vector<8x8x32xf32>
    %110 = arith.mulf %109, %0 : vector<8x8x32xf32>
    %cst_44 = arith.constant dense<0.000000e+00> : vector<8x8xf32>
    %111 = vector.multi_reduction <add>, %110, %cst_44 [2] : vector<8x8x32xf32> to vector<8x8xf32>
    %112 = arith.addf %111, %2 : vector<8x8xf32>
    %cst_45 = arith.constant dense<0xFF800000> : vector<8xf32>
    %113 = vector.multi_reduction <maximumf>, %112, %cst_45 [1] : vector<8x8xf32> to vector<8xf32>
    %114 = vector.shape_cast %113 : vector<8xf32> to vector<8x1xf32>
    %115 = vector.broadcast %114 : vector<8x1xf32> to vector<8x8xf32>
    %116 = arith.subf %112, %115 : vector<8x8xf32>
    %117 = math.exp %116 : vector<8x8xf32>
    %cst_46 = arith.constant dense<0.000000e+00> : vector<8xf32>
    %118 = vector.multi_reduction <add>, %117, %cst_46 [1] : vector<8x8xf32> to vector<8xf32>
    %119 = vector.shape_cast %118 : vector<8xf32> to vector<8x1xf32>
    %120 = vector.broadcast %119 : vector<8x1xf32> to vector<8x8xf32>
    %121 = arith.divf %117, %120 : vector<8x8xf32>
    %122 = vector.shape_cast %121 : vector<8x8xf32> to vector<8x8x1xf32>
    %123 = vector.broadcast %122 : vector<8x8x1xf32> to vector<8x8x32xf32>
    %124 = arith.mulf %123, %1 : vector<8x8x32xf32>
    %cst_47 = arith.constant dense<0.000000e+00> : vector<8x32xf32>
    %125 = vector.multi_reduction <add>, %124, %cst_47 [1] : vector<8x8x32xf32> to vector<8x32xf32>
    %cst_48 = arith.constant dense<0.000000e+00> : vector<8x16xf32>
    %126 = tpu.matmul %125, %5, %cst_48 {dimension_numbers = #tpu.dot_dimension_numbers<[1], [0], [0], [1], [0, 0, 1, 1], [], []>} : vector<8x32xf32>, vector<32x16xf32>, vector<8x16xf32> -> vector<8x16xf32>
    %127 = arith.addf %126, %14 : vector<8x16xf32>
    %cst_49 = arith.constant 0.000000e+00 : f32
    %128 = vector.broadcast %cst_49 : f32 to vector<8x16xf32>
    %129 = arith.maximumf %127, %128 : vector<8x16xf32>
    %130 = arith.index_cast %c1_i32 : i32 to index
    %c0_50 = arith.constant 0 : index
    %c0_51 = arith.constant 0 : index
    %131 = vector.load %arg12[%130, %c0_50, %c0_51] : memref<8x8x16xf32, #tpu.memory_space<vmem>>, vector<1x8x16xf32>
    %132 = vector.shape_cast %131 : vector<1x8x16xf32> to vector<8x16xf32>
    %133 = vector.shape_cast %129 : vector<8x16xf32> to vector<1x8x16xf32>
    tpu.vector_store %arg12[%130, %c0_50, %c0_51], %133 {strides = array<i32>} : memref<8x8x16xf32, #tpu.memory_space<vmem>>, vector<1x8x16xf32>,
    %134 = arith.index_cast %c1_i32 : i32 to index
    %c0_52 = arith.constant 0 : index
    %c0_53 = arith.constant 0 : index
    %135 = vector.load %arg13[%134, %c0_52, %c0_53] : memref<8x8x8xf32, #tpu.memory_space<vmem>>, vector<1x8x8xf32>
    %136 = vector.shape_cast %135 : vector<1x8x8xf32> to vector<8x8xf32>
    %137 = vector.shape_cast %121 : vector<8x8xf32> to vector<1x8x8xf32>
    tpu.vector_store %arg13[%134, %c0_52, %c0_53], %137 {strides = array<i32>} : memref<8x8x8xf32, #tpu.memory_space<vmem>>, vector<1x8x8xf32>,
    %c2_i32 = arith.constant 2 : i32
    %138 = tpu.concatenate %129, %105 in 1 : vector<8x16xf32>, vector<8x32xf32> -> vector<8x48xf32>
    %cst_54 = arith.constant dense<0.000000e+00> : vector<8x128xf32>
    %139 = tpu.matmul %138, %3, %cst_54 {dimension_numbers = #tpu.dot_dimension_numbers<[1], [0], [0], [1], [0, 0, 1, 1], [], []>} : vector<8x48xf32>, vector<48x128xf32>, vector<8x128xf32> -> vector<8x128xf32>
    %140 = arith.addf %139, %8 : vector<8x128xf32>
    %141 = vector.extract_strided_slice %140 {offsets = [0, 0], sizes = [8, 32], strides = [1, 1]} : vector<8x128xf32> to vector<8x32xf32>
    %142 = arith.negf %141 : vector<8x32xf32>
    %143 = math.exp %142 : vector<8x32xf32>
    %cst_55 = arith.constant 1.000000e+00 : f32
    %144 = vector.broadcast %cst_55 : f32 to vector<8x32xf32>
    %145 = arith.addf %144, %143 : vector<8x32xf32>
    %146 = arith.divf %144, %145 : vector<8x32xf32>
    %147 = vector.extract_strided_slice %140 {offsets = [0, 32], sizes = [8, 32], strides = [1, 1]} : vector<8x128xf32> to vector<8x32xf32>
    %148 = arith.negf %147 : vector<8x32xf32>
    %149 = math.exp %148 : vector<8x32xf32>
    %cst_56 = arith.constant 1.000000e+00 : f32
    %150 = vector.broadcast %cst_56 : f32 to vector<8x32xf32>
    %151 = arith.addf %150, %149 : vector<8x32xf32>
    %152 = arith.divf %150, %151 : vector<8x32xf32>
    %153 = vector.extract_strided_slice %140 {offsets = [0, 64], sizes = [8, 32], strides = [1, 1]} : vector<8x128xf32> to vector<8x32xf32>
    %154 = math.tanh %153 : vector<8x32xf32>
    %155 = vector.extract_strided_slice %140 {offsets = [0, 96], sizes = [8, 32], strides = [1, 1]} : vector<8x128xf32> to vector<8x32xf32>
    %156 = arith.negf %155 : vector<8x32xf32>
    %157 = math.exp %156 : vector<8x32xf32>
    %cst_57 = arith.constant 1.000000e+00 : f32
    %158 = vector.broadcast %cst_57 : f32 to vector<8x32xf32>
    %159 = arith.addf %158, %157 : vector<8x32xf32>
    %160 = arith.divf %158, %159 : vector<8x32xf32>
    %161 = arith.mulf %152, %103 : vector<8x32xf32>
    %162 = arith.mulf %146, %154 : vector<8x32xf32>
    %163 = arith.addf %161, %162 : vector<8x32xf32>
    %164 = math.tanh %163 : vector<8x32xf32>
    %165 = arith.mulf %160, %164 : vector<8x32xf32>
    %cst_58 = arith.constant dense<0.000000e+00> : vector<8x32xf32>
    %166 = tpu.matmul %165, %4, %cst_58 {dimension_numbers = #tpu.dot_dimension_numbers<[1], [0], [0], [1], [0, 0, 1, 1], [], []>} : vector<8x32xf32>, vector<32x32xf32>, vector<8x32xf32> -> vector<8x32xf32>
    %167 = arith.addf %166, %11 : vector<8x32xf32>
    %168 = vector.shape_cast %167 : vector<8x32xf32> to vector<8x1x32xf32>
    %169 = vector.broadcast %168 : vector<8x1x32xf32> to vector<8x8x32xf32>
    %170 = arith.mulf %169, %0 : vector<8x8x32xf32>
    %cst_59 = arith.constant dense<0.000000e+00> : vector<8x8xf32>
    %171 = vector.multi_reduction <add>, %170, %cst_59 [2] : vector<8x8x32xf32> to vector<8x8xf32>
    %172 = arith.addf %171, %2 : vector<8x8xf32>
    %cst_60 = arith.constant dense<0xFF800000> : vector<8xf32>
    %173 = vector.multi_reduction <maximumf>, %172, %cst_60 [1] : vector<8x8xf32> to vector<8xf32>
    %174 = vector.shape_cast %173 : vector<8xf32> to vector<8x1xf32>
    %175 = vector.broadcast %174 : vector<8x1xf32> to vector<8x8xf32>
    %176 = arith.subf %172, %175 : vector<8x8xf32>
    %177 = math.exp %176 : vector<8x8xf32>
    %cst_61 = arith.constant dense<0.000000e+00> : vector<8xf32>
    %178 = vector.multi_reduction <add>, %177, %cst_61 [1] : vector<8x8xf32> to vector<8xf32>
    %179 = vector.shape_cast %178 : vector<8xf32> to vector<8x1xf32>
    %180 = vector.broadcast %179 : vector<8x1xf32> to vector<8x8xf32>
    %181 = arith.divf %177, %180 : vector<8x8xf32>
    %182 = vector.shape_cast %181 : vector<8x8xf32> to vector<8x8x1xf32>
    %183 = vector.broadcast %182 : vector<8x8x1xf32> to vector<8x8x32xf32>
    %184 = arith.mulf %183, %1 : vector<8x8x32xf32>
    %cst_62 = arith.constant dense<0.000000e+00> : vector<8x32xf32>
    %185 = vector.multi_reduction <add>, %184, %cst_62 [1] : vector<8x8x32xf32> to vector<8x32xf32>
    %cst_63 = arith.constant dense<0.000000e+00> : vector<8x16xf32>
    %186 = tpu.matmul %185, %5, %cst_63 {dimension_numbers = #tpu.dot_dimension_numbers<[1], [0], [0], [1], [0, 0, 1, 1], [], []>} : vector<8x32xf32>, vector<32x16xf32>, vector<8x16xf32> -> vector<8x16xf32>
    %187 = arith.addf %186, %14 : vector<8x16xf32>
    %cst_64 = arith.constant 0.000000e+00 : f32
    %188 = vector.broadcast %cst_64 : f32 to vector<8x16xf32>
    %189 = arith.maximumf %187, %188 : vector<8x16xf32>
    %190 = arith.index_cast %c2_i32 : i32 to index
    %c0_65 = arith.constant 0 : index
    %c0_66 = arith.constant 0 : index
    %191 = vector.load %arg12[%190, %c0_65, %c0_66] : memref<8x8x16xf32, #tpu.memory_space<vmem>>, vector<1x8x16xf32>
    %192 = vector.shape_cast %191 : vector<1x8x16xf32> to vector<8x16xf32>
    %193 = vector.shape_cast %189 : vector<8x16xf32> to vector<1x8x16xf32>
    tpu.vector_store %arg12[%190, %c0_65, %c0_66], %193 {strides = array<i32>} : memref<8x8x16xf32, #tpu.memory_space<vmem>>, vector<1x8x16xf32>,
    %194 = arith.index_cast %c2_i32 : i32 to index
    %c0_67 = arith.constant 0 : index
    %c0_68 = arith.constant 0 : index
    %195 = vector.load %arg13[%194, %c0_67, %c0_68] : memref<8x8x8xf32, #tpu.memory_space<vmem>>, vector<1x8x8xf32>
    %196 = vector.shape_cast %195 : vector<1x8x8xf32> to vector<8x8xf32>
    %197 = vector.shape_cast %181 : vector<8x8xf32> to vector<1x8x8xf32>
    tpu.vector_store %arg13[%194, %c0_67, %c0_68], %197 {strides = array<i32>} : memref<8x8x8xf32, #tpu.memory_space<vmem>>, vector<1x8x8xf32>,
    %c3_i32 = arith.constant 3 : i32
    %198 = tpu.concatenate %189, %165 in 1 : vector<8x16xf32>, vector<8x32xf32> -> vector<8x48xf32>
    %cst_69 = arith.constant dense<0.000000e+00> : vector<8x128xf32>
    %199 = tpu.matmul %198, %3, %cst_69 {dimension_numbers = #tpu.dot_dimension_numbers<[1], [0], [0], [1], [0, 0, 1, 1], [], []>} : vector<8x48xf32>, vector<48x128xf32>, vector<8x128xf32> -> vector<8x128xf32>
    %200 = arith.addf %199, %8 : vector<8x128xf32>
    %201 = vector.extract_strided_slice %200 {offsets = [0, 0], sizes = [8, 32], strides = [1, 1]} : vector<8x128xf32> to vector<8x32xf32>
    %202 = arith.negf %201 : vector<8x32xf32>
    %203 = math.exp %202 : vector<8x32xf32>
    %cst_70 = arith.constant 1.000000e+00 : f32
    %204 = vector.broadcast %cst_70 : f32 to vector<8x32xf32>
    %205 = arith.addf %204, %203 : vector<8x32xf32>
    %206 = arith.divf %204, %205 : vector<8x32xf32>
    %207 = vector.extract_strided_slice %200 {offsets = [0, 32], sizes = [8, 32], strides = [1, 1]} : vector<8x128xf32> to vector<8x32xf32>
    %208 = arith.negf %207 : vector<8x32xf32>
    %209 = math.exp %208 : vector<8x32xf32>
    %cst_71 = arith.constant 1.000000e+00 : f32
    %210 = vector.broadcast %cst_71 : f32 to vector<8x32xf32>
    %211 = arith.addf %210, %209 : vector<8x32xf32>
    %212 = arith.divf %210, %211 : vector<8x32xf32>
    %213 = vector.extract_strided_slice %200 {offsets = [0, 64], sizes = [8, 32], strides = [1, 1]} : vector<8x128xf32> to vector<8x32xf32>
    %214 = math.tanh %213 : vector<8x32xf32>
    %215 = vector.extract_strided_slice %200 {offsets = [0, 96], sizes = [8, 32], strides = [1, 1]} : vector<8x128xf32> to vector<8x32xf32>
    %216 = arith.negf %215 : vector<8x32xf32>
    %217 = math.exp %216 : vector<8x32xf32>
    %cst_72 = arith.constant 1.000000e+00 : f32
    %218 = vector.broadcast %cst_72 : f32 to vector<8x32xf32>
    %219 = arith.addf %218, %217 : vector<8x32xf32>
    %220 = arith.divf %218, %219 : vector<8x32xf32>
    %221 = arith.mulf %212, %163 : vector<8x32xf32>
    %222 = arith.mulf %206, %214 : vector<8x32xf32>
    %223 = arith.addf %221, %222 : vector<8x32xf32>
    %224 = math.tanh %223 : vector<8x32xf32>
    %225 = arith.mulf %220, %224 : vector<8x32xf32>
    %cst_73 = arith.constant dense<0.000000e+00> : vector<8x32xf32>
    %226 = tpu.matmul %225, %4, %cst_73 {dimension_numbers = #tpu.dot_dimension_numbers<[1], [0], [0], [1], [0, 0, 1, 1], [], []>} : vector<8x32xf32>, vector<32x32xf32>, vector<8x32xf32> -> vector<8x32xf32>
    %227 = arith.addf %226, %11 : vector<8x32xf32>
    %228 = vector.shape_cast %227 : vector<8x32xf32> to vector<8x1x32xf32>
    %229 = vector.broadcast %228 : vector<8x1x32xf32> to vector<8x8x32xf32>
    %230 = arith.mulf %229, %0 : vector<8x8x32xf32>
    %cst_74 = arith.constant dense<0.000000e+00> : vector<8x8xf32>
    %231 = vector.multi_reduction <add>, %230, %cst_74 [2] : vector<8x8x32xf32> to vector<8x8xf32>
    %232 = arith.addf %231, %2 : vector<8x8xf32>
    %cst_75 = arith.constant dense<0xFF800000> : vector<8xf32>
    %233 = vector.multi_reduction <maximumf>, %232, %cst_75 [1] : vector<8x8xf32> to vector<8xf32>
    %234 = vector.shape_cast %233 : vector<8xf32> to vector<8x1xf32>
    %235 = vector.broadcast %234 : vector<8x1xf32> to vector<8x8xf32>
    %236 = arith.subf %232, %235 : vector<8x8xf32>
    %237 = math.exp %236 : vector<8x8xf32>
    %cst_76 = arith.constant dense<0.000000e+00> : vector<8xf32>
    %238 = vector.multi_reduction <add>, %237, %cst_76 [1] : vector<8x8xf32> to vector<8xf32>
    %239 = vector.shape_cast %238 : vector<8xf32> to vector<8x1xf32>
    %240 = vector.broadcast %239 : vector<8x1xf32> to vector<8x8xf32>
    %241 = arith.divf %237, %240 : vector<8x8xf32>
    %242 = vector.shape_cast %241 : vector<8x8xf32> to vector<8x8x1xf32>
    %243 = vector.broadcast %242 : vector<8x8x1xf32> to vector<8x8x32xf32>
    %244 = arith.mulf %243, %1 : vector<8x8x32xf32>
    %cst_77 = arith.constant dense<0.000000e+00> : vector<8x32xf32>
    %245 = vector.multi_reduction <add>, %244, %cst_77 [1] : vector<8x8x32xf32> to vector<8x32xf32>
    %cst_78 = arith.constant dense<0.000000e+00> : vector<8x16xf32>
    %246 = tpu.matmul %245, %5, %cst_78 {dimension_numbers = #tpu.dot_dimension_numbers<[1], [0], [0], [1], [0, 0, 1, 1], [], []>} : vector<8x32xf32>, vector<32x16xf32>, vector<8x16xf32> -> vector<8x16xf32>
    %247 = arith.addf %246, %14 : vector<8x16xf32>
    %cst_79 = arith.constant 0.000000e+00 : f32
    %248 = vector.broadcast %cst_79 : f32 to vector<8x16xf32>
    %249 = arith.maximumf %247, %248 : vector<8x16xf32>
    %250 = arith.index_cast %c3_i32 : i32 to index
    %c0_80 = arith.constant 0 : index
    %c0_81 = arith.constant 0 : index
    %251 = vector.load %arg12[%250, %c0_80, %c0_81] : memref<8x8x16xf32, #tpu.memory_space<vmem>>, vector<1x8x16xf32>
    %252 = vector.shape_cast %251 : vector<1x8x16xf32> to vector<8x16xf32>
    %253 = vector.shape_cast %249 : vector<8x16xf32> to vector<1x8x16xf32>
    tpu.vector_store %arg12[%250, %c0_80, %c0_81], %253 {strides = array<i32>} : memref<8x8x16xf32, #tpu.memory_space<vmem>>, vector<1x8x16xf32>,
    %254 = arith.index_cast %c3_i32 : i32 to index
    %c0_82 = arith.constant 0 : index
    %c0_83 = arith.constant 0 : index
    %255 = vector.load %arg13[%254, %c0_82, %c0_83] : memref<8x8x8xf32, #tpu.memory_space<vmem>>, vector<1x8x8xf32>
    %256 = vector.shape_cast %255 : vector<1x8x8xf32> to vector<8x8xf32>
    %257 = vector.shape_cast %241 : vector<8x8xf32> to vector<1x8x8xf32>
    tpu.vector_store %arg13[%254, %c0_82, %c0_83], %257 {strides = array<i32>} : memref<8x8x8xf32, #tpu.memory_space<vmem>>, vector<1x8x8xf32>,
    %c4_i32 = arith.constant 4 : i32
    %258 = tpu.concatenate %249, %225 in 1 : vector<8x16xf32>, vector<8x32xf32> -> vector<8x48xf32>
    %cst_84 = arith.constant dense<0.000000e+00> : vector<8x128xf32>
    %259 = tpu.matmul %258, %3, %cst_84 {dimension_numbers = #tpu.dot_dimension_numbers<[1], [0], [0], [1], [0, 0, 1, 1], [], []>} : vector<8x48xf32>, vector<48x128xf32>, vector<8x128xf32> -> vector<8x128xf32>
    %260 = arith.addf %259, %8 : vector<8x128xf32>
    %261 = vector.extract_strided_slice %260 {offsets = [0, 0], sizes = [8, 32], strides = [1, 1]} : vector<8x128xf32> to vector<8x32xf32>
    %262 = arith.negf %261 : vector<8x32xf32>
    %263 = math.exp %262 : vector<8x32xf32>
    %cst_85 = arith.constant 1.000000e+00 : f32
    %264 = vector.broadcast %cst_85 : f32 to vector<8x32xf32>
    %265 = arith.addf %264, %263 : vector<8x32xf32>
    %266 = arith.divf %264, %265 : vector<8x32xf32>
    %267 = vector.extract_strided_slice %260 {offsets = [0, 32], sizes = [8, 32], strides = [1, 1]} : vector<8x128xf32> to vector<8x32xf32>
    %268 = arith.negf %267 : vector<8x32xf32>
    %269 = math.exp %268 : vector<8x32xf32>
    %cst_86 = arith.constant 1.000000e+00 : f32
    %270 = vector.broadcast %cst_86 : f32 to vector<8x32xf32>
    %271 = arith.addf %270, %269 : vector<8x32xf32>
    %272 = arith.divf %270, %271 : vector<8x32xf32>
    %273 = vector.extract_strided_slice %260 {offsets = [0, 64], sizes = [8, 32], strides = [1, 1]} : vector<8x128xf32> to vector<8x32xf32>
    %274 = math.tanh %273 : vector<8x32xf32>
    %275 = vector.extract_strided_slice %260 {offsets = [0, 96], sizes = [8, 32], strides = [1, 1]} : vector<8x128xf32> to vector<8x32xf32>
    %276 = arith.negf %275 : vector<8x32xf32>
    %277 = math.exp %276 : vector<8x32xf32>
    %cst_87 = arith.constant 1.000000e+00 : f32
    %278 = vector.broadcast %cst_87 : f32 to vector<8x32xf32>
    %279 = arith.addf %278, %277 : vector<8x32xf32>
    %280 = arith.divf %278, %279 : vector<8x32xf32>
    %281 = arith.mulf %272, %223 : vector<8x32xf32>
    %282 = arith.mulf %266, %274 : vector<8x32xf32>
    %283 = arith.addf %281, %282 : vector<8x32xf32>
    %284 = math.tanh %283 : vector<8x32xf32>
    %285 = arith.mulf %280, %284 : vector<8x32xf32>
    %cst_88 = arith.constant dense<0.000000e+00> : vector<8x32xf32>
    %286 = tpu.matmul %285, %4, %cst_88 {dimension_numbers = #tpu.dot_dimension_numbers<[1], [0], [0], [1], [0, 0, 1, 1], [], []>} : vector<8x32xf32>, vector<32x32xf32>, vector<8x32xf32> -> vector<8x32xf32>
    %287 = arith.addf %286, %11 : vector<8x32xf32>
    %288 = vector.shape_cast %287 : vector<8x32xf32> to vector<8x1x32xf32>
    %289 = vector.broadcast %288 : vector<8x1x32xf32> to vector<8x8x32xf32>
    %290 = arith.mulf %289, %0 : vector<8x8x32xf32>
    %cst_89 = arith.constant dense<0.000000e+00> : vector<8x8xf32>
    %291 = vector.multi_reduction <add>, %290, %cst_89 [2] : vector<8x8x32xf32> to vector<8x8xf32>
    %292 = arith.addf %291, %2 : vector<8x8xf32>
    %cst_90 = arith.constant dense<0xFF800000> : vector<8xf32>
    %293 = vector.multi_reduction <maximumf>, %292, %cst_90 [1] : vector<8x8xf32> to vector<8xf32>
    %294 = vector.shape_cast %293 : vector<8xf32> to vector<8x1xf32>
    %295 = vector.broadcast %294 : vector<8x1xf32> to vector<8x8xf32>
    %296 = arith.subf %292, %295 : vector<8x8xf32>
    %297 = math.exp %296 : vector<8x8xf32>
    %cst_91 = arith.constant dense<0.000000e+00> : vector<8xf32>
    %298 = vector.multi_reduction <add>, %297, %cst_91 [1] : vector<8x8xf32> to vector<8xf32>
    %299 = vector.shape_cast %298 : vector<8xf32> to vector<8x1xf32>
    %300 = vector.broadcast %299 : vector<8x1xf32> to vector<8x8xf32>
    %301 = arith.divf %297, %300 : vector<8x8xf32>
    %302 = vector.shape_cast %301 : vector<8x8xf32> to vector<8x8x1xf32>
    %303 = vector.broadcast %302 : vector<8x8x1xf32> to vector<8x8x32xf32>
    %304 = arith.mulf %303, %1 : vector<8x8x32xf32>
    %cst_92 = arith.constant dense<0.000000e+00> : vector<8x32xf32>
    %305 = vector.multi_reduction <add>, %304, %cst_92 [1] : vector<8x8x32xf32> to vector<8x32xf32>
    %cst_93 = arith.constant dense<0.000000e+00> : vector<8x16xf32>
    %306 = tpu.matmul %305, %5, %cst_93 {dimension_numbers = #tpu.dot_dimension_numbers<[1], [0], [0], [1], [0, 0, 1, 1], [], []>} : vector<8x32xf32>, vector<32x16xf32>, vector<8x16xf32> -> vector<8x16xf32>
    %307 = arith.addf %306, %14 : vector<8x16xf32>
    %cst_94 = arith.constant 0.000000e+00 : f32
    %308 = vector.broadcast %cst_94 : f32 to vector<8x16xf32>
    %309 = arith.maximumf %307, %308 : vector<8x16xf32>
    %310 = arith.index_cast %c4_i32 : i32 to index
    %c0_95 = arith.constant 0 : index
    %c0_96 = arith.constant 0 : index
    %311 = vector.load %arg12[%310, %c0_95, %c0_96] : memref<8x8x16xf32, #tpu.memory_space<vmem>>, vector<1x8x16xf32>
    %312 = vector.shape_cast %311 : vector<1x8x16xf32> to vector<8x16xf32>
    %313 = vector.shape_cast %309 : vector<8x16xf32> to vector<1x8x16xf32>
    tpu.vector_store %arg12[%310, %c0_95, %c0_96], %313 {strides = array<i32>} : memref<8x8x16xf32, #tpu.memory_space<vmem>>, vector<1x8x16xf32>,
    %314 = arith.index_cast %c4_i32 : i32 to index
    %c0_97 = arith.constant 0 : index
    %c0_98 = arith.constant 0 : index
    %315 = vector.load %arg13[%314, %c0_97, %c0_98] : memref<8x8x8xf32, #tpu.memory_space<vmem>>, vector<1x8x8xf32>
    %316 = vector.shape_cast %315 : vector<1x8x8xf32> to vector<8x8xf32>
    %317 = vector.shape_cast %301 : vector<8x8xf32> to vector<1x8x8xf32>
    tpu.vector_store %arg13[%314, %c0_97, %c0_98], %317 {strides = array<i32>} : memref<8x8x8xf32, #tpu.memory_space<vmem>>, vector<1x8x8xf32>,
    %c5_i32 = arith.constant 5 : i32
    %318 = tpu.concatenate %309, %285 in 1 : vector<8x16xf32>, vector<8x32xf32> -> vector<8x48xf32>
    %cst_99 = arith.constant dense<0.000000e+00> : vector<8x128xf32>
    %319 = tpu.matmul %318, %3, %cst_99 {dimension_numbers = #tpu.dot_dimension_numbers<[1], [0], [0], [1], [0, 0, 1, 1], [], []>} : vector<8x48xf32>, vector<48x128xf32>, vector<8x128xf32> -> vector<8x128xf32>
    %320 = arith.addf %319, %8 : vector<8x128xf32>
    %321 = vector.extract_strided_slice %320 {offsets = [0, 0], sizes = [8, 32], strides = [1, 1]} : vector<8x128xf32> to vector<8x32xf32>
    %322 = arith.negf %321 : vector<8x32xf32>
    %323 = math.exp %322 : vector<8x32xf32>
    %cst_100 = arith.constant 1.000000e+00 : f32
    %324 = vector.broadcast %cst_100 : f32 to vector<8x32xf32>
    %325 = arith.addf %324, %323 : vector<8x32xf32>
    %326 = arith.divf %324, %325 : vector<8x32xf32>
    %327 = vector.extract_strided_slice %320 {offsets = [0, 32], sizes = [8, 32], strides = [1, 1]} : vector<8x128xf32> to vector<8x32xf32>
    %328 = arith.negf %327 : vector<8x32xf32>
    %329 = math.exp %328 : vector<8x32xf32>
    %cst_101 = arith.constant 1.000000e+00 : f32
    %330 = vector.broadcast %cst_101 : f32 to vector<8x32xf32>
    %331 = arith.addf %330, %329 : vector<8x32xf32>
    %332 = arith.divf %330, %331 : vector<8x32xf32>
    %333 = vector.extract_strided_slice %320 {offsets = [0, 64], sizes = [8, 32], strides = [1, 1]} : vector<8x128xf32> to vector<8x32xf32>
    %334 = math.tanh %333 : vector<8x32xf32>
    %335 = vector.extract_strided_slice %320 {offsets = [0, 96], sizes = [8, 32], strides = [1, 1]} : vector<8x128xf32> to vector<8x32xf32>
    %336 = arith.negf %335 : vector<8x32xf32>
    %337 = math.exp %336 : vector<8x32xf32>
    %cst_102 = arith.constant 1.000000e+00 : f32
    %338 = vector.broadcast %cst_102 : f32 to vector<8x32xf32>
    %339 = arith.addf %338, %337 : vector<8x32xf32>
    %340 = arith.divf %338, %339 : vector<8x32xf32>
    %341 = arith.mulf %332, %283 : vector<8x32xf32>
    %342 = arith.mulf %326, %334 : vector<8x32xf32>
    %343 = arith.addf %341, %342 : vector<8x32xf32>
    %344 = math.tanh %343 : vector<8x32xf32>
    %345 = arith.mulf %340, %344 : vector<8x32xf32>
    %cst_103 = arith.constant dense<0.000000e+00> : vector<8x32xf32>
    %346 = tpu.matmul %345, %4, %cst_103 {dimension_numbers = #tpu.dot_dimension_numbers<[1], [0], [0], [1], [0, 0, 1, 1], [], []>} : vector<8x32xf32>, vector<32x32xf32>, vector<8x32xf32> -> vector<8x32xf32>
    %347 = arith.addf %346, %11 : vector<8x32xf32>
    %348 = vector.shape_cast %347 : vector<8x32xf32> to vector<8x1x32xf32>
    %349 = vector.broadcast %348 : vector<8x1x32xf32> to vector<8x8x32xf32>
    %350 = arith.mulf %349, %0 : vector<8x8x32xf32>
    %cst_104 = arith.constant dense<0.000000e+00> : vector<8x8xf32>
    %351 = vector.multi_reduction <add>, %350, %cst_104 [2] : vector<8x8x32xf32> to vector<8x8xf32>
    %352 = arith.addf %351, %2 : vector<8x8xf32>
    %cst_105 = arith.constant dense<0xFF800000> : vector<8xf32>
    %353 = vector.multi_reduction <maximumf>, %352, %cst_105 [1] : vector<8x8xf32> to vector<8xf32>
    %354 = vector.shape_cast %353 : vector<8xf32> to vector<8x1xf32>
    %355 = vector.broadcast %354 : vector<8x1xf32> to vector<8x8xf32>
    %356 = arith.subf %352, %355 : vector<8x8xf32>
    %357 = math.exp %356 : vector<8x8xf32>
    %cst_106 = arith.constant dense<0.000000e+00> : vector<8xf32>
    %358 = vector.multi_reduction <add>, %357, %cst_106 [1] : vector<8x8xf32> to vector<8xf32>
    %359 = vector.shape_cast %358 : vector<8xf32> to vector<8x1xf32>
    %360 = vector.broadcast %359 : vector<8x1xf32> to vector<8x8xf32>
    %361 = arith.divf %357, %360 : vector<8x8xf32>
    %362 = vector.shape_cast %361 : vector<8x8xf32> to vector<8x8x1xf32>
    %363 = vector.broadcast %362 : vector<8x8x1xf32> to vector<8x8x32xf32>
    %364 = arith.mulf %363, %1 : vector<8x8x32xf32>
    %cst_107 = arith.constant dense<0.000000e+00> : vector<8x32xf32>
    %365 = vector.multi_reduction <add>, %364, %cst_107 [1] : vector<8x8x32xf32> to vector<8x32xf32>
    %cst_108 = arith.constant dense<0.000000e+00> : vector<8x16xf32>
    %366 = tpu.matmul %365, %5, %cst_108 {dimension_numbers = #tpu.dot_dimension_numbers<[1], [0], [0], [1], [0, 0, 1, 1], [], []>} : vector<8x32xf32>, vector<32x16xf32>, vector<8x16xf32> -> vector<8x16xf32>
    %367 = arith.addf %366, %14 : vector<8x16xf32>
    %cst_109 = arith.constant 0.000000e+00 : f32
    %368 = vector.broadcast %cst_109 : f32 to vector<8x16xf32>
    %369 = arith.maximumf %367, %368 : vector<8x16xf32>
    %370 = arith.index_cast %c5_i32 : i32 to index
    %c0_110 = arith.constant 0 : index
    %c0_111 = arith.constant 0 : index
    %371 = vector.load %arg12[%370, %c0_110, %c0_111] : memref<8x8x16xf32, #tpu.memory_space<vmem>>, vector<1x8x16xf32>
    %372 = vector.shape_cast %371 : vector<1x8x16xf32> to vector<8x16xf32>
    %373 = vector.shape_cast %369 : vector<8x16xf32> to vector<1x8x16xf32>
    tpu.vector_store %arg12[%370, %c0_110, %c0_111], %373 {strides = array<i32>} : memref<8x8x16xf32, #tpu.memory_space<vmem>>, vector<1x8x16xf32>,
    %374 = arith.index_cast %c5_i32 : i32 to index
    %c0_112 = arith.constant 0 : index
    %c0_113 = arith.constant 0 : index
    %375 = vector.load %arg13[%374, %c0_112, %c0_113] : memref<8x8x8xf32, #tpu.memory_space<vmem>>, vector<1x8x8xf32>
    %376 = vector.shape_cast %375 : vector<1x8x8xf32> to vector<8x8xf32>
    %377 = vector.shape_cast %361 : vector<8x8xf32> to vector<1x8x8xf32>
    tpu.vector_store %arg13[%374, %c0_112, %c0_113], %377 {strides = array<i32>} : memref<8x8x8xf32, #tpu.memory_space<vmem>>, vector<1x8x8xf32>,
    %c6_i32 = arith.constant 6 : i32
    %378 = tpu.concatenate %369, %345 in 1 : vector<8x16xf32>, vector<8x32xf32> -> vector<8x48xf32>
    %cst_114 = arith.constant dense<0.000000e+00> : vector<8x128xf32>
    %379 = tpu.matmul %378, %3, %cst_114 {dimension_numbers = #tpu.dot_dimension_numbers<[1], [0], [0], [1], [0, 0, 1, 1], [], []>} : vector<8x48xf32>, vector<48x128xf32>, vector<8x128xf32> -> vector<8x128xf32>
    %380 = arith.addf %379, %8 : vector<8x128xf32>
    %381 = vector.extract_strided_slice %380 {offsets = [0, 0], sizes = [8, 32], strides = [1, 1]} : vector<8x128xf32> to vector<8x32xf32>
    %382 = arith.negf %381 : vector<8x32xf32>
    %383 = math.exp %382 : vector<8x32xf32>
    %cst_115 = arith.constant 1.000000e+00 : f32
    %384 = vector.broadcast %cst_115 : f32 to vector<8x32xf32>
    %385 = arith.addf %384, %383 : vector<8x32xf32>
    %386 = arith.divf %384, %385 : vector<8x32xf32>
    %387 = vector.extract_strided_slice %380 {offsets = [0, 32], sizes = [8, 32], strides = [1, 1]} : vector<8x128xf32> to vector<8x32xf32>
    %388 = arith.negf %387 : vector<8x32xf32>
    %389 = math.exp %388 : vector<8x32xf32>
    %cst_116 = arith.constant 1.000000e+00 : f32
    %390 = vector.broadcast %cst_116 : f32 to vector<8x32xf32>
    %391 = arith.addf %390, %389 : vector<8x32xf32>
    %392 = arith.divf %390, %391 : vector<8x32xf32>
    %393 = vector.extract_strided_slice %380 {offsets = [0, 64], sizes = [8, 32], strides = [1, 1]} : vector<8x128xf32> to vector<8x32xf32>
    %394 = math.tanh %393 : vector<8x32xf32>
    %395 = vector.extract_strided_slice %380 {offsets = [0, 96], sizes = [8, 32], strides = [1, 1]} : vector<8x128xf32> to vector<8x32xf32>
    %396 = arith.negf %395 : vector<8x32xf32>
    %397 = math.exp %396 : vector<8x32xf32>
    %cst_117 = arith.constant 1.000000e+00 : f32
    %398 = vector.broadcast %cst_117 : f32 to vector<8x32xf32>
    %399 = arith.addf %398, %397 : vector<8x32xf32>
    %400 = arith.divf %398, %399 : vector<8x32xf32>
    %401 = arith.mulf %392, %343 : vector<8x32xf32>
    %402 = arith.mulf %386, %394 : vector<8x32xf32>
    %403 = arith.addf %401, %402 : vector<8x32xf32>
    %404 = math.tanh %403 : vector<8x32xf32>
    %405 = arith.mulf %400, %404 : vector<8x32xf32>
    %cst_118 = arith.constant dense<0.000000e+00> : vector<8x32xf32>
    %406 = tpu.matmul %405, %4, %cst_118 {dimension_numbers = #tpu.dot_dimension_numbers<[1], [0], [0], [1], [0, 0, 1, 1], [], []>} : vector<8x32xf32>, vector<32x32xf32>, vector<8x32xf32> -> vector<8x32xf32>
    %407 = arith.addf %406, %11 : vector<8x32xf32>
    %408 = vector.shape_cast %407 : vector<8x32xf32> to vector<8x1x32xf32>
    %409 = vector.broadcast %408 : vector<8x1x32xf32> to vector<8x8x32xf32>
    %410 = arith.mulf %409, %0 : vector<8x8x32xf32>
    %cst_119 = arith.constant dense<0.000000e+00> : vector<8x8xf32>
    %411 = vector.multi_reduction <add>, %410, %cst_119 [2] : vector<8x8x32xf32> to vector<8x8xf32>
    %412 = arith.addf %411, %2 : vector<8x8xf32>
    %cst_120 = arith.constant dense<0xFF800000> : vector<8xf32>
    %413 = vector.multi_reduction <maximumf>, %412, %cst_120 [1] : vector<8x8xf32> to vector<8xf32>
    %414 = vector.shape_cast %413 : vector<8xf32> to vector<8x1xf32>
    %415 = vector.broadcast %414 : vector<8x1xf32> to vector<8x8xf32>
    %416 = arith.subf %412, %415 : vector<8x8xf32>
    %417 = math.exp %416 : vector<8x8xf32>
    %cst_121 = arith.constant dense<0.000000e+00> : vector<8xf32>
    %418 = vector.multi_reduction <add>, %417, %cst_121 [1] : vector<8x8xf32> to vector<8xf32>
    %419 = vector.shape_cast %418 : vector<8xf32> to vector<8x1xf32>
    %420 = vector.broadcast %419 : vector<8x1xf32> to vector<8x8xf32>
    %421 = arith.divf %417, %420 : vector<8x8xf32>
    %422 = vector.shape_cast %421 : vector<8x8xf32> to vector<8x8x1xf32>
    %423 = vector.broadcast %422 : vector<8x8x1xf32> to vector<8x8x32xf32>
    %424 = arith.mulf %423, %1 : vector<8x8x32xf32>
    %cst_122 = arith.constant dense<0.000000e+00> : vector<8x32xf32>
    %425 = vector.multi_reduction <add>, %424, %cst_122 [1] : vector<8x8x32xf32> to vector<8x32xf32>
    %cst_123 = arith.constant dense<0.000000e+00> : vector<8x16xf32>
    %426 = tpu.matmul %425, %5, %cst_123 {dimension_numbers = #tpu.dot_dimension_numbers<[1], [0], [0], [1], [0, 0, 1, 1], [], []>} : vector<8x32xf32>, vector<32x16xf32>, vector<8x16xf32> -> vector<8x16xf32>
    %427 = arith.addf %426, %14 : vector<8x16xf32>
    %cst_124 = arith.constant 0.000000e+00 : f32
    %428 = vector.broadcast %cst_124 : f32 to vector<8x16xf32>
    %429 = arith.maximumf %427, %428 : vector<8x16xf32>
    %430 = arith.index_cast %c6_i32 : i32 to index
    %c0_125 = arith.constant 0 : index
    %c0_126 = arith.constant 0 : index
    %431 = vector.load %arg12[%430, %c0_125, %c0_126] : memref<8x8x16xf32, #tpu.memory_space<vmem>>, vector<1x8x16xf32>
    %432 = vector.shape_cast %431 : vector<1x8x16xf32> to vector<8x16xf32>
    %433 = vector.shape_cast %429 : vector<8x16xf32> to vector<1x8x16xf32>
    tpu.vector_store %arg12[%430, %c0_125, %c0_126], %433 {strides = array<i32>} : memref<8x8x16xf32, #tpu.memory_space<vmem>>, vector<1x8x16xf32>,
    %434 = arith.index_cast %c6_i32 : i32 to index
    %c0_127 = arith.constant 0 : index
    %c0_128 = arith.constant 0 : index
    %435 = vector.load %arg13[%434, %c0_127, %c0_128] : memref<8x8x8xf32, #tpu.memory_space<vmem>>, vector<1x8x8xf32>
    %436 = vector.shape_cast %435 : vector<1x8x8xf32> to vector<8x8xf32>
    %437 = vector.shape_cast %421 : vector<8x8xf32> to vector<1x8x8xf32>
    tpu.vector_store %arg13[%434, %c0_127, %c0_128], %437 {strides = array<i32>} : memref<8x8x8xf32, #tpu.memory_space<vmem>>, vector<1x8x8xf32>,
    %c7_i32 = arith.constant 7 : i32
    %438 = tpu.concatenate %429, %405 in 1 : vector<8x16xf32>, vector<8x32xf32> -> vector<8x48xf32>
    %cst_129 = arith.constant dense<0.000000e+00> : vector<8x128xf32>
    %439 = tpu.matmul %438, %3, %cst_129 {dimension_numbers = #tpu.dot_dimension_numbers<[1], [0], [0], [1], [0, 0, 1, 1], [], []>} : vector<8x48xf32>, vector<48x128xf32>, vector<8x128xf32> -> vector<8x128xf32>
    %440 = arith.addf %439, %8 : vector<8x128xf32>
    %441 = vector.extract_strided_slice %440 {offsets = [0, 0], sizes = [8, 32], strides = [1, 1]} : vector<8x128xf32> to vector<8x32xf32>
    %442 = arith.negf %441 : vector<8x32xf32>
    %443 = math.exp %442 : vector<8x32xf32>
    %cst_130 = arith.constant 1.000000e+00 : f32
    %444 = vector.broadcast %cst_130 : f32 to vector<8x32xf32>
    %445 = arith.addf %444, %443 : vector<8x32xf32>
    %446 = arith.divf %444, %445 : vector<8x32xf32>
    %447 = vector.extract_strided_slice %440 {offsets = [0, 32], sizes = [8, 32], strides = [1, 1]} : vector<8x128xf32> to vector<8x32xf32>
    %448 = arith.negf %447 : vector<8x32xf32>
    %449 = math.exp %448 : vector<8x32xf32>
    %cst_131 = arith.constant 1.000000e+00 : f32
    %450 = vector.broadcast %cst_131 : f32 to vector<8x32xf32>
    %451 = arith.addf %450, %449 : vector<8x32xf32>
    %452 = arith.divf %450, %451 : vector<8x32xf32>
    %453 = vector.extract_strided_slice %440 {offsets = [0, 64], sizes = [8, 32], strides = [1, 1]} : vector<8x128xf32> to vector<8x32xf32>
    %454 = math.tanh %453 : vector<8x32xf32>
    %455 = vector.extract_strided_slice %440 {offsets = [0, 96], sizes = [8, 32], strides = [1, 1]} : vector<8x128xf32> to vector<8x32xf32>
    %456 = arith.negf %455 : vector<8x32xf32>
    %457 = math.exp %456 : vector<8x32xf32>
    %cst_132 = arith.constant 1.000000e+00 : f32
    %458 = vector.broadcast %cst_132 : f32 to vector<8x32xf32>
    %459 = arith.addf %458, %457 : vector<8x32xf32>
    %460 = arith.divf %458, %459 : vector<8x32xf32>
    %461 = arith.mulf %452, %403 : vector<8x32xf32>
    %462 = arith.mulf %446, %454 : vector<8x32xf32>
    %463 = arith.addf %461, %462 : vector<8x32xf32>
    %464 = math.tanh %463 : vector<8x32xf32>
    %465 = arith.mulf %460, %464 : vector<8x32xf32>
    %cst_133 = arith.constant dense<0.000000e+00> : vector<8x32xf32>
    %466 = tpu.matmul %465, %4, %cst_133 {dimension_numbers = #tpu.dot_dimension_numbers<[1], [0], [0], [1], [0, 0, 1, 1], [], []>} : vector<8x32xf32>, vector<32x32xf32>, vector<8x32xf32> -> vector<8x32xf32>
    %467 = arith.addf %466, %11 : vector<8x32xf32>
    %468 = vector.shape_cast %467 : vector<8x32xf32> to vector<8x1x32xf32>
    %469 = vector.broadcast %468 : vector<8x1x32xf32> to vector<8x8x32xf32>
    %470 = arith.mulf %469, %0 : vector<8x8x32xf32>
    %cst_134 = arith.constant dense<0.000000e+00> : vector<8x8xf32>
    %471 = vector.multi_reduction <add>, %470, %cst_134 [2] : vector<8x8x32xf32> to vector<8x8xf32>
    %472 = arith.addf %471, %2 : vector<8x8xf32>
    %cst_135 = arith.constant dense<0xFF800000> : vector<8xf32>
    %473 = vector.multi_reduction <maximumf>, %472, %cst_135 [1] : vector<8x8xf32> to vector<8xf32>
    %474 = vector.shape_cast %473 : vector<8xf32> to vector<8x1xf32>
    %475 = vector.broadcast %474 : vector<8x1xf32> to vector<8x8xf32>
    %476 = arith.subf %472, %475 : vector<8x8xf32>
    %477 = math.exp %476 : vector<8x8xf32>
    %cst_136 = arith.constant dense<0.000000e+00> : vector<8xf32>
    %478 = vector.multi_reduction <add>, %477, %cst_136 [1] : vector<8x8xf32> to vector<8xf32>
    %479 = vector.shape_cast %478 : vector<8xf32> to vector<8x1xf32>
    %480 = vector.broadcast %479 : vector<8x1xf32> to vector<8x8xf32>
    %481 = arith.divf %477, %480 : vector<8x8xf32>
    %482 = vector.shape_cast %481 : vector<8x8xf32> to vector<8x8x1xf32>
    %483 = vector.broadcast %482 : vector<8x8x1xf32> to vector<8x8x32xf32>
    %484 = arith.mulf %483, %1 : vector<8x8x32xf32>
    %cst_137 = arith.constant dense<0.000000e+00> : vector<8x32xf32>
    %485 = vector.multi_reduction <add>, %484, %cst_137 [1] : vector<8x8x32xf32> to vector<8x32xf32>
    %cst_138 = arith.constant dense<0.000000e+00> : vector<8x16xf32>
    %486 = tpu.matmul %485, %5, %cst_138 {dimension_numbers = #tpu.dot_dimension_numbers<[1], [0], [0], [1], [0, 0, 1, 1], [], []>} : vector<8x32xf32>, vector<32x16xf32>, vector<8x16xf32> -> vector<8x16xf32>
    %487 = arith.addf %486, %14 : vector<8x16xf32>
    %cst_139 = arith.constant 0.000000e+00 : f32
    %488 = vector.broadcast %cst_139 : f32 to vector<8x16xf32>
    %489 = arith.maximumf %487, %488 : vector<8x16xf32>
    %490 = arith.index_cast %c7_i32 : i32 to index
    %c0_140 = arith.constant 0 : index
    %c0_141 = arith.constant 0 : index
    %491 = vector.load %arg12[%490, %c0_140, %c0_141] : memref<8x8x16xf32, #tpu.memory_space<vmem>>, vector<1x8x16xf32>
    %492 = vector.shape_cast %491 : vector<1x8x16xf32> to vector<8x16xf32>
    %493 = vector.shape_cast %489 : vector<8x16xf32> to vector<1x8x16xf32>
    tpu.vector_store %arg12[%490, %c0_140, %c0_141], %493 {strides = array<i32>} : memref<8x8x16xf32, #tpu.memory_space<vmem>>, vector<1x8x16xf32>,
    %494 = arith.index_cast %c7_i32 : i32 to index
    %c0_142 = arith.constant 0 : index
    %c0_143 = arith.constant 0 : index
    %495 = vector.load %arg13[%494, %c0_142, %c0_143] : memref<8x8x8xf32, #tpu.memory_space<vmem>>, vector<1x8x8xf32>
    %496 = vector.shape_cast %495 : vector<1x8x8xf32> to vector<8x8xf32>
    %497 = vector.shape_cast %481 : vector<8x8xf32> to vector<1x8x8xf32>
    tpu.vector_store %arg13[%494, %c0_142, %c0_143], %497 {strides = array<i32>} : memref<8x8x8xf32, #tpu.memory_space<vmem>>, vector<1x8x8xf32>,
    %c8_i32 = arith.constant 8 : i32
    return
  }
}

</mosaic_0001>

<llo_original>
// kernel: tpu_custom_call.1
$region0: #{tpu_custom_call.1}
  #allocation0 [shape = 'u32[]', space=smem, size = 0x4, offset = 0x4, fixed_abs, tag = 'smem constant byte address 0x4 - core index']
  #allocation1 [shape = 'u32[144,128]{1,0:T(1,128)}', space=vmem, size = 0x12000, scoped, tag = 'internal scratch']
  %s0 = inlined_call_operand.hbm [shape: f32[8,16], index: 0, kind: input, shape index: {}]
  %s1 = inlined_call_operand.hbm [shape: f32[8,32], index: 1, kind: input, shape index: {}]
  %s2 = inlined_call_operand.hbm [shape: f32[8,32], index: 2, kind: input, shape index: {}]
  %s3 = inlined_call_operand.hbm [shape: f32[8,8,32], index: 3, kind: input, shape index: {}]
  %s4 = inlined_call_operand.hbm [shape: f32[8,8,32], index: 4, kind: input, shape index: {}]
  %s5 = inlined_call_operand.hbm [shape: f32[8,8], index: 5, kind: input, shape index: {}]
  %s6 = inlined_call_operand.vmem [shape: f32[48,128], index: 6, kind: input, shape index: {}]
  %s7 = inlined_call_operand.vmem [shape: f32[1,128], index: 7, kind: input, shape index: {}]
  %s8 = inlined_call_operand.hbm [shape: f32[32,32], index: 8, kind: input, shape index: {}]
  %s9 = inlined_call_operand.vmem [shape: f32[1,32], index: 9, kind: input, shape index: {}]
  %s10 = inlined_call_operand.vmem [shape: f32[32,16], index: 10, kind: input, shape index: {}]
  %s11 = inlined_call_operand.vmem [shape: f32[1,16], index: 11, kind: input, shape index: {}]
  %s12 = inlined_call_operand.hbm [shape: f32[8,8,16], index: 12, kind: output, shape index: {0}]
  %s13 = inlined_call_operand.hbm [shape: f32[8,8,8], index: 13, kind: output, shape index: {1}]
  %14 = xla_tuple %s12, %s13
  %s15 = sld [smem:[#allocation0]]
  $region94: #{tpu_custom_call.1} parent=0
    _
  %s17 = ssub.s32 1, %s15
  %s18 = scalar_select 0, %s17, %s15
  $region1: #{tpu_custom_call.1} parent=0
    #allocation2 [shape = 'u8[4096]{0}', space=vmem, size = 0x1000, scoped, tag = 'input window, operand 0, single buffered']
    #allocation3 [shape = 's32[1]{0}', space=sflag, size = 0x4, scoped, tag = 'scoped memory for tpu_custom_call.1']
    #allocation4 [shape = 's32[1]{0}', space=sflag, size = 0x4, scoped, tag = 'scoped memory for tpu_custom_call.1']
    #allocation5 [shape = 'u8[4096]{0}', space=vmem, size = 0x1000, scoped, tag = 'input window, operand 1, single buffered']
    #allocation6 [shape = 's32[1]{0}', space=sflag, size = 0x4, scoped, tag = 'scoped memory for tpu_custom_call.1']
    #allocation7 [shape = 'u8[4096]{0}', space=vmem, size = 0x1000, scoped, tag = 'input window, operand 2, single buffered']
    #allocation8 [shape = 'u8[32768]{0}', space=vmem, size = 0x8000, scoped, tag = 'input window, operand 3, single buffered']
    #allocation9 [shape = 's32[1]{0}', space=sflag, size = 0x4, scoped, tag = 'scoped memory for tpu_custom_call.1']
    #allocation10 [shape = 'u8[32768]{0}', space=vmem, size = 0x8000, scoped, tag = 'input window, operand 4, single buffered']
    #allocation11 [shape = 'u8[4096]{0}', space=vmem, size = 0x1000, scoped, tag = 'input window, operand 5, single buffered']
    #allocation12 [shape = 's32[1]{0}', space=sflag, size = 0x4, scoped, tag = 'scoped memory for tpu_custom_call.1']
    #allocation13 [shape = 'u8[16384]{0}', space=vmem, size = 0x4000, scoped, tag = 'input window, operand 8, single buffered']
    #allocation14 [shape = 'u8[32768]{0}', space=vmem, size = 0x8000, scoped, tag = 'output window, operand 0, single buffered']
    #allocation15 [shape = 'u8[32768]{0}', space=vmem, size = 0x8000, scoped, tag = 'output window, operand 1, single buffered']
    #allocation16 [shape = 's32[1]{0}', space=sflag, size = 0x4, scoped, tag = 'scoped memory for tpu_custom_call.1']
    %19 = vsyncpa [#allocation3], 0
    %20 = vsyncpa [#allocation6], 0
    %21 = vsyncpa [#allocation9], 0
    %22 = vsyncpa [#allocation12], 0
    %23 = vsyncpa [#allocation4], 0
    %24 = vsyncpa [#allocation16], 0
    // Predicated region
    $region2: #{tpu_custom_call.1} parent=1 // pred_check
      _
    $region3: #{tpu_custom_call.1} parent=1 // pred_check_branch
      %26 = sbr.rel (0) target = $region5
    $region4: #{tpu_custom_call.1} parent=1 // pred_region
      %s28 = ssub.s32 128, 128
      %29 = vsyncadd [#allocation3], %s28
      %s31 = sshll.u32 [#allocation2], 4
      %s32 = int_to_ptr.vmem [resolvable:$true] %s31
      %34 = dma.hbm_to_vmem [thread:$0]  %s0, 128, %s32, [#allocation3]
    $region5: #{tpu_custom_call.1} parent=1 // pred_fallthru
      _
    // Predicated region
    $region6: #{tpu_custom_call.1} parent=1 // pred_check
      _
    $region7: #{tpu_custom_call.1} parent=1 // pred_check_branch
      %36 = sbr.rel (0) target = $region9
    $region8: #{tpu_custom_call.1} parent=1 // pred_region
      %s38 = ssub.s32 128, 128
      %39 = vsyncadd [#allocation6], %s38
      %s41 = sshll.u32 [#allocation5], 4
      %s42 = int_to_ptr.vmem [resolvable:$true] %s41
      %44 = dma.hbm_to_vmem [thread:$0]  %s1, 128, %s42, [#allocation6]
    $region9: #{tpu_custom_call.1} parent=1 // pred_fallthru
      _
    // Predicated region
    $region10: #{tpu_custom_call.1} parent=1 // pred_check
      _
    $region11: #{tpu_custom_call.1} parent=1 // pred_check_branch
      %46 = sbr.rel (0) target = $region13
    $region12: #{tpu_custom_call.1} parent=1 // pred_region
      %s48 = ssub.s32 128, 128
      %49 = vsyncadd [#allocation6], %s48
      %s51 = sshll.u32 [#allocation7], 4
      %s52 = int_to_ptr.vmem [resolvable:$true] %s51
      %54 = dma.hbm_to_vmem [thread:$0]  %s2, 128, %s52, [#allocation6]
    $region13: #{tpu_custom_call.1} parent=1 // pred_fallthru
      _
    // Predicated region
    $region14: #{tpu_custom_call.1} parent=1 // pred_check
      _
    $region15: #{tpu_custom_call.1} parent=1 // pred_check_branch
      %56 = sbr.rel (0) target = $region17
    $region16: #{tpu_custom_call.1} parent=1 // pred_region
      %s58 = ssub.s32 1024, 1024
      %59 = vsyncadd [#allocation9], %s58
      %s60 = sshll.u32 [#allocation8], 4
      %s61 = int_to_ptr.vmem [resolvable:$true] %s60
      %66 = dma.hbm_to_vmem [thread:$0]  %s3, 1024, %s61, [#allocation9], 128, 128, 8
    $region17: #{tpu_custom_call.1} parent=1 // pred_fallthru
      _
    // Predicated region
    $region18: #{tpu_custom_call.1} parent=1 // pred_check
      _
    $region19: #{tpu_custom_call.1} parent=1 // pred_check_branch
      %68 = sbr.rel (0) target = $region21
    $region20: #{tpu_custom_call.1} parent=1 // pred_region
      %s70 = ssub.s32 1024, 1024
      %71 = vsyncadd [#allocation9], %s70
      %s72 = sshll.u32 [#allocation10], 4
      %s73 = int_to_ptr.vmem [resolvable:$true] %s72
      %78 = dma.hbm_to_vmem [thread:$0]  %s4, 1024, %s73, [#allocation9], 128, 128, 8
    $region21: #{tpu_custom_call.1} parent=1 // pred_fallthru
      _
    // Predicated region
    $region22: #{tpu_custom_call.1} parent=1 // pred_check
      _
    $region23: #{tpu_custom_call.1} parent=1 // pred_check_branch
      %80 = sbr.rel (0) target = $region25
    $region24: #{tpu_custom_call.1} parent=1 // pred_region
      %s82 = ssub.s32 128, 128
      %83 = vsyncadd [#allocation12], %s82
      %s85 = sshll.u32 [#allocation11], 4
      %s86 = int_to_ptr.vmem [resolvable:$true] %s85
      %88 = dma.hbm_to_vmem [thread:$0]  %s5, 128, %s86, [#allocation12]
    $region25: #{tpu_custom_call.1} parent=1 // pred_fallthru
      _
    // Predicated region
    $region26: #{tpu_custom_call.1} parent=1 // pred_check
      _
    $region27: #{tpu_custom_call.1} parent=1 // pred_check_branch
      %90 = sbr.rel (0) target = $region29
    $region28: #{tpu_custom_call.1} parent=1 // pred_region
      _
    $region29: #{tpu_custom_call.1} parent=1 // pred_fallthru
      _
    // Predicated region
    $region30: #{tpu_custom_call.1} parent=1 // pred_check
      _
    $region31: #{tpu_custom_call.1} parent=1 // pred_check_branch
      %92 = sbr.rel (0) target = $region33
    $region32: #{tpu_custom_call.1} parent=1 // pred_region
      _
    $region33: #{tpu_custom_call.1} parent=1 // pred_fallthru
      _
    // Predicated region
    $region34: #{tpu_custom_call.1} parent=1 // pred_check
      _
    $region35: #{tpu_custom_call.1} parent=1 // pred_check_branch
      %94 = sbr.rel (0) target = $region37
    $region36: #{tpu_custom_call.1} parent=1 // pred_region
      %s96 = ssub.s32 512, 512
      %97 = vsyncadd [#allocation12], %s96
      %s98 = sshll.u32 [#allocation13], 4
      %s99 = int_to_ptr.vmem [resolvable:$true] %s98
      %104 = dma.hbm_to_vmem [thread:$0]  %s8, 512, %s99, [#allocation12], 128, 128, 8
    $region37: #{tpu_custom_call.1} parent=1 // pred_fallthru
      _
    // Predicated region
    $region38: #{tpu_custom_call.1} parent=1 // pred_check
      _
    $region39: #{tpu_custom_call.1} parent=1 // pred_check_branch
      %106 = sbr.rel (0) target = $region41
    $region40: #{tpu_custom_call.1} parent=1 // pred_region
      _
    $region41: #{tpu_custom_call.1} parent=1 // pred_fallthru
      _
    // Predicated region
    $region42: #{tpu_custom_call.1} parent=1 // pred_check
      _
    $region43: #{tpu_custom_call.1} parent=1 // pred_check_branch
      %108 = sbr.rel (0) target = $region45
    $region44: #{tpu_custom_call.1} parent=1 // pred_region
      _
    $region45: #{tpu_custom_call.1} parent=1 // pred_fallthru
      _
    // Predicated region
    $region46: #{tpu_custom_call.1} parent=1 // pred_check
      _
    $region47: #{tpu_custom_call.1} parent=1 // pred_check_branch
      %110 = sbr.rel (0) target = $region49
    $region48: #{tpu_custom_call.1} parent=1 // pred_region
      _
    $region49: #{tpu_custom_call.1} parent=1 // pred_fallthru
      _
    // Predicated region
    $region50: #{tpu_custom_call.1} parent=1 // pred_check
      _
    $region51: #{tpu_custom_call.1} parent=1 // pred_check_branch
      %112 = sbr.rel (0) target = $region53
    $region52: #{tpu_custom_call.1} parent=1 // pred_region
      %113 = dma.done [#allocation3], 128
    $region53: #{tpu_custom_call.1} parent=1 // pred_fallthru
      _
    // Predicated region
    $region54: #{tpu_custom_call.1} parent=1 // pred_check
      _
    $region55: #{tpu_custom_call.1} parent=1 // pred_check_branch
      %115 = sbr.rel (0) target = $region57
    $region56: #{tpu_custom_call.1} parent=1 // pred_region
      %116 = dma.done [#allocation6], 128
    $region57: #{tpu_custom_call.1} parent=1 // pred_fallthru
      _
    // Predicated region
    $region58: #{tpu_custom_call.1} parent=1 // pred_check
      _
    $region59: #{tpu_custom_call.1} parent=1 // pred_check_branch
      %118 = sbr.rel (0) target = $region61
    $region60: #{tpu_custom_call.1} parent=1 // pred_region
      %119 = dma.done [#allocation6], 128
    $region61: #{tpu_custom_call.1} parent=1 // pred_fallthru
      _
    // Predicated region
    $region62: #{tpu_custom_call.1} parent=1 // pred_check
      _
    $region63: #{tpu_custom_call.1} parent=1 // pred_check_branch
      %121 = sbr.rel (0) target = $region65
    $region64: #{tpu_custom_call.1} parent=1 // pred_region
      %122 = dma.done [#allocation9], 1024
    $region65: #{tpu_custom_call.1} parent=1 // pred_fallthru
      _
    // Predicated region
    $region66: #{tpu_custom_call.1} parent=1 // pred_check
      _
    $region67: #{tpu_custom_call.1} parent=1 // pred_check_branch
      %124 = sbr.rel (0) target = $region69
    $region68: #{tpu_custom_call.1} parent=1 // pred_region
      %125 = dma.done [#allocation9], 1024
    $region69: #{tpu_custom_call.1} parent=1 // pred_fallthru
      _
    // Predicated region
    $region70: #{tpu_custom_call.1} parent=1 // pred_check
      _
    $region71: #{tpu_custom_call.1} parent=1 // pred_check_branch
      %127 = sbr.rel (0) target = $region73
    $region72: #{tpu_custom_call.1} parent=1 // pred_region
      %128 = dma.done [#allocation12], 128
    $region73: #{tpu_custom_call.1} parent=1 // pred_fallthru
      _
    // Predicated region
    $region74: #{tpu_custom_call.1} parent=1 // pred_check
      _
    $region75: #{tpu_custom_call.1} parent=1 // pred_check_branch
      %130 = sbr.rel (0) target = $region77
    $region76: #{tpu_custom_call.1} parent=1 // pred_region
      %131 = dma.done [#allocation12], 512
    $region77: #{tpu_custom_call.1} parent=1 // pred_fallthru
      _
    %v132 = vld [vmem:[#allocation8] sm:$0xff]
    %v133 = vld [vmem:[#allocation8 + $0x8] sm:$0xff]
    %v134 = vld [vmem:[#allocation8 + $0x10] sm:$0xff]
    %v135 = vld [vmem:[#allocation8 + $0x18] sm:$0xff]
    %v136 = vld [vmem:[#allocation8 + $0x20] sm:$0xff]
    %v137 = vld [vmem:[#allocation8 + $0x28] sm:$0xff]
    %v138 = vld [vmem:[#allocation8 + $0x30] sm:$0xff]
    %v139 = vld [vmem:[#allocation8 + $0x38] sm:$0xff]
    %v140 = vld [vmem:[#allocation10] sm:$0xff]
    %v141 = vld [vmem:[#allocation10 + $0x8] sm:$0xff]
    %v142 = vld [vmem:[#allocation10 + $0x10] sm:$0xff]
    %v143 = vld [vmem:[#allocation10 + $0x18] sm:$0xff]
    %v144 = vld [vmem:[#allocation10 + $0x20] sm:$0xff]
    %v145 = vld [vmem:[#allocation10 + $0x28] sm:$0xff]
    %v146 = vld [vmem:[#allocation10 + $0x30] sm:$0xff]
    %v147 = vld [vmem:[#allocation10 + $0x38] sm:$0xff]
    %v148 = vld [vmem:[#allocation11] sm:$0xff]
    %v149 = vld [vmem:[%s6] sm:$0xff]
    %v150 = vld [vmem:[%s6 + $0x8] sm:$0xff]
    %v151 = vld [vmem:[%s6 + $0x10] sm:$0xff]
    %v152 = vld [vmem:[%s6 + $0x18] sm:$0xff]
    %v153 = vld [vmem:[%s6 + $0x20] sm:$0xff]
    %v154 = vld [vmem:[%s6 + $0x28] sm:$0xff]
    %v155 = vld [vmem:[#allocation13] sm:$0xff]
    %v156 = vld [vmem:[#allocation13 + $0x8] sm:$0xff]
    %v157 = vld [vmem:[#allocation13 + $0x10] sm:$0xff]
    %v158 = vld [vmem:[#allocation13 + $0x18] sm:$0xff]
    %v159 = vld [vmem:[%s10] sm:$0xff]
    %v160 = vld [vmem:[%s10 + $0x8] sm:$0xff]
    %v161 = vld [vmem:[%s10 + $0x10] sm:$0xff]
    %v162 = vld [vmem:[%s10 + $0x18] sm:$0xff]
    %v163 = vld [vmem:[%s7] sm:$0x1]
    %v165 = vlaneseq
    %v166 = vshrl.u32 %v165, 7
    %v167 = vsub.s32 0, %v166
    %v168 = vrot.slane %v163, %v167
    %v170 = vld [vmem:[%s9] sm:$0x1]
    %v172 = vlaneseq
    %v173 = vshrl.u32 %v172, 7
    %v174 = vsub.s32 0, %v173
    %v175 = vrot.slane %v170, %v174
    %v177 = vld [vmem:[%s11] sm:$0x1]
    %v179 = vlaneseq
    %v180 = vshrl.u32 %v179, 7
    %v181 = vsub.s32 0, %v180
    %v182 = vrot.slane %v177, %v181
    %v184 = vld [vmem:[#allocation2] sm:$0xff]
    %v185 = vld [vmem:[#allocation5] sm:$0xff]
    %v186 = vld [vmem:[#allocation7] sm:$0xff]
    %188 = vrot.lane.b32.xlu0 %v185, 16
    %v189 = vpop.permute.xlu0 %188
    %vm191 = vcmask 130048
    %v192 = vsel %vm191, %v184, %v189
    %vm193 = vcmask 392192
    %v195 = vsel %vm193, %v192, 0
    %197 = vmatprep.subr.mxu0 0.0
    %198 = vmatpush1.msra.mxu0 0.0
    %199 = vmatprep.subr.mxu0 0.0
    %200 = vmatpush1.msra.mxu0 0.0
    %201 = vmatprep.subr.mxu0 0.0
    %202 = vmatpush1.msra.mxu0 0.0
    %203 = vmatprep.subr.mxu0 0.0
    %204 = vmatpush1.msra.mxu0 0.0
    %205 = vmatprep.subr.mxu0 0.0
    %206 = vmatpush1.msra.mxu0 0.0
    %207 = vmatprep.subr.mxu0 0.0
    %208 = vmatpush1.msra.mxu0 0.0
    %209 = vmatprep.subr.mxu0 0.0
    %210 = vmatpush1.msra.mxu0 0.0
    %211 = vmatprep.subr.mxu0 0.0
    %212 = vmatpush1.msra.mxu0 0.0
    %213 = vmatprep.subr.mxu0 0.0
    %214 = vmatpush1.msra.mxu0 0.0
    %215 = vmatprep.subr.mxu0 0.0
    %216 = vmatpush1.msra.mxu0 0.0
    %217 = vmatprep.subr.mxu0 0.0
    %218 = vmatpush1.msra.mxu0 %v154
    %219 = vmatprep.subr.mxu0 0.0
    %220 = vmatpush1.msra.mxu0 %v153
    %221 = vmatprep.subr.mxu0 0.0
    %222 = vmatpush1.msra.mxu0 %v152
    %223 = vmatprep.subr.mxu0 0.0
    %224 = vmatpush1.msra.mxu0 %v151
    %225 = vmatprep.subr.mxu0 0.0
    %226 = vmatpush1.msra.mxu0 %v150
    %227 = vmatprep.subr.mxu0 0.0
    %228 = vmatpush1.msra.mxu0 %v149
    %229 = vmatprep.subr.mxu0 0.0
    %230 = vmatpush2.msra.mxu0 0.0
    %231 = vmatprep.subr.mxu0 0.0
    %232 = vmatpush2.msra.mxu0 0.0
    %233 = vmatprep.subr.mxu0 0.0
    %234 = vmatpush2.msra.mxu0 0.0
    %235 = vmatprep.subr.mxu0 0.0
    %236 = vmatpush2.msra.mxu0 0.0
    %237 = vmatprep.subr.mxu0 0.0
    %238 = vmatpush2.msra.mxu0 0.0
    %239 = vmatprep.subr.mxu0 0.0
    %240 = vmatpush2.msra.mxu0 0.0
    %241 = vmatprep.subr.mxu0 0.0
    %242 = vmatpush2.msra.mxu0 0.0
    %243 = vmatprep.subr.mxu0 0.0
    %244 = vmatpush2.msra.mxu0 0.0
    %245 = vmatprep.subr.mxu0 0.0
    %246 = vmatpush2.msra.mxu0 0.0
    %247 = vmatprep.subr.mxu0 0.0
    %248 = vmatpush2.msra.mxu0 0.0
    %249 = vmatprep.subr.mxu0 0.0
    %250 = vmatpush2.msra.mxu0 0.0
    %251 = vmatprep.subr.mxu0 0.0
    %252 = vmatpush2.msra.mxu0 0.0
    %253 = vmatprep.subr.mxu0 0.0
    %254 = vmatpush2.msra.mxu0 0.0
    %255 = vmatprep.subr.mxu0 0.0
    %256 = vmatpush2.msra.mxu0 0.0
    %257 = vmatprep.subr.mxu0 0.0
    %258 = vmatpush2.msra.mxu0 0.0
    %259 = vmatprep.subr.mxu0 0.0
    %260 = vmatpush2.msra.mxu0 0.0
    %261 = vmatprep.mubr.f32.mxu0 0.0
    %262 = vmatmul.mubr.f32.gmra.mxu0 %v195
    %v263 = vpop.f32.mrf.mxu0
    %v264 = vadd.f32 %v168, %v263
    %v265 = vpop.f32.mrf.mxu0
    %266 = vdwg.mxu0
    %v267 = vxor.u32 %v264, 2147483648
    %v268 = vmul.f32 %v267, 1.442695
    %v269 = vpow.pop %v268
    %v270 = vadd.f32 %v269, 1.0
    %v271 = vrcp.pop %v270
    %v272 = vmul.f32 1.0, %v271
    %v273 = vtanh.pop %v264
    %275 = vrot.lane.b32.xlu0 %v186, 32
    %v276 = vpop.permute.xlu0 %275
    %v278 = vmul.f32 %v272, %v276
    %280 = vrot.lane.b32.xlu0 %v273, 64
    %v281 = vpop.permute.xlu0 %280
    %v283 = vmul.f32 %v272, %v281
    %285 = vrot.lane.b32.xlu0 %v283, 32
    %v286 = vpop.permute.xlu0 %285
    %v288 = vadd.f32 %v278, %v286
    %v289 = vtanh.pop %v288
    %291 = vrot.lane.b32.xlu0 %v289, 64
    %v292 = vpop.permute.xlu0 %291
    %v294 = vmul.f32 %v272, %v292
    %296 = vrot.lane.b32.xlu0 %v294, 32
    %v297 = vpop.permute.xlu0 %296
    %vm298 = vcmask 261120
    %v299 = vsel %vm298, %v297, 0
    %301 = vmatprep.subr.mxu0 0.0
    %302 = vmatpush1.msra.mxu0 0.0
    %303 = vmatprep.subr.mxu0 0.0
    %304 = vmatpush1.msra.mxu0 0.0
    %305 = vmatprep.subr.mxu0 0.0
    %306 = vmatpush1.msra.mxu0 0.0
    %307 = vmatprep.subr.mxu0 0.0
    %308 = vmatpush1.msra.mxu0 0.0
    %309 = vmatprep.subr.mxu0 0.0
    %310 = vmatpush1.msra.mxu0 0.0
    %311 = vmatprep.subr.mxu0 0.0
    %312 = vmatpush1.msra.mxu0 0.0
    %313 = vmatprep.subr.mxu0 0.0
    %314 = vmatpush1.msra.mxu0 0.0
    %315 = vmatprep.subr.mxu0 0.0
    %316 = vmatpush1.msra.mxu0 0.0
    %317 = vmatprep.subr.mxu0 0.0
    %318 = vmatpush1.msra.mxu0 0.0
    %319 = vmatprep.subr.mxu0 0.0
    %320 = vmatpush1.msra.mxu0 0.0
    %321 = vmatprep.subr.mxu0 0.0
    %322 = vmatpush1.msra.mxu0 0.0
    %323 = vmatprep.subr.mxu0 0.0
    %324 = vmatpush1.msra.mxu0 0.0
    %325 = vmatprep.subr.mxu0 0.0
    %326 = vmatpush1.msra.mxu0 %v158
    %327 = vmatprep.subr.mxu0 0.0
    %328 = vmatpush1.msra.mxu0 %v157
    %329 = vmatprep.subr.mxu0 0.0
    %330 = vmatpush1.msra.mxu0 %v156
    %331 = vmatprep.subr.mxu0 0.0
    %332 = vmatpush1.msra.mxu0 %v155
    %333 = vmatprep.subr.mxu0 0.0
    %334 = vmatpush2.msra.mxu0 0.0
    %335 = vmatprep.subr.mxu0 0.0
    %336 = vmatpush2.msra.mxu0 0.0
    %337 = vmatprep.subr.mxu0 0.0
    %338 = vmatpush2.msra.mxu0 0.0
    %339 = vmatprep.subr.mxu0 0.0
    %340 = vmatpush2.msra.mxu0 0.0
    %341 = vmatprep.subr.mxu0 0.0
    %342 = vmatpush2.msra.mxu0 0.0
    %343 = vmatprep.subr.mxu0 0.0
    %344 = vmatpush2.msra.mxu0 0.0
    %345 = vmatprep.subr.mxu0 0.0
    %346 = vmatpush2.msra.mxu0 0.0
    %347 = vmatprep.subr.mxu0 0.0
    %348 = vmatpush2.msra.mxu0 0.0
    %349 = vmatprep.subr.mxu0 0.0
    %350 = vmatpush2.msra.mxu0 0.0
    %351 = vmatprep.subr.mxu0 0.0
    %352 = vmatpush2.msra.mxu0 0.0
    %353 = vmatprep.subr.mxu0 0.0
    %354 = vmatpush2.msra.mxu0 0.0
    %355 = vmatprep.subr.mxu0 0.0
    %356 = vmatpush2.msra.mxu0 0.0
    %357 = vmatprep.subr.mxu0 0.0
    %358 = vmatpush2.msra.mxu0 0.0
    %359 = vmatprep.subr.mxu0 0.0
    %360 = vmatpush2.msra.mxu0 0.0
    %361 = vmatprep.subr.mxu0 0.0
    %362 = vmatpush2.msra.mxu0 0.0
    %363 = vmatprep.subr.mxu0 0.0
    %364 = vmatpush2.msra.mxu0 0.0
    %365 = vmatprep.mubr.f32.mxu0 0.0
    %366 = vmatmul.mubr.f32.gmra.mxu0 %v299
    %v367 = vpop.f32.mrf.mxu0
    %v368 = vadd.f32 %v175, %v367
    %v369 = vpop.f32.mrf.mxu0
    %370 = vdwg.mxu0
    %v372 = vcombine.high %v368, %v368
    %v374 = vunpack.c.l.s4 1966171168
    %v375 = vunpack.c.0.s8 %v374
    %v376 = vlaneseq
    %v377 = vshrl.u32 %v376, 7
    %v378 = vsub.s32 %v375, %v377
    %v379 = vrot.slane %v368, %v378
    %v381 = vunpack.c.l.s4 1966171168
    %v382 = vunpack.c.0.s8 %v381
    %v383 = vlaneseq
    %v384 = vshrl.u32 %v383, 7
    %v385 = vsub.s32 %v382, %v384
    %v386 = vrot.slane %v372, %v385
    %v387 = vcombine.high %v379, %v379
    %v388 = vcombine.high %v386, %v386
    %v390 = vunpack.c.l.s4 1966171168
    %v391 = vunpack.c.0.s8 %v390
    %v392 = vlaneseq
    %v393 = vshrl.u32 %v392, 7
    %v394 = vsub.s32 %v391, %v393
    %v395 = vrot.slane %v379, %v394
    %v397 = vunpack.c.l.s4 1966171168
    %v398 = vunpack.c.0.s8 %v397
    %v399 = vlaneseq
    %v400 = vshrl.u32 %v399, 7
    %v401 = vsub.s32 %v398, %v400
    %v402 = vrot.slane %v386, %v401
    %v404 = vunpack.c.l.s4 1966171168
    %v405 = vunpack.c.0.s8 %v404
    %v406 = vlaneseq
    %v407 = vshrl.u32 %v406, 7
    %v408 = vsub.s32 %v405, %v407
    %v409 = vrot.slane %v387, %v408
    %v411 = vunpack.c.l.s4 1966171168
    %v412 = vunpack.c.0.s8 %v411
    %v413 = vlaneseq
    %v414 = vshrl.u32 %v413, 7
    %v415 = vsub.s32 %v412, %v414
    %v416 = vrot.slane %v388, %v415
    %v417 = vcombine.high %v395, %v395
    %v418 = vcombine.high %v402, %v402
    %v419 = vcombine.high %v409, %v409
    %v420 = vcombine.high %v416, %v416
    %v421 = vlaneseq
    %v422 = vshrl.u32 %v421, 7
    %v423 = vsub.s32 0, %v422
    %v424 = vrot.slane %v395, %v423
    %v425 = vlaneseq
    %v426 = vshrl.u32 %v425, 7
    %v427 = vsub.s32 0, %v426
    %v428 = vrot.slane %v409, %v427
    %v429 = vlaneseq
    %v430 = vshrl.u32 %v429, 7
    %v431 = vsub.s32 0, %v430
    %v432 = vrot.slane %v417, %v431
    %v433 = vlaneseq
    %v434 = vshrl.u32 %v433, 7
    %v435 = vsub.s32 0, %v434
    %v436 = vrot.slane %v419, %v435
    %v437 = vlaneseq
    %v438 = vshrl.u32 %v437, 7
    %v439 = vsub.s32 0, %v438
    %v440 = vrot.slane %v402, %v439
    %v441 = vlaneseq
    %v442 = vshrl.u32 %v441, 7
    %v443 = vsub.s32 0, %v442
    %v444 = vrot.slane %v416, %v443
    %v445 = vlaneseq
    %v446 = vshrl.u32 %v445, 7
    %v447 = vsub.s32 0, %v446
    %v448 = vrot.slane %v418, %v447
    %v449 = vlaneseq
    %v450 = vshrl.u32 %v449, 7
    %v451 = vsub.s32 0, %v450
    %v452 = vrot.slane %v420, %v451
    %v461 = vmul.f32 %v424, %v132
    %v462 = vmul.f32 %v428, %v133
    %v463 = vmul.f32 %v432, %v134
    %v464 = vmul.f32 %v436, %v135
    %v465 = vmul.f32 %v440, %v136
    %v466 = vmul.f32 %v444, %v137
    %v467 = vmul.f32 %v448, %v138
    %v468 = vmul.f32 %v452, %v139
    %v469 = vsel %vm298, %v461, 0.0
    %470 = vadd.xlane.f32.xlu0 %v469
    %v471 = vpop.xlane.xlu0 %470
    %v472 = vsel %vm298, %v462, 0.0
    %473 = vadd.xlane.f32.xlu0 %v472
    %v474 = vpop.xlane.xlu0 %473
    %v475 = vsel %vm298, %v463, 0.0
    %476 = vadd.xlane.f32.xlu0 %v475
    %v477 = vpop.xlane.xlu0 %476
    %v478 = vsel %vm298, %v464, 0.0
    %479 = vadd.xlane.f32.xlu0 %v478
    %v480 = vpop.xlane.xlu0 %479
    %v481 = vsel %vm298, %v465, 0.0
    %482 = vadd.xlane.f32.xlu0 %v481
    %v483 = vpop.xlane.xlu0 %482
    %v484 = vsel %vm298, %v466, 0.0
    %485 = vadd.xlane.f32.xlu0 %v484
    %v486 = vpop.xlane.xlu0 %485
    %v487 = vsel %vm298, %v467, 0.0
    %488 = vadd.xlane.f32.xlu0 %v487
    %v489 = vpop.xlane.xlu0 %488
    %v490 = vsel %vm298, %v468, 0.0
    %491 = vadd.xlane.f32.xlu0 %v490
    %v492 = vpop.xlane.xlu0 %491
    %v494 = vlaneseq
    %v495 = vshrl.u32 %v494, 7
    %v496 = vsub.s32 0, %v495
    %v497 = vrot.slane %v148, %v496
    %499 = vbcast.lane.b32.xlu0 %v497, 256
    %v500 = vpop.permute.xlu0 %499
    %v501 = vlaneseq
    %v502 = vshrl.u32 %v501, 7
    %v503 = vsub.s32 1, %v502
    %v504 = vrot.slane %v148, %v503
    %506 = vbcast.lane.b32.xlu0 %v504, 256
    %v507 = vpop.permute.xlu0 %506
    %v508 = vlaneseq
    %v509 = vshrl.u32 %v508, 7
    %v510 = vsub.s32 2, %v509
    %v511 = vrot.slane %v148, %v510
    %513 = vbcast.lane.b32.xlu0 %v511, 256
    %v514 = vpop.permute.xlu0 %513
    %v515 = vlaneseq
    %v516 = vshrl.u32 %v515, 7
    %v517 = vsub.s32 3, %v516
    %v518 = vrot.slane %v148, %v517
    %520 = vbcast.lane.b32.xlu0 %v518, 256
    %v521 = vpop.permute.xlu0 %520
    %v522 = vlaneseq
    %v523 = vshrl.u32 %v522, 7
    %v524 = vsub.s32 4, %v523
    %v525 = vrot.slane %v148, %v524
    %527 = vbcast.lane.b32.xlu0 %v525, 256
    %v528 = vpop.permute.xlu0 %527
    %v529 = vlaneseq
    %v530 = vshrl.u32 %v529, 7
    %v531 = vsub.s32 5, %v530
    %v532 = vrot.slane %v148, %v531
    %534 = vbcast.lane.b32.xlu0 %v532, 256
    %v535 = vpop.permute.xlu0 %534
    %v536 = vlaneseq
    %v537 = vshrl.u32 %v536, 7
    %v538 = vsub.s32 6, %v537
    %v539 = vrot.slane %v148, %v538
    %541 = vbcast.lane.b32.xlu0 %v539, 256
    %v542 = vpop.permute.xlu0 %541
    %v543 = vlaneseq
    %v544 = vshrl.u32 %v543, 7
    %v545 = vsub.s32 7, %v544
    %v546 = vrot.slane %v148, %v545
    %548 = vbcast.lane.b32.xlu0 %v546, 256
    %v549 = vpop.permute.xlu0 %548
    %v558 = vadd.f32 %v471, %v500
    %v559 = vadd.f32 %v474, %v507
    %v560 = vadd.f32 %v477, %v514
    %v561 = vadd.f32 %v480, %v521
    %v562 = vadd.f32 %v483, %v528
    %v563 = vadd.f32 %v486, %v535
    %v564 = vadd.f32 %v489, %v542
    %v565 = vadd.f32 %v492, %v549
    %574 = vset.pattern.permute.xlu0 0
    %575 = vperm.xlu0 %574, %v558
    %v576 = vpop.permute.xlu0 %575
    %577 = vset.pattern.permute.xlu0 0
    %578 = vperm.xlu0 %577, %v559
    %v579 = vpop.permute.xlu0 %578
    %580 = vset.pattern.permute.xlu0 0
    %581 = vperm.xlu0 %580, %v560
    %v582 = vpop.permute.xlu0 %581
    %583 = vset.pattern.permute.xlu0 0
    %584 = vperm.xlu0 %583, %v561
    %v585 = vpop.permute.xlu0 %584
    %586 = vset.pattern.permute.xlu0 0
    %587 = vperm.xlu0 %586, %v562
    %v588 = vpop.permute.xlu0 %587
    %589 = vset.pattern.permute.xlu0 0
    %590 = vperm.xlu0 %589, %v563
    %v591 = vpop.permute.xlu0 %590
    %592 = vset.pattern.permute.xlu0 0
    %593 = vperm.xlu0 %592, %v564
    %v594 = vpop.permute.xlu0 %593
    %595 = vset.pattern.permute.xlu0 0
    %596 = vperm.xlu0 %595, %v565
    %v597 = vpop.permute.xlu0 %596
    %v598 = vlaneseq
    %v599 = vand.u32 %v598, 127
    %v600 = vlaneseq
    %v601 = vshrl.u32 %v600, 7
    %v602 = vsub.s32 %v599, %v601
    %v603 = vrot.slane %v576, %v602
    %v604 = vlaneseq
    %v605 = vshrl.u32 %v604, 7
    %v606 = vsub.s32 %v599, %v605
    %v607 = vrot.slane %v579, %v606
    %v608 = vlaneseq
    %v609 = vshrl.u32 %v608, 7
    %v610 = vsub.s32 %v599, %v609
    %v611 = vrot.slane %v582, %v610
    %v612 = vlaneseq
    %v613 = vshrl.u32 %v612, 7
    %v614 = vsub.s32 %v599, %v613
    %v615 = vrot.slane %v585, %v614
    %v616 = vlaneseq
    %v617 = vshrl.u32 %v616, 7
    %v618 = vsub.s32 %v599, %v617
    %v619 = vrot.slane %v588, %v618
    %v620 = vlaneseq
    %v621 = vshrl.u32 %v620, 7
    %v622 = vsub.s32 %v599, %v621
    %v623 = vrot.slane %v591, %v622
    %v624 = vlaneseq
    %v625 = vshrl.u32 %v624, 7
    %v626 = vsub.s32 %v599, %v625
    %v627 = vrot.slane %v594, %v626
    %v628 = vlaneseq
    %v629 = vshrl.u32 %v628, 7
    %v630 = vsub.s32 %v599, %v629
    %v631 = vrot.slane %v597, %v630
    %vm632 = vcmask 1041409
    %v633 = vsel %vm632, %v607, %v603
    %vm634 = vcmask 1042434
    %v635 = vsel %vm634, %v611, %v633
    %vm636 = vcmask 1043459
    %v637 = vsel %vm636, %v615, %v635
    %vm638 = vcmask 1044484
    %v639 = vsel %vm638, %v619, %v637
    %vm640 = vcmask 1045509
    %v641 = vsel %vm640, %v623, %v639
    %vm642 = vcmask 1046534
    %v643 = vsel %vm642, %v627, %v641
    %vm644 = vcmask 1047559
    %v645 = vsel %vm644, %v631, %v643
    %vm647 = vcmask 64512
    %v648 = vsel %vm647, %v645, -inf
    %649 = vmax.xlane.f32.xlu0 %v648
    %v650 = vpop.xlane.xlu0 %649
    %v652 = vlaneseq
    %v653 = vshrl.u32 %v652, 7
    %v654 = vsub.s32 0, %v653
    %v655 = vrot.slane %v650, %v654
    %v656 = vlaneseq
    %v657 = vshrl.u32 %v656, 7
    %v658 = vsub.s32 1, %v657
    %v659 = vrot.slane %v650, %v658
    %v660 = vlaneseq
    %v661 = vshrl.u32 %v660, 7
    %v662 = vsub.s32 2, %v661
    %v663 = vrot.slane %v650, %v662
    %v664 = vlaneseq
    %v665 = vshrl.u32 %v664, 7
    %v666 = vsub.s32 3, %v665
    %v667 = vrot.slane %v650, %v666
    %v668 = vlaneseq
    %v669 = vshrl.u32 %v668, 7
    %v670 = vsub.s32 4, %v669
    %v671 = vrot.slane %v650, %v670
    %v672 = vlaneseq
    %v673 = vshrl.u32 %v672, 7
    %v674 = vsub.s32 5, %v673
    %v675 = vrot.slane %v650, %v674
    %v676 = vlaneseq
    %v677 = vshrl.u32 %v676, 7
    %v678 = vsub.s32 6, %v677
    %v679 = vrot.slane %v650, %v678
    %v680 = vlaneseq
    %v681 = vshrl.u32 %v680, 7
    %v682 = vsub.s32 7, %v681
    %v683 = vrot.slane %v650, %v682
    %v692 = vsub.f32 %v558, %v655
    %v693 = vsub.f32 %v559, %v659
    %v694 = vsub.f32 %v560, %v663
    %v695 = vsub.f32 %v561, %v667
    %v696 = vsub.f32 %v562, %v671
    %v697 = vsub.f32 %v563, %v675
    %v698 = vsub.f32 %v564, %v679
    %v699 = vsub.f32 %v565, %v683
    %v700 = vmul.f32 %v692, 1.442695
    %v701 = vpow.pop %v700
    %v702 = vmul.f32 %v693, 1.442695
    %v703 = vpow.pop %v702
    %v704 = vmul.f32 %v694, 1.442695
    %v705 = vpow.pop %v704
    %v706 = vmul.f32 %v695, 1.442695
    %v707 = vpow.pop %v706
    %v708 = vmul.f32 %v696, 1.442695
    %v709 = vpow.pop %v708
    %v710 = vmul.f32 %v697, 1.442695
    %v711 = vpow.pop %v710
    %v712 = vmul.f32 %v698, 1.442695
    %v713 = vpow.pop %v712
    %v714 = vmul.f32 %v699, 1.442695
    %v715 = vpow.pop %v714
    %724 = vset.pattern.permute.xlu0 0
    %725 = vperm.xlu0 %724, %v701
    %v726 = vpop.permute.xlu0 %725
    %727 = vset.pattern.permute.xlu0 0
    %728 = vperm.xlu0 %727, %v703
    %v729 = vpop.permute.xlu0 %728
    %730 = vset.pattern.permute.xlu0 0
    %731 = vperm.xlu0 %730, %v705
    %v732 = vpop.permute.xlu0 %731
    %733 = vset.pattern.permute.xlu0 0
    %734 = vperm.xlu0 %733, %v707
    %v735 = vpop.permute.xlu0 %734
    %736 = vset.pattern.permute.xlu0 0
    %737 = vperm.xlu0 %736, %v709
    %v738 = vpop.permute.xlu0 %737
    %739 = vset.pattern.permute.xlu0 0
    %740 = vperm.xlu0 %739, %v711
    %v741 = vpop.permute.xlu0 %740
    %742 = vset.pattern.permute.xlu0 0
    %743 = vperm.xlu0 %742, %v713
    %v744 = vpop.permute.xlu0 %743
    %745 = vset.pattern.permute.xlu0 0
    %746 = vperm.xlu0 %745, %v715
    %v747 = vpop.permute.xlu0 %746
    %v748 = vlaneseq
    %v749 = vshrl.u32 %v748, 7
    %v750 = vsub.s32 %v599, %v749
    %v751 = vrot.slane %v726, %v750
    %v752 = vlaneseq
    %v753 = vshrl.u32 %v752, 7
    %v754 = vsub.s32 %v599, %v753
    %v755 = vrot.slane %v729, %v754
    %v756 = vlaneseq
    %v757 = vshrl.u32 %v756, 7
    %v758 = vsub.s32 %v599, %v757
    %v759 = vrot.slane %v732, %v758
    %v760 = vlaneseq
    %v761 = vshrl.u32 %v760, 7
    %v762 = vsub.s32 %v599, %v761
    %v763 = vrot.slane %v735, %v762
    %v764 = vlaneseq
    %v765 = vshrl.u32 %v764, 7
    %v766 = vsub.s32 %v599, %v765
    %v767 = vrot.slane %v738, %v766
    %v768 = vlaneseq
    %v769 = vshrl.u32 %v768, 7
    %v770 = vsub.s32 %v599, %v769
    %v771 = vrot.slane %v741, %v770
    %v772 = vlaneseq
    %v773 = vshrl.u32 %v772, 7
    %v774 = vsub.s32 %v599, %v773
    %v775 = vrot.slane %v744, %v774
    %v776 = vlaneseq
    %v777 = vshrl.u32 %v776, 7
    %v778 = vsub.s32 %v599, %v777
    %v779 = vrot.slane %v747, %v778
    %v780 = vsel %vm632, %v755, %v751
    %v781 = vsel %vm634, %v759, %v780
    %v782 = vsel %vm636, %v763, %v781
    %v783 = vsel %vm638, %v767, %v782
    %v784 = vsel %vm640, %v771, %v783
    %v785 = vsel %vm642, %v775, %v784
    %v786 = vsel %vm644, %v779, %v785
    %v788 = vsel %vm647, %v786, 0.0
    %789 = vadd.xlane.f32.xlu0 %v788
    %v790 = vpop.xlane.xlu0 %789
    %v792 = vlaneseq
    %v793 = vshrl.u32 %v792, 7
    %v794 = vsub.s32 0, %v793
    %v795 = vrot.slane %v790, %v794
    %v796 = vlaneseq
    %v797 = vshrl.u32 %v796, 7
    %v798 = vsub.s32 1, %v797
    %v799 = vrot.slane %v790, %v798
    %v800 = vlaneseq
    %v801 = vshrl.u32 %v800, 7
    %v802 = vsub.s32 2, %v801
    %v803 = vrot.slane %v790, %v802
    %v804 = vlaneseq
    %v805 = vshrl.u32 %v804, 7
    %v806 = vsub.s32 3, %v805
    %v807 = vrot.slane %v790, %v806
    %v808 = vlaneseq
    %v809 = vshrl.u32 %v808, 7
    %v810 = vsub.s32 4, %v809
    %v811 = vrot.slane %v790, %v810
    %v812 = vlaneseq
    %v813 = vshrl.u32 %v812, 7
    %v814 = vsub.s32 5, %v813
    %v815 = vrot.slane %v790, %v814
    %v816 = vlaneseq
    %v817 = vshrl.u32 %v816, 7
    %v818 = vsub.s32 6, %v817
    %v819 = vrot.slane %v790, %v818
    %v820 = vlaneseq
    %v821 = vshrl.u32 %v820, 7
    %v822 = vsub.s32 7, %v821
    %v823 = vrot.slane %v790, %v822
    %v832 = vrcp.pop %v795
    %v833 = vmul.f32 %v701, %v832
    %v834 = vrcp.pop %v799
    %v835 = vmul.f32 %v703, %v834
    %v836 = vrcp.pop %v803
    %v837 = vmul.f32 %v705, %v836
    %v838 = vrcp.pop %v807
    %v839 = vmul.f32 %v707, %v838
    %v840 = vrcp.pop %v811
    %v841 = vmul.f32 %v709, %v840
    %v842 = vrcp.pop %v815
    %v843 = vmul.f32 %v711, %v842
    %v844 = vrcp.pop %v819
    %v845 = vmul.f32 %v713, %v844
    %v846 = vrcp.pop %v823
    %v847 = vmul.f32 %v715, %v846
    %849 = vset.pattern.permute.xlu0 0
    %850 = vperm.xlu0 %849, %v833
    %v851 = vpop.permute.xlu0 %850
    %854 = vset.pattern.permute.xlu0 0
    %855 = vperm.xlu0 %854, %v835
    %v856 = vpop.permute.xlu0 %855
    %859 = vset.pattern.permute.xlu0 0
    %860 = vperm.xlu0 %859, %v837
    %v861 = vpop.permute.xlu0 %860
    %864 = vset.pattern.permute.xlu0 0
    %865 = vperm.xlu0 %864, %v839
    %v866 = vpop.permute.xlu0 %865
    %869 = vset.pattern.permute.xlu0 0
    %870 = vperm.xlu0 %869, %v841
    %v871 = vpop.permute.xlu0 %870
    %874 = vset.pattern.permute.xlu0 0
    %875 = vperm.xlu0 %874, %v843
    %v876 = vpop.permute.xlu0 %875
    %879 = vset.pattern.permute.xlu0 0
    %880 = vperm.xlu0 %879, %v845
    %v881 = vpop.permute.xlu0 %880
    %884 = vset.pattern.permute.xlu0 0
    %885 = vperm.xlu0 %884, %v847
    %v886 = vpop.permute.xlu0 %885
    %v888 = vmul.f32 %v851, %v140
    %v889 = vmul.f32 %v856, %v141
    %v890 = vmul.f32 %v861, %v142
    %v891 = vmul.f32 %v866, %v143
    %v892 = vmul.f32 %v871, %v144
    %v893 = vmul.f32 %v876, %v145
    %v894 = vmul.f32 %v881, %v146
    %v895 = vmul.f32 %v886, %v147
    %v896 = vsel %vm298, %v888, 0.0
    %v897 = vrot.slane %v896, 4
    %v898 = vadd.f32 %v896, %v897
    %v899 = vrot.slane %v898, 2
    %v900 = vadd.f32 %v898, %v899
    %v901 = vrot.slane %v900, 1
    %v902 = vadd.f32 %v900, %v901
    %v903 = vsel %vm298, %v889, 0.0
    %v904 = vrot.slane %v903, 4
    %v905 = vadd.f32 %v903, %v904
    %v906 = vrot.slane %v905, 2
    %v907 = vadd.f32 %v905, %v906
    %v908 = vrot.slane %v907, 1
    %v909 = vadd.f32 %v907, %v908
    %v910 = vsel %vm298, %v890, 0.0
    %v911 = vrot.slane %v910, 4
    %v912 = vadd.f32 %v910, %v911
    %v913 = vrot.slane %v912, 2
    %v914 = vadd.f32 %v912, %v913
    %v915 = vrot.slane %v914, 1
    %v916 = vadd.f32 %v914, %v915
    %v917 = vsel %vm298, %v891, 0.0
    %v918 = vrot.slane %v917, 4
    %v919 = vadd.f32 %v917, %v918
    %v920 = vrot.slane %v919, 2
    %v921 = vadd.f32 %v919, %v920
    %v922 = vrot.slane %v921, 1
    %v923 = vadd.f32 %v921, %v922
    %v924 = vsel %vm298, %v892, 0.0
    %v925 = vrot.slane %v924, 4
    %v926 = vadd.f32 %v924, %v925
    %v927 = vrot.slane %v926, 2
    %v928 = vadd.f32 %v926, %v927
    %v929 = vrot.slane %v928, 1
    %v930 = vadd.f32 %v928, %v929
    %v931 = vsel %vm298, %v893, 0.0
    %v932 = vrot.slane %v931, 4
    %v933 = vadd.f32 %v931, %v932
    %v934 = vrot.slane %v933, 2
    %v935 = vadd.f32 %v933, %v934
    %v936 = vrot.slane %v935, 1
    %v937 = vadd.f32 %v935, %v936
    %v938 = vsel %vm298, %v894, 0.0
    %v939 = vrot.slane %v938, 4
    %v940 = vadd.f32 %v938, %v939
    %v941 = vrot.slane %v940, 2
    %v942 = vadd.f32 %v940, %v941
    %v943 = vrot.slane %v942, 1
    %v944 = vadd.f32 %v942, %v943
    %v945 = vsel %vm298, %v895, 0.0
    %v946 = vrot.slane %v945, 4
    %v947 = vadd.f32 %v945, %v946
    %v948 = vrot.slane %v947, 2
    %v949 = vadd.f32 %v947, %v948
    %v950 = vrot.slane %v949, 1
    %v951 = vadd.f32 %v949, %v950
    %v960 = vsel %vm632, %v909, %v902
    %v961 = vsel %vm634, %v916, %v960
    %v962 = vsel %vm636, %v923, %v961
    %v963 = vsel %vm638, %v930, %v962
    %v964 = vsel %vm640, %v937, %v963
    %v965 = vsel %vm642, %v944, %v964
    %v966 = vsel %vm644, %v951, %v965
    %v967 = vsel %vm298, %v966, 0
    %969 = vmatprep.subr.mxu0 0.0
    %970 = vmatpush1.msra.mxu0 0.0
    %971 = vmatprep.subr.mxu0 0.0
    %972 = vmatpush1.msra.mxu0 0.0
    %973 = vmatprep.subr.mxu0 0.0
    %974 = vmatpush1.msra.mxu0 0.0
    %975 = vmatprep.subr.mxu0 0.0
    %976 = vmatpush1.msra.mxu0 0.0
    %977 = vmatprep.subr.mxu0 0.0
    %978 = vmatpush1.msra.mxu0 0.0
    %979 = vmatprep.subr.mxu0 0.0
    %980 = vmatpush1.msra.mxu0 0.0
    %981 = vmatprep.subr.mxu0 0.0
    %982 = vmatpush1.msra.mxu0 0.0
    %983 = vmatprep.subr.mxu0 0.0
    %984 = vmatpush1.msra.mxu0 0.0
    %985 = vmatprep.subr.mxu0 0.0
    %986 = vmatpush1.msra.mxu0 0.0
    %987 = vmatprep.subr.mxu0 0.0
    %988 = vmatpush1.msra.mxu0 0.0
    %989 = vmatprep.subr.mxu0 0.0
    %990 = vmatpush1.msra.mxu0 0.0
    %991 = vmatprep.subr.mxu0 0.0
    %992 = vmatpush1.msra.mxu0 0.0
    %993 = vmatprep.subr.mxu0 0.0
    %994 = vmatpush1.msra.mxu0 %v162
    %995 = vmatprep.subr.mxu0 0.0
    %996 = vmatpush1.msra.mxu0 %v161
    %997 = vmatprep.subr.mxu0 0.0
    %998 = vmatpush1.msra.mxu0 %v160
    %999 = vmatprep.subr.mxu0 0.0
    %1000 = vmatpush1.msra.mxu0 %v159
    %1001 = vmatprep.subr.mxu0 0.0
    %1002 = vmatpush2.msra.mxu0 0.0
    %1003 = vmatprep.subr.mxu0 0.0
    %1004 = vmatpush2.msra.mxu0 0.0
    %1005 = vmatprep.subr.mxu0 0.0
    %1006 = vmatpush2.msra.mxu0 0.0
    %1007 = vmatprep.subr.mxu0 0.0
    %1008 = vmatpush2.msra.mxu0 0.0
    %1009 = vmatprep.subr.mxu0 0.0
    %1010 = vmatpush2.msra.mxu0 0.0
    %1011 = vmatprep.subr.mxu0 0.0
    %1012 = vmatpush2.msra.mxu0 0.0
    %1013 = vmatprep.subr.mxu0 0.0
    %1014 = vmatpush2.msra.mxu0 0.0
    %1015 = vmatprep.subr.mxu0 0.0
    %1016 = vmatpush2.msra.mxu0 0.0
    %1017 = vmatprep.subr.mxu0 0.0
    %1018 = vmatpush2.msra.mxu0 0.0
    %1019 = vmatprep.subr.mxu0 0.0
    %1020 = vmatpush2.msra.mxu0 0.0
    %1021 = vmatprep.subr.mxu0 0.0
    %1022 = vmatpush2.msra.mxu0 0.0
    %1023 = vmatprep.subr.mxu0 0.0
    %1024 = vmatpush2.msra.mxu0 0.0
    %1025 = vmatprep.subr.mxu0 0.0
    %1026 = vmatpush2.msra.mxu0 0.0
    %1027 = vmatprep.subr.mxu0 0.0
    %1028 = vmatpush2.msra.mxu0 0.0
    %1029 = vmatprep.subr.mxu0 0.0
    %1030 = vmatpush2.msra.mxu0 0.0
    %1031 = vmatprep.subr.mxu0 0.0
    %1032 = vmatpush2.msra.mxu0 0.0
    %1033 = vmatprep.mubr.f32.mxu0 0.0
    %1034 = vmatmul.mubr.f32.gmra.mxu0 %v967
    %v1035 = vpop.f32.mrf.mxu0
    %v1036 = vadd.f32 %v182, %v1035
    %v1037 = vpop.f32.mrf.mxu0
    %1038 = vdwg.mxu0
    %v1039 = vmax.f32 %v1036, 0.0
    %1040 = vst.msk [vmem:[#allocation14] sm:$0xff] %vm191, %v1039
    %v1041 = vlaneseq
    %v1042 = vshrl.u32 %v1041, 7
    %v1043 = vsub.s32 %v599, %v1042
    %v1044 = vrot.slane %v851, %v1043
    %v1045 = vlaneseq
    %v1046 = vshrl.u32 %v1045, 7
    %v1047 = vsub.s32 %v599, %v1046
    %v1048 = vrot.slane %v856, %v1047
    %v1049 = vlaneseq
    %v1050 = vshrl.u32 %v1049, 7
    %v1051 = vsub.s32 %v599, %v1050
    %v1052 = vrot.slane %v861, %v1051
    %v1053 = vlaneseq
    %v1054 = vshrl.u32 %v1053, 7
    %v1055 = vsub.s32 %v599, %v1054
    %v1056 = vrot.slane %v866, %v1055
    %v1057 = vlaneseq
    %v1058 = vshrl.u32 %v1057, 7
    %v1059 = vsub.s32 %v599, %v1058
    %v1060 = vrot.slane %v871, %v1059
    %v1061 = vlaneseq
    %v1062 = vshrl.u32 %v1061, 7
    %v1063 = vsub.s32 %v599, %v1062
    %v1064 = vrot.slane %v876, %v1063
    %v1065 = vlaneseq
    %v1066 = vshrl.u32 %v1065, 7
    %v1067 = vsub.s32 %v599, %v1066
    %v1068 = vrot.slane %v881, %v1067
    %v1069 = vlaneseq
    %v1070 = vshrl.u32 %v1069, 7
    %v1071 = vsub.s32 %v599, %v1070
    %v1072 = vrot.slane %v886, %v1071
    %v1073 = vsel %vm632, %v1048, %v1044
    %v1074 = vsel %vm634, %v1052, %v1073
    %v1075 = vsel %vm636, %v1056, %v1074
    %v1076 = vsel %vm638, %v1060, %v1075
    %v1077 = vsel %vm640, %v1064, %v1076
    %v1078 = vsel %vm642, %v1068, %v1077
    %v1079 = vsel %vm644, %v1072, %v1078
    %1081 = vst.msk [vmem:[#allocation15] sm:$0xff] %vm647, %v1079
    %1082 = vrot.lane.b32.xlu0 %v294, 48
    %v1083 = vpop.permute.xlu0 %1082
    %v1085 = vsel %vm191, %v1039, %v1083
    %v1087 = vsel %vm193, %v1085, 0
    %1089 = vmatprep.subr.mxu0 0.0
    %1090 = vmatpush1.msra.mxu0 0.0
    %1091 = vmatprep.subr.mxu0 0.0
    %1092 = vmatpush1.msra.mxu0 0.0
    %1093 = vmatprep.subr.mxu0 0.0
    %1094 = vmatpush1.msra.mxu0 0.0
    %1095 = vmatprep.subr.mxu0 0.0
    %1096 = vmatpush1.msra.mxu0 0.0
    %1097 = vmatprep.subr.mxu0 0.0
    %1098 = vmatpush1.msra.mxu0 0.0
    %1099 = vmatprep.subr.mxu0 0.0
    %1100 = vmatpush1.msra.mxu0 0.0
    %1101 = vmatprep.subr.mxu0 0.0
    %1102 = vmatpush1.msra.mxu0 0.0
    %1103 = vmatprep.subr.mxu0 0.0
    %1104 = vmatpush1.msra.mxu0 0.0
    %1105 = vmatprep.subr.mxu0 0.0
    %1106 = vmatpush1.msra.mxu0 0.0
    %1107 = vmatprep.subr.mxu0 0.0
    %1108 = vmatpush1.msra.mxu0 0.0
    %1109 = vmatprep.subr.mxu0 0.0
    %1110 = vmatpush1.msra.mxu0 %v154
    %1111 = vmatprep.subr.mxu0 0.0
    %1112 = vmatpush1.msra.mxu0 %v153
    %1113 = vmatprep.subr.mxu0 0.0
    %1114 = vmatpush1.msra.mxu0 %v152
    %1115 = vmatprep.subr.mxu0 0.0
    %1116 = vmatpush1.msra.mxu0 %v151
    %1117 = vmatprep.subr.mxu0 0.0
    %1118 = vmatpush1.msra.mxu0 %v150
    %1119 = vmatprep.subr.mxu0 0.0
    %1120 = vmatpush1.msra.mxu0 %v149
    %1121 = vmatprep.subr.mxu0 0.0
    %1122 = vmatpush2.msra.mxu0 0.0
    %1123 = vmatprep.subr.mxu0 0.0
    %1124 = vmatpush2.msra.mxu0 0.0
    %1125 = vmatprep.subr.mxu0 0.0
    %1126 = vmatpush2.msra.mxu0 0.0
    %1127 = vmatprep.subr.mxu0 0.0
    %1128 = vmatpush2.msra.mxu0 0.0
    %1129 = vmatprep.subr.mxu0 0.0
    %1130 = vmatpush2.msra.mxu0 0.0
    %1131 = vmatprep.subr.mxu0 0.0
    %1132 = vmatpush2.msra.mxu0 0.0
    %1133 = vmatprep.subr.mxu0 0.0
    %1134 = vmatpush2.msra.mxu0 0.0
    %1135 = vmatprep.subr.mxu0 0.0
    %1136 = vmatpush2.msra.mxu0 0.0
    %1137 = vmatprep.subr.mxu0 0.0
    %1138 = vmatpush2.msra.mxu0 0.0
    %1139 = vmatprep.subr.mxu0 0.0
    %1140 = vmatpush2.msra.mxu0 0.0
    %1141 = vmatprep.subr.mxu0 0.0
    %1142 = vmatpush2.msra.mxu0 0.0
    %1143 = vmatprep.subr.mxu0 0.0
    %1144 = vmatpush2.msra.mxu0 0.0
    %1145 = vmatprep.subr.mxu0 0.0
    %1146 = vmatpush2.msra.mxu0 0.0
    %1147 = vmatprep.subr.mxu0 0.0
    %1148 = vmatpush2.msra.mxu0 0.0
    %1149 = vmatprep.subr.mxu0 0.0
    %1150 = vmatpush2.msra.mxu0 0.0
    %1151 = vmatprep.subr.mxu0 0.0
    %1152 = vmatpush2.msra.mxu0 0.0
    %1153 = vmatprep.mubr.f32.mxu0 0.0
    %1154 = vmatmul.mubr.f32.gmra.mxu0 %v1087
    %v1155 = vpop.f32.mrf.mxu0
    %v1156 = vadd.f32 %v168, %v1155
    %v1157 = vpop.f32.mrf.mxu0
    %1158 = vdwg.mxu0
    %v1159 = vxor.u32 %v1156, 2147483648
    %v1160 = vmul.f32 %v1159, 1.442695
    %v1161 = vpow.pop %v1160
    %v1162 = vadd.f32 %v1161, 1.0
    %v1163 = vrcp.pop %v1162
    %v1164 = vmul.f32 1.0, %v1163
    %v1165 = vtanh.pop %v1156
    %v1166 = vmul.f32 %v1164, %v288
    %1168 = vrot.lane.b32.xlu0 %v1165, 64
    %v1169 = vpop.permute.xlu0 %1168
    %v1171 = vmul.f32 %v1164, %v1169
    %1173 = vrot.lane.b32.xlu0 %v1171, 32
    %v1174 = vpop.permute.xlu0 %1173
    %v1176 = vadd.f32 %v1166, %v1174
    %v1177 = vtanh.pop %v1176
    %1179 = vrot.lane.b32.xlu0 %v1177, 64
    %v1180 = vpop.permute.xlu0 %1179
    %v1182 = vmul.f32 %v1164, %v1180
    %1184 = vrot.lane.b32.xlu0 %v1182, 32
    %v1185 = vpop.permute.xlu0 %1184
    %v1186 = vsel %vm298, %v1185, 0
    %1188 = vmatprep.subr.mxu0 0.0
    %1189 = vmatpush1.msra.mxu0 0.0
    %1190 = vmatprep.subr.mxu0 0.0
    %1191 = vmatpush1.msra.mxu0 0.0
    %1192 = vmatprep.subr.mxu0 0.0
    %1193 = vmatpush1.msra.mxu0 0.0
    %1194 = vmatprep.subr.mxu0 0.0
    %1195 = vmatpush1.msra.mxu0 0.0
    %1196 = vmatprep.subr.mxu0 0.0
    %1197 = vmatpush1.msra.mxu0 0.0
    %1198 = vmatprep.subr.mxu0 0.0
    %1199 = vmatpush1.msra.mxu0 0.0
    %1200 = vmatprep.subr.mxu0 0.0
    %1201 = vmatpush1.msra.mxu0 0.0
    %1202 = vmatprep.subr.mxu0 0.0
    %1203 = vmatpush1.msra.mxu0 0.0
    %1204 = vmatprep.subr.mxu0 0.0
    %1205 = vmatpush1.msra.mxu0 0.0
    %1206 = vmatprep.subr.mxu0 0.0
    %1207 = vmatpush1.msra.mxu0 0.0
    %1208 = vmatprep.subr.mxu0 0.0
    %1209 = vmatpush1.msra.mxu0 0.0
    %1210 = vmatprep.subr.mxu0 0.0
    %1211 = vmatpush1.msra.mxu0 0.0
    %1212 = vmatprep.subr.mxu0 0.0
    %1213 = vmatpush1.msra.mxu0 %v158
    %1214 = vmatprep.subr.mxu0 0.0
    %1215 = vmatpush1.msra.mxu0 %v157
    %1216 = vmatprep.subr.mxu0 0.0
    %1217 = vmatpush1.msra.mxu0 %v156
    %1218 = vmatprep.subr.mxu0 0.0
    %1219 = vmatpush1.msra.mxu0 %v155
    %1220 = vmatprep.subr.mxu0 0.0
    %1221 = vmatpush2.msra.mxu0 0.0
    %1222 = vmatprep.subr.mxu0 0.0
    %1223 = vmatpush2.msra.mxu0 0.0
    %1224 = vmatprep.subr.mxu0 0.0
    %1225 = vmatpush2.msra.mxu0 0.0
    %1226 = vmatprep.subr.mxu0 0.0
    %1227 = vmatpush2.msra.mxu0 0.0
    %1228 = vmatprep.subr.mxu0 0.0
    %1229 = vmatpush2.msra.mxu0 0.0
    %1230 = vmatprep.subr.mxu0 0.0
    %1231 = vmatpush2.msra.mxu0 0.0
    %1232 = vmatprep.subr.mxu0 0.0
    %1233 = vmatpush2.msra.mxu0 0.0
    %1234 = vmatprep.subr.mxu0 0.0
    %1235 = vmatpush2.msra.mxu0 0.0
    %1236 = vmatprep.subr.mxu0 0.0
    %1237 = vmatpush2.msra.mxu0 0.0
    %1238 = vmatprep.subr.mxu0 0.0
    %1239 = vmatpush2.msra.mxu0 0.0
    %1240 = vmatprep.subr.mxu0 0.0
    %1241 = vmatpush2.msra.mxu0 0.0
    %1242 = vmatprep.subr.mxu0 0.0
    %1243 = vmatpush2.msra.mxu0 0.0
    %1244 = vmatprep.subr.mxu0 0.0
    %1245 = vmatpush2.msra.mxu0 0.0
    %1246 = vmatprep.subr.mxu0 0.0
    %1247 = vmatpush2.msra.mxu0 0.0
    %1248 = vmatprep.subr.mxu0 0.0
    %1249 = vmatpush2.msra.mxu0 0.0
    %1250 = vmatprep.subr.mxu0 0.0
    %1251 = vmatpush2.msra.mxu0 0.0
    %1252 = vmatprep.mubr.f32.mxu0 0.0
    %1253 = vmatmul.mubr.f32.gmra.mxu0 %v1186
    %v1254 = vpop.f32.mrf.mxu0
    %v1255 = vadd.f32 %v175, %v1254
    %v1256 = vpop.f32.mrf.mxu0
    %1257 = vdwg.mxu0
    %v1259 = vcombine.high %v1255, %v1255
    %v1261 = vunpack.c.l.s4 1966171168
    %v1262 = vunpack.c.0.s8 %v1261
    %v1263 = vlaneseq
    %v1264 = vshrl.u32 %v1263, 7
    %v1265 = vsub.s32 %v1262, %v1264
    %v1266 = vrot.slane %v1255, %v1265
    %v1268 = vunpack.c.l.s4 1966171168
    %v1269 = vunpack.c.0.s8 %v1268
    %v1270 = vlaneseq
    %v1271 = vshrl.u32 %v1270, 7
    %v1272 = vsub.s32 %v1269, %v1271
    %v1273 = vrot.slane %v1259, %v1272
    %v1274 = vcombine.high %v1266, %v1266
    %v1275 = vcombine.high %v1273, %v1273
    %v1277 = vunpack.c.l.s4 1966171168
    %v1278 = vunpack.c.0.s8 %v1277
    %v1279 = vlaneseq
    %v1280 = vshrl.u32 %v1279, 7
    %v1281 = vsub.s32 %v1278, %v1280
    %v1282 = vrot.slane %v1266, %v1281
    %v1284 = vunpack.c.l.s4 1966171168
    %v1285 = vunpack.c.0.s8 %v1284
    %v1286 = vlaneseq
    %v1287 = vshrl.u32 %v1286, 7
    %v1288 = vsub.s32 %v1285, %v1287
    %v1289 = vrot.slane %v1273, %v1288
    %v1291 = vunpack.c.l.s4 1966171168
    %v1292 = vunpack.c.0.s8 %v1291
    %v1293 = vlaneseq
    %v1294 = vshrl.u32 %v1293, 7
    %v1295 = vsub.s32 %v1292, %v1294
    %v1296 = vrot.slane %v1274, %v1295
    %v1298 = vunpack.c.l.s4 1966171168
    %v1299 = vunpack.c.0.s8 %v1298
    %v1300 = vlaneseq
    %v1301 = vshrl.u32 %v1300, 7
    %v1302 = vsub.s32 %v1299, %v1301
    %v1303 = vrot.slane %v1275, %v1302
    %v1304 = vcombine.high %v1282, %v1282
    %v1305 = vcombine.high %v1289, %v1289
    %v1306 = vcombine.high %v1296, %v1296
    %v1307 = vcombine.high %v1303, %v1303
    %v1308 = vlaneseq
    %v1309 = vshrl.u32 %v1308, 7
    %v1310 = vsub.s32 0, %v1309
    %v1311 = vrot.slane %v1282, %v1310
    %v1312 = vlaneseq
    %v1313 = vshrl.u32 %v1312, 7
    %v1314 = vsub.s32 0, %v1313
    %v1315 = vrot.slane %v1296, %v1314
    %v1316 = vlaneseq
    %v1317 = vshrl.u32 %v1316, 7
    %v1318 = vsub.s32 0, %v1317
    %v1319 = vrot.slane %v1304, %v1318
    %v1320 = vlaneseq
    %v1321 = vshrl.u32 %v1320, 7
    %v1322 = vsub.s32 0, %v1321
    %v1323 = vrot.slane %v1306, %v1322
    %v1324 = vlaneseq
    %v1325 = vshrl.u32 %v1324, 7
    %v1326 = vsub.s32 0, %v1325
    %v1327 = vrot.slane %v1289, %v1326
    %v1328 = vlaneseq
    %v1329 = vshrl.u32 %v1328, 7
    %v1330 = vsub.s32 0, %v1329
    %v1331 = vrot.slane %v1303, %v1330
    %v1332 = vlaneseq
    %v1333 = vshrl.u32 %v1332, 7
    %v1334 = vsub.s32 0, %v1333
    %v1335 = vrot.slane %v1305, %v1334
    %v1336 = vlaneseq
    %v1337 = vshrl.u32 %v1336, 7
    %v1338 = vsub.s32 0, %v1337
    %v1339 = vrot.slane %v1307, %v1338
    %v1348 = vmul.f32 %v1311, %v132
    %v1349 = vmul.f32 %v1315, %v133
    %v1350 = vmul.f32 %v1319, %v134
    %v1351 = vmul.f32 %v1323, %v135
    %v1352 = vmul.f32 %v1327, %v136
    %v1353 = vmul.f32 %v1331, %v137
    %v1354 = vmul.f32 %v1335, %v138
    %v1355 = vmul.f32 %v1339, %v139
    %v1356 = vsel %vm298, %v1348, 0.0
    %1357 = vadd.xlane.f32.xlu0 %v1356
    %v1358 = vpop.xlane.xlu0 %1357
    %v1359 = vsel %vm298, %v1349, 0.0
    %1360 = vadd.xlane.f32.xlu0 %v1359
    %v1361 = vpop.xlane.xlu0 %1360
    %v1362 = vsel %vm298, %v1350, 0.0
    %1363 = vadd.xlane.f32.xlu0 %v1362
    %v1364 = vpop.xlane.xlu0 %1363
    %v1365 = vsel %vm298, %v1351, 0.0
    %1366 = vadd.xlane.f32.xlu0 %v1365
    %v1367 = vpop.xlane.xlu0 %1366
    %v1368 = vsel %vm298, %v1352, 0.0
    %1369 = vadd.xlane.f32.xlu0 %v1368
    %v1370 = vpop.xlane.xlu0 %1369
    %v1371 = vsel %vm298, %v1353, 0.0
    %1372 = vadd.xlane.f32.xlu0 %v1371
    %v1373 = vpop.xlane.xlu0 %1372
    %v1374 = vsel %vm298, %v1354, 0.0
    %1375 = vadd.xlane.f32.xlu0 %v1374
    %v1376 = vpop.xlane.xlu0 %1375
    %v1377 = vsel %vm298, %v1355, 0.0
    %1378 = vadd.xlane.f32.xlu0 %v1377
    %v1379 = vpop.xlane.xlu0 %1378
    %v1380 = vadd.f32 %v1358, %v500
    %v1381 = vadd.f32 %v1361, %v507
    %v1382 = vadd.f32 %v1364, %v514
    %v1383 = vadd.f32 %v1367, %v521
    %v1384 = vadd.f32 %v1370, %v528
    %v1385 = vadd.f32 %v1373, %v535
    %v1386 = vadd.f32 %v1376, %v542
    %v1387 = vadd.f32 %v1379, %v549
    %1396 = vset.pattern.permute.xlu0 0
    %1397 = vperm.xlu0 %1396, %v1380
    %v1398 = vpop.permute.xlu0 %1397
    %1399 = vset.pattern.permute.xlu0 0
    %1400 = vperm.xlu0 %1399, %v1381
    %v1401 = vpop.permute.xlu0 %1400
    %1402 = vset.pattern.permute.xlu0 0
    %1403 = vperm.xlu0 %1402, %v1382
    %v1404 = vpop.permute.xlu0 %1403
    %1405 = vset.pattern.permute.xlu0 0
    %1406 = vperm.xlu0 %1405, %v1383
    %v1407 = vpop.permute.xlu0 %1406
    %1408 = vset.pattern.permute.xlu0 0
    %1409 = vperm.xlu0 %1408, %v1384
    %v1410 = vpop.permute.xlu0 %1409
    %1411 = vset.pattern.permute.xlu0 0
    %1412 = vperm.xlu0 %1411, %v1385
    %v1413 = vpop.permute.xlu0 %1412
    %1414 = vset.pattern.permute.xlu0 0
    %1415 = vperm.xlu0 %1414, %v1386
    %v1416 = vpop.permute.xlu0 %1415
    %1417 = vset.pattern.permute.xlu0 0
    %1418 = vperm.xlu0 %1417, %v1387
    %v1419 = vpop.permute.xlu0 %1418
    %v1420 = vlaneseq
    %v1421 = vshrl.u32 %v1420, 7
    %v1422 = vsub.s32 %v599, %v1421
    %v1423 = vrot.slane %v1398, %v1422
    %v1424 = vlaneseq
    %v1425 = vshrl.u32 %v1424, 7
    %v1426 = vsub.s32 %v599, %v1425
    %v1427 = vrot.slane %v1401, %v1426
    %v1428 = vlaneseq
    %v1429 = vshrl.u32 %v1428, 7
    %v1430 = vsub.s32 %v599, %v1429
    %v1431 = vrot.slane %v1404, %v1430
    %v1432 = vlaneseq
    %v1433 = vshrl.u32 %v1432, 7
    %v1434 = vsub.s32 %v599, %v1433
    %v1435 = vrot.slane %v1407, %v1434
    %v1436 = vlaneseq
    %v1437 = vshrl.u32 %v1436, 7
    %v1438 = vsub.s32 %v599, %v1437
    %v1439 = vrot.slane %v1410, %v1438
    %v1440 = vlaneseq
    %v1441 = vshrl.u32 %v1440, 7
    %v1442 = vsub.s32 %v599, %v1441
    %v1443 = vrot.slane %v1413, %v1442
    %v1444 = vlaneseq
    %v1445 = vshrl.u32 %v1444, 7
    %v1446 = vsub.s32 %v599, %v1445
    %v1447 = vrot.slane %v1416, %v1446
    %v1448 = vlaneseq
    %v1449 = vshrl.u32 %v1448, 7
    %v1450 = vsub.s32 %v599, %v1449
    %v1451 = vrot.slane %v1419, %v1450
    %v1452 = vsel %vm632, %v1427, %v1423
    %v1453 = vsel %vm634, %v1431, %v1452
    %v1454 = vsel %vm636, %v1435, %v1453
    %v1455 = vsel %vm638, %v1439, %v1454
    %v1456 = vsel %vm640, %v1443, %v1455
    %v1457 = vsel %vm642, %v1447, %v1456
    %v1458 = vsel %vm644, %v1451, %v1457
    %v1460 = vsel %vm647, %v1458, -inf
    %1461 = vmax.xlane.f32.xlu0 %v1460
    %v1462 = vpop.xlane.xlu0 %1461
    %v1464 = vlaneseq
    %v1465 = vshrl.u32 %v1464, 7
    %v1466 = vsub.s32 0, %v1465
    %v1467 = vrot.slane %v1462, %v1466
    %v1468 = vlaneseq
    %v1469 = vshrl.u32 %v1468, 7
    %v1470 = vsub.s32 1, %v1469
    %v1471 = vrot.slane %v1462, %v1470
    %v1472 = vlaneseq
    %v1473 = vshrl.u32 %v1472, 7
    %v1474 = vsub.s32 2, %v1473
    %v1475 = vrot.slane %v1462, %v1474
    %v1476 = vlaneseq
    %v1477 = vshrl.u32 %v1476, 7
    %v1478 = vsub.s32 3, %v1477
    %v1479 = vrot.slane %v1462, %v1478
    %v1480 = vlaneseq
    %v1481 = vshrl.u32 %v1480, 7
    %v1482 = vsub.s32 4, %v1481
    %v1483 = vrot.slane %v1462, %v1482
    %v1484 = vlaneseq
    %v1485 = vshrl.u32 %v1484, 7
    %v1486 = vsub.s32 5, %v1485
    %v1487 = vrot.slane %v1462, %v1486
    %v1488 = vlaneseq
    %v1489 = vshrl.u32 %v1488, 7
    %v1490 = vsub.s32 6, %v1489
    %v1491 = vrot.slane %v1462, %v1490
    %v1492 = vlaneseq
    %v1493 = vshrl.u32 %v1492, 7
    %v1494 = vsub.s32 7, %v1493
    %v1495 = vrot.slane %v1462, %v1494
    %v1504 = vsub.f32 %v1380, %v1467
    %v1505 = vsub.f32 %v1381, %v1471
    %v1506 = vsub.f32 %v1382, %v1475
    %v1507 = vsub.f32 %v1383, %v1479
    %v1508 = vsub.f32 %v1384, %v1483
    %v1509 = vsub.f32 %v1385, %v1487
    %v1510 = vsub.f32 %v1386, %v1491
    %v1511 = vsub.f32 %v1387, %v1495
    %v1512 = vmul.f32 %v1504, 1.442695
    %v1513 = vpow.pop %v1512
    %v1514 = vmul.f32 %v1505, 1.442695
    %v1515 = vpow.pop %v1514
    %v1516 = vmul.f32 %v1506, 1.442695
    %v1517 = vpow.pop %v1516
    %v1518 = vmul.f32 %v1507, 1.442695
    %v1519 = vpow.pop %v1518
    %v1520 = vmul.f32 %v1508, 1.442695
    %v1521 = vpow.pop %v1520
    %v1522 = vmul.f32 %v1509, 1.442695
    %v1523 = vpow.pop %v1522
    %v1524 = vmul.f32 %v1510, 1.442695
    %v1525 = vpow.pop %v1524
    %v1526 = vmul.f32 %v1511, 1.442695
    %v1527 = vpow.pop %v1526
    %1536 = vset.pattern.permute.xlu0 0
    %1537 = vperm.xlu0 %1536, %v1513
    %v1538 = vpop.permute.xlu0 %1537
    %1539 = vset.pattern.permute.xlu0 0
    %1540 = vperm.xlu0 %1539, %v1515
    %v1541 = vpop.permute.xlu0 %1540
    %1542 = vset.pattern.permute.xlu0 0
    %1543 = vperm.xlu0 %1542, %v1517
    %v1544 = vpop.permute.xlu0 %1543
    %1545 = vset.pattern.permute.xlu0 0
    %1546 = vperm.xlu0 %1545, %v1519
    %v1547 = vpop.permute.xlu0 %1546
    %1548 = vset.pattern.permute.xlu0 0
    %1549 = vperm.xlu0 %1548, %v1521
    %v1550 = vpop.permute.xlu0 %1549
    %1551 = vset.pattern.permute.xlu0 0
    %1552 = vperm.xlu0 %1551, %v1523
    %v1553 = vpop.permute.xlu0 %1552
    %1554 = vset.pattern.permute.xlu0 0
    %1555 = vperm.xlu0 %1554, %v1525
    %v1556 = vpop.permute.xlu0 %1555
    %1557 = vset.pattern.permute.xlu0 0
    %1558 = vperm.xlu0 %1557, %v1527
    %v1559 = vpop.permute.xlu0 %1558
    %v1560 = vlaneseq
    %v1561 = vshrl.u32 %v1560, 7
    %v1562 = vsub.s32 %v599, %v1561
    %v1563 = vrot.slane %v1538, %v1562
    %v1564 = vlaneseq
    %v1565 = vshrl.u32 %v1564, 7
    %v1566 = vsub.s32 %v599, %v1565
    %v1567 = vrot.slane %v1541, %v1566
    %v1568 = vlaneseq
    %v1569 = vshrl.u32 %v1568, 7
    %v1570 = vsub.s32 %v599, %v1569
    %v1571 = vrot.slane %v1544, %v1570
    %v1572 = vlaneseq
    %v1573 = vshrl.u32 %v1572, 7
    %v1574 = vsub.s32 %v599, %v1573
    %v1575 = vrot.slane %v1547, %v1574
    %v1576 = vlaneseq
    %v1577 = vshrl.u32 %v1576, 7
    %v1578 = vsub.s32 %v599, %v1577
    %v1579 = vrot.slane %v1550, %v1578
    %v1580 = vlaneseq
    %v1581 = vshrl.u32 %v1580, 7
    %v1582 = vsub.s32 %v599, %v1581
    %v1583 = vrot.slane %v1553, %v1582
    %v1584 = vlaneseq
    %v1585 = vshrl.u32 %v1584, 7
    %v1586 = vsub.s32 %v599, %v1585
    %v1587 = vrot.slane %v1556, %v1586
    %v1588 = vlaneseq
    %v1589 = vshrl.u32 %v1588, 7
    %v1590 = vsub.s32 %v599, %v1589
    %v1591 = vrot.slane %v1559, %v1590
    %v1592 = vsel %vm632, %v1567, %v1563
    %v1593 = vsel %vm634, %v1571, %v1592
    %v1594 = vsel %vm636, %v1575, %v1593
    %v1595 = vsel %vm638, %v1579, %v1594
    %v1596 = vsel %vm640, %v1583, %v1595
    %v1597 = vsel %vm642, %v1587, %v1596
    %v1598 = vsel %vm644, %v1591, %v1597
    %v1600 = vsel %vm647, %v1598, 0.0
    %1601 = vadd.xlane.f32.xlu0 %v1600
    %v1602 = vpop.xlane.xlu0 %1601
    %v1604 = vlaneseq
    %v1605 = vshrl.u32 %v1604, 7
    %v1606 = vsub.s32 0, %v1605
    %v1607 = vrot.slane %v1602, %v1606
    %v1608 = vlaneseq
    %v1609 = vshrl.u32 %v1608, 7
    %v1610 = vsub.s32 1, %v1609
    %v1611 = vrot.slane %v1602, %v1610
    %v1612 = vlaneseq
    %v1613 = vshrl.u32 %v1612, 7
    %v1614 = vsub.s32 2, %v1613
    %v1615 = vrot.slane %v1602, %v1614
    %v1616 = vlaneseq
    %v1617 = vshrl.u32 %v1616, 7
    %v1618 = vsub.s32 3, %v1617
    %v1619 = vrot.slane %v1602, %v1618
    %v1620 = vlaneseq
    %v1621 = vshrl.u32 %v1620, 7
    %v1622 = vsub.s32 4, %v1621
    %v1623 = vrot.slane %v1602, %v1622
    %v1624 = vlaneseq
    %v1625 = vshrl.u32 %v1624, 7
    %v1626 = vsub.s32 5, %v1625
    %v1627 = vrot.slane %v1602, %v1626
    %v1628 = vlaneseq
    %v1629 = vshrl.u32 %v1628, 7
    %v1630 = vsub.s32 6, %v1629
    %v1631 = vrot.slane %v1602, %v1630
    %v1632 = vlaneseq
    %v1633 = vshrl.u32 %v1632, 7
    %v1634 = vsub.s32 7, %v1633
    %v1635 = vrot.slane %v1602, %v1634
    %v1644 = vrcp.pop %v1607
    %v1645 = vmul.f32 %v1513, %v1644
    %v1646 = vrcp.pop %v1611
    %v1647 = vmul.f32 %v1515, %v1646
    %v1648 = vrcp.pop %v1615
    %v1649 = vmul.f32 %v1517, %v1648
    %v1650 = vrcp.pop %v1619
    %v1651 = vmul.f32 %v1519, %v1650
    %v1652 = vrcp.pop %v1623
    %v1653 = vmul.f32 %v1521, %v1652
    %v1654 = vrcp.pop %v1627
    %v1655 = vmul.f32 %v1523, %v1654
    %v1656 = vrcp.pop %v1631
    %v1657 = vmul.f32 %v1525, %v1656
    %v1658 = vrcp.pop %v1635
    %v1659 = vmul.f32 %v1527, %v1658
    %1661 = vset.pattern.permute.xlu0 0
    %1662 = vperm.xlu0 %1661, %v1645
    %v1663 = vpop.permute.xlu0 %1662
    %1666 = vset.pattern.permute.xlu0 0
    %1667 = vperm.xlu0 %1666, %v1647
    %v1668 = vpop.permute.xlu0 %1667
    %1671 = vset.pattern.permute.xlu0 0
    %1672 = vperm.xlu0 %1671, %v1649
    %v1673 = vpop.permute.xlu0 %1672
    %1676 = vset.pattern.permute.xlu0 0
    %1677 = vperm.xlu0 %1676, %v1651
    %v1678 = vpop.permute.xlu0 %1677
    %1681 = vset.pattern.permute.xlu0 0
    %1682 = vperm.xlu0 %1681, %v1653
    %v1683 = vpop.permute.xlu0 %1682
    %1686 = vset.pattern.permute.xlu0 0
    %1687 = vperm.xlu0 %1686, %v1655
    %v1688 = vpop.permute.xlu0 %1687
    %1691 = vset.pattern.permute.xlu0 0
    %1692 = vperm.xlu0 %1691, %v1657
    %v1693 = vpop.permute.xlu0 %1692
    %1696 = vset.pattern.permute.xlu0 0
    %1697 = vperm.xlu0 %1696, %v1659
    %v1698 = vpop.permute.xlu0 %1697
    %v1700 = vmul.f32 %v1663, %v140
    %v1701 = vmul.f32 %v1668, %v141
    %v1702 = vmul.f32 %v1673, %v142
    %v1703 = vmul.f32 %v1678, %v143
    %v1704 = vmul.f32 %v1683, %v144
    %v1705 = vmul.f32 %v1688, %v145
    %v1706 = vmul.f32 %v1693, %v146
    %v1707 = vmul.f32 %v1698, %v147
    %v1708 = vsel %vm298, %v1700, 0.0
    %v1709 = vrot.slane %v1708, 4
    %v1710 = vadd.f32 %v1708, %v1709
    %v1711 = vrot.slane %v1710, 2
    %v1712 = vadd.f32 %v1710, %v1711
    %v1713 = vrot.slane %v1712, 1
    %v1714 = vadd.f32 %v1712, %v1713
    %v1715 = vsel %vm298, %v1701, 0.0
    %v1716 = vrot.slane %v1715, 4
    %v1717 = vadd.f32 %v1715, %v1716
    %v1718 = vrot.slane %v1717, 2
    %v1719 = vadd.f32 %v1717, %v1718
    %v1720 = vrot.slane %v1719, 1
    %v1721 = vadd.f32 %v1719, %v1720
    %v1722 = vsel %vm298, %v1702, 0.0
    %v1723 = vrot.slane %v1722, 4
    %v1724 = vadd.f32 %v1722, %v1723
    %v1725 = vrot.slane %v1724, 2
    %v1726 = vadd.f32 %v1724, %v1725
    %v1727 = vrot.slane %v1726, 1
    %v1728 = vadd.f32 %v1726, %v1727
    %v1729 = vsel %vm298, %v1703, 0.0
    %v1730 = vrot.slane %v1729, 4
    %v1731 = vadd.f32 %v1729, %v1730
    %v1732 = vrot.slane %v1731, 2
    %v1733 = vadd.f32 %v1731, %v1732
    %v1734 = vrot.slane %v1733, 1
    %v1735 = vadd.f32 %v1733, %v1734
    %v1736 = vsel %vm298, %v1704, 0.0
    %v1737 = vrot.slane %v1736, 4
    %v1738 = vadd.f32 %v1736, %v1737
    %v1739 = vrot.slane %v1738, 2
    %v1740 = vadd.f32 %v1738, %v1739
    %v1741 = vrot.slane %v1740, 1
    %v1742 = vadd.f32 %v1740, %v1741
    %v1743 = vsel %vm298, %v1705, 0.0
    %v1744 = vrot.slane %v1743, 4
    %v1745 = vadd.f32 %v1743, %v1744
    %v1746 = vrot.slane %v1745, 2
    %v1747 = vadd.f32 %v1745, %v1746
    %v1748 = vrot.slane %v1747, 1
    %v1749 = vadd.f32 %v1747, %v1748
    %v1750 = vsel %vm298, %v1706, 0.0
    %v1751 = vrot.slane %v1750, 4
    %v1752 = vadd.f32 %v1750, %v1751
    %v1753 = vrot.slane %v1752, 2
    %v1754 = vadd.f32 %v1752, %v1753
    %v1755 = vrot.slane %v1754, 1
    %v1756 = vadd.f32 %v1754, %v1755
    %v1757 = vsel %vm298, %v1707, 0.0
    %v1758 = vrot.slane %v1757, 4
    %v1759 = vadd.f32 %v1757, %v1758
    %v1760 = vrot.slane %v1759, 2
    %v1761 = vadd.f32 %v1759, %v1760
    %v1762 = vrot.slane %v1761, 1
    %v1763 = vadd.f32 %v1761, %v1762
    %v1772 = vsel %vm632, %v1721, %v1714
    %v1773 = vsel %vm634, %v1728, %v1772
    %v1774 = vsel %vm636, %v1735, %v1773
    %v1775 = vsel %vm638, %v1742, %v1774
    %v1776 = vsel %vm640, %v1749, %v1775
    %v1777 = vsel %vm642, %v1756, %v1776
    %v1778 = vsel %vm644, %v1763, %v1777
    %v1779 = vsel %vm298, %v1778, 0
    %1781 = vmatprep.subr.mxu0 0.0
    %1782 = vmatpush1.msra.mxu0 0.0
    %1783 = vmatprep.subr.mxu0 0.0
    %1784 = vmatpush1.msra.mxu0 0.0
    %1785 = vmatprep.subr.mxu0 0.0
    %1786 = vmatpush1.msra.mxu0 0.0
    %1787 = vmatprep.subr.mxu0 0.0
    %1788 = vmatpush1.msra.mxu0 0.0
    %1789 = vmatprep.subr.mxu0 0.0
    %1790 = vmatpush1.msra.mxu0 0.0
    %1791 = vmatprep.subr.mxu0 0.0
    %1792 = vmatpush1.msra.mxu0 0.0
    %1793 = vmatprep.subr.mxu0 0.0
    %1794 = vmatpush1.msra.mxu0 0.0
    %1795 = vmatprep.subr.mxu0 0.0
    %1796 = vmatpush1.msra.mxu0 0.0
    %1797 = vmatprep.subr.mxu0 0.0
    %1798 = vmatpush1.msra.mxu0 0.0
    %1799 = vmatprep.subr.mxu0 0.0
    %1800 = vmatpush1.msra.mxu0 0.0
    %1801 = vmatprep.subr.mxu0 0.0
    %1802 = vmatpush1.msra.mxu0 0.0
    %1803 = vmatprep.subr.mxu0 0.0
    %1804 = vmatpush1.msra.mxu0 0.0
    %1805 = vmatprep.subr.mxu0 0.0
    %1806 = vmatpush1.msra.mxu0 %v162
    %1807 = vmatprep.subr.mxu0 0.0
    %1808 = vmatpush1.msra.mxu0 %v161
    %1809 = vmatprep.subr.mxu0 0.0
    %1810 = vmatpush1.msra.mxu0 %v160
    %1811 = vmatprep.subr.mxu0 0.0
    %1812 = vmatpush1.msra.mxu0 %v159
    %1813 = vmatprep.subr.mxu0 0.0
    %1814 = vmatpush2.msra.mxu0 0.0
    %1815 = vmatprep.subr.mxu0 0.0
    %1816 = vmatpush2.msra.mxu0 0.0
    %1817 = vmatprep.subr.mxu0 0.0
    %1818 = vmatpush2.msra.mxu0 0.0
    %1819 = vmatprep.subr.mxu0 0.0
    %1820 = vmatpush2.msra.mxu0 0.0
    %1821 = vmatprep.subr.mxu0 0.0
    %1822 = vmatpush2.msra.mxu0 0.0
    %1823 = vmatprep.subr.mxu0 0.0
    %1824 = vmatpush2.msra.mxu0 0.0
    %1825 = vmatprep.subr.mxu0 0.0
    %1826 = vmatpush2.msra.mxu0 0.0
    %1827 = vmatprep.subr.mxu0 0.0
    %1828 = vmatpush2.msra.mxu0 0.0
    %1829 = vmatprep.subr.mxu0 0.0
    %1830 = vmatpush2.msra.mxu0 0.0
    %1831 = vmatprep.subr.mxu0 0.0
    %1832 = vmatpush2.msra.mxu0 0.0
    %1833 = vmatprep.subr.mxu0 0.0
    %1834 = vmatpush2.msra.mxu0 0.0
    %1835 = vmatprep.subr.mxu0 0.0
    %1836 = vmatpush2.msra.mxu0 0.0
    %1837 = vmatprep.subr.mxu0 0.0
    %1838 = vmatpush2.msra.mxu0 0.0
    %1839 = vmatprep.subr.mxu0 0.0
    %1840 = vmatpush2.msra.mxu0 0.0
    %1841 = vmatprep.subr.mxu0 0.0
    %1842 = vmatpush2.msra.mxu0 0.0
    %1843 = vmatprep.subr.mxu0 0.0
    %1844 = vmatpush2.msra.mxu0 0.0
    %1845 = vmatprep.mubr.f32.mxu0 0.0
    %1846 = vmatmul.mubr.f32.gmra.mxu0 %v1779
    %v1847 = vpop.f32.mrf.mxu0
    %v1848 = vadd.f32 %v182, %v1847
    %v1849 = vpop.f32.mrf.mxu0
    %1850 = vdwg.mxu0
    %v1851 = vmax.f32 %v1848, 0.0
    %s1852 = scalar_lea.vmem [#allocation14], 8
    %1853 = vst.msk [vmem:[%s1852] sm:$0xff] %vm191, %v1851
    %v1854 = vlaneseq
    %v1855 = vshrl.u32 %v1854, 7
    %v1856 = vsub.s32 %v599, %v1855
    %v1857 = vrot.slane %v1663, %v1856
    %v1858 = vlaneseq
    %v1859 = vshrl.u32 %v1858, 7
    %v1860 = vsub.s32 %v599, %v1859
    %v1861 = vrot.slane %v1668, %v1860
    %v1862 = vlaneseq
    %v1863 = vshrl.u32 %v1862, 7
    %v1864 = vsub.s32 %v599, %v1863
    %v1865 = vrot.slane %v1673, %v1864
    %v1866 = vlaneseq
    %v1867 = vshrl.u32 %v1866, 7
    %v1868 = vsub.s32 %v599, %v1867
    %v1869 = vrot.slane %v1678, %v1868
    %v1870 = vlaneseq
    %v1871 = vshrl.u32 %v1870, 7
    %v1872 = vsub.s32 %v599, %v1871
    %v1873 = vrot.slane %v1683, %v1872
    %v1874 = vlaneseq
    %v1875 = vshrl.u32 %v1874, 7
    %v1876 = vsub.s32 %v599, %v1875
    %v1877 = vrot.slane %v1688, %v1876
    %v1878 = vlaneseq
    %v1879 = vshrl.u32 %v1878, 7
    %v1880 = vsub.s32 %v599, %v1879
    %v1881 = vrot.slane %v1693, %v1880
    %v1882 = vlaneseq
    %v1883 = vshrl.u32 %v1882, 7
    %v1884 = vsub.s32 %v599, %v1883
    %v1885 = vrot.slane %v1698, %v1884
    %v1886 = vsel %vm632, %v1861, %v1857
    %v1887 = vsel %vm634, %v1865, %v1886
    %v1888 = vsel %vm636, %v1869, %v1887
    %v1889 = vsel %vm638, %v1873, %v1888
    %v1890 = vsel %vm640, %v1877, %v1889
    %v1891 = vsel %vm642, %v1881, %v1890
    %v1892 = vsel %vm644, %v1885, %v1891
    %s1894 = scalar_lea.vmem [#allocation15], 8
    %1895 = vst.msk [vmem:[%s1894] sm:$0xff] %vm647, %v1892
    %1896 = vrot.lane.b32.xlu0 %v1182, 48
    %v1897 = vpop.permute.xlu0 %1896
    %v1899 = vsel %vm191, %v1851, %v1897
    %v1901 = vsel %vm193, %v1899, 0
    %1903 = vmatprep.subr.mxu0 0.0
    %1904 = vmatpush1.msra.mxu0 0.0
    %1905 = vmatprep.subr.mxu0 0.0
    %1906 = vmatpush1.msra.mxu0 0.0
    %1907 = vmatprep.subr.mxu0 0.0
    %1908 = vmatpush1.msra.mxu0 0.0
    %1909 = vmatprep.subr.mxu0 0.0
    %1910 = vmatpush1.msra.mxu0 0.0
    %1911 = vmatprep.subr.mxu0 0.0
    %1912 = vmatpush1.msra.mxu0 0.0
    %1913 = vmatprep.subr.mxu0 0.0
    %1914 = vmatpush1.msra.mxu0 0.0
    %1915 = vmatprep.subr.mxu0 0.0
    %1916 = vmatpush1.msra.mxu0 0.0
    %1917 = vmatprep.subr.mxu0 0.0
    %1918 = vmatpush1.msra.mxu0 0.0
    %1919 = vmatprep.subr.mxu0 0.0
    %1920 = vmatpush1.msra.mxu0 0.0
    %1921 = vmatprep.subr.mxu0 0.0
    %1922 = vmatpush1.msra.mxu0 0.0
    %1923 = vmatprep.subr.mxu0 0.0
    %1924 = vmatpush1.msra.mxu0 %v154
    %1925 = vmatprep.subr.mxu0 0.0
    %1926 = vmatpush1.msra.mxu0 %v153
    %1927 = vmatprep.subr.mxu0 0.0
    %1928 = vmatpush1.msra.mxu0 %v152
    %1929 = vmatprep.subr.mxu0 0.0
    %1930 = vmatpush1.msra.mxu0 %v151
    %1931 = vmatprep.subr.mxu0 0.0
    %1932 = vmatpush1.msra.mxu0 %v150
    %1933 = vmatprep.subr.mxu0 0.0
    %1934 = vmatpush1.msra.mxu0 %v149
    %1935 = vmatprep.subr.mxu0 0.0
    %1936 = vmatpush2.msra.mxu0 0.0
    %1937 = vmatprep.subr.mxu0 0.0
    %1938 = vmatpush2.msra.mxu0 0.0
    %1939 = vmatprep.subr.mxu0 0.0
    %1940 = vmatpush2.msra.mxu0 0.0
    %1941 = vmatprep.subr.mxu0 0.0
    %1942 = vmatpush2.msra.mxu0 0.0
    %1943 = vmatprep.subr.mxu0 0.0
    %1944 = vmatpush2.msra.mxu0 0.0
    %1945 = vmatprep.subr.mxu0 0.0
    %1946 = vmatpush2.msra.mxu0 0.0
    %1947 = vmatprep.subr.mxu0 0.0
    %1948 = vmatpush2.msra.mxu0 0.0
    %1949 = vmatprep.subr.mxu0 0.0
    %1950 = vmatpush2.msra.mxu0 0.0
    %1951 = vmatprep.subr.mxu0 0.0
    %1952 = vmatpush2.msra.mxu0 0.0
    %1953 = vmatprep.subr.mxu0 0.0
    %1954 = vmatpush2.msra.mxu0 0.0
    %1955 = vmatprep.subr.mxu0 0.0
    %1956 = vmatpush2.msra.mxu0 0.0
    %1957 = vmatprep.subr.mxu0 0.0
    %1958 = vmatpush2.msra.mxu0 0.0
    %1959 = vmatprep.subr.mxu0 0.0
    %1960 = vmatpush2.msra.mxu0 0.0
    %1961 = vmatprep.subr.mxu0 0.0
    %1962 = vmatpush2.msra.mxu0 0.0
    %1963 = vmatprep.subr.mxu0 0.0
    %1964 = vmatpush2.msra.mxu0 0.0
    %1965 = vmatprep.subr.mxu0 0.0
    %1966 = vmatpush2.msra.mxu0 0.0
    %1967 = vmatprep.mubr.f32.mxu0 0.0
    %1968 = vmatmul.mubr.f32.gmra.mxu0 %v1901
    %v1969 = vpop.f32.mrf.mxu0
    %v1970 = vadd.f32 %v168, %v1969
    %v1971 = vpop.f32.mrf.mxu0
    %1972 = vdwg.mxu0
    %v1973 = vxor.u32 %v1970, 2147483648
    %v1974 = vmul.f32 %v1973, 1.442695
    %v1975 = vpow.pop %v1974
    %v1976 = vadd.f32 %v1975, 1.0
    %v1977 = vrcp.pop %v1976
    %v1978 = vmul.f32 1.0, %v1977
    %v1979 = vtanh.pop %v1970
    %v1980 = vmul.f32 %v1978, %v1176
    %1982 = vrot.lane.b32.xlu0 %v1979, 64
    %v1983 = vpop.permute.xlu0 %1982
    %v1985 = vmul.f32 %v1978, %v1983
    %1987 = vrot.lane.b32.xlu0 %v1985, 32
    %v1988 = vpop.permute.xlu0 %1987
    %v1990 = vadd.f32 %v1980, %v1988
    %v1991 = vtanh.pop %v1990
    %1993 = vrot.lane.b32.xlu0 %v1991, 64
    %v1994 = vpop.permute.xlu0 %1993
    %v1996 = vmul.f32 %v1978, %v1994
    %1998 = vrot.lane.b32.xlu0 %v1996, 32
    %v1999 = vpop.permute.xlu0 %1998
    %v2000 = vsel %vm298, %v1999, 0
    %2002 = vmatprep.subr.mxu0 0.0
    %2003 = vmatpush1.msra.mxu0 0.0
    %2004 = vmatprep.subr.mxu0 0.0
    %2005 = vmatpush1.msra.mxu0 0.0
    %2006 = vmatprep.subr.mxu0 0.0
    %2007 = vmatpush1.msra.mxu0 0.0
    %2008 = vmatprep.subr.mxu0 0.0
    %2009 = vmatpush1.msra.mxu0 0.0
    %2010 = vmatprep.subr.mxu0 0.0
    %2011 = vmatpush1.msra.mxu0 0.0
    %2012 = vmatprep.subr.mxu0 0.0
    %2013 = vmatpush1.msra.mxu0 0.0
    %2014 = vmatprep.subr.mxu0 0.0
    %2015 = vmatpush1.msra.mxu0 0.0
    %2016 = vmatprep.subr.mxu0 0.0
    %2017 = vmatpush1.msra.mxu0 0.0
    %2018 = vmatprep.subr.mxu0 0.0
    %2019 = vmatpush1.msra.mxu0 0.0
    %2020 = vmatprep.subr.mxu0 0.0
    %2021 = vmatpush1.msra.mxu0 0.0
    %2022 = vmatprep.subr.mxu0 0.0
    %2023 = vmatpush1.msra.mxu0 0.0
    %2024 = vmatprep.subr.mxu0 0.0
    %2025 = vmatpush1.msra.mxu0 0.0
    %2026 = vmatprep.subr.mxu0 0.0
    %2027 = vmatpush1.msra.mxu0 %v158
    %2028 = vmatprep.subr.mxu0 0.0
    %2029 = vmatpush1.msra.mxu0 %v157
    %2030 = vmatprep.subr.mxu0 0.0
    %2031 = vmatpush1.msra.mxu0 %v156
    %2032 = vmatprep.subr.mxu0 0.0
    %2033 = vmatpush1.msra.mxu0 %v155
    %2034 = vmatprep.subr.mxu0 0.0
    %2035 = vmatpush2.msra.mxu0 0.0
    %2036 = vmatprep.subr.mxu0 0.0
    %2037 = vmatpush2.msra.mxu0 0.0
    %2038 = vmatprep.subr.mxu0 0.0
    %2039 = vmatpush2.msra.mxu0 0.0
    %2040 = vmatprep.subr.mxu0 0.0
    %2041 = vmatpush2.msra.mxu0 0.0
    %2042 = vmatprep.subr.mxu0 0.0
    %2043 = vmatpush2.msra.mxu0 0.0
    %2044 = vmatprep.subr.mxu0 0.0
    %2045 = vmatpush2.msra.mxu0 0.0
    %2046 = vmatprep.subr.mxu0 0.0
    %2047 = vmatpush2.msra.mxu0 0.0
    %2048 = vmatprep.subr.mxu0 0.0
    %2049 = vmatpush2.msra.mxu0 0.0
    %2050 = vmatprep.subr.mxu0 0.0
    %2051 = vmatpush2.msra.mxu0 0.0
    %2052 = vmatprep.subr.mxu0 0.0
    %2053 = vmatpush2.msra.mxu0 0.0
    %2054 = vmatprep.subr.mxu0 0.0
    %2055 = vmatpush2.msra.mxu0 0.0
    %2056 = vmatprep.subr.mxu0 0.0
    %2057 = vmatpush2.msra.mxu0 0.0
    %2058 = vmatprep.subr.mxu0 0.0
    %2059 = vmatpush2.msra.mxu0 0.0
    %2060 = vmatprep.subr.mxu0 0.0
    %2061 = vmatpush2.msra.mxu0 0.0
    %2062 = vmatprep.subr.mxu0 0.0
    %2063 = vmatpush2.msra.mxu0 0.0
    %2064 = vmatprep.subr.mxu0 0.0
    %2065 = vmatpush2.msra.mxu0 0.0
    %2066 = vmatprep.mubr.f32.mxu0 0.0
    %2067 = vmatmul.mubr.f32.gmra.mxu0 %v2000
    %v2068 = vpop.f32.mrf.mxu0
    %v2069 = vadd.f32 %v175, %v2068
    %v2070 = vpop.f32.mrf.mxu0
    %2071 = vdwg.mxu0
    %v2073 = vcombine.high %v2069, %v2069
    %v2075 = vunpack.c.l.s4 1966171168
    %v2076 = vunpack.c.0.s8 %v2075
    %v2077 = vlaneseq
    %v2078 = vshrl.u32 %v2077, 7
    %v2079 = vsub.s32 %v2076, %v2078
    %v2080 = vrot.slane %v2069, %v2079
    %v2082 = vunpack.c.l.s4 1966171168
    %v2083 = vunpack.c.0.s8 %v2082
    %v2084 = vlaneseq
    %v2085 = vshrl.u32 %v2084, 7
    %v2086 = vsub.s32 %v2083, %v2085
    %v2087 = vrot.slane %v2073, %v2086
    %v2088 = vcombine.high %v2080, %v2080
    %v2089 = vcombine.high %v2087, %v2087
    %v2091 = vunpack.c.l.s4 1966171168
    %v2092 = vunpack.c.0.s8 %v2091
    %v2093 = vlaneseq
    %v2094 = vshrl.u32 %v2093, 7
    %v2095 = vsub.s32 %v2092, %v2094
    %v2096 = vrot.slane %v2080, %v2095
    %v2098 = vunpack.c.l.s4 1966171168
    %v2099 = vunpack.c.0.s8 %v2098
    %v2100 = vlaneseq
    %v2101 = vshrl.u32 %v2100, 7
    %v2102 = vsub.s32 %v2099, %v2101
    %v2103 = vrot.slane %v2087, %v2102
    %v2105 = vunpack.c.l.s4 1966171168
    %v2106 = vunpack.c.0.s8 %v2105
    %v2107 = vlaneseq
    %v2108 = vshrl.u32 %v2107, 7
    %v2109 = vsub.s32 %v2106, %v2108
    %v2110 = vrot.slane %v2088, %v2109
    %v2112 = vunpack.c.l.s4 1966171168
    %v2113 = vunpack.c.0.s8 %v2112
    %v2114 = vlaneseq
    %v2115 = vshrl.u32 %v2114, 7
    %v2116 = vsub.s32 %v2113, %v2115
    %v2117 = vrot.slane %v2089, %v2116
    %v2118 = vcombine.high %v2096, %v2096
    %v2119 = vcombine.high %v2103, %v2103
    %v2120 = vcombine.high %v2110, %v2110
    %v2121 = vcombine.high %v2117, %v2117
    %v2122 = vlaneseq
    %v2123 = vshrl.u32 %v2122, 7
    %v2124 = vsub.s32 0, %v2123
    %v2125 = vrot.slane %v2096, %v2124
    %v2126 = vlaneseq
    %v2127 = vshrl.u32 %v2126, 7
    %v2128 = vsub.s32 0, %v2127
    %v2129 = vrot.slane %v2110, %v2128
    %v2130 = vlaneseq
    %v2131 = vshrl.u32 %v2130, 7
    %v2132 = vsub.s32 0, %v2131
    %v2133 = vrot.slane %v2118, %v2132
    %v2134 = vlaneseq
    %v2135 = vshrl.u32 %v2134, 7
    %v2136 = vsub.s32 0, %v2135
    %v2137 = vrot.slane %v2120, %v2136
    %v2138 = vlaneseq
    %v2139 = vshrl.u32 %v2138, 7
    %v2140 = vsub.s32 0, %v2139
    %v2141 = vrot.slane %v2103, %v2140
    %v2142 = vlaneseq
    %v2143 = vshrl.u32 %v2142, 7
    %v2144 = vsub.s32 0, %v2143
    %v2145 = vrot.slane %v2117, %v2144
    %v2146 = vlaneseq
    %v2147 = vshrl.u32 %v2146, 7
    %v2148 = vsub.s32 0, %v2147
    %v2149 = vrot.slane %v2119, %v2148
    %v2150 = vlaneseq
    %v2151 = vshrl.u32 %v2150, 7
    %v2152 = vsub.s32 0, %v2151
    %v2153 = vrot.slane %v2121, %v2152
    %v2162 = vmul.f32 %v2125, %v132
    %v2163 = vmul.f32 %v2129, %v133
    %v2164 = vmul.f32 %v2133, %v134
    %v2165 = vmul.f32 %v2137, %v135
    %v2166 = vmul.f32 %v2141, %v136
    %v2167 = vmul.f32 %v2145, %v137
    %v2168 = vmul.f32 %v2149, %v138
    %v2169 = vmul.f32 %v2153, %v139
    %v2170 = vsel %vm298, %v2162, 0.0
    %2171 = vadd.xlane.f32.xlu0 %v2170
    %v2172 = vpop.xlane.xlu0 %2171
    %v2173 = vsel %vm298, %v2163, 0.0
    %2174 = vadd.xlane.f32.xlu0 %v2173
    %v2175 = vpop.xlane.xlu0 %2174
    %v2176 = vsel %vm298, %v2164, 0.0
    %2177 = vadd.xlane.f32.xlu0 %v2176
    %v2178 = vpop.xlane.xlu0 %2177
    %v2179 = vsel %vm298, %v2165, 0.0
    %2180 = vadd.xlane.f32.xlu0 %v2179
    %v2181 = vpop.xlane.xlu0 %2180
    %v2182 = vsel %vm298, %v2166, 0.0
    %2183 = vadd.xlane.f32.xlu0 %v2182
    %v2184 = vpop.xlane.xlu0 %2183
    %v2185 = vsel %vm298, %v2167, 0.0
    %2186 = vadd.xlane.f32.xlu0 %v2185
    %v2187 = vpop.xlane.xlu0 %2186
    %v2188 = vsel %vm298, %v2168, 0.0
    %2189 = vadd.xlane.f32.xlu0 %v2188
    %v2190 = vpop.xlane.xlu0 %2189
    %v2191 = vsel %vm298, %v2169, 0.0
    %2192 = vadd.xlane.f32.xlu0 %v2191
    %v2193 = vpop.xlane.xlu0 %2192
    %v2194 = vadd.f32 %v2172, %v500
    %v2195 = vadd.f32 %v2175, %v507
    %v2196 = vadd.f32 %v2178, %v514
    %v2197 = vadd.f32 %v2181, %v521
    %v2198 = vadd.f32 %v2184, %v528
    %v2199 = vadd.f32 %v2187, %v535
    %v2200 = vadd.f32 %v2190, %v542
    %v2201 = vadd.f32 %v2193, %v549
    %2210 = vset.pattern.permute.xlu0 0
    %2211 = vperm.xlu0 %2210, %v2194
    %v2212 = vpop.permute.xlu0 %2211
    %2213 = vset.pattern.permute.xlu0 0
    %2214 = vperm.xlu0 %2213, %v2195
    %v2215 = vpop.permute.xlu0 %2214
    %2216 = vset.pattern.permute.xlu0 0
    %2217 = vperm.xlu0 %2216, %v2196
    %v2218 = vpop.permute.xlu0 %2217
    %2219 = vset.pattern.permute.xlu0 0
    %2220 = vperm.xlu0 %2219, %v2197
    %v2221 = vpop.permute.xlu0 %2220
    %2222 = vset.pattern.permute.xlu0 0
    %2223 = vperm.xlu0 %2222, %v2198
    %v2224 = vpop.permute.xlu0 %2223
    %2225 = vset.pattern.permute.xlu0 0
    %2226 = vperm.xlu0 %2225, %v2199
    %v2227 = vpop.permute.xlu0 %2226
    %2228 = vset.pattern.permute.xlu0 0
    %2229 = vperm.xlu0 %2228, %v2200
    %v2230 = vpop.permute.xlu0 %2229
    %2231 = vset.pattern.permute.xlu0 0
    %2232 = vperm.xlu0 %2231, %v2201
    %v2233 = vpop.permute.xlu0 %2232
    %v2234 = vlaneseq
    %v2235 = vshrl.u32 %v2234, 7
    %v2236 = vsub.s32 %v599, %v2235
    %v2237 = vrot.slane %v2212, %v2236
    %v2238 = vlaneseq
    %v2239 = vshrl.u32 %v2238, 7
    %v2240 = vsub.s32 %v599, %v2239
    %v2241 = vrot.slane %v2215, %v2240
    %v2242 = vlaneseq
    %v2243 = vshrl.u32 %v2242, 7
    %v2244 = vsub.s32 %v599, %v2243
    %v2245 = vrot.slane %v2218, %v2244
    %v2246 = vlaneseq
    %v2247 = vshrl.u32 %v2246, 7
    %v2248 = vsub.s32 %v599, %v2247
    %v2249 = vrot.slane %v2221, %v2248
    %v2250 = vlaneseq
    %v2251 = vshrl.u32 %v2250, 7
    %v2252 = vsub.s32 %v599, %v2251
    %v2253 = vrot.slane %v2224, %v2252
    %v2254 = vlaneseq
    %v2255 = vshrl.u32 %v2254, 7
    %v2256 = vsub.s32 %v599, %v2255
    %v2257 = vrot.slane %v2227, %v2256
    %v2258 = vlaneseq
    %v2259 = vshrl.u32 %v2258, 7
    %v2260 = vsub.s32 %v599, %v2259
    %v2261 = vrot.slane %v2230, %v2260
    %v2262 = vlaneseq
    %v2263 = vshrl.u32 %v2262, 7
    %v2264 = vsub.s32 %v599, %v2263
    %v2265 = vrot.slane %v2233, %v2264
    %v2266 = vsel %vm632, %v2241, %v2237
    %v2267 = vsel %vm634, %v2245, %v2266
    %v2268 = vsel %vm636, %v2249, %v2267
    %v2269 = vsel %vm638, %v2253, %v2268
    %v2270 = vsel %vm640, %v2257, %v2269
    %v2271 = vsel %vm642, %v2261, %v2270
    %v2272 = vsel %vm644, %v2265, %v2271
    %v2274 = vsel %vm647, %v2272, -inf
    %2275 = vmax.xlane.f32.xlu0 %v2274
    %v2276 = vpop.xlane.xlu0 %2275
    %v2278 = vlaneseq
    %v2279 = vshrl.u32 %v2278, 7
    %v2280 = vsub.s32 0, %v2279
    %v2281 = vrot.slane %v2276, %v2280
    %v2282 = vlaneseq
    %v2283 = vshrl.u32 %v2282, 7
    %v2284 = vsub.s32 1, %v2283
    %v2285 = vrot.slane %v2276, %v2284
    %v2286 = vlaneseq
    %v2287 = vshrl.u32 %v2286, 7
    %v2288 = vsub.s32 2, %v2287
    %v2289 = vrot.slane %v2276, %v2288
    %v2290 = vlaneseq
    %v2291 = vshrl.u32 %v2290, 7
    %v2292 = vsub.s32 3, %v2291
    %v2293 = vrot.slane %v2276, %v2292
    %v2294 = vlaneseq
    %v2295 = vshrl.u32 %v2294, 7
    %v2296 = vsub.s32 4, %v2295
    %v2297 = vrot.slane %v2276, %v2296
    %v2298 = vlaneseq
    %v2299 = vshrl.u32 %v2298, 7
    %v2300 = vsub.s32 5, %v2299
    %v2301 = vrot.slane %v2276, %v2300
    %v2302 = vlaneseq
    %v2303 = vshrl.u32 %v2302, 7
    %v2304 = vsub.s32 6, %v2303
    %v2305 = vrot.slane %v2276, %v2304
    %v2306 = vlaneseq
    %v2307 = vshrl.u32 %v2306, 7
    %v2308 = vsub.s32 7, %v2307
    %v2309 = vrot.slane %v2276, %v2308
    %v2318 = vsub.f32 %v2194, %v2281
    %v2319 = vsub.f32 %v2195, %v2285
    %v2320 = vsub.f32 %v2196, %v2289
    %v2321 = vsub.f32 %v2197, %v2293
    %v2322 = vsub.f32 %v2198, %v2297
    %v2323 = vsub.f32 %v2199, %v2301
    %v2324 = vsub.f32 %v2200, %v2305
    %v2325 = vsub.f32 %v2201, %v2309
    %v2326 = vmul.f32 %v2318, 1.442695
    %v2327 = vpow.pop %v2326
    %v2328 = vmul.f32 %v2319, 1.442695
    %v2329 = vpow.pop %v2328
    %v2330 = vmul.f32 %v2320, 1.442695
    %v2331 = vpow.pop %v2330
    %v2332 = vmul.f32 %v2321, 1.442695
    %v2333 = vpow.pop %v2332
    %v2334 = vmul.f32 %v2322, 1.442695
    %v2335 = vpow.pop %v2334
    %v2336 = vmul.f32 %v2323, 1.442695
    %v2337 = vpow.pop %v2336
    %v2338 = vmul.f32 %v2324, 1.442695
    %v2339 = vpow.pop %v2338
    %v2340 = vmul.f32 %v2325, 1.442695
    %v2341 = vpow.pop %v2340
    %2350 = vset.pattern.permute.xlu0 0
    %2351 = vperm.xlu0 %2350, %v2327
    %v2352 = vpop.permute.xlu0 %2351
    %2353 = vset.pattern.permute.xlu0 0
    %2354 = vperm.xlu0 %2353, %v2329
    %v2355 = vpop.permute.xlu0 %2354
    %2356 = vset.pattern.permute.xlu0 0
    %2357 = vperm.xlu0 %2356, %v2331
    %v2358 = vpop.permute.xlu0 %2357
    %2359 = vset.pattern.permute.xlu0 0
    %2360 = vperm.xlu0 %2359, %v2333
    %v2361 = vpop.permute.xlu0 %2360
    %2362 = vset.pattern.permute.xlu0 0
    %2363 = vperm.xlu0 %2362, %v2335
    %v2364 = vpop.permute.xlu0 %2363
    %2365 = vset.pattern.permute.xlu0 0
    %2366 = vperm.xlu0 %2365, %v2337
    %v2367 = vpop.permute.xlu0 %2366
    %2368 = vset.pattern.permute.xlu0 0
    %2369 = vperm.xlu0 %2368, %v2339
    %v2370 = vpop.permute.xlu0 %2369
    %2371 = vset.pattern.permute.xlu0 0
    %2372 = vperm.xlu0 %2371, %v2341
    %v2373 = vpop.permute.xlu0 %2372
    %v2374 = vlaneseq
    %v2375 = vshrl.u32 %v2374, 7
    %v2376 = vsub.s32 %v599, %v2375
    %v2377 = vrot.slane %v2352, %v2376
    %v2378 = vlaneseq
    %v2379 = vshrl.u32 %v2378, 7
    %v2380 = vsub.s32 %v599, %v2379
    %v2381 = vrot.slane %v2355, %v2380
    %v2382 = vlaneseq
    %v2383 = vshrl.u32 %v2382, 7
    %v2384 = vsub.s32 %v599, %v2383
    %v2385 = vrot.slane %v2358, %v2384
    %v2386 = vlaneseq
    %v2387 = vshrl.u32 %v2386, 7
    %v2388 = vsub.s32 %v599, %v2387
    %v2389 = vrot.slane %v2361, %v2388
    %v2390 = vlaneseq
    %v2391 = vshrl.u32 %v2390, 7
    %v2392 = vsub.s32 %v599, %v2391
    %v2393 = vrot.slane %v2364, %v2392
    %v2394 = vlaneseq
    %v2395 = vshrl.u32 %v2394, 7
    %v2396 = vsub.s32 %v599, %v2395
    %v2397 = vrot.slane %v2367, %v2396
    %v2398 = vlaneseq
    %v2399 = vshrl.u32 %v2398, 7
    %v2400 = vsub.s32 %v599, %v2399
    %v2401 = vrot.slane %v2370, %v2400
    %v2402 = vlaneseq
    %v2403 = vshrl.u32 %v2402, 7
    %v2404 = vsub.s32 %v599, %v2403
    %v2405 = vrot.slane %v2373, %v2404
    %v2406 = vsel %vm632, %v2381, %v2377
    %v2407 = vsel %vm634, %v2385, %v2406
    %v2408 = vsel %vm636, %v2389, %v2407
    %v2409 = vsel %vm638, %v2393, %v2408
    %v2410 = vsel %vm640, %v2397, %v2409
    %v2411 = vsel %vm642, %v2401, %v2410
    %v2412 = vsel %vm644, %v2405, %v2411
    %v2414 = vsel %vm647, %v2412, 0.0
    %2415 = vadd.xlane.f32.xlu0 %v2414
    %v2416 = vpop.xlane.xlu0 %2415
    %v2418 = vlaneseq
    %v2419 = vshrl.u32 %v2418, 7
    %v2420 = vsub.s32 0, %v2419
    %v2421 = vrot.slane %v2416, %v2420
    %v2422 = vlaneseq
    %v2423 = vshrl.u32 %v2422, 7
    %v2424 = vsub.s32 1, %v2423
    %v2425 = vrot.slane %v2416, %v2424
    %v2426 = vlaneseq
    %v2427 = vshrl.u32 %v2426, 7
    %v2428 = vsub.s32 2, %v2427
    %v2429 = vrot.slane %v2416, %v2428
    %v2430 = vlaneseq
    %v2431 = vshrl.u32 %v2430, 7
    %v2432 = vsub.s32 3, %v2431
    %v2433 = vrot.slane %v2416, %v2432
    %v2434 = vlaneseq
    %v2435 = vshrl.u32 %v2434, 7
    %v2436 = vsub.s32 4, %v2435
    %v2437 = vrot.slane %v2416, %v2436
    %v2438 = vlaneseq
    %v2439 = vshrl.u32 %v2438, 7
    %v2440 = vsub.s32 5, %v2439
    %v2441 = vrot.slane %v2416, %v2440
    %v2442 = vlaneseq
    %v2443 = vshrl.u32 %v2442, 7
    %v2444 = vsub.s32 6, %v2443
    %v2445 = vrot.slane %v2416, %v2444
    %v2446 = vlaneseq
    %v2447 = vshrl.u32 %v2446, 7
    %v2448 = vsub.s32 7, %v2447
    %v2449 = vrot.slane %v2416, %v2448
    %v2458 = vrcp.pop %v2421
    %v2459 = vmul.f32 %v2327, %v2458
    %v2460 = vrcp.pop %v2425
    %v2461 = vmul.f32 %v2329, %v2460
    %v2462 = vrcp.pop %v2429
    %v2463 = vmul.f32 %v2331, %v2462
    %v2464 = vrcp.pop %v2433
    %v2465 = vmul.f32 %v2333, %v2464
    %v2466 = vrcp.pop %v2437
    %v2467 = vmul.f32 %v2335, %v2466
    %v2468 = vrcp.pop %v2441
    %v2469 = vmul.f32 %v2337, %v2468
    %v2470 = vrcp.pop %v2445
    %v2471 = vmul.f32 %v2339, %v2470
    %v2472 = vrcp.pop %v2449
    %v2473 = vmul.f32 %v2341, %v2472
    %2475 = vset.pattern.permute.xlu0 0
    %2476 = vperm.xlu0 %2475, %v2459
    %v2477 = vpop.permute.xlu0 %2476
    %2480 = vset.pattern.permute.xlu0 0
    %2481 = vperm.xlu0 %2480, %v2461
    %v2482 = vpop.permute.xlu0 %2481
    %2485 = vset.pattern.permute.xlu0 0
    %2486 = vperm.xlu0 %2485, %v2463
    %v2487 = vpop.permute.xlu0 %2486
    %2490 = vset.pattern.permute.xlu0 0
    %2491 = vperm.xlu0 %2490, %v2465
    %v2492 = vpop.permute.xlu0 %2491
    %2495 = vset.pattern.permute.xlu0 0
    %2496 = vperm.xlu0 %2495, %v2467
    %v2497 = vpop.permute.xlu0 %2496
    %2500 = vset.pattern.permute.xlu0 0
    %2501 = vperm.xlu0 %2500, %v2469
    %v2502 = vpop.permute.xlu0 %2501
    %2505 = vset.pattern.permute.xlu0 0
    %2506 = vperm.xlu0 %2505, %v2471
    %v2507 = vpop.permute.xlu0 %2506
    %2510 = vset.pattern.permute.xlu0 0
    %2511 = vperm.xlu0 %2510, %v2473
    %v2512 = vpop.permute.xlu0 %2511
    %v2514 = vmul.f32 %v2477, %v140
    %v2515 = vmul.f32 %v2482, %v141
    %v2516 = vmul.f32 %v2487, %v142
    %v2517 = vmul.f32 %v2492, %v143
    %v2518 = vmul.f32 %v2497, %v144
    %v2519 = vmul.f32 %v2502, %v145
    %v2520 = vmul.f32 %v2507, %v146
    %v2521 = vmul.f32 %v2512, %v147
    %v2522 = vsel %vm298, %v2514, 0.0
    %v2523 = vrot.slane %v2522, 4
    %v2524 = vadd.f32 %v2522, %v2523
    %v2525 = vrot.slane %v2524, 2
    %v2526 = vadd.f32 %v2524, %v2525
    %v2527 = vrot.slane %v2526, 1
    %v2528 = vadd.f32 %v2526, %v2527
    %v2529 = vsel %vm298, %v2515, 0.0
    %v2530 = vrot.slane %v2529, 4
    %v2531 = vadd.f32 %v2529, %v2530
    %v2532 = vrot.slane %v2531, 2
    %v2533 = vadd.f32 %v2531, %v2532
    %v2534 = vrot.slane %v2533, 1
    %v2535 = vadd.f32 %v2533, %v2534
    %v2536 = vsel %vm298, %v2516, 0.0
    %v2537 = vrot.slane %v2536, 4
    %v2538 = vadd.f32 %v2536, %v2537
    %v2539 = vrot.slane %v2538, 2
    %v2540 = vadd.f32 %v2538, %v2539
    %v2541 = vrot.slane %v2540, 1
    %v2542 = vadd.f32 %v2540, %v2541
    %v2543 = vsel %vm298, %v2517, 0.0
    %v2544 = vrot.slane %v2543, 4
    %v2545 = vadd.f32 %v2543, %v2544
    %v2546 = vrot.slane %v2545, 2
    %v2547 = vadd.f32 %v2545, %v2546
    %v2548 = vrot.slane %v2547, 1
    %v2549 = vadd.f32 %v2547, %v2548
    %v2550 = vsel %vm298, %v2518, 0.0
    %v2551 = vrot.slane %v2550, 4
    %v2552 = vadd.f32 %v2550, %v2551
    %v2553 = vrot.slane %v2552, 2
    %v2554 = vadd.f32 %v2552, %v2553
    %v2555 = vrot.slane %v2554, 1
    %v2556 = vadd.f32 %v2554, %v2555
    %v2557 = vsel %vm298, %v2519, 0.0
    %v2558 = vrot.slane %v2557, 4
    %v2559 = vadd.f32 %v2557, %v2558
    %v2560 = vrot.slane %v2559, 2
    %v2561 = vadd.f32 %v2559, %v2560
    %v2562 = vrot.slane %v2561, 1
    %v2563 = vadd.f32 %v2561, %v2562
    %v2564 = vsel %vm298, %v2520, 0.0
    %v2565 = vrot.slane %v2564, 4
    %v2566 = vadd.f32 %v2564, %v2565
    %v2567 = vrot.slane %v2566, 2
    %v2568 = vadd.f32 %v2566, %v2567
    %v2569 = vrot.slane %v2568, 1
    %v2570 = vadd.f32 %v2568, %v2569
    %v2571 = vsel %vm298, %v2521, 0.0
    %v2572 = vrot.slane %v2571, 4
    %v2573 = vadd.f32 %v2571, %v2572
    %v2574 = vrot.slane %v2573, 2
    %v2575 = vadd.f32 %v2573, %v2574
    %v2576 = vrot.slane %v2575, 1
    %v2577 = vadd.f32 %v2575, %v2576
    %v2586 = vsel %vm632, %v2535, %v2528
    %v2587 = vsel %vm634, %v2542, %v2586
    %v2588 = vsel %vm636, %v2549, %v2587
    %v2589 = vsel %vm638, %v2556, %v2588
    %v2590 = vsel %vm640, %v2563, %v2589
    %v2591 = vsel %vm642, %v2570, %v2590
    %v2592 = vsel %vm644, %v2577, %v2591
    %v2593 = vsel %vm298, %v2592, 0
    %2595 = vmatprep.subr.mxu0 0.0
    %2596 = vmatpush1.msra.mxu0 0.0
    %2597 = vmatprep.subr.mxu0 0.0
    %2598 = vmatpush1.msra.mxu0 0.0
    %2599 = vmatprep.subr.mxu0 0.0
    %2600 = vmatpush1.msra.mxu0 0.0
    %2601 = vmatprep.subr.mxu0 0.0
    %2602 = vmatpush1.msra.mxu0 0.0
    %2603 = vmatprep.subr.mxu0 0.0
    %2604 = vmatpush1.msra.mxu0 0.0
    %2605 = vmatprep.subr.mxu0 0.0
    %2606 = vmatpush1.msra.mxu0 0.0
    %2607 = vmatprep.subr.mxu0 0.0
    %2608 = vmatpush1.msra.mxu0 0.0
    %2609 = vmatprep.subr.mxu0 0.0
    %2610 = vmatpush1.msra.mxu0 0.0
    %2611 = vmatprep.subr.mxu0 0.0
    %2612 = vmatpush1.msra.mxu0 0.0
    %2613 = vmatprep.subr.mxu0 0.0
    %2614 = vmatpush1.msra.mxu0 0.0
    %2615 = vmatprep.subr.mxu0 0.0
    %2616 = vmatpush1.msra.mxu0 0.0
    %2617 = vmatprep.subr.mxu0 0.0
    %2618 = vmatpush1.msra.mxu0 0.0
    %2619 = vmatprep.subr.mxu0 0.0
    %2620 = vmatpush1.msra.mxu0 %v162
    %2621 = vmatprep.subr.mxu0 0.0
    %2622 = vmatpush1.msra.mxu0 %v161
    %2623 = vmatprep.subr.mxu0 0.0
    %2624 = vmatpush1.msra.mxu0 %v160
    %2625 = vmatprep.subr.mxu0 0.0
    %2626 = vmatpush1.msra.mxu0 %v159
    %2627 = vmatprep.subr.mxu0 0.0
    %2628 = vmatpush2.msra.mxu0 0.0
    %2629 = vmatprep.subr.mxu0 0.0
    %2630 = vmatpush2.msra.mxu0 0.0
    %2631 = vmatprep.subr.mxu0 0.0
    %2632 = vmatpush2.msra.mxu0 0.0
    %2633 = vmatprep.subr.mxu0 0.0
    %2634 = vmatpush2.msra.mxu0 0.0
    %2635 = vmatprep.subr.mxu0 0.0
    %2636 = vmatpush2.msra.mxu0 0.0
    %2637 = vmatprep.subr.mxu0 0.0
    %2638 = vmatpush2.msra.mxu0 0.0
    %2639 = vmatprep.subr.mxu0 0.0
    %2640 = vmatpush2.msra.mxu0 0.0
    %2641 = vmatprep.subr.mxu0 0.0
    %2642 = vmatpush2.msra.mxu0 0.0
    %2643 = vmatprep.subr.mxu0 0.0
    %2644 = vmatpush2.msra.mxu0 0.0
    %2645 = vmatprep.subr.mxu0 0.0
    %2646 = vmatpush2.msra.mxu0 0.0
    %2647 = vmatprep.subr.mxu0 0.0
    %2648 = vmatpush2.msra.mxu0 0.0
    %2649 = vmatprep.subr.mxu0 0.0
    %2650 = vmatpush2.msra.mxu0 0.0
    %2651 = vmatprep.subr.mxu0 0.0
    %2652 = vmatpush2.msra.mxu0 0.0
    %2653 = vmatprep.subr.mxu0 0.0
    %2654 = vmatpush2.msra.mxu0 0.0
    %2655 = vmatprep.subr.mxu0 0.0
    %2656 = vmatpush2.msra.mxu0 0.0
    %2657 = vmatprep.subr.mxu0 0.0
    %2658 = vmatpush2.msra.mxu0 0.0
    %2659 = vmatprep.mubr.f32.mxu0 0.0
    %2660 = vmatmul.mubr.f32.gmra.mxu0 %v2593
    %v2661 = vpop.f32.mrf.mxu0
    %v2662 = vadd.f32 %v182, %v2661
    %v2663 = vpop.f32.mrf.mxu0
    %2664 = vdwg.mxu0
    %v2665 = vmax.f32 %v2662, 0.0
    %s2666 = scalar_lea.vmem [#allocation14], 16
    %2667 = vst.msk [vmem:[%s2666] sm:$0xff] %vm191, %v2665
    %v2668 = vlaneseq
    %v2669 = vshrl.u32 %v2668, 7
    %v2670 = vsub.s32 %v599, %v2669
    %v2671 = vrot.slane %v2477, %v2670
    %v2672 = vlaneseq
    %v2673 = vshrl.u32 %v2672, 7
    %v2674 = vsub.s32 %v599, %v2673
    %v2675 = vrot.slane %v2482, %v2674
    %v2676 = vlaneseq
    %v2677 = vshrl.u32 %v2676, 7
    %v2678 = vsub.s32 %v599, %v2677
    %v2679 = vrot.slane %v2487, %v2678
    %v2680 = vlaneseq
    %v2681 = vshrl.u32 %v2680, 7
    %v2682 = vsub.s32 %v599, %v2681
    %v2683 = vrot.slane %v2492, %v2682
    %v2684 = vlaneseq
    %v2685 = vshrl.u32 %v2684, 7
    %v2686 = vsub.s32 %v599, %v2685
    %v2687 = vrot.slane %v2497, %v2686
    %v2688 = vlaneseq
    %v2689 = vshrl.u32 %v2688, 7
    %v2690 = vsub.s32 %v599, %v2689
    %v2691 = vrot.slane %v2502, %v2690
    %v2692 = vlaneseq
    %v2693 = vshrl.u32 %v2692, 7
    %v2694 = vsub.s32 %v599, %v2693
    %v2695 = vrot.slane %v2507, %v2694
    %v2696 = vlaneseq
    %v2697 = vshrl.u32 %v2696, 7
    %v2698 = vsub.s32 %v599, %v2697
    %v2699 = vrot.slane %v2512, %v2698
    %v2700 = vsel %vm632, %v2675, %v2671
    %v2701 = vsel %vm634, %v2679, %v2700
    %v2702 = vsel %vm636, %v2683, %v2701
    %v2703 = vsel %vm638, %v2687, %v2702
    %v2704 = vsel %vm640, %v2691, %v2703
    %v2705 = vsel %vm642, %v2695, %v2704
    %v2706 = vsel %vm644, %v2699, %v2705
    %s2708 = scalar_lea.vmem [#allocation15], 16
    %2709 = vst.msk [vmem:[%s2708] sm:$0xff] %vm647, %v2706
    %2710 = vrot.lane.b32.xlu0 %v1996, 48
    %v2711 = vpop.permute.xlu0 %2710
    %v2713 = vsel %vm191, %v2665, %v2711
    %v2715 = vsel %vm193, %v2713, 0
    %2717 = vmatprep.subr.mxu0 0.0
    %2718 = vmatpush1.msra.mxu0 0.0
    %2719 = vmatprep.subr.mxu0 0.0
    %2720 = vmatpush1.msra.mxu0 0.0
    %2721 = vmatprep.subr.mxu0 0.0
    %2722 = vmatpush1.msra.mxu0 0.0
    %2723 = vmatprep.subr.mxu0 0.0
    %2724 = vmatpush1.msra.mxu0 0.0
    %2725 = vmatprep.subr.mxu0 0.0
    %2726 = vmatpush1.msra.mxu0 0.0
    %2727 = vmatprep.subr.mxu0 0.0
    %2728 = vmatpush1.msra.mxu0 0.0
    %2729 = vmatprep.subr.mxu0 0.0
    %2730 = vmatpush1.msra.mxu0 0.0
    %2731 = vmatprep.subr.mxu0 0.0
    %2732 = vmatpush1.msra.mxu0 0.0
    %2733 = vmatprep.subr.mxu0 0.0
    %2734 = vmatpush1.msra.mxu0 0.0
    %2735 = vmatprep.subr.mxu0 0.0
    %2736 = vmatpush1.msra.mxu0 0.0
    %2737 = vmatprep.subr.mxu0 0.0
    %2738 = vmatpush1.msra.mxu0 %v154
    %2739 = vmatprep.subr.mxu0 0.0
    %2740 = vmatpush1.msra.mxu0 %v153
    %2741 = vmatprep.subr.mxu0 0.0
    %2742 = vmatpush1.msra.mxu0 %v152
    %2743 = vmatprep.subr.mxu0 0.0
    %2744 = vmatpush1.msra.mxu0 %v151
    %2745 = vmatprep.subr.mxu0 0.0
    %2746 = vmatpush1.msra.mxu0 %v150
    %2747 = vmatprep.subr.mxu0 0.0
    %2748 = vmatpush1.msra.mxu0 %v149
    %2749 = vmatprep.subr.mxu0 0.0
    %2750 = vmatpush2.msra.mxu0 0.0
    %2751 = vmatprep.subr.mxu0 0.0
    %2752 = vmatpush2.msra.mxu0 0.0
    %2753 = vmatprep.subr.mxu0 0.0
    %2754 = vmatpush2.msra.mxu0 0.0
    %2755 = vmatprep.subr.mxu0 0.0
    %2756 = vmatpush2.msra.mxu0 0.0
    %2757 = vmatprep.subr.mxu0 0.0
    %2758 = vmatpush2.msra.mxu0 0.0
    %2759 = vmatprep.subr.mxu0 0.0
    %2760 = vmatpush2.msra.mxu0 0.0
    %2761 = vmatprep.subr.mxu0 0.0
    %2762 = vmatpush2.msra.mxu0 0.0
    %2763 = vmatprep.subr.mxu0 0.0
    %2764 = vmatpush2.msra.mxu0 0.0
    %2765 = vmatprep.subr.mxu0 0.0
    %2766 = vmatpush2.msra.mxu0 0.0
    %2767 = vmatprep.subr.mxu0 0.0
    %2768 = vmatpush2.msra.mxu0 0.0
    %2769 = vmatprep.subr.mxu0 0.0
    %2770 = vmatpush2.msra.mxu0 0.0
    %2771 = vmatprep.subr.mxu0 0.0
    %2772 = vmatpush2.msra.mxu0 0.0
    %2773 = vmatprep.subr.mxu0 0.0
    %2774 = vmatpush2.msra.mxu0 0.0
    %2775 = vmatprep.subr.mxu0 0.0
    %2776 = vmatpush2.msra.mxu0 0.0
    %2777 = vmatprep.subr.mxu0 0.0
    %2778 = vmatpush2.msra.mxu0 0.0
    %2779 = vmatprep.subr.mxu0 0.0
    %2780 = vmatpush2.msra.mxu0 0.0
    %2781 = vmatprep.mubr.f32.mxu0 0.0
    %2782 = vmatmul.mubr.f32.gmra.mxu0 %v2715
    %v2783 = vpop.f32.mrf.mxu0
    %v2784 = vadd.f32 %v168, %v2783
    %v2785 = vpop.f32.mrf.mxu0
    %2786 = vdwg.mxu0
    %v2787 = vxor.u32 %v2784, 2147483648
    %v2788 = vmul.f32 %v2787, 1.442695
    %v2789 = vpow.pop %v2788
    %v2790 = vadd.f32 %v2789, 1.0
    %v2791 = vrcp.pop %v2790
    %v2792 = vmul.f32 1.0, %v2791
    %v2793 = vtanh.pop %v2784
    %v2794 = vmul.f32 %v2792, %v1990
    %2796 = vrot.lane.b32.xlu0 %v2793, 64
    %v2797 = vpop.permute.xlu0 %2796
    %v2799 = vmul.f32 %v2792, %v2797
    %2801 = vrot.lane.b32.xlu0 %v2799, 32
    %v2802 = vpop.permute.xlu0 %2801
    %v2804 = vadd.f32 %v2794, %v2802
    %v2805 = vtanh.pop %v2804
    %2807 = vrot.lane.b32.xlu0 %v2805, 64
    %v2808 = vpop.permute.xlu0 %2807
    %v2810 = vmul.f32 %v2792, %v2808
    %2812 = vrot.lane.b32.xlu0 %v2810, 32
    %v2813 = vpop.permute.xlu0 %2812
    %v2814 = vsel %vm298, %v2813, 0
    %2816 = vmatprep.subr.mxu0 0.0
    %2817 = vmatpush1.msra.mxu0 0.0
    %2818 = vmatprep.subr.mxu0 0.0
    %2819 = vmatpush1.msra.mxu0 0.0
    %2820 = vmatprep.subr.mxu0 0.0
    %2821 = vmatpush1.msra.mxu0 0.0
    %2822 = vmatprep.subr.mxu0 0.0
    %2823 = vmatpush1.msra.mxu0 0.0
    %2824 = vmatprep.subr.mxu0 0.0
    %2825 = vmatpush1.msra.mxu0 0.0
    %2826 = vmatprep.subr.mxu0 0.0
    %2827 = vmatpush1.msra.mxu0 0.0
    %2828 = vmatprep.subr.mxu0 0.0
    %2829 = vmatpush1.msra.mxu0 0.0
    %2830 = vmatprep.subr.mxu0 0.0
    %2831 = vmatpush1.msra.mxu0 0.0
    %2832 = vmatprep.subr.mxu0 0.0
    %2833 = vmatpush1.msra.mxu0 0.0
    %2834 = vmatprep.subr.mxu0 0.0
    %2835 = vmatpush1.msra.mxu0 0.0
    %2836 = vmatprep.subr.mxu0 0.0
    %2837 = vmatpush1.msra.mxu0 0.0
    %2838 = vmatprep.subr.mxu0 0.0
    %2839 = vmatpush1.msra.mxu0 0.0
    %2840 = vmatprep.subr.mxu0 0.0
    %2841 = vmatpush1.msra.mxu0 %v158
    %2842 = vmatprep.subr.mxu0 0.0
    %2843 = vmatpush1.msra.mxu0 %v157
    %2844 = vmatprep.subr.mxu0 0.0
    %2845 = vmatpush1.msra.mxu0 %v156
    %2846 = vmatprep.subr.mxu0 0.0
    %2847 = vmatpush1.msra.mxu0 %v155
    %2848 = vmatprep.subr.mxu0 0.0
    %2849 = vmatpush2.msra.mxu0 0.0
    %2850 = vmatprep.subr.mxu0 0.0
    %2851 = vmatpush2.msra.mxu0 0.0
    %2852 = vmatprep.subr.mxu0 0.0
    %2853 = vmatpush2.msra.mxu0 0.0
    %2854 = vmatprep.subr.mxu0 0.0
    %2855 = vmatpush2.msra.mxu0 0.0
    %2856 = vmatprep.subr.mxu0 0.0
    %2857 = vmatpush2.msra.mxu0 0.0
    %2858 = vmatprep.subr.mxu0 0.0
    %2859 = vmatpush2.msra.mxu0 0.0
    %2860 = vmatprep.subr.mxu0 0.0
    %2861 = vmatpush2.msra.mxu0 0.0
    %2862 = vmatprep.subr.mxu0 0.0
    %2863 = vmatpush2.msra.mxu0 0.0
    %2864 = vmatprep.subr.mxu0 0.0
    %2865 = vmatpush2.msra.mxu0 0.0
    %2866 = vmatprep.subr.mxu0 0.0
    %2867 = vmatpush2.msra.mxu0 0.0
    %2868 = vmatprep.subr.mxu0 0.0
    %2869 = vmatpush2.msra.mxu0 0.0
    %2870 = vmatprep.subr.mxu0 0.0
    %2871 = vmatpush2.msra.mxu0 0.0
    %2872 = vmatprep.subr.mxu0 0.0
    %2873 = vmatpush2.msra.mxu0 0.0
    %2874 = vmatprep.subr.mxu0 0.0
    %2875 = vmatpush2.msra.mxu0 0.0
    %2876 = vmatprep.subr.mxu0 0.0
    %2877 = vmatpush2.msra.mxu0 0.0
    %2878 = vmatprep.subr.mxu0 0.0
    %2879 = vmatpush2.msra.mxu0 0.0
    %2880 = vmatprep.mubr.f32.mxu0 0.0
    %2881 = vmatmul.mubr.f32.gmra.mxu0 %v2814
    %v2882 = vpop.f32.mrf.mxu0
    %v2883 = vadd.f32 %v175, %v2882
    %v2884 = vpop.f32.mrf.mxu0
    %2885 = vdwg.mxu0
    %v2887 = vcombine.high %v2883, %v2883
    %v2889 = vunpack.c.l.s4 1966171168
    %v2890 = vunpack.c.0.s8 %v2889
    %v2891 = vlaneseq
    %v2892 = vshrl.u32 %v2891, 7
    %v2893 = vsub.s32 %v2890, %v2892
    %v2894 = vrot.slane %v2883, %v2893
    %v2896 = vunpack.c.l.s4 1966171168
    %v2897 = vunpack.c.0.s8 %v2896
    %v2898 = vlaneseq
    %v2899 = vshrl.u32 %v2898, 7
    %v2900 = vsub.s32 %v2897, %v2899
    %v2901 = vrot.slane %v2887, %v2900
    %v2902 = vcombine.high %v2894, %v2894
    %v2903 = vcombine.high %v2901, %v2901
    %v2905 = vunpack.c.l.s4 1966171168
    %v2906 = vunpack.c.0.s8 %v2905
    %v2907 = vlaneseq
    %v2908 = vshrl.u32 %v2907, 7
    %v2909 = vsub.s32 %v2906, %v2908
    %v2910 = vrot.slane %v2894, %v2909
    %v2912 = vunpack.c.l.s4 1966171168
    %v2913 = vunpack.c.0.s8 %v2912
    %v2914 = vlaneseq
    %v2915 = vshrl.u32 %v2914, 7
    %v2916 = vsub.s32 %v2913, %v2915
    %v2917 = vrot.slane %v2901, %v2916
    %v2919 = vunpack.c.l.s4 1966171168
    %v2920 = vunpack.c.0.s8 %v2919
    %v2921 = vlaneseq
    %v2922 = vshrl.u32 %v2921, 7
    %v2923 = vsub.s32 %v2920, %v2922
    %v2924 = vrot.slane %v2902, %v2923
    %v2926 = vunpack.c.l.s4 1966171168
    %v2927 = vunpack.c.0.s8 %v2926
    %v2928 = vlaneseq
    %v2929 = vshrl.u32 %v2928, 7
    %v2930 = vsub.s32 %v2927, %v2929
    %v2931 = vrot.slane %v2903, %v2930
    %v2932 = vcombine.high %v2910, %v2910
    %v2933 = vcombine.high %v2917, %v2917
    %v2934 = vcombine.high %v2924, %v2924
    %v2935 = vcombine.high %v2931, %v2931
    %v2936 = vlaneseq
    %v2937 = vshrl.u32 %v2936, 7
    %v2938 = vsub.s32 0, %v2937
    %v2939 = vrot.slane %v2910, %v2938
    %v2940 = vlaneseq
    %v2941 = vshrl.u32 %v2940, 7
    %v2942 = vsub.s32 0, %v2941
    %v2943 = vrot.slane %v2924, %v2942
    %v2944 = vlaneseq
    %v2945 = vshrl.u32 %v2944, 7
    %v2946 = vsub.s32 0, %v2945
    %v2947 = vrot.slane %v2932, %v2946
    %v2948 = vlaneseq
    %v2949 = vshrl.u32 %v2948, 7
    %v2950 = vsub.s32 0, %v2949
    %v2951 = vrot.slane %v2934, %v2950
    %v2952 = vlaneseq
    %v2953 = vshrl.u32 %v2952, 7
    %v2954 = vsub.s32 0, %v2953
    %v2955 = vrot.slane %v2917, %v2954
    %v2956 = vlaneseq
    %v2957 = vshrl.u32 %v2956, 7
    %v2958 = vsub.s32 0, %v2957
    %v2959 = vrot.slane %v2931, %v2958
    %v2960 = vlaneseq
    %v2961 = vshrl.u32 %v2960, 7
    %v2962 = vsub.s32 0, %v2961
    %v2963 = vrot.slane %v2933, %v2962
    %v2964 = vlaneseq
    %v2965 = vshrl.u32 %v2964, 7
    %v2966 = vsub.s32 0, %v2965
    %v2967 = vrot.slane %v2935, %v2966
    %v2976 = vmul.f32 %v2939, %v132
    %v2977 = vmul.f32 %v2943, %v133
    %v2978 = vmul.f32 %v2947, %v134
    %v2979 = vmul.f32 %v2951, %v135
    %v2980 = vmul.f32 %v2955, %v136
    %v2981 = vmul.f32 %v2959, %v137
    %v2982 = vmul.f32 %v2963, %v138
    %v2983 = vmul.f32 %v2967, %v139
    %v2984 = vsel %vm298, %v2976, 0.0
    %2985 = vadd.xlane.f32.xlu0 %v2984
    %v2986 = vpop.xlane.xlu0 %2985
    %v2987 = vsel %vm298, %v2977, 0.0
    %2988 = vadd.xlane.f32.xlu0 %v2987
    %v2989 = vpop.xlane.xlu0 %2988
    %v2990 = vsel %vm298, %v2978, 0.0
    %2991 = vadd.xlane.f32.xlu0 %v2990
    %v2992 = vpop.xlane.xlu0 %2991
    %v2993 = vsel %vm298, %v2979, 0.0
    %2994 = vadd.xlane.f32.xlu0 %v2993
    %v2995 = vpop.xlane.xlu0 %2994
    %v2996 = vsel %vm298, %v2980, 0.0
    %2997 = vadd.xlane.f32.xlu0 %v2996
    %v2998 = vpop.xlane.xlu0 %2997
    %v2999 = vsel %vm298, %v2981, 0.0
    %3000 = vadd.xlane.f32.xlu0 %v2999
    %v3001 = vpop.xlane.xlu0 %3000
    %v3002 = vsel %vm298, %v2982, 0.0
    %3003 = vadd.xlane.f32.xlu0 %v3002
    %v3004 = vpop.xlane.xlu0 %3003
    %v3005 = vsel %vm298, %v2983, 0.0
    %3006 = vadd.xlane.f32.xlu0 %v3005
    %v3007 = vpop.xlane.xlu0 %3006
    %v3008 = vadd.f32 %v2986, %v500
    %v3009 = vadd.f32 %v2989, %v507
    %v3010 = vadd.f32 %v2992, %v514
    %v3011 = vadd.f32 %v2995, %v521
    %v3012 = vadd.f32 %v2998, %v528
    %v3013 = vadd.f32 %v3001, %v535
    %v3014 = vadd.f32 %v3004, %v542
    %v3015 = vadd.f32 %v3007, %v549
    %3024 = vset.pattern.permute.xlu0 0
    %3025 = vperm.xlu0 %3024, %v3008
    %v3026 = vpop.permute.xlu0 %3025
    %3027 = vset.pattern.permute.xlu0 0
    %3028 = vperm.xlu0 %3027, %v3009
    %v3029 = vpop.permute.xlu0 %3028
    %3030 = vset.pattern.permute.xlu0 0
    %3031 = vperm.xlu0 %3030, %v3010
    %v3032 = vpop.permute.xlu0 %3031
    %3033 = vset.pattern.permute.xlu0 0
    %3034 = vperm.xlu0 %3033, %v3011
    %v3035 = vpop.permute.xlu0 %3034
    %3036 = vset.pattern.permute.xlu0 0
    %3037 = vperm.xlu0 %3036, %v3012
    %v3038 = vpop.permute.xlu0 %3037
    %3039 = vset.pattern.permute.xlu0 0
    %3040 = vperm.xlu0 %3039, %v3013
    %v3041 = vpop.permute.xlu0 %3040
    %3042 = vset.pattern.permute.xlu0 0
    %3043 = vperm.xlu0 %3042, %v3014
    %v3044 = vpop.permute.xlu0 %3043
    %3045 = vset.pattern.permute.xlu0 0
    %3046 = vperm.xlu0 %3045, %v3015
    %v3047 = vpop.permute.xlu0 %3046
    %v3048 = vlaneseq
    %v3049 = vshrl.u32 %v3048, 7
    %v3050 = vsub.s32 %v599, %v3049
    %v3051 = vrot.slane %v3026, %v3050
    %v3052 = vlaneseq
    %v3053 = vshrl.u32 %v3052, 7
    %v3054 = vsub.s32 %v599, %v3053
    %v3055 = vrot.slane %v3029, %v3054
    %v3056 = vlaneseq
    %v3057 = vshrl.u32 %v3056, 7
    %v3058 = vsub.s32 %v599, %v3057
    %v3059 = vrot.slane %v3032, %v3058
    %v3060 = vlaneseq
    %v3061 = vshrl.u32 %v3060, 7
    %v3062 = vsub.s32 %v599, %v3061
    %v3063 = vrot.slane %v3035, %v3062
    %v3064 = vlaneseq
    %v3065 = vshrl.u32 %v3064, 7
    %v3066 = vsub.s32 %v599, %v3065
    %v3067 = vrot.slane %v3038, %v3066
    %v3068 = vlaneseq
    %v3069 = vshrl.u32 %v3068, 7
    %v3070 = vsub.s32 %v599, %v3069
    %v3071 = vrot.slane %v3041, %v3070
    %v3072 = vlaneseq
    %v3073 = vshrl.u32 %v3072, 7
    %v3074 = vsub.s32 %v599, %v3073
    %v3075 = vrot.slane %v3044, %v3074
    %v3076 = vlaneseq
    %v3077 = vshrl.u32 %v3076, 7
    %v3078 = vsub.s32 %v599, %v3077
    %v3079 = vrot.slane %v3047, %v3078
    %v3080 = vsel %vm632, %v3055, %v3051
    %v3081 = vsel %vm634, %v3059, %v3080
    %v3082 = vsel %vm636, %v3063, %v3081
    %v3083 = vsel %vm638, %v3067, %v3082
    %v3084 = vsel %vm640, %v3071, %v3083
    %v3085 = vsel %vm642, %v3075, %v3084
    %v3086 = vsel %vm644, %v3079, %v3085
    %v3088 = vsel %vm647, %v3086, -inf
    %3089 = vmax.xlane.f32.xlu0 %v3088
    %v3090 = vpop.xlane.xlu0 %3089
    %v3092 = vlaneseq
    %v3093 = vshrl.u32 %v3092, 7
    %v3094 = vsub.s32 0, %v3093
    %v3095 = vrot.slane %v3090, %v3094
    %v3096 = vlaneseq
    %v3097 = vshrl.u32 %v3096, 7
    %v3098 = vsub.s32 1, %v3097
    %v3099 = vrot.slane %v3090, %v3098
    %v3100 = vlaneseq
    %v3101 = vshrl.u32 %v3100, 7
    %v3102 = vsub.s32 2, %v3101
    %v3103 = vrot.slane %v3090, %v3102
    %v3104 = vlaneseq
    %v3105 = vshrl.u32 %v3104, 7
    %v3106 = vsub.s32 3, %v3105
    %v3107 = vrot.slane %v3090, %v3106
    %v3108 = vlaneseq
    %v3109 = vshrl.u32 %v3108, 7
    %v3110 = vsub.s32 4, %v3109
    %v3111 = vrot.slane %v3090, %v3110
    %v3112 = vlaneseq
    %v3113 = vshrl.u32 %v3112, 7
    %v3114 = vsub.s32 5, %v3113
    %v3115 = vrot.slane %v3090, %v3114
    %v3116 = vlaneseq
    %v3117 = vshrl.u32 %v3116, 7
    %v3118 = vsub.s32 6, %v3117
    %v3119 = vrot.slane %v3090, %v3118
    %v3120 = vlaneseq
    %v3121 = vshrl.u32 %v3120, 7
    %v3122 = vsub.s32 7, %v3121
    %v3123 = vrot.slane %v3090, %v3122
    %v3132 = vsub.f32 %v3008, %v3095
    %v3133 = vsub.f32 %v3009, %v3099
    %v3134 = vsub.f32 %v3010, %v3103
    %v3135 = vsub.f32 %v3011, %v3107
    %v3136 = vsub.f32 %v3012, %v3111
    %v3137 = vsub.f32 %v3013, %v3115
    %v3138 = vsub.f32 %v3014, %v3119
    %v3139 = vsub.f32 %v3015, %v3123
    %v3140 = vmul.f32 %v3132, 1.442695
    %v3141 = vpow.pop %v3140
    %v3142 = vmul.f32 %v3133, 1.442695
    %v3143 = vpow.pop %v3142
    %v3144 = vmul.f32 %v3134, 1.442695
    %v3145 = vpow.pop %v3144
    %v3146 = vmul.f32 %v3135, 1.442695
    %v3147 = vpow.pop %v3146
    %v3148 = vmul.f32 %v3136, 1.442695
    %v3149 = vpow.pop %v3148
    %v3150 = vmul.f32 %v3137, 1.442695
    %v3151 = vpow.pop %v3150
    %v3152 = vmul.f32 %v3138, 1.442695
    %v3153 = vpow.pop %v3152
    %v3154 = vmul.f32 %v3139, 1.442695
    %v3155 = vpow.pop %v3154
    %3164 = vset.pattern.permute.xlu0 0
    %3165 = vperm.xlu0 %3164, %v3141
    %v3166 = vpop.permute.xlu0 %3165
    %3167 = vset.pattern.permute.xlu0 0
    %3168 = vperm.xlu0 %3167, %v3143
    %v3169 = vpop.permute.xlu0 %3168
    %3170 = vset.pattern.permute.xlu0 0
    %3171 = vperm.xlu0 %3170, %v3145
    %v3172 = vpop.permute.xlu0 %3171
    %3173 = vset.pattern.permute.xlu0 0
    %3174 = vperm.xlu0 %3173, %v3147
    %v3175 = vpop.permute.xlu0 %3174
    %3176 = vset.pattern.permute.xlu0 0
    %3177 = vperm.xlu0 %3176, %v3149
    %v3178 = vpop.permute.xlu0 %3177
    %3179 = vset.pattern.permute.xlu0 0
    %3180 = vperm.xlu0 %3179, %v3151
    %v3181 = vpop.permute.xlu0 %3180
    %3182 = vset.pattern.permute.xlu0 0
    %3183 = vperm.xlu0 %3182, %v3153
    %v3184 = vpop.permute.xlu0 %3183
    %3185 = vset.pattern.permute.xlu0 0
    %3186 = vperm.xlu0 %3185, %v3155
    %v3187 = vpop.permute.xlu0 %3186
    %v3188 = vlaneseq
    %v3189 = vshrl.u32 %v3188, 7
    %v3190 = vsub.s32 %v599, %v3189
    %v3191 = vrot.slane %v3166, %v3190
    %v3192 = vlaneseq
    %v3193 = vshrl.u32 %v3192, 7
    %v3194 = vsub.s32 %v599, %v3193
    %v3195 = vrot.slane %v3169, %v3194
    %v3196 = vlaneseq
    %v3197 = vshrl.u32 %v3196, 7
    %v3198 = vsub.s32 %v599, %v3197
    %v3199 = vrot.slane %v3172, %v3198
    %v3200 = vlaneseq
    %v3201 = vshrl.u32 %v3200, 7
    %v3202 = vsub.s32 %v599, %v3201
    %v3203 = vrot.slane %v3175, %v3202
    %v3204 = vlaneseq
    %v3205 = vshrl.u32 %v3204, 7
    %v3206 = vsub.s32 %v599, %v3205
    %v3207 = vrot.slane %v3178, %v3206
    %v3208 = vlaneseq
    %v3209 = vshrl.u32 %v3208, 7
    %v3210 = vsub.s32 %v599, %v3209
    %v3211 = vrot.slane %v3181, %v3210
    %v3212 = vlaneseq
    %v3213 = vshrl.u32 %v3212, 7
    %v3214 = vsub.s32 %v599, %v3213
    %v3215 = vrot.slane %v3184, %v3214
    %v3216 = vlaneseq
    %v3217 = vshrl.u32 %v3216, 7
    %v3218 = vsub.s32 %v599, %v3217
    %v3219 = vrot.slane %v3187, %v3218
    %v3220 = vsel %vm632, %v3195, %v3191
    %v3221 = vsel %vm634, %v3199, %v3220
    %v3222 = vsel %vm636, %v3203, %v3221
    %v3223 = vsel %vm638, %v3207, %v3222
    %v3224 = vsel %vm640, %v3211, %v3223
    %v3225 = vsel %vm642, %v3215, %v3224
    %v3226 = vsel %vm644, %v3219, %v3225
    %v3228 = vsel %vm647, %v3226, 0.0
    %3229 = vadd.xlane.f32.xlu0 %v3228
    %v3230 = vpop.xlane.xlu0 %3229
    %v3232 = vlaneseq
    %v3233 = vshrl.u32 %v3232, 7
    %v3234 = vsub.s32 0, %v3233
    %v3235 = vrot.slane %v3230, %v3234
    %v3236 = vlaneseq
    %v3237 = vshrl.u32 %v3236, 7
    %v3238 = vsub.s32 1, %v3237
    %v3239 = vrot.slane %v3230, %v3238
    %v3240 = vlaneseq
    %v3241 = vshrl.u32 %v3240, 7
    %v3242 = vsub.s32 2, %v3241
    %v3243 = vrot.slane %v3230, %v3242
    %v3244 = vlaneseq
    %v3245 = vshrl.u32 %v3244, 7
    %v3246 = vsub.s32 3, %v3245
    %v3247 = vrot.slane %v3230, %v3246
    %v3248 = vlaneseq
    %v3249 = vshrl.u32 %v3248, 7
    %v3250 = vsub.s32 4, %v3249
    %v3251 = vrot.slane %v3230, %v3250
    %v3252 = vlaneseq
    %v3253 = vshrl.u32 %v3252, 7
    %v3254 = vsub.s32 5, %v3253
    %v3255 = vrot.slane %v3230, %v3254
    %v3256 = vlaneseq
    %v3257 = vshrl.u32 %v3256, 7
    %v3258 = vsub.s32 6, %v3257
    %v3259 = vrot.slane %v3230, %v3258
    %v3260 = vlaneseq
    %v3261 = vshrl.u32 %v3260, 7
    %v3262 = vsub.s32 7, %v3261
    %v3263 = vrot.slane %v3230, %v3262
    %v3272 = vrcp.pop %v3235
    %v3273 = vmul.f32 %v3141, %v3272
    %v3274 = vrcp.pop %v3239
    %v3275 = vmul.f32 %v3143, %v3274
    %v3276 = vrcp.pop %v3243
    %v3277 = vmul.f32 %v3145, %v3276
    %v3278 = vrcp.pop %v3247
    %v3279 = vmul.f32 %v3147, %v3278
    %v3280 = vrcp.pop %v3251
    %v3281 = vmul.f32 %v3149, %v3280
    %v3282 = vrcp.pop %v3255
    %v3283 = vmul.f32 %v3151, %v3282
    %v3284 = vrcp.pop %v3259
    %v3285 = vmul.f32 %v3153, %v3284
    %v3286 = vrcp.pop %v3263
    %v3287 = vmul.f32 %v3155, %v3286
    %3289 = vset.pattern.permute.xlu0 0
    %3290 = vperm.xlu0 %3289, %v3273
    %v3291 = vpop.permute.xlu0 %3290
    %3294 = vset.pattern.permute.xlu0 0
    %3295 = vperm.xlu0 %3294, %v3275
    %v3296 = vpop.permute.xlu0 %3295
    %3299 = vset.pattern.permute.xlu0 0
    %3300 = vperm.xlu0 %3299, %v3277
    %v3301 = vpop.permute.xlu0 %3300
    %3304 = vset.pattern.permute.xlu0 0
    %3305 = vperm.xlu0 %3304, %v3279
    %v3306 = vpop.permute.xlu0 %3305
    %3309 = vset.pattern.permute.xlu0 0
    %3310 = vperm.xlu0 %3309, %v3281
    %v3311 = vpop.permute.xlu0 %3310
    %3314 = vset.pattern.permute.xlu0 0
    %3315 = vperm.xlu0 %3314, %v3283
    %v3316 = vpop.permute.xlu0 %3315
    %3319 = vset.pattern.permute.xlu0 0
    %3320 = vperm.xlu0 %3319, %v3285
    %v3321 = vpop.permute.xlu0 %3320
    %3324 = vset.pattern.permute.xlu0 0
    %3325 = vperm.xlu0 %3324, %v3287
    %v3326 = vpop.permute.xlu0 %3325
    %v3328 = vmul.f32 %v3291, %v140
    %v3329 = vmul.f32 %v3296, %v141
    %v3330 = vmul.f32 %v3301, %v142
    %v3331 = vmul.f32 %v3306, %v143
    %v3332 = vmul.f32 %v3311, %v144
    %v3333 = vmul.f32 %v3316, %v145
    %v3334 = vmul.f32 %v3321, %v146
    %v3335 = vmul.f32 %v3326, %v147
    %v3336 = vsel %vm298, %v3328, 0.0
    %v3337 = vrot.slane %v3336, 4
    %v3338 = vadd.f32 %v3336, %v3337
    %v3339 = vrot.slane %v3338, 2
    %v3340 = vadd.f32 %v3338, %v3339
    %v3341 = vrot.slane %v3340, 1
    %v3342 = vadd.f32 %v3340, %v3341
    %v3343 = vsel %vm298, %v3329, 0.0
    %v3344 = vrot.slane %v3343, 4
    %v3345 = vadd.f32 %v3343, %v3344
    %v3346 = vrot.slane %v3345, 2
    %v3347 = vadd.f32 %v3345, %v3346
    %v3348 = vrot.slane %v3347, 1
    %v3349 = vadd.f32 %v3347, %v3348
    %v3350 = vsel %vm298, %v3330, 0.0
    %v3351 = vrot.slane %v3350, 4
    %v3352 = vadd.f32 %v3350, %v3351
    %v3353 = vrot.slane %v3352, 2
    %v3354 = vadd.f32 %v3352, %v3353
    %v3355 = vrot.slane %v3354, 1
    %v3356 = vadd.f32 %v3354, %v3355
    %v3357 = vsel %vm298, %v3331, 0.0
    %v3358 = vrot.slane %v3357, 4
    %v3359 = vadd.f32 %v3357, %v3358
    %v3360 = vrot.slane %v3359, 2
    %v3361 = vadd.f32 %v3359, %v3360
    %v3362 = vrot.slane %v3361, 1
    %v3363 = vadd.f32 %v3361, %v3362
    %v3364 = vsel %vm298, %v3332, 0.0
    %v3365 = vrot.slane %v3364, 4
    %v3366 = vadd.f32 %v3364, %v3365
    %v3367 = vrot.slane %v3366, 2
    %v3368 = vadd.f32 %v3366, %v3367
    %v3369 = vrot.slane %v3368, 1
    %v3370 = vadd.f32 %v3368, %v3369
    %v3371 = vsel %vm298, %v3333, 0.0
    %v3372 = vrot.slane %v3371, 4
    %v3373 = vadd.f32 %v3371, %v3372
    %v3374 = vrot.slane %v3373, 2
    %v3375 = vadd.f32 %v3373, %v3374
    %v3376 = vrot.slane %v3375, 1
    %v3377 = vadd.f32 %v3375, %v3376
    %v3378 = vsel %vm298, %v3334, 0.0
    %v3379 = vrot.slane %v3378, 4
    %v3380 = vadd.f32 %v3378, %v3379
    %v3381 = vrot.slane %v3380, 2
    %v3382 = vadd.f32 %v3380, %v3381
    %v3383 = vrot.slane %v3382, 1
    %v3384 = vadd.f32 %v3382, %v3383
    %v3385 = vsel %vm298, %v3335, 0.0
    %v3386 = vrot.slane %v3385, 4
    %v3387 = vadd.f32 %v3385, %v3386
    %v3388 = vrot.slane %v3387, 2
    %v3389 = vadd.f32 %v3387, %v3388
    %v3390 = vrot.slane %v3389, 1
    %v3391 = vadd.f32 %v3389, %v3390
    %v3400 = vsel %vm632, %v3349, %v3342
    %v3401 = vsel %vm634, %v3356, %v3400
    %v3402 = vsel %vm636, %v3363, %v3401
    %v3403 = vsel %vm638, %v3370, %v3402
    %v3404 = vsel %vm640, %v3377, %v3403
    %v3405 = vsel %vm642, %v3384, %v3404
    %v3406 = vsel %vm644, %v3391, %v3405
    %v3407 = vsel %vm298, %v3406, 0
    %3409 = vmatprep.subr.mxu0 0.0
    %3410 = vmatpush1.msra.mxu0 0.0
    %3411 = vmatprep.subr.mxu0 0.0
    %3412 = vmatpush1.msra.mxu0 0.0
    %3413 = vmatprep.subr.mxu0 0.0
    %3414 = vmatpush1.msra.mxu0 0.0
    %3415 = vmatprep.subr.mxu0 0.0
    %3416 = vmatpush1.msra.mxu0 0.0
    %3417 = vmatprep.subr.mxu0 0.0
    %3418 = vmatpush1.msra.mxu0 0.0
    %3419 = vmatprep.subr.mxu0 0.0
    %3420 = vmatpush1.msra.mxu0 0.0
    %3421 = vmatprep.subr.mxu0 0.0
    %3422 = vmatpush1.msra.mxu0 0.0
    %3423 = vmatprep.subr.mxu0 0.0
    %3424 = vmatpush1.msra.mxu0 0.0
    %3425 = vmatprep.subr.mxu0 0.0
    %3426 = vmatpush1.msra.mxu0 0.0
    %3427 = vmatprep.subr.mxu0 0.0
    %3428 = vmatpush1.msra.mxu0 0.0
    %3429 = vmatprep.subr.mxu0 0.0
    %3430 = vmatpush1.msra.mxu0 0.0
    %3431 = vmatprep.subr.mxu0 0.0
    %3432 = vmatpush1.msra.mxu0 0.0
    %3433 = vmatprep.subr.mxu0 0.0
    %3434 = vmatpush1.msra.mxu0 %v162
    %3435 = vmatprep.subr.mxu0 0.0
    %3436 = vmatpush1.msra.mxu0 %v161
    %3437 = vmatprep.subr.mxu0 0.0
    %3438 = vmatpush1.msra.mxu0 %v160
    %3439 = vmatprep.subr.mxu0 0.0
    %3440 = vmatpush1.msra.mxu0 %v159
    %3441 = vmatprep.subr.mxu0 0.0
    %3442 = vmatpush2.msra.mxu0 0.0
    %3443 = vmatprep.subr.mxu0 0.0
    %3444 = vmatpush2.msra.mxu0 0.0
    %3445 = vmatprep.subr.mxu0 0.0
    %3446 = vmatpush2.msra.mxu0 0.0
    %3447 = vmatprep.subr.mxu0 0.0
    %3448 = vmatpush2.msra.mxu0 0.0
    %3449 = vmatprep.subr.mxu0 0.0
    %3450 = vmatpush2.msra.mxu0 0.0
    %3451 = vmatprep.subr.mxu0 0.0
    %3452 = vmatpush2.msra.mxu0 0.0
    %3453 = vmatprep.subr.mxu0 0.0
    %3454 = vmatpush2.msra.mxu0 0.0
    %3455 = vmatprep.subr.mxu0 0.0
    %3456 = vmatpush2.msra.mxu0 0.0
    %3457 = vmatprep.subr.mxu0 0.0
    %3458 = vmatpush2.msra.mxu0 0.0
    %3459 = vmatprep.subr.mxu0 0.0
    %3460 = vmatpush2.msra.mxu0 0.0
    %3461 = vmatprep.subr.mxu0 0.0
    %3462 = vmatpush2.msra.mxu0 0.0
    %3463 = vmatprep.subr.mxu0 0.0
    %3464 = vmatpush2.msra.mxu0 0.0
    %3465 = vmatprep.subr.mxu0 0.0
    %3466 = vmatpush2.msra.mxu0 0.0
    %3467 = vmatprep.subr.mxu0 0.0
    %3468 = vmatpush2.msra.mxu0 0.0
    %3469 = vmatprep.subr.mxu0 0.0
    %3470 = vmatpush2.msra.mxu0 0.0
    %3471 = vmatprep.subr.mxu0 0.0
    %3472 = vmatpush2.msra.mxu0 0.0
    %3473 = vmatprep.mubr.f32.mxu0 0.0
    %3474 = vmatmul.mubr.f32.gmra.mxu0 %v3407
    %v3475 = vpop.f32.mrf.mxu0
    %v3476 = vadd.f32 %v182, %v3475
    %v3477 = vpop.f32.mrf.mxu0
    %3478 = vdwg.mxu0
    %v3479 = vmax.f32 %v3476, 0.0
    %s3480 = scalar_lea.vmem [#allocation14], 24
    %3481 = vst.msk [vmem:[%s3480] sm:$0xff] %vm191, %v3479
    %v3482 = vlaneseq
    %v3483 = vshrl.u32 %v3482, 7
    %v3484 = vsub.s32 %v599, %v3483
    %v3485 = vrot.slane %v3291, %v3484
    %v3486 = vlaneseq
    %v3487 = vshrl.u32 %v3486, 7
    %v3488 = vsub.s32 %v599, %v3487
    %v3489 = vrot.slane %v3296, %v3488
    %v3490 = vlaneseq
    %v3491 = vshrl.u32 %v3490, 7
    %v3492 = vsub.s32 %v599, %v3491
    %v3493 = vrot.slane %v3301, %v3492
    %v3494 = vlaneseq
    %v3495 = vshrl.u32 %v3494, 7
    %v3496 = vsub.s32 %v599, %v3495
    %v3497 = vrot.slane %v3306, %v3496
    %v3498 = vlaneseq
    %v3499 = vshrl.u32 %v3498, 7
    %v3500 = vsub.s32 %v599, %v3499
    %v3501 = vrot.slane %v3311, %v3500
    %v3502 = vlaneseq
    %v3503 = vshrl.u32 %v3502, 7
    %v3504 = vsub.s32 %v599, %v3503
    %v3505 = vrot.slane %v3316, %v3504
    %v3506 = vlaneseq
    %v3507 = vshrl.u32 %v3506, 7
    %v3508 = vsub.s32 %v599, %v3507
    %v3509 = vrot.slane %v3321, %v3508
    %v3510 = vlaneseq
    %v3511 = vshrl.u32 %v3510, 7
    %v3512 = vsub.s32 %v599, %v3511
    %v3513 = vrot.slane %v3326, %v3512
    %v3514 = vsel %vm632, %v3489, %v3485
    %v3515 = vsel %vm634, %v3493, %v3514
    %v3516 = vsel %vm636, %v3497, %v3515
    %v3517 = vsel %vm638, %v3501, %v3516
    %v3518 = vsel %vm640, %v3505, %v3517
    %v3519 = vsel %vm642, %v3509, %v3518
    %v3520 = vsel %vm644, %v3513, %v3519
    %s3522 = scalar_lea.vmem [#allocation15], 24
    %3523 = vst.msk [vmem:[%s3522] sm:$0xff] %vm647, %v3520
    %3524 = vrot.lane.b32.xlu0 %v2810, 48
    %v3525 = vpop.permute.xlu0 %3524
    %v3527 = vsel %vm191, %v3479, %v3525
    %v3529 = vsel %vm193, %v3527, 0
    %3531 = vmatprep.subr.mxu0 0.0
    %3532 = vmatpush1.msra.mxu0 0.0
    %3533 = vmatprep.subr.mxu0 0.0
    %3534 = vmatpush1.msra.mxu0 0.0
    %3535 = vmatprep.subr.mxu0 0.0
    %3536 = vmatpush1.msra.mxu0 0.0
    %3537 = vmatprep.subr.mxu0 0.0
    %3538 = vmatpush1.msra.mxu0 0.0
    %3539 = vmatprep.subr.mxu0 0.0
    %3540 = vmatpush1.msra.mxu0 0.0
    %3541 = vmatprep.subr.mxu0 0.0
    %3542 = vmatpush1.msra.mxu0 0.0
    %3543 = vmatprep.subr.mxu0 0.0
    %3544 = vmatpush1.msra.mxu0 0.0
    %3545 = vmatprep.subr.mxu0 0.0
    %3546 = vmatpush1.msra.mxu0 0.0
    %3547 = vmatprep.subr.mxu0 0.0
    %3548 = vmatpush1.msra.mxu0 0.0
    %3549 = vmatprep.subr.mxu0 0.0
    %3550 = vmatpush1.msra.mxu0 0.0
    %3551 = vmatprep.subr.mxu0 0.0
    %3552 = vmatpush1.msra.mxu0 %v154
    %3553 = vmatprep.subr.mxu0 0.0
    %3554 = vmatpush1.msra.mxu0 %v153
    %3555 = vmatprep.subr.mxu0 0.0
    %3556 = vmatpush1.msra.mxu0 %v152
    %3557 = vmatprep.subr.mxu0 0.0
    %3558 = vmatpush1.msra.mxu0 %v151
    %3559 = vmatprep.subr.mxu0 0.0
    %3560 = vmatpush1.msra.mxu0 %v150
    %3561 = vmatprep.subr.mxu0 0.0
    %3562 = vmatpush1.msra.mxu0 %v149
    %3563 = vmatprep.subr.mxu0 0.0
    %3564 = vmatpush2.msra.mxu0 0.0
    %3565 = vmatprep.subr.mxu0 0.0
    %3566 = vmatpush2.msra.mxu0 0.0
    %3567 = vmatprep.subr.mxu0 0.0
    %3568 = vmatpush2.msra.mxu0 0.0
    %3569 = vmatprep.subr.mxu0 0.0
    %3570 = vmatpush2.msra.mxu0 0.0
    %3571 = vmatprep.subr.mxu0 0.0
    %3572 = vmatpush2.msra.mxu0 0.0
    %3573 = vmatprep.subr.mxu0 0.0
    %3574 = vmatpush2.msra.mxu0 0.0
    %3575 = vmatprep.subr.mxu0 0.0
    %3576 = vmatpush2.msra.mxu0 0.0
    %3577 = vmatprep.subr.mxu0 0.0
    %3578 = vmatpush2.msra.mxu0 0.0
    %3579 = vmatprep.subr.mxu0 0.0
    %3580 = vmatpush2.msra.mxu0 0.0
    %3581 = vmatprep.subr.mxu0 0.0
    %3582 = vmatpush2.msra.mxu0 0.0
    %3583 = vmatprep.subr.mxu0 0.0
    %3584 = vmatpush2.msra.mxu0 0.0
    %3585 = vmatprep.subr.mxu0 0.0
    %3586 = vmatpush2.msra.mxu0 0.0
    %3587 = vmatprep.subr.mxu0 0.0
    %3588 = vmatpush2.msra.mxu0 0.0
    %3589 = vmatprep.subr.mxu0 0.0
    %3590 = vmatpush2.msra.mxu0 0.0
    %3591 = vmatprep.subr.mxu0 0.0
    %3592 = vmatpush2.msra.mxu0 0.0
    %3593 = vmatprep.subr.mxu0 0.0
    %3594 = vmatpush2.msra.mxu0 0.0
    %3595 = vmatprep.mubr.f32.mxu0 0.0
    %3596 = vmatmul.mubr.f32.gmra.mxu0 %v3529
    %v3597 = vpop.f32.mrf.mxu0
    %v3598 = vadd.f32 %v168, %v3597
    %v3599 = vpop.f32.mrf.mxu0
    %3600 = vdwg.mxu0
    %v3601 = vxor.u32 %v3598, 2147483648
    %v3602 = vmul.f32 %v3601, 1.442695
    %v3603 = vpow.pop %v3602
    %v3604 = vadd.f32 %v3603, 1.0
    %v3605 = vrcp.pop %v3604
    %v3606 = vmul.f32 1.0, %v3605
    %v3607 = vtanh.pop %v3598
    %v3608 = vmul.f32 %v3606, %v2804
    %3610 = vrot.lane.b32.xlu0 %v3607, 64
    %v3611 = vpop.permute.xlu0 %3610
    %v3613 = vmul.f32 %v3606, %v3611
    %3615 = vrot.lane.b32.xlu0 %v3613, 32
    %v3616 = vpop.permute.xlu0 %3615
    %v3618 = vadd.f32 %v3608, %v3616
    %v3619 = vtanh.pop %v3618
    %3621 = vrot.lane.b32.xlu0 %v3619, 64
    %v3622 = vpop.permute.xlu0 %3621
    %v3624 = vmul.f32 %v3606, %v3622
    %3626 = vrot.lane.b32.xlu0 %v3624, 32
    %v3627 = vpop.permute.xlu0 %3626
    %v3628 = vsel %vm298, %v3627, 0
    %3630 = vmatprep.subr.mxu0 0.0
    %3631 = vmatpush1.msra.mxu0 0.0
    %3632 = vmatprep.subr.mxu0 0.0
    %3633 = vmatpush1.msra.mxu0 0.0
    %3634 = vmatprep.subr.mxu0 0.0
    %3635 = vmatpush1.msra.mxu0 0.0
    %3636 = vmatprep.subr.mxu0 0.0
    %3637 = vmatpush1.msra.mxu0 0.0
    %3638 = vmatprep.subr.mxu0 0.0
    %3639 = vmatpush1.msra.mxu0 0.0
    %3640 = vmatprep.subr.mxu0 0.0
    %3641 = vmatpush1.msra.mxu0 0.0
    %3642 = vmatprep.subr.mxu0 0.0
    %3643 = vmatpush1.msra.mxu0 0.0
    %3644 = vmatprep.subr.mxu0 0.0
    %3645 = vmatpush1.msra.mxu0 0.0
    %3646 = vmatprep.subr.mxu0 0.0
    %3647 = vmatpush1.msra.mxu0 0.0
    %3648 = vmatprep.subr.mxu0 0.0
    %3649 = vmatpush1.msra.mxu0 0.0
    %3650 = vmatprep.subr.mxu0 0.0
    %3651 = vmatpush1.msra.mxu0 0.0
    %3652 = vmatprep.subr.mxu0 0.0
    %3653 = vmatpush1.msra.mxu0 0.0
    %3654 = vmatprep.subr.mxu0 0.0
    %3655 = vmatpush1.msra.mxu0 %v158
    %3656 = vmatprep.subr.mxu0 0.0
    %3657 = vmatpush1.msra.mxu0 %v157
    %3658 = vmatprep.subr.mxu0 0.0
    %3659 = vmatpush1.msra.mxu0 %v156
    %3660 = vmatprep.subr.mxu0 0.0
    %3661 = vmatpush1.msra.mxu0 %v155
    %3662 = vmatprep.subr.mxu0 0.0
    %3663 = vmatpush2.msra.mxu0 0.0
    %3664 = vmatprep.subr.mxu0 0.0
    %3665 = vmatpush2.msra.mxu0 0.0
    %3666 = vmatprep.subr.mxu0 0.0
    %3667 = vmatpush2.msra.mxu0 0.0
    %3668 = vmatprep.subr.mxu0 0.0
    %3669 = vmatpush2.msra.mxu0 0.0
    %3670 = vmatprep.subr.mxu0 0.0
    %3671 = vmatpush2.msra.mxu0 0.0
    %3672 = vmatprep.subr.mxu0 0.0
    %3673 = vmatpush2.msra.mxu0 0.0
    %3674 = vmatprep.subr.mxu0 0.0
    %3675 = vmatpush2.msra.mxu0 0.0
    %3676 = vmatprep.subr.mxu0 0.0
    %3677 = vmatpush2.msra.mxu0 0.0
    %3678 = vmatprep.subr.mxu0 0.0
    %3679 = vmatpush2.msra.mxu0 0.0
    %3680 = vmatprep.subr.mxu0 0.0
    %3681 = vmatpush2.msra.mxu0 0.0
    %3682 = vmatprep.subr.mxu0 0.0
    %3683 = vmatpush2.msra.mxu0 0.0
    %3684 = vmatprep.subr.mxu0 0.0
    %3685 = vmatpush2.msra.mxu0 0.0
    %3686 = vmatprep.subr.mxu0 0.0
    %3687 = vmatpush2.msra.mxu0 0.0
    %3688 = vmatprep.subr.mxu0 0.0
    %3689 = vmatpush2.msra.mxu0 0.0
    %3690 = vmatprep.subr.mxu0 0.0
    %3691 = vmatpush2.msra.mxu0 0.0
    %3692 = vmatprep.subr.mxu0 0.0
    %3693 = vmatpush2.msra.mxu0 0.0
    %3694 = vmatprep.mubr.f32.mxu0 0.0
    %3695 = vmatmul.mubr.f32.gmra.mxu0 %v3628
    %v3696 = vpop.f32.mrf.mxu0
    %v3697 = vadd.f32 %v175, %v3696
    %v3698 = vpop.f32.mrf.mxu0
    %3699 = vdwg.mxu0
    %v3701 = vcombine.high %v3697, %v3697
    %v3703 = vunpack.c.l.s4 1966171168
    %v3704 = vunpack.c.0.s8 %v3703
    %v3705 = vlaneseq
    %v3706 = vshrl.u32 %v3705, 7
    %v3707 = vsub.s32 %v3704, %v3706
    %v3708 = vrot.slane %v3697, %v3707
    %v3710 = vunpack.c.l.s4 1966171168
    %v3711 = vunpack.c.0.s8 %v3710
    %v3712 = vlaneseq
    %v3713 = vshrl.u32 %v3712, 7
    %v3714 = vsub.s32 %v3711, %v3713
    %v3715 = vrot.slane %v3701, %v3714
    %v3716 = vcombine.high %v3708, %v3708
    %v3717 = vcombine.high %v3715, %v3715
    %v3719 = vunpack.c.l.s4 1966171168
    %v3720 = vunpack.c.0.s8 %v3719
    %v3721 = vlaneseq
    %v3722 = vshrl.u32 %v3721, 7
    %v3723 = vsub.s32 %v3720, %v3722
    %v3724 = vrot.slane %v3708, %v3723
    %v3726 = vunpack.c.l.s4 1966171168
    %v3727 = vunpack.c.0.s8 %v3726
    %v3728 = vlaneseq
    %v3729 = vshrl.u32 %v3728, 7
    %v3730 = vsub.s32 %v3727, %v3729
    %v3731 = vrot.slane %v3715, %v3730
    %v3733 = vunpack.c.l.s4 1966171168
    %v3734 = vunpack.c.0.s8 %v3733
    %v3735 = vlaneseq
    %v3736 = vshrl.u32 %v3735, 7
    %v3737 = vsub.s32 %v3734, %v3736
    %v3738 = vrot.slane %v3716, %v3737
    %v3740 = vunpack.c.l.s4 1966171168
    %v3741 = vunpack.c.0.s8 %v3740
    %v3742 = vlaneseq
    %v3743 = vshrl.u32 %v3742, 7
    %v3744 = vsub.s32 %v3741, %v3743
    %v3745 = vrot.slane %v3717, %v3744
    %v3746 = vcombine.high %v3724, %v3724
    %v3747 = vcombine.high %v3731, %v3731
    %v3748 = vcombine.high %v3738, %v3738
    %v3749 = vcombine.high %v3745, %v3745
    %v3750 = vlaneseq
    %v3751 = vshrl.u32 %v3750, 7
    %v3752 = vsub.s32 0, %v3751
    %v3753 = vrot.slane %v3724, %v3752
    %v3754 = vlaneseq
    %v3755 = vshrl.u32 %v3754, 7
    %v3756 = vsub.s32 0, %v3755
    %v3757 = vrot.slane %v3738, %v3756
    %v3758 = vlaneseq
    %v3759 = vshrl.u32 %v3758, 7
    %v3760 = vsub.s32 0, %v3759
    %v3761 = vrot.slane %v3746, %v3760
    %v3762 = vlaneseq
    %v3763 = vshrl.u32 %v3762, 7
    %v3764 = vsub.s32 0, %v3763
    %v3765 = vrot.slane %v3748, %v3764
    %v3766 = vlaneseq
    %v3767 = vshrl.u32 %v3766, 7
    %v3768 = vsub.s32 0, %v3767
    %v3769 = vrot.slane %v3731, %v3768
    %v3770 = vlaneseq
    %v3771 = vshrl.u32 %v3770, 7
    %v3772 = vsub.s32 0, %v3771
    %v3773 = vrot.slane %v3745, %v3772
    %v3774 = vlaneseq
    %v3775 = vshrl.u32 %v3774, 7
    %v3776 = vsub.s32 0, %v3775
    %v3777 = vrot.slane %v3747, %v3776
    %v3778 = vlaneseq
    %v3779 = vshrl.u32 %v3778, 7
    %v3780 = vsub.s32 0, %v3779
    %v3781 = vrot.slane %v3749, %v3780
    %v3790 = vmul.f32 %v3753, %v132
    %v3791 = vmul.f32 %v3757, %v133
    %v3792 = vmul.f32 %v3761, %v134
    %v3793 = vmul.f32 %v3765, %v135
    %v3794 = vmul.f32 %v3769, %v136
    %v3795 = vmul.f32 %v3773, %v137
    %v3796 = vmul.f32 %v3777, %v138
    %v3797 = vmul.f32 %v3781, %v139
    %v3798 = vsel %vm298, %v3790, 0.0
    %3799 = vadd.xlane.f32.xlu0 %v3798
    %v3800 = vpop.xlane.xlu0 %3799
    %v3801 = vsel %vm298, %v3791, 0.0
    %3802 = vadd.xlane.f32.xlu0 %v3801
    %v3803 = vpop.xlane.xlu0 %3802
    %v3804 = vsel %vm298, %v3792, 0.0
    %3805 = vadd.xlane.f32.xlu0 %v3804
    %v3806 = vpop.xlane.xlu0 %3805
    %v3807 = vsel %vm298, %v3793, 0.0
    %3808 = vadd.xlane.f32.xlu0 %v3807
    %v3809 = vpop.xlane.xlu0 %3808
    %v3810 = vsel %vm298, %v3794, 0.0
    %3811 = vadd.xlane.f32.xlu0 %v3810
    %v3812 = vpop.xlane.xlu0 %3811
    %v3813 = vsel %vm298, %v3795, 0.0
    %3814 = vadd.xlane.f32.xlu0 %v3813
    %v3815 = vpop.xlane.xlu0 %3814
    %v3816 = vsel %vm298, %v3796, 0.0
    %3817 = vadd.xlane.f32.xlu0 %v3816
    %v3818 = vpop.xlane.xlu0 %3817
    %v3819 = vsel %vm298, %v3797, 0.0
    %3820 = vadd.xlane.f32.xlu0 %v3819
    %v3821 = vpop.xlane.xlu0 %3820
    %v3822 = vadd.f32 %v3800, %v500
    %v3823 = vadd.f32 %v3803, %v507
    %v3824 = vadd.f32 %v3806, %v514
    %v3825 = vadd.f32 %v3809, %v521
    %v3826 = vadd.f32 %v3812, %v528
    %v3827 = vadd.f32 %v3815, %v535
    %v3828 = vadd.f32 %v3818, %v542
    %v3829 = vadd.f32 %v3821, %v549
    %3838 = vset.pattern.permute.xlu0 0
    %3839 = vperm.xlu0 %3838, %v3822
    %v3840 = vpop.permute.xlu0 %3839
    %3841 = vset.pattern.permute.xlu0 0
    %3842 = vperm.xlu0 %3841, %v3823
    %v3843 = vpop.permute.xlu0 %3842
    %3844 = vset.pattern.permute.xlu0 0
    %3845 = vperm.xlu0 %3844, %v3824
    %v3846 = vpop.permute.xlu0 %3845
    %3847 = vset.pattern.permute.xlu0 0
    %3848 = vperm.xlu0 %3847, %v3825
    %v3849 = vpop.permute.xlu0 %3848
    %3850 = vset.pattern.permute.xlu0 0
    %3851 = vperm.xlu0 %3850, %v3826
    %v3852 = vpop.permute.xlu0 %3851
    %3853 = vset.pattern.permute.xlu0 0
    %3854 = vperm.xlu0 %3853, %v3827
    %v3855 = vpop.permute.xlu0 %3854
    %3856 = vset.pattern.permute.xlu0 0
    %3857 = vperm.xlu0 %3856, %v3828
    %v3858 = vpop.permute.xlu0 %3857
    %3859 = vset.pattern.permute.xlu0 0
    %3860 = vperm.xlu0 %3859, %v3829
    %v3861 = vpop.permute.xlu0 %3860
    %v3862 = vlaneseq
    %v3863 = vshrl.u32 %v3862, 7
    %v3864 = vsub.s32 %v599, %v3863
    %v3865 = vrot.slane %v3840, %v3864
    %v3866 = vlaneseq
    %v3867 = vshrl.u32 %v3866, 7
    %v3868 = vsub.s32 %v599, %v3867
    %v3869 = vrot.slane %v3843, %v3868
    %v3870 = vlaneseq
    %v3871 = vshrl.u32 %v3870, 7
    %v3872 = vsub.s32 %v599, %v3871
    %v3873 = vrot.slane %v3846, %v3872
    %v3874 = vlaneseq
    %v3875 = vshrl.u32 %v3874, 7
    %v3876 = vsub.s32 %v599, %v3875
    %v3877 = vrot.slane %v3849, %v3876
    %v3878 = vlaneseq
    %v3879 = vshrl.u32 %v3878, 7
    %v3880 = vsub.s32 %v599, %v3879
    %v3881 = vrot.slane %v3852, %v3880
    %v3882 = vlaneseq
    %v3883 = vshrl.u32 %v3882, 7
    %v3884 = vsub.s32 %v599, %v3883
    %v3885 = vrot.slane %v3855, %v3884
    %v3886 = vlaneseq
    %v3887 = vshrl.u32 %v3886, 7
    %v3888 = vsub.s32 %v599, %v3887
    %v3889 = vrot.slane %v3858, %v3888
    %v3890 = vlaneseq
    %v3891 = vshrl.u32 %v3890, 7
    %v3892 = vsub.s32 %v599, %v3891
    %v3893 = vrot.slane %v3861, %v3892
    %v3894 = vsel %vm632, %v3869, %v3865
    %v3895 = vsel %vm634, %v3873, %v3894
    %v3896 = vsel %vm636, %v3877, %v3895
    %v3897 = vsel %vm638, %v3881, %v3896
    %v3898 = vsel %vm640, %v3885, %v3897
    %v3899 = vsel %vm642, %v3889, %v3898
    %v3900 = vsel %vm644, %v3893, %v3899
    %v3902 = vsel %vm647, %v3900, -inf
    %3903 = vmax.xlane.f32.xlu0 %v3902
    %v3904 = vpop.xlane.xlu0 %3903
    %v3906 = vlaneseq
    %v3907 = vshrl.u32 %v3906, 7
    %v3908 = vsub.s32 0, %v3907
    %v3909 = vrot.slane %v3904, %v3908
    %v3910 = vlaneseq
    %v3911 = vshrl.u32 %v3910, 7
    %v3912 = vsub.s32 1, %v3911
    %v3913 = vrot.slane %v3904, %v3912
    %v3914 = vlaneseq
    %v3915 = vshrl.u32 %v3914, 7
    %v3916 = vsub.s32 2, %v3915
    %v3917 = vrot.slane %v3904, %v3916
    %v3918 = vlaneseq
    %v3919 = vshrl.u32 %v3918, 7
    %v3920 = vsub.s32 3, %v3919
    %v3921 = vrot.slane %v3904, %v3920
    %v3922 = vlaneseq
    %v3923 = vshrl.u32 %v3922, 7
    %v3924 = vsub.s32 4, %v3923
    %v3925 = vrot.slane %v3904, %v3924
    %v3926 = vlaneseq
    %v3927 = vshrl.u32 %v3926, 7
    %v3928 = vsub.s32 5, %v3927
    %v3929 = vrot.slane %v3904, %v3928
    %v3930 = vlaneseq
    %v3931 = vshrl.u32 %v3930, 7
    %v3932 = vsub.s32 6, %v3931
    %v3933 = vrot.slane %v3904, %v3932
    %v3934 = vlaneseq
    %v3935 = vshrl.u32 %v3934, 7
    %v3936 = vsub.s32 7, %v3935
    %v3937 = vrot.slane %v3904, %v3936
    %v3946 = vsub.f32 %v3822, %v3909
    %v3947 = vsub.f32 %v3823, %v3913
    %v3948 = vsub.f32 %v3824, %v3917
    %v3949 = vsub.f32 %v3825, %v3921
    %v3950 = vsub.f32 %v3826, %v3925
    %v3951 = vsub.f32 %v3827, %v3929
    %v3952 = vsub.f32 %v3828, %v3933
    %v3953 = vsub.f32 %v3829, %v3937
    %v3954 = vmul.f32 %v3946, 1.442695
    %v3955 = vpow.pop %v3954
    %v3956 = vmul.f32 %v3947, 1.442695
    %v3957 = vpow.pop %v3956
    %v3958 = vmul.f32 %v3948, 1.442695
    %v3959 = vpow.pop %v3958
    %v3960 = vmul.f32 %v3949, 1.442695
    %v3961 = vpow.pop %v3960
    %v3962 = vmul.f32 %v3950, 1.442695
    %v3963 = vpow.pop %v3962
    %v3964 = vmul.f32 %v3951, 1.442695
    %v3965 = vpow.pop %v3964
    %v3966 = vmul.f32 %v3952, 1.442695
    %v3967 = vpow.pop %v3966
    %v3968 = vmul.f32 %v3953, 1.442695
    %v3969 = vpow.pop %v3968
    %3978 = vset.pattern.permute.xlu0 0
    %3979 = vperm.xlu0 %3978, %v3955
    %v3980 = vpop.permute.xlu0 %3979
    %3981 = vset.pattern.permute.xlu0 0
    %3982 = vperm.xlu0 %3981, %v3957
    %v3983 = vpop.permute.xlu0 %3982
    %3984 = vset.pattern.permute.xlu0 0
    %3985 = vperm.xlu0 %3984, %v3959
    %v3986 = vpop.permute.xlu0 %3985
    %3987 = vset.pattern.permute.xlu0 0
    %3988 = vperm.xlu0 %3987, %v3961
    %v3989 = vpop.permute.xlu0 %3988
    %3990 = vset.pattern.permute.xlu0 0
    %3991 = vperm.xlu0 %3990, %v3963
    %v3992 = vpop.permute.xlu0 %3991
    %3993 = vset.pattern.permute.xlu0 0
    %3994 = vperm.xlu0 %3993, %v3965
    %v3995 = vpop.permute.xlu0 %3994
    %3996 = vset.pattern.permute.xlu0 0
    %3997 = vperm.xlu0 %3996, %v3967
    %v3998 = vpop.permute.xlu0 %3997
    %3999 = vset.pattern.permute.xlu0 0
    %4000 = vperm.xlu0 %3999, %v3969
    %v4001 = vpop.permute.xlu0 %4000
    %v4002 = vlaneseq
    %v4003 = vshrl.u32 %v4002, 7
    %v4004 = vsub.s32 %v599, %v4003
    %v4005 = vrot.slane %v3980, %v4004
    %v4006 = vlaneseq
    %v4007 = vshrl.u32 %v4006, 7
    %v4008 = vsub.s32 %v599, %v4007
    %v4009 = vrot.slane %v3983, %v4008
    %v4010 = vlaneseq
    %v4011 = vshrl.u32 %v4010, 7
    %v4012 = vsub.s32 %v599, %v4011
    %v4013 = vrot.slane %v3986, %v4012
    %v4014 = vlaneseq
    %v4015 = vshrl.u32 %v4014, 7
    %v4016 = vsub.s32 %v599, %v4015
    %v4017 = vrot.slane %v3989, %v4016
    %v4018 = vlaneseq
    %v4019 = vshrl.u32 %v4018, 7
    %v4020 = vsub.s32 %v599, %v4019
    %v4021 = vrot.slane %v3992, %v4020
    %v4022 = vlaneseq
    %v4023 = vshrl.u32 %v4022, 7
    %v4024 = vsub.s32 %v599, %v4023
    %v4025 = vrot.slane %v3995, %v4024
    %v4026 = vlaneseq
    %v4027 = vshrl.u32 %v4026, 7
    %v4028 = vsub.s32 %v599, %v4027
    %v4029 = vrot.slane %v3998, %v4028
    %v4030 = vlaneseq
    %v4031 = vshrl.u32 %v4030, 7
    %v4032 = vsub.s32 %v599, %v4031
    %v4033 = vrot.slane %v4001, %v4032
    %v4034 = vsel %vm632, %v4009, %v4005
    %v4035 = vsel %vm634, %v4013, %v4034
    %v4036 = vsel %vm636, %v4017, %v4035
    %v4037 = vsel %vm638, %v4021, %v4036
    %v4038 = vsel %vm640, %v4025, %v4037
    %v4039 = vsel %vm642, %v4029, %v4038
    %v4040 = vsel %vm644, %v4033, %v4039
    %v4042 = vsel %vm647, %v4040, 0.0
    %4043 = vadd.xlane.f32.xlu0 %v4042
    %v4044 = vpop.xlane.xlu0 %4043
    %v4046 = vlaneseq
    %v4047 = vshrl.u32 %v4046, 7
    %v4048 = vsub.s32 0, %v4047
    %v4049 = vrot.slane %v4044, %v4048
    %v4050 = vlaneseq
    %v4051 = vshrl.u32 %v4050, 7
    %v4052 = vsub.s32 1, %v4051
    %v4053 = vrot.slane %v4044, %v4052
    %v4054 = vlaneseq
    %v4055 = vshrl.u32 %v4054, 7
    %v4056 = vsub.s32 2, %v4055
    %v4057 = vrot.slane %v4044, %v4056
    %v4058 = vlaneseq
    %v4059 = vshrl.u32 %v4058, 7
    %v4060 = vsub.s32 3, %v4059
    %v4061 = vrot.slane %v4044, %v4060
    %v4062 = vlaneseq
    %v4063 = vshrl.u32 %v4062, 7
    %v4064 = vsub.s32 4, %v4063
    %v4065 = vrot.slane %v4044, %v4064
    %v4066 = vlaneseq
    %v4067 = vshrl.u32 %v4066, 7
    %v4068 = vsub.s32 5, %v4067
    %v4069 = vrot.slane %v4044, %v4068
    %v4070 = vlaneseq
    %v4071 = vshrl.u32 %v4070, 7
    %v4072 = vsub.s32 6, %v4071
    %v4073 = vrot.slane %v4044, %v4072
    %v4074 = vlaneseq
    %v4075 = vshrl.u32 %v4074, 7
    %v4076 = vsub.s32 7, %v4075
    %v4077 = vrot.slane %v4044, %v4076
    %v4086 = vrcp.pop %v4049
    %v4087 = vmul.f32 %v3955, %v4086
    %v4088 = vrcp.pop %v4053
    %v4089 = vmul.f32 %v3957, %v4088
    %v4090 = vrcp.pop %v4057
    %v4091 = vmul.f32 %v3959, %v4090
    %v4092 = vrcp.pop %v4061
    %v4093 = vmul.f32 %v3961, %v4092
    %v4094 = vrcp.pop %v4065
    %v4095 = vmul.f32 %v3963, %v4094
    %v4096 = vrcp.pop %v4069
    %v4097 = vmul.f32 %v3965, %v4096
    %v4098 = vrcp.pop %v4073
    %v4099 = vmul.f32 %v3967, %v4098
    %v4100 = vrcp.pop %v4077
    %v4101 = vmul.f32 %v3969, %v4100
    %4103 = vset.pattern.permute.xlu0 0
    %4104 = vperm.xlu0 %4103, %v4087
    %v4105 = vpop.permute.xlu0 %4104
    %4108 = vset.pattern.permute.xlu0 0
    %4109 = vperm.xlu0 %4108, %v4089
    %v4110 = vpop.permute.xlu0 %4109
    %4113 = vset.pattern.permute.xlu0 0
    %4114 = vperm.xlu0 %4113, %v4091
    %v4115 = vpop.permute.xlu0 %4114
    %4118 = vset.pattern.permute.xlu0 0
    %4119 = vperm.xlu0 %4118, %v4093
    %v4120 = vpop.permute.xlu0 %4119
    %4123 = vset.pattern.permute.xlu0 0
    %4124 = vperm.xlu0 %4123, %v4095
    %v4125 = vpop.permute.xlu0 %4124
    %4128 = vset.pattern.permute.xlu0 0
    %4129 = vperm.xlu0 %4128, %v4097
    %v4130 = vpop.permute.xlu0 %4129
    %4133 = vset.pattern.permute.xlu0 0
    %4134 = vperm.xlu0 %4133, %v4099
    %v4135 = vpop.permute.xlu0 %4134
    %4138 = vset.pattern.permute.xlu0 0
    %4139 = vperm.xlu0 %4138, %v4101
    %v4140 = vpop.permute.xlu0 %4139
    %v4142 = vmul.f32 %v4105, %v140
    %v4143 = vmul.f32 %v4110, %v141
    %v4144 = vmul.f32 %v4115, %v142
    %v4145 = vmul.f32 %v4120, %v143
    %v4146 = vmul.f32 %v4125, %v144
    %v4147 = vmul.f32 %v4130, %v145
    %v4148 = vmul.f32 %v4135, %v146
    %v4149 = vmul.f32 %v4140, %v147
    %v4150 = vsel %vm298, %v4142, 0.0
    %v4151 = vrot.slane %v4150, 4
    %v4152 = vadd.f32 %v4150, %v4151
    %v4153 = vrot.slane %v4152, 2
    %v4154 = vadd.f32 %v4152, %v4153
    %v4155 = vrot.slane %v4154, 1
    %v4156 = vadd.f32 %v4154, %v4155
    %v4157 = vsel %vm298, %v4143, 0.0
    %v4158 = vrot.slane %v4157, 4
    %v4159 = vadd.f32 %v4157, %v4158
    %v4160 = vrot.slane %v4159, 2
    %v4161 = vadd.f32 %v4159, %v4160
    %v4162 = vrot.slane %v4161, 1
    %v4163 = vadd.f32 %v4161, %v4162
    %v4164 = vsel %vm298, %v4144, 0.0
    %v4165 = vrot.slane %v4164, 4
    %v4166 = vadd.f32 %v4164, %v4165
    %v4167 = vrot.slane %v4166, 2
    %v4168 = vadd.f32 %v4166, %v4167
    %v4169 = vrot.slane %v4168, 1
    %v4170 = vadd.f32 %v4168, %v4169
    %v4171 = vsel %vm298, %v4145, 0.0
    %v4172 = vrot.slane %v4171, 4
    %v4173 = vadd.f32 %v4171, %v4172
    %v4174 = vrot.slane %v4173, 2
    %v4175 = vadd.f32 %v4173, %v4174
    %v4176 = vrot.slane %v4175, 1
    %v4177 = vadd.f32 %v4175, %v4176
    %v4178 = vsel %vm298, %v4146, 0.0
    %v4179 = vrot.slane %v4178, 4
    %v4180 = vadd.f32 %v4178, %v4179
    %v4181 = vrot.slane %v4180, 2
    %v4182 = vadd.f32 %v4180, %v4181
    %v4183 = vrot.slane %v4182, 1
    %v4184 = vadd.f32 %v4182, %v4183
    %v4185 = vsel %vm298, %v4147, 0.0
    %v4186 = vrot.slane %v4185, 4
    %v4187 = vadd.f32 %v4185, %v4186
    %v4188 = vrot.slane %v4187, 2
    %v4189 = vadd.f32 %v4187, %v4188
    %v4190 = vrot.slane %v4189, 1
    %v4191 = vadd.f32 %v4189, %v4190
    %v4192 = vsel %vm298, %v4148, 0.0
    %v4193 = vrot.slane %v4192, 4
    %v4194 = vadd.f32 %v4192, %v4193
    %v4195 = vrot.slane %v4194, 2
    %v4196 = vadd.f32 %v4194, %v4195
    %v4197 = vrot.slane %v4196, 1
    %v4198 = vadd.f32 %v4196, %v4197
    %v4199 = vsel %vm298, %v4149, 0.0
    %v4200 = vrot.slane %v4199, 4
    %v4201 = vadd.f32 %v4199, %v4200
    %v4202 = vrot.slane %v4201, 2
    %v4203 = vadd.f32 %v4201, %v4202
    %v4204 = vrot.slane %v4203, 1
    %v4205 = vadd.f32 %v4203, %v4204
    %v4214 = vsel %vm632, %v4163, %v4156
    %v4215 = vsel %vm634, %v4170, %v4214
    %v4216 = vsel %vm636, %v4177, %v4215
    %v4217 = vsel %vm638, %v4184, %v4216
    %v4218 = vsel %vm640, %v4191, %v4217
    %v4219 = vsel %vm642, %v4198, %v4218
    %v4220 = vsel %vm644, %v4205, %v4219
    %v4221 = vsel %vm298, %v4220, 0
    %4223 = vmatprep.subr.mxu0 0.0
    %4224 = vmatpush1.msra.mxu0 0.0
    %4225 = vmatprep.subr.mxu0 0.0
    %4226 = vmatpush1.msra.mxu0 0.0
    %4227 = vmatprep.subr.mxu0 0.0
    %4228 = vmatpush1.msra.mxu0 0.0
    %4229 = vmatprep.subr.mxu0 0.0
    %4230 = vmatpush1.msra.mxu0 0.0
    %4231 = vmatprep.subr.mxu0 0.0
    %4232 = vmatpush1.msra.mxu0 0.0
    %4233 = vmatprep.subr.mxu0 0.0
    %4234 = vmatpush1.msra.mxu0 0.0
    %4235 = vmatprep.subr.mxu0 0.0
    %4236 = vmatpush1.msra.mxu0 0.0
    %4237 = vmatprep.subr.mxu0 0.0
    %4238 = vmatpush1.msra.mxu0 0.0
    %4239 = vmatprep.subr.mxu0 0.0
    %4240 = vmatpush1.msra.mxu0 0.0
    %4241 = vmatprep.subr.mxu0 0.0
    %4242 = vmatpush1.msra.mxu0 0.0
    %4243 = vmatprep.subr.mxu0 0.0
    %4244 = vmatpush1.msra.mxu0 0.0
    %4245 = vmatprep.subr.mxu0 0.0
    %4246 = vmatpush1.msra.mxu0 0.0
    %4247 = vmatprep.subr.mxu0 0.0
    %4248 = vmatpush1.msra.mxu0 %v162
    %4249 = vmatprep.subr.mxu0 0.0
    %4250 = vmatpush1.msra.mxu0 %v161
    %4251 = vmatprep.subr.mxu0 0.0
    %4252 = vmatpush1.msra.mxu0 %v160
    %4253 = vmatprep.subr.mxu0 0.0
    %4254 = vmatpush1.msra.mxu0 %v159
    %4255 = vmatprep.subr.mxu0 0.0
    %4256 = vmatpush2.msra.mxu0 0.0
    %4257 = vmatprep.subr.mxu0 0.0
    %4258 = vmatpush2.msra.mxu0 0.0
    %4259 = vmatprep.subr.mxu0 0.0
    %4260 = vmatpush2.msra.mxu0 0.0
    %4261 = vmatprep.subr.mxu0 0.0
    %4262 = vmatpush2.msra.mxu0 0.0
    %4263 = vmatprep.subr.mxu0 0.0
    %4264 = vmatpush2.msra.mxu0 0.0
    %4265 = vmatprep.subr.mxu0 0.0
    %4266 = vmatpush2.msra.mxu0 0.0
    %4267 = vmatprep.subr.mxu0 0.0
    %4268 = vmatpush2.msra.mxu0 0.0
    %4269 = vmatprep.subr.mxu0 0.0
    %4270 = vmatpush2.msra.mxu0 0.0
    %4271 = vmatprep.subr.mxu0 0.0
    %4272 = vmatpush2.msra.mxu0 0.0
    %4273 = vmatprep.subr.mxu0 0.0
    %4274 = vmatpush2.msra.mxu0 0.0
    %4275 = vmatprep.subr.mxu0 0.0
    %4276 = vmatpush2.msra.mxu0 0.0
    %4277 = vmatprep.subr.mxu0 0.0
    %4278 = vmatpush2.msra.mxu0 0.0
    %4279 = vmatprep.subr.mxu0 0.0
    %4280 = vmatpush2.msra.mxu0 0.0
    %4281 = vmatprep.subr.mxu0 0.0
    %4282 = vmatpush2.msra.mxu0 0.0
    %4283 = vmatprep.subr.mxu0 0.0
    %4284 = vmatpush2.msra.mxu0 0.0
    %4285 = vmatprep.subr.mxu0 0.0
    %4286 = vmatpush2.msra.mxu0 0.0
    %4287 = vmatprep.mubr.f32.mxu0 0.0
    %4288 = vmatmul.mubr.f32.gmra.mxu0 %v4221
    %v4289 = vpop.f32.mrf.mxu0
    %v4290 = vadd.f32 %v182, %v4289
    %v4291 = vpop.f32.mrf.mxu0
    %4292 = vdwg.mxu0
    %v4293 = vmax.f32 %v4290, 0.0
    %s4294 = scalar_lea.vmem [#allocation14], 32
    %4295 = vst.msk [vmem:[%s4294] sm:$0xff] %vm191, %v4293
    %v4296 = vlaneseq
    %v4297 = vshrl.u32 %v4296, 7
    %v4298 = vsub.s32 %v599, %v4297
    %v4299 = vrot.slane %v4105, %v4298
    %v4300 = vlaneseq
    %v4301 = vshrl.u32 %v4300, 7
    %v4302 = vsub.s32 %v599, %v4301
    %v4303 = vrot.slane %v4110, %v4302
    %v4304 = vlaneseq
    %v4305 = vshrl.u32 %v4304, 7
    %v4306 = vsub.s32 %v599, %v4305
    %v4307 = vrot.slane %v4115, %v4306
    %v4308 = vlaneseq
    %v4309 = vshrl.u32 %v4308, 7
    %v4310 = vsub.s32 %v599, %v4309
    %v4311 = vrot.slane %v4120, %v4310
    %v4312 = vlaneseq
    %v4313 = vshrl.u32 %v4312, 7
    %v4314 = vsub.s32 %v599, %v4313
    %v4315 = vrot.slane %v4125, %v4314
    %v4316 = vlaneseq
    %v4317 = vshrl.u32 %v4316, 7
    %v4318 = vsub.s32 %v599, %v4317
    %v4319 = vrot.slane %v4130, %v4318
    %v4320 = vlaneseq
    %v4321 = vshrl.u32 %v4320, 7
    %v4322 = vsub.s32 %v599, %v4321
    %v4323 = vrot.slane %v4135, %v4322
    %v4324 = vlaneseq
    %v4325 = vshrl.u32 %v4324, 7
    %v4326 = vsub.s32 %v599, %v4325
    %v4327 = vrot.slane %v4140, %v4326
    %v4328 = vsel %vm632, %v4303, %v4299
    %v4329 = vsel %vm634, %v4307, %v4328
    %v4330 = vsel %vm636, %v4311, %v4329
    %v4331 = vsel %vm638, %v4315, %v4330
    %v4332 = vsel %vm640, %v4319, %v4331
    %v4333 = vsel %vm642, %v4323, %v4332
    %v4334 = vsel %vm644, %v4327, %v4333
    %s4336 = scalar_lea.vmem [#allocation15], 32
    %4337 = vst.msk [vmem:[%s4336] sm:$0xff] %vm647, %v4334
    %4338 = vrot.lane.b32.xlu0 %v3624, 48
    %v4339 = vpop.permute.xlu0 %4338
    %v4341 = vsel %vm191, %v4293, %v4339
    %v4343 = vsel %vm193, %v4341, 0
    %4345 = vmatprep.subr.mxu0 0.0
    %4346 = vmatpush1.msra.mxu0 0.0
    %4347 = vmatprep.subr.mxu0 0.0
    %4348 = vmatpush1.msra.mxu0 0.0
    %4349 = vmatprep.subr.mxu0 0.0
    %4350 = vmatpush1.msra.mxu0 0.0
    %4351 = vmatprep.subr.mxu0 0.0
    %4352 = vmatpush1.msra.mxu0 0.0
    %4353 = vmatprep.subr.mxu0 0.0
    %4354 = vmatpush1.msra.mxu0 0.0
    %4355 = vmatprep.subr.mxu0 0.0
    %4356 = vmatpush1.msra.mxu0 0.0
    %4357 = vmatprep.subr.mxu0 0.0
    %4358 = vmatpush1.msra.mxu0 0.0
    %4359 = vmatprep.subr.mxu0 0.0
    %4360 = vmatpush1.msra.mxu0 0.0
    %4361 = vmatprep.subr.mxu0 0.0
    %4362 = vmatpush1.msra.mxu0 0.0
    %4363 = vmatprep.subr.mxu0 0.0
    %4364 = vmatpush1.msra.mxu0 0.0
    %4365 = vmatprep.subr.mxu0 0.0
    %4366 = vmatpush1.msra.mxu0 %v154
    %4367 = vmatprep.subr.mxu0 0.0
    %4368 = vmatpush1.msra.mxu0 %v153
    %4369 = vmatprep.subr.mxu0 0.0
    %4370 = vmatpush1.msra.mxu0 %v152
    %4371 = vmatprep.subr.mxu0 0.0
    %4372 = vmatpush1.msra.mxu0 %v151
    %4373 = vmatprep.subr.mxu0 0.0
    %4374 = vmatpush1.msra.mxu0 %v150
    %4375 = vmatprep.subr.mxu0 0.0
    %4376 = vmatpush1.msra.mxu0 %v149
    %4377 = vmatprep.subr.mxu0 0.0
    %4378 = vmatpush2.msra.mxu0 0.0
    %4379 = vmatprep.subr.mxu0 0.0
    %4380 = vmatpush2.msra.mxu0 0.0
    %4381 = vmatprep.subr.mxu0 0.0
    %4382 = vmatpush2.msra.mxu0 0.0
    %4383 = vmatprep.subr.mxu0 0.0
    %4384 = vmatpush2.msra.mxu0 0.0
    %4385 = vmatprep.subr.mxu0 0.0
    %4386 = vmatpush2.msra.mxu0 0.0
    %4387 = vmatprep.subr.mxu0 0.0
    %4388 = vmatpush2.msra.mxu0 0.0
    %4389 = vmatprep.subr.mxu0 0.0
    %4390 = vmatpush2.msra.mxu0 0.0
    %4391 = vmatprep.subr.mxu0 0.0
    %4392 = vmatpush2.msra.mxu0 0.0
    %4393 = vmatprep.subr.mxu0 0.0
    %4394 = vmatpush2.msra.mxu0 0.0
    %4395 = vmatprep.subr.mxu0 0.0
    %4396 = vmatpush2.msra.mxu0 0.0
    %4397 = vmatprep.subr.mxu0 0.0
    %4398 = vmatpush2.msra.mxu0 0.0
    %4399 = vmatprep.subr.mxu0 0.0
    %4400 = vmatpush2.msra.mxu0 0.0
    %4401 = vmatprep.subr.mxu0 0.0
    %4402 = vmatpush2.msra.mxu0 0.0
    %4403 = vmatprep.subr.mxu0 0.0
    %4404 = vmatpush2.msra.mxu0 0.0
    %4405 = vmatprep.subr.mxu0 0.0
    %4406 = vmatpush2.msra.mxu0 0.0
    %4407 = vmatprep.subr.mxu0 0.0
    %4408 = vmatpush2.msra.mxu0 0.0
    %4409 = vmatprep.mubr.f32.mxu0 0.0
    %4410 = vmatmul.mubr.f32.gmra.mxu0 %v4343
    %v4411 = vpop.f32.mrf.mxu0
    %v4412 = vadd.f32 %v168, %v4411
    %v4413 = vpop.f32.mrf.mxu0
    %4414 = vdwg.mxu0
    %v4415 = vxor.u32 %v4412, 2147483648
    %v4416 = vmul.f32 %v4415, 1.442695
    %v4417 = vpow.pop %v4416
    %v4418 = vadd.f32 %v4417, 1.0
    %v4419 = vrcp.pop %v4418
    %v4420 = vmul.f32 1.0, %v4419
    %v4421 = vtanh.pop %v4412
    %v4422 = vmul.f32 %v4420, %v3618
    %4424 = vrot.lane.b32.xlu0 %v4421, 64
    %v4425 = vpop.permute.xlu0 %4424
    %v4427 = vmul.f32 %v4420, %v4425
    %4429 = vrot.lane.b32.xlu0 %v4427, 32
    %v4430 = vpop.permute.xlu0 %4429
    %v4432 = vadd.f32 %v4422, %v4430
    %v4433 = vtanh.pop %v4432
    %4435 = vrot.lane.b32.xlu0 %v4433, 64
    %v4436 = vpop.permute.xlu0 %4435
    %v4438 = vmul.f32 %v4420, %v4436
    %4440 = vrot.lane.b32.xlu0 %v4438, 32
    %v4441 = vpop.permute.xlu0 %4440
    %v4442 = vsel %vm298, %v4441, 0
    %4444 = vmatprep.subr.mxu0 0.0
    %4445 = vmatpush1.msra.mxu0 0.0
    %4446 = vmatprep.subr.mxu0 0.0
    %4447 = vmatpush1.msra.mxu0 0.0
    %4448 = vmatprep.subr.mxu0 0.0
    %4449 = vmatpush1.msra.mxu0 0.0
    %4450 = vmatprep.subr.mxu0 0.0
    %4451 = vmatpush1.msra.mxu0 0.0
    %4452 = vmatprep.subr.mxu0 0.0
    %4453 = vmatpush1.msra.mxu0 0.0
    %4454 = vmatprep.subr.mxu0 0.0
    %4455 = vmatpush1.msra.mxu0 0.0
    %4456 = vmatprep.subr.mxu0 0.0
    %4457 = vmatpush1.msra.mxu0 0.0
    %4458 = vmatprep.subr.mxu0 0.0
    %4459 = vmatpush1.msra.mxu0 0.0
    %4460 = vmatprep.subr.mxu0 0.0
    %4461 = vmatpush1.msra.mxu0 0.0
    %4462 = vmatprep.subr.mxu0 0.0
    %4463 = vmatpush1.msra.mxu0 0.0
    %4464 = vmatprep.subr.mxu0 0.0
    %4465 = vmatpush1.msra.mxu0 0.0
    %4466 = vmatprep.subr.mxu0 0.0
    %4467 = vmatpush1.msra.mxu0 0.0
    %4468 = vmatprep.subr.mxu0 0.0
    %4469 = vmatpush1.msra.mxu0 %v158
    %4470 = vmatprep.subr.mxu0 0.0
    %4471 = vmatpush1.msra.mxu0 %v157
    %4472 = vmatprep.subr.mxu0 0.0
    %4473 = vmatpush1.msra.mxu0 %v156
    %4474 = vmatprep.subr.mxu0 0.0
    %4475 = vmatpush1.msra.mxu0 %v155
    %4476 = vmatprep.subr.mxu0 0.0
    %4477 = vmatpush2.msra.mxu0 0.0
    %4478 = vmatprep.subr.mxu0 0.0
    %4479 = vmatpush2.msra.mxu0 0.0
    %4480 = vmatprep.subr.mxu0 0.0
    %4481 = vmatpush2.msra.mxu0 0.0
    %4482 = vmatprep.subr.mxu0 0.0
    %4483 = vmatpush2.msra.mxu0 0.0
    %4484 = vmatprep.subr.mxu0 0.0
    %4485 = vmatpush2.msra.mxu0 0.0
    %4486 = vmatprep.subr.mxu0 0.0
    %4487 = vmatpush2.msra.mxu0 0.0
    %4488 = vmatprep.subr.mxu0 0.0
    %4489 = vmatpush2.msra.mxu0 0.0
    %4490 = vmatprep.subr.mxu0 0.0
    %4491 = vmatpush2.msra.mxu0 0.0
    %4492 = vmatprep.subr.mxu0 0.0
    %4493 = vmatpush2.msra.mxu0 0.0
    %4494 = vmatprep.subr.mxu0 0.0
    %4495 = vmatpush2.msra.mxu0 0.0
    %4496 = vmatprep.subr.mxu0 0.0
    %4497 = vmatpush2.msra.mxu0 0.0
    %4498 = vmatprep.subr.mxu0 0.0
    %4499 = vmatpush2.msra.mxu0 0.0
    %4500 = vmatprep.subr.mxu0 0.0
    %4501 = vmatpush2.msra.mxu0 0.0
    %4502 = vmatprep.subr.mxu0 0.0
    %4503 = vmatpush2.msra.mxu0 0.0
    %4504 = vmatprep.subr.mxu0 0.0
    %4505 = vmatpush2.msra.mxu0 0.0
    %4506 = vmatprep.subr.mxu0 0.0
    %4507 = vmatpush2.msra.mxu0 0.0
    %4508 = vmatprep.mubr.f32.mxu0 0.0
    %4509 = vmatmul.mubr.f32.gmra.mxu0 %v4442
    %v4510 = vpop.f32.mrf.mxu0
    %v4511 = vadd.f32 %v175, %v4510
    %v4512 = vpop.f32.mrf.mxu0
    %4513 = vdwg.mxu0
    %v4515 = vcombine.high %v4511, %v4511
    %v4517 = vunpack.c.l.s4 1966171168
    %v4518 = vunpack.c.0.s8 %v4517
    %v4519 = vlaneseq
    %v4520 = vshrl.u32 %v4519, 7
    %v4521 = vsub.s32 %v4518, %v4520
    %v4522 = vrot.slane %v4511, %v4521
    %v4524 = vunpack.c.l.s4 1966171168
    %v4525 = vunpack.c.0.s8 %v4524
    %v4526 = vlaneseq
    %v4527 = vshrl.u32 %v4526, 7
    %v4528 = vsub.s32 %v4525, %v4527
    %v4529 = vrot.slane %v4515, %v4528
    %v4530 = vcombine.high %v4522, %v4522
    %v4531 = vcombine.high %v4529, %v4529
    %v4533 = vunpack.c.l.s4 1966171168
    %v4534 = vunpack.c.0.s8 %v4533
    %v4535 = vlaneseq
    %v4536 = vshrl.u32 %v4535, 7
    %v4537 = vsub.s32 %v4534, %v4536
    %v4538 = vrot.slane %v4522, %v4537
    %v4540 = vunpack.c.l.s4 1966171168
    %v4541 = vunpack.c.0.s8 %v4540
    %v4542 = vlaneseq
    %v4543 = vshrl.u32 %v4542, 7
    %v4544 = vsub.s32 %v4541, %v4543
    %v4545 = vrot.slane %v4529, %v4544
    %v4547 = vunpack.c.l.s4 1966171168
    %v4548 = vunpack.c.0.s8 %v4547
    %v4549 = vlaneseq
    %v4550 = vshrl.u32 %v4549, 7
    %v4551 = vsub.s32 %v4548, %v4550
    %v4552 = vrot.slane %v4530, %v4551
    %v4554 = vunpack.c.l.s4 1966171168
    %v4555 = vunpack.c.0.s8 %v4554
    %v4556 = vlaneseq
    %v4557 = vshrl.u32 %v4556, 7
    %v4558 = vsub.s32 %v4555, %v4557
    %v4559 = vrot.slane %v4531, %v4558
    %v4560 = vcombine.high %v4538, %v4538
    %v4561 = vcombine.high %v4545, %v4545
    %v4562 = vcombine.high %v4552, %v4552
    %v4563 = vcombine.high %v4559, %v4559
    %v4564 = vlaneseq
    %v4565 = vshrl.u32 %v4564, 7
    %v4566 = vsub.s32 0, %v4565
    %v4567 = vrot.slane %v4538, %v4566
    %v4568 = vlaneseq
    %v4569 = vshrl.u32 %v4568, 7
    %v4570 = vsub.s32 0, %v4569
    %v4571 = vrot.slane %v4552, %v4570
    %v4572 = vlaneseq
    %v4573 = vshrl.u32 %v4572, 7
    %v4574 = vsub.s32 0, %v4573
    %v4575 = vrot.slane %v4560, %v4574
    %v4576 = vlaneseq
    %v4577 = vshrl.u32 %v4576, 7
    %v4578 = vsub.s32 0, %v4577
    %v4579 = vrot.slane %v4562, %v4578
    %v4580 = vlaneseq
    %v4581 = vshrl.u32 %v4580, 7
    %v4582 = vsub.s32 0, %v4581
    %v4583 = vrot.slane %v4545, %v4582
    %v4584 = vlaneseq
    %v4585 = vshrl.u32 %v4584, 7
    %v4586 = vsub.s32 0, %v4585
    %v4587 = vrot.slane %v4559, %v4586
    %v4588 = vlaneseq
    %v4589 = vshrl.u32 %v4588, 7
    %v4590 = vsub.s32 0, %v4589
    %v4591 = vrot.slane %v4561, %v4590
    %v4592 = vlaneseq
    %v4593 = vshrl.u32 %v4592, 7
    %v4594 = vsub.s32 0, %v4593
    %v4595 = vrot.slane %v4563, %v4594
    %v4604 = vmul.f32 %v4567, %v132
    %v4605 = vmul.f32 %v4571, %v133
    %v4606 = vmul.f32 %v4575, %v134
    %v4607 = vmul.f32 %v4579, %v135
    %v4608 = vmul.f32 %v4583, %v136
    %v4609 = vmul.f32 %v4587, %v137
    %v4610 = vmul.f32 %v4591, %v138
    %v4611 = vmul.f32 %v4595, %v139
    %v4612 = vsel %vm298, %v4604, 0.0
    %4613 = vadd.xlane.f32.xlu0 %v4612
    %v4614 = vpop.xlane.xlu0 %4613
    %v4615 = vsel %vm298, %v4605, 0.0
    %4616 = vadd.xlane.f32.xlu0 %v4615
    %v4617 = vpop.xlane.xlu0 %4616
    %v4618 = vsel %vm298, %v4606, 0.0
    %4619 = vadd.xlane.f32.xlu0 %v4618
    %v4620 = vpop.xlane.xlu0 %4619
    %v4621 = vsel %vm298, %v4607, 0.0
    %4622 = vadd.xlane.f32.xlu0 %v4621
    %v4623 = vpop.xlane.xlu0 %4622
    %v4624 = vsel %vm298, %v4608, 0.0
    %4625 = vadd.xlane.f32.xlu0 %v4624
    %v4626 = vpop.xlane.xlu0 %4625
    %v4627 = vsel %vm298, %v4609, 0.0
    %4628 = vadd.xlane.f32.xlu0 %v4627
    %v4629 = vpop.xlane.xlu0 %4628
    %v4630 = vsel %vm298, %v4610, 0.0
    %4631 = vadd.xlane.f32.xlu0 %v4630
    %v4632 = vpop.xlane.xlu0 %4631
    %v4633 = vsel %vm298, %v4611, 0.0
    %4634 = vadd.xlane.f32.xlu0 %v4633
    %v4635 = vpop.xlane.xlu0 %4634
    %v4636 = vadd.f32 %v4614, %v500
    %v4637 = vadd.f32 %v4617, %v507
    %v4638 = vadd.f32 %v4620, %v514
    %v4639 = vadd.f32 %v4623, %v521
    %v4640 = vadd.f32 %v4626, %v528
    %v4641 = vadd.f32 %v4629, %v535
    %v4642 = vadd.f32 %v4632, %v542
    %v4643 = vadd.f32 %v4635, %v549
    %4652 = vset.pattern.permute.xlu0 0
    %4653 = vperm.xlu0 %4652, %v4636
    %v4654 = vpop.permute.xlu0 %4653
    %4655 = vset.pattern.permute.xlu0 0
    %4656 = vperm.xlu0 %4655, %v4637
    %v4657 = vpop.permute.xlu0 %4656
    %4658 = vset.pattern.permute.xlu0 0
    %4659 = vperm.xlu0 %4658, %v4638
    %v4660 = vpop.permute.xlu0 %4659
    %4661 = vset.pattern.permute.xlu0 0
    %4662 = vperm.xlu0 %4661, %v4639
    %v4663 = vpop.permute.xlu0 %4662
    %4664 = vset.pattern.permute.xlu0 0
    %4665 = vperm.xlu0 %4664, %v4640
    %v4666 = vpop.permute.xlu0 %4665
    %4667 = vset.pattern.permute.xlu0 0
    %4668 = vperm.xlu0 %4667, %v4641
    %v4669 = vpop.permute.xlu0 %4668
    %4670 = vset.pattern.permute.xlu0 0
    %4671 = vperm.xlu0 %4670, %v4642
    %v4672 = vpop.permute.xlu0 %4671
    %4673 = vset.pattern.permute.xlu0 0
    %4674 = vperm.xlu0 %4673, %v4643
    %v4675 = vpop.permute.xlu0 %4674
    %v4676 = vlaneseq
    %v4677 = vshrl.u32 %v4676, 7
    %v4678 = vsub.s32 %v599, %v4677
    %v4679 = vrot.slane %v4654, %v4678
    %v4680 = vlaneseq
    %v4681 = vshrl.u32 %v4680, 7
    %v4682 = vsub.s32 %v599, %v4681
    %v4683 = vrot.slane %v4657, %v4682
    %v4684 = vlaneseq
    %v4685 = vshrl.u32 %v4684, 7
    %v4686 = vsub.s32 %v599, %v4685
    %v4687 = vrot.slane %v4660, %v4686
    %v4688 = vlaneseq
    %v4689 = vshrl.u32 %v4688, 7
    %v4690 = vsub.s32 %v599, %v4689
    %v4691 = vrot.slane %v4663, %v4690
    %v4692 = vlaneseq
    %v4693 = vshrl.u32 %v4692, 7
    %v4694 = vsub.s32 %v599, %v4693
    %v4695 = vrot.slane %v4666, %v4694
    %v4696 = vlaneseq
    %v4697 = vshrl.u32 %v4696, 7
    %v4698 = vsub.s32 %v599, %v4697
    %v4699 = vrot.slane %v4669, %v4698
    %v4700 = vlaneseq
    %v4701 = vshrl.u32 %v4700, 7
    %v4702 = vsub.s32 %v599, %v4701
    %v4703 = vrot.slane %v4672, %v4702
    %v4704 = vlaneseq
    %v4705 = vshrl.u32 %v4704, 7
    %v4706 = vsub.s32 %v599, %v4705
    %v4707 = vrot.slane %v4675, %v4706
    %v4708 = vsel %vm632, %v4683, %v4679
    %v4709 = vsel %vm634, %v4687, %v4708
    %v4710 = vsel %vm636, %v4691, %v4709
    %v4711 = vsel %vm638, %v4695, %v4710
    %v4712 = vsel %vm640, %v4699, %v4711
    %v4713 = vsel %vm642, %v4703, %v4712
    %v4714 = vsel %vm644, %v4707, %v4713
    %v4716 = vsel %vm647, %v4714, -inf
    %4717 = vmax.xlane.f32.xlu0 %v4716
    %v4718 = vpop.xlane.xlu0 %4717
    %v4720 = vlaneseq
    %v4721 = vshrl.u32 %v4720, 7
    %v4722 = vsub.s32 0, %v4721
    %v4723 = vrot.slane %v4718, %v4722
    %v4724 = vlaneseq
    %v4725 = vshrl.u32 %v4724, 7
    %v4726 = vsub.s32 1, %v4725
    %v4727 = vrot.slane %v4718, %v4726
    %v4728 = vlaneseq
    %v4729 = vshrl.u32 %v4728, 7
    %v4730 = vsub.s32 2, %v4729
    %v4731 = vrot.slane %v4718, %v4730
    %v4732 = vlaneseq
    %v4733 = vshrl.u32 %v4732, 7
    %v4734 = vsub.s32 3, %v4733
    %v4735 = vrot.slane %v4718, %v4734
    %v4736 = vlaneseq
    %v4737 = vshrl.u32 %v4736, 7
    %v4738 = vsub.s32 4, %v4737
    %v4739 = vrot.slane %v4718, %v4738
    %v4740 = vlaneseq
    %v4741 = vshrl.u32 %v4740, 7
    %v4742 = vsub.s32 5, %v4741
    %v4743 = vrot.slane %v4718, %v4742
    %v4744 = vlaneseq
    %v4745 = vshrl.u32 %v4744, 7
    %v4746 = vsub.s32 6, %v4745
    %v4747 = vrot.slane %v4718, %v4746
    %v4748 = vlaneseq
    %v4749 = vshrl.u32 %v4748, 7
    %v4750 = vsub.s32 7, %v4749
    %v4751 = vrot.slane %v4718, %v4750
    %v4760 = vsub.f32 %v4636, %v4723
    %v4761 = vsub.f32 %v4637, %v4727
    %v4762 = vsub.f32 %v4638, %v4731
    %v4763 = vsub.f32 %v4639, %v4735
    %v4764 = vsub.f32 %v4640, %v4739
    %v4765 = vsub.f32 %v4641, %v4743
    %v4766 = vsub.f32 %v4642, %v4747
    %v4767 = vsub.f32 %v4643, %v4751
    %v4768 = vmul.f32 %v4760, 1.442695
    %v4769 = vpow.pop %v4768
    %v4770 = vmul.f32 %v4761, 1.442695
    %v4771 = vpow.pop %v4770
    %v4772 = vmul.f32 %v4762, 1.442695
    %v4773 = vpow.pop %v4772
    %v4774 = vmul.f32 %v4763, 1.442695
    %v4775 = vpow.pop %v4774
    %v4776 = vmul.f32 %v4764, 1.442695
    %v4777 = vpow.pop %v4776
    %v4778 = vmul.f32 %v4765, 1.442695
    %v4779 = vpow.pop %v4778
    %v4780 = vmul.f32 %v4766, 1.442695
    %v4781 = vpow.pop %v4780
    %v4782 = vmul.f32 %v4767, 1.442695
    %v4783 = vpow.pop %v4782
    %4792 = vset.pattern.permute.xlu0 0
    %4793 = vperm.xlu0 %4792, %v4769
    %v4794 = vpop.permute.xlu0 %4793
    %4795 = vset.pattern.permute.xlu0 0
    %4796 = vperm.xlu0 %4795, %v4771
    %v4797 = vpop.permute.xlu0 %4796
    %4798 = vset.pattern.permute.xlu0 0
    %4799 = vperm.xlu0 %4798, %v4773
    %v4800 = vpop.permute.xlu0 %4799
    %4801 = vset.pattern.permute.xlu0 0
    %4802 = vperm.xlu0 %4801, %v4775
    %v4803 = vpop.permute.xlu0 %4802
    %4804 = vset.pattern.permute.xlu0 0
    %4805 = vperm.xlu0 %4804, %v4777
    %v4806 = vpop.permute.xlu0 %4805
    %4807 = vset.pattern.permute.xlu0 0
    %4808 = vperm.xlu0 %4807, %v4779
    %v4809 = vpop.permute.xlu0 %4808
    %4810 = vset.pattern.permute.xlu0 0
    %4811 = vperm.xlu0 %4810, %v4781
    %v4812 = vpop.permute.xlu0 %4811
    %4813 = vset.pattern.permute.xlu0 0
    %4814 = vperm.xlu0 %4813, %v4783
    %v4815 = vpop.permute.xlu0 %4814
    %v4816 = vlaneseq
    %v4817 = vshrl.u32 %v4816, 7
    %v4818 = vsub.s32 %v599, %v4817
    %v4819 = vrot.slane %v4794, %v4818
    %v4820 = vlaneseq
    %v4821 = vshrl.u32 %v4820, 7
    %v4822 = vsub.s32 %v599, %v4821
    %v4823 = vrot.slane %v4797, %v4822
    %v4824 = vlaneseq
    %v4825 = vshrl.u32 %v4824, 7
    %v4826 = vsub.s32 %v599, %v4825
    %v4827 = vrot.slane %v4800, %v4826
    %v4828 = vlaneseq
    %v4829 = vshrl.u32 %v4828, 7
    %v4830 = vsub.s32 %v599, %v4829
    %v4831 = vrot.slane %v4803, %v4830
    %v4832 = vlaneseq
    %v4833 = vshrl.u32 %v4832, 7
    %v4834 = vsub.s32 %v599, %v4833
    %v4835 = vrot.slane %v4806, %v4834
    %v4836 = vlaneseq
    %v4837 = vshrl.u32 %v4836, 7
    %v4838 = vsub.s32 %v599, %v4837
    %v4839 = vrot.slane %v4809, %v4838
    %v4840 = vlaneseq
    %v4841 = vshrl.u32 %v4840, 7
    %v4842 = vsub.s32 %v599, %v4841
    %v4843 = vrot.slane %v4812, %v4842
    %v4844 = vlaneseq
    %v4845 = vshrl.u32 %v4844, 7
    %v4846 = vsub.s32 %v599, %v4845
    %v4847 = vrot.slane %v4815, %v4846
    %v4848 = vsel %vm632, %v4823, %v4819
    %v4849 = vsel %vm634, %v4827, %v4848
    %v4850 = vsel %vm636, %v4831, %v4849
    %v4851 = vsel %vm638, %v4835, %v4850
    %v4852 = vsel %vm640, %v4839, %v4851
    %v4853 = vsel %vm642, %v4843, %v4852
    %v4854 = vsel %vm644, %v4847, %v4853
    %v4856 = vsel %vm647, %v4854, 0.0
    %4857 = vadd.xlane.f32.xlu0 %v4856
    %v4858 = vpop.xlane.xlu0 %4857
    %v4860 = vlaneseq
    %v4861 = vshrl.u32 %v4860, 7
    %v4862 = vsub.s32 0, %v4861
    %v4863 = vrot.slane %v4858, %v4862
    %v4864 = vlaneseq
    %v4865 = vshrl.u32 %v4864, 7
    %v4866 = vsub.s32 1, %v4865
    %v4867 = vrot.slane %v4858, %v4866
    %v4868 = vlaneseq
    %v4869 = vshrl.u32 %v4868, 7
    %v4870 = vsub.s32 2, %v4869
    %v4871 = vrot.slane %v4858, %v4870
    %v4872 = vlaneseq
    %v4873 = vshrl.u32 %v4872, 7
    %v4874 = vsub.s32 3, %v4873
    %v4875 = vrot.slane %v4858, %v4874
    %v4876 = vlaneseq
    %v4877 = vshrl.u32 %v4876, 7
    %v4878 = vsub.s32 4, %v4877
    %v4879 = vrot.slane %v4858, %v4878
    %v4880 = vlaneseq
    %v4881 = vshrl.u32 %v4880, 7
    %v4882 = vsub.s32 5, %v4881
    %v4883 = vrot.slane %v4858, %v4882
    %v4884 = vlaneseq
    %v4885 = vshrl.u32 %v4884, 7
    %v4886 = vsub.s32 6, %v4885
    %v4887 = vrot.slane %v4858, %v4886
    %v4888 = vlaneseq
    %v4889 = vshrl.u32 %v4888, 7
    %v4890 = vsub.s32 7, %v4889
    %v4891 = vrot.slane %v4858, %v4890
    %v4900 = vrcp.pop %v4863
    %v4901 = vmul.f32 %v4769, %v4900
    %v4902 = vrcp.pop %v4867
    %v4903 = vmul.f32 %v4771, %v4902
    %v4904 = vrcp.pop %v4871
    %v4905 = vmul.f32 %v4773, %v4904
    %v4906 = vrcp.pop %v4875
    %v4907 = vmul.f32 %v4775, %v4906
    %v4908 = vrcp.pop %v4879
    %v4909 = vmul.f32 %v4777, %v4908
    %v4910 = vrcp.pop %v4883
    %v4911 = vmul.f32 %v4779, %v4910
    %v4912 = vrcp.pop %v4887
    %v4913 = vmul.f32 %v4781, %v4912
    %v4914 = vrcp.pop %v4891
    %v4915 = vmul.f32 %v4783, %v4914
    %4917 = vset.pattern.permute.xlu0 0
    %4918 = vperm.xlu0 %4917, %v4901
    %v4919 = vpop.permute.xlu0 %4918
    %4922 = vset.pattern.permute.xlu0 0
    %4923 = vperm.xlu0 %4922, %v4903
    %v4924 = vpop.permute.xlu0 %4923
    %4927 = vset.pattern.permute.xlu0 0
    %4928 = vperm.xlu0 %4927, %v4905
    %v4929 = vpop.permute.xlu0 %4928
    %4932 = vset.pattern.permute.xlu0 0
    %4933 = vperm.xlu0 %4932, %v4907
    %v4934 = vpop.permute.xlu0 %4933
    %4937 = vset.pattern.permute.xlu0 0
    %4938 = vperm.xlu0 %4937, %v4909
    %v4939 = vpop.permute.xlu0 %4938
    %4942 = vset.pattern.permute.xlu0 0
    %4943 = vperm.xlu0 %4942, %v4911
    %v4944 = vpop.permute.xlu0 %4943
    %4947 = vset.pattern.permute.xlu0 0
    %4948 = vperm.xlu0 %4947, %v4913
    %v4949 = vpop.permute.xlu0 %4948
    %4952 = vset.pattern.permute.xlu0 0
    %4953 = vperm.xlu0 %4952, %v4915
    %v4954 = vpop.permute.xlu0 %4953
    %v4956 = vmul.f32 %v4919, %v140
    %v4957 = vmul.f32 %v4924, %v141
    %v4958 = vmul.f32 %v4929, %v142
    %v4959 = vmul.f32 %v4934, %v143
    %v4960 = vmul.f32 %v4939, %v144
    %v4961 = vmul.f32 %v4944, %v145
    %v4962 = vmul.f32 %v4949, %v146
    %v4963 = vmul.f32 %v4954, %v147
    %v4964 = vsel %vm298, %v4956, 0.0
    %v4965 = vrot.slane %v4964, 4
    %v4966 = vadd.f32 %v4964, %v4965
    %v4967 = vrot.slane %v4966, 2
    %v4968 = vadd.f32 %v4966, %v4967
    %v4969 = vrot.slane %v4968, 1
    %v4970 = vadd.f32 %v4968, %v4969
    %v4971 = vsel %vm298, %v4957, 0.0
    %v4972 = vrot.slane %v4971, 4
    %v4973 = vadd.f32 %v4971, %v4972
    %v4974 = vrot.slane %v4973, 2
    %v4975 = vadd.f32 %v4973, %v4974
    %v4976 = vrot.slane %v4975, 1
    %v4977 = vadd.f32 %v4975, %v4976
    %v4978 = vsel %vm298, %v4958, 0.0
    %v4979 = vrot.slane %v4978, 4
    %v4980 = vadd.f32 %v4978, %v4979
    %v4981 = vrot.slane %v4980, 2
    %v4982 = vadd.f32 %v4980, %v4981
    %v4983 = vrot.slane %v4982, 1
    %v4984 = vadd.f32 %v4982, %v4983
    %v4985 = vsel %vm298, %v4959, 0.0
    %v4986 = vrot.slane %v4985, 4
    %v4987 = vadd.f32 %v4985, %v4986
    %v4988 = vrot.slane %v4987, 2
    %v4989 = vadd.f32 %v4987, %v4988
    %v4990 = vrot.slane %v4989, 1
    %v4991 = vadd.f32 %v4989, %v4990
    %v4992 = vsel %vm298, %v4960, 0.0
    %v4993 = vrot.slane %v4992, 4
    %v4994 = vadd.f32 %v4992, %v4993
    %v4995 = vrot.slane %v4994, 2
    %v4996 = vadd.f32 %v4994, %v4995
    %v4997 = vrot.slane %v4996, 1
    %v4998 = vadd.f32 %v4996, %v4997
    %v4999 = vsel %vm298, %v4961, 0.0
    %v5000 = vrot.slane %v4999, 4
    %v5001 = vadd.f32 %v4999, %v5000
    %v5002 = vrot.slane %v5001, 2
    %v5003 = vadd.f32 %v5001, %v5002
    %v5004 = vrot.slane %v5003, 1
    %v5005 = vadd.f32 %v5003, %v5004
    %v5006 = vsel %vm298, %v4962, 0.0
    %v5007 = vrot.slane %v5006, 4
    %v5008 = vadd.f32 %v5006, %v5007
    %v5009 = vrot.slane %v5008, 2
    %v5010 = vadd.f32 %v5008, %v5009
    %v5011 = vrot.slane %v5010, 1
    %v5012 = vadd.f32 %v5010, %v5011
    %v5013 = vsel %vm298, %v4963, 0.0
    %v5014 = vrot.slane %v5013, 4
    %v5015 = vadd.f32 %v5013, %v5014
    %v5016 = vrot.slane %v5015, 2
    %v5017 = vadd.f32 %v5015, %v5016
    %v5018 = vrot.slane %v5017, 1
    %v5019 = vadd.f32 %v5017, %v5018
    %v5028 = vsel %vm632, %v4977, %v4970
    %v5029 = vsel %vm634, %v4984, %v5028
    %v5030 = vsel %vm636, %v4991, %v5029
    %v5031 = vsel %vm638, %v4998, %v5030
    %v5032 = vsel %vm640, %v5005, %v5031
    %v5033 = vsel %vm642, %v5012, %v5032
    %v5034 = vsel %vm644, %v5019, %v5033
    %v5035 = vsel %vm298, %v5034, 0
    %5037 = vmatprep.subr.mxu0 0.0
    %5038 = vmatpush1.msra.mxu0 0.0
    %5039 = vmatprep.subr.mxu0 0.0
    %5040 = vmatpush1.msra.mxu0 0.0
    %5041 = vmatprep.subr.mxu0 0.0
    %5042 = vmatpush1.msra.mxu0 0.0
    %5043 = vmatprep.subr.mxu0 0.0
    %5044 = vmatpush1.msra.mxu0 0.0
    %5045 = vmatprep.subr.mxu0 0.0
    %5046 = vmatpush1.msra.mxu0 0.0
    %5047 = vmatprep.subr.mxu0 0.0
    %5048 = vmatpush1.msra.mxu0 0.0
    %5049 = vmatprep.subr.mxu0 0.0
    %5050 = vmatpush1.msra.mxu0 0.0
    %5051 = vmatprep.subr.mxu0 0.0
    %5052 = vmatpush1.msra.mxu0 0.0
    %5053 = vmatprep.subr.mxu0 0.0
    %5054 = vmatpush1.msra.mxu0 0.0
    %5055 = vmatprep.subr.mxu0 0.0
    %5056 = vmatpush1.msra.mxu0 0.0
    %5057 = vmatprep.subr.mxu0 0.0
    %5058 = vmatpush1.msra.mxu0 0.0
    %5059 = vmatprep.subr.mxu0 0.0
    %5060 = vmatpush1.msra.mxu0 0.0
    %5061 = vmatprep.subr.mxu0 0.0
    %5062 = vmatpush1.msra.mxu0 %v162
    %5063 = vmatprep.subr.mxu0 0.0
    %5064 = vmatpush1.msra.mxu0 %v161
    %5065 = vmatprep.subr.mxu0 0.0
    %5066 = vmatpush1.msra.mxu0 %v160
    %5067 = vmatprep.subr.mxu0 0.0
    %5068 = vmatpush1.msra.mxu0 %v159
    %5069 = vmatprep.subr.mxu0 0.0
    %5070 = vmatpush2.msra.mxu0 0.0
    %5071 = vmatprep.subr.mxu0 0.0
    %5072 = vmatpush2.msra.mxu0 0.0
    %5073 = vmatprep.subr.mxu0 0.0
    %5074 = vmatpush2.msra.mxu0 0.0
    %5075 = vmatprep.subr.mxu0 0.0
    %5076 = vmatpush2.msra.mxu0 0.0
    %5077 = vmatprep.subr.mxu0 0.0
    %5078 = vmatpush2.msra.mxu0 0.0
    %5079 = vmatprep.subr.mxu0 0.0
    %5080 = vmatpush2.msra.mxu0 0.0
    %5081 = vmatprep.subr.mxu0 0.0
    %5082 = vmatpush2.msra.mxu0 0.0
    %5083 = vmatprep.subr.mxu0 0.0
    %5084 = vmatpush2.msra.mxu0 0.0
    %5085 = vmatprep.subr.mxu0 0.0
    %5086 = vmatpush2.msra.mxu0 0.0
    %5087 = vmatprep.subr.mxu0 0.0
    %5088 = vmatpush2.msra.mxu0 0.0
    %5089 = vmatprep.subr.mxu0 0.0
    %5090 = vmatpush2.msra.mxu0 0.0
    %5091 = vmatprep.subr.mxu0 0.0
    %5092 = vmatpush2.msra.mxu0 0.0
    %5093 = vmatprep.subr.mxu0 0.0
    %5094 = vmatpush2.msra.mxu0 0.0
    %5095 = vmatprep.subr.mxu0 0.0
    %5096 = vmatpush2.msra.mxu0 0.0
    %5097 = vmatprep.subr.mxu0 0.0
    %5098 = vmatpush2.msra.mxu0 0.0
    %5099 = vmatprep.subr.mxu0 0.0
    %5100 = vmatpush2.msra.mxu0 0.0
    %5101 = vmatprep.mubr.f32.mxu0 0.0
    %5102 = vmatmul.mubr.f32.gmra.mxu0 %v5035
    %v5103 = vpop.f32.mrf.mxu0
    %v5104 = vadd.f32 %v182, %v5103
    %v5105 = vpop.f32.mrf.mxu0
    %5106 = vdwg.mxu0
    %v5107 = vmax.f32 %v5104, 0.0
    %s5108 = scalar_lea.vmem [#allocation14], 40
    %5109 = vst.msk [vmem:[%s5108] sm:$0xff] %vm191, %v5107
    %v5110 = vlaneseq
    %v5111 = vshrl.u32 %v5110, 7
    %v5112 = vsub.s32 %v599, %v5111
    %v5113 = vrot.slane %v4919, %v5112
    %v5114 = vlaneseq
    %v5115 = vshrl.u32 %v5114, 7
    %v5116 = vsub.s32 %v599, %v5115
    %v5117 = vrot.slane %v4924, %v5116
    %v5118 = vlaneseq
    %v5119 = vshrl.u32 %v5118, 7
    %v5120 = vsub.s32 %v599, %v5119
    %v5121 = vrot.slane %v4929, %v5120
    %v5122 = vlaneseq
    %v5123 = vshrl.u32 %v5122, 7
    %v5124 = vsub.s32 %v599, %v5123
    %v5125 = vrot.slane %v4934, %v5124
    %v5126 = vlaneseq
    %v5127 = vshrl.u32 %v5126, 7
    %v5128 = vsub.s32 %v599, %v5127
    %v5129 = vrot.slane %v4939, %v5128
    %v5130 = vlaneseq
    %v5131 = vshrl.u32 %v5130, 7
    %v5132 = vsub.s32 %v599, %v5131
    %v5133 = vrot.slane %v4944, %v5132
    %v5134 = vlaneseq
    %v5135 = vshrl.u32 %v5134, 7
    %v5136 = vsub.s32 %v599, %v5135
    %v5137 = vrot.slane %v4949, %v5136
    %v5138 = vlaneseq
    %v5139 = vshrl.u32 %v5138, 7
    %v5140 = vsub.s32 %v599, %v5139
    %v5141 = vrot.slane %v4954, %v5140
    %v5142 = vsel %vm632, %v5117, %v5113
    %v5143 = vsel %vm634, %v5121, %v5142
    %v5144 = vsel %vm636, %v5125, %v5143
    %v5145 = vsel %vm638, %v5129, %v5144
    %v5146 = vsel %vm640, %v5133, %v5145
    %v5147 = vsel %vm642, %v5137, %v5146
    %v5148 = vsel %vm644, %v5141, %v5147
    %s5150 = scalar_lea.vmem [#allocation15], 40
    %5151 = vst.msk [vmem:[%s5150] sm:$0xff] %vm647, %v5148
    %5152 = vrot.lane.b32.xlu0 %v4438, 48
    %v5153 = vpop.permute.xlu0 %5152
    %v5155 = vsel %vm191, %v5107, %v5153
    %v5157 = vsel %vm193, %v5155, 0
    %5159 = vmatprep.subr.mxu0 0.0
    %5160 = vmatpush1.msra.mxu0 0.0
    %5161 = vmatprep.subr.mxu0 0.0
    %5162 = vmatpush1.msra.mxu0 0.0
    %5163 = vmatprep.subr.mxu0 0.0
    %5164 = vmatpush1.msra.mxu0 0.0
    %5165 = vmatprep.subr.mxu0 0.0
    %5166 = vmatpush1.msra.mxu0 0.0
    %5167 = vmatprep.subr.mxu0 0.0
    %5168 = vmatpush1.msra.mxu0 0.0
    %5169 = vmatprep.subr.mxu0 0.0
    %5170 = vmatpush1.msra.mxu0 0.0
    %5171 = vmatprep.subr.mxu0 0.0
    %5172 = vmatpush1.msra.mxu0 0.0
    %5173 = vmatprep.subr.mxu0 0.0
    %5174 = vmatpush1.msra.mxu0 0.0
    %5175 = vmatprep.subr.mxu0 0.0
    %5176 = vmatpush1.msra.mxu0 0.0
    %5177 = vmatprep.subr.mxu0 0.0
    %5178 = vmatpush1.msra.mxu0 0.0
    %5179 = vmatprep.subr.mxu0 0.0
    %5180 = vmatpush1.msra.mxu0 %v154
    %5181 = vmatprep.subr.mxu0 0.0
    %5182 = vmatpush1.msra.mxu0 %v153
    %5183 = vmatprep.subr.mxu0 0.0
    %5184 = vmatpush1.msra.mxu0 %v152
    %5185 = vmatprep.subr.mxu0 0.0
    %5186 = vmatpush1.msra.mxu0 %v151
    %5187 = vmatprep.subr.mxu0 0.0
    %5188 = vmatpush1.msra.mxu0 %v150
    %5189 = vmatprep.subr.mxu0 0.0
    %5190 = vmatpush1.msra.mxu0 %v149
    %5191 = vmatprep.subr.mxu0 0.0
    %5192 = vmatpush2.msra.mxu0 0.0
    %5193 = vmatprep.subr.mxu0 0.0
    %5194 = vmatpush2.msra.mxu0 0.0
    %5195 = vmatprep.subr.mxu0 0.0
    %5196 = vmatpush2.msra.mxu0 0.0
    %5197 = vmatprep.subr.mxu0 0.0
    %5198 = vmatpush2.msra.mxu0 0.0
    %5199 = vmatprep.subr.mxu0 0.0
    %5200 = vmatpush2.msra.mxu0 0.0
    %5201 = vmatprep.subr.mxu0 0.0
    %5202 = vmatpush2.msra.mxu0 0.0
    %5203 = vmatprep.subr.mxu0 0.0
    %5204 = vmatpush2.msra.mxu0 0.0
    %5205 = vmatprep.subr.mxu0 0.0
    %5206 = vmatpush2.msra.mxu0 0.0
    %5207 = vmatprep.subr.mxu0 0.0
    %5208 = vmatpush2.msra.mxu0 0.0
    %5209 = vmatprep.subr.mxu0 0.0
    %5210 = vmatpush2.msra.mxu0 0.0
    %5211 = vmatprep.subr.mxu0 0.0
    %5212 = vmatpush2.msra.mxu0 0.0
    %5213 = vmatprep.subr.mxu0 0.0
    %5214 = vmatpush2.msra.mxu0 0.0
    %5215 = vmatprep.subr.mxu0 0.0
    %5216 = vmatpush2.msra.mxu0 0.0
    %5217 = vmatprep.subr.mxu0 0.0
    %5218 = vmatpush2.msra.mxu0 0.0
    %5219 = vmatprep.subr.mxu0 0.0
    %5220 = vmatpush2.msra.mxu0 0.0
    %5221 = vmatprep.subr.mxu0 0.0
    %5222 = vmatpush2.msra.mxu0 0.0
    %5223 = vmatprep.mubr.f32.mxu0 0.0
    %5224 = vmatmul.mubr.f32.gmra.mxu0 %v5157
    %v5225 = vpop.f32.mrf.mxu0
    %v5226 = vadd.f32 %v168, %v5225
    %v5227 = vpop.f32.mrf.mxu0
    %5228 = vdwg.mxu0
    %v5229 = vxor.u32 %v5226, 2147483648
    %v5230 = vmul.f32 %v5229, 1.442695
    %v5231 = vpow.pop %v5230
    %v5232 = vadd.f32 %v5231, 1.0
    %v5233 = vrcp.pop %v5232
    %v5234 = vmul.f32 1.0, %v5233
    %v5235 = vtanh.pop %v5226
    %v5236 = vmul.f32 %v5234, %v4432
    %5238 = vrot.lane.b32.xlu0 %v5235, 64
    %v5239 = vpop.permute.xlu0 %5238
    %v5241 = vmul.f32 %v5234, %v5239
    %5243 = vrot.lane.b32.xlu0 %v5241, 32
    %v5244 = vpop.permute.xlu0 %5243
    %v5246 = vadd.f32 %v5236, %v5244
    %v5247 = vtanh.pop %v5246
    %5249 = vrot.lane.b32.xlu0 %v5247, 64
    %v5250 = vpop.permute.xlu0 %5249
    %v5252 = vmul.f32 %v5234, %v5250
    %5254 = vrot.lane.b32.xlu0 %v5252, 32
    %v5255 = vpop.permute.xlu0 %5254
    %v5256 = vsel %vm298, %v5255, 0
    %5258 = vmatprep.subr.mxu0 0.0
    %5259 = vmatpush1.msra.mxu0 0.0
    %5260 = vmatprep.subr.mxu0 0.0
    %5261 = vmatpush1.msra.mxu0 0.0
    %5262 = vmatprep.subr.mxu0 0.0
    %5263 = vmatpush1.msra.mxu0 0.0
    %5264 = vmatprep.subr.mxu0 0.0
    %5265 = vmatpush1.msra.mxu0 0.0
    %5266 = vmatprep.subr.mxu0 0.0
    %5267 = vmatpush1.msra.mxu0 0.0
    %5268 = vmatprep.subr.mxu0 0.0
    %5269 = vmatpush1.msra.mxu0 0.0
    %5270 = vmatprep.subr.mxu0 0.0
    %5271 = vmatpush1.msra.mxu0 0.0
    %5272 = vmatprep.subr.mxu0 0.0
    %5273 = vmatpush1.msra.mxu0 0.0
    %5274 = vmatprep.subr.mxu0 0.0
    %5275 = vmatpush1.msra.mxu0 0.0
    %5276 = vmatprep.subr.mxu0 0.0
    %5277 = vmatpush1.msra.mxu0 0.0
    %5278 = vmatprep.subr.mxu0 0.0
    %5279 = vmatpush1.msra.mxu0 0.0
    %5280 = vmatprep.subr.mxu0 0.0
    %5281 = vmatpush1.msra.mxu0 0.0
    %5282 = vmatprep.subr.mxu0 0.0
    %5283 = vmatpush1.msra.mxu0 %v158
    %5284 = vmatprep.subr.mxu0 0.0
    %5285 = vmatpush1.msra.mxu0 %v157
    %5286 = vmatprep.subr.mxu0 0.0
    %5287 = vmatpush1.msra.mxu0 %v156
    %5288 = vmatprep.subr.mxu0 0.0
    %5289 = vmatpush1.msra.mxu0 %v155
    %5290 = vmatprep.subr.mxu0 0.0
    %5291 = vmatpush2.msra.mxu0 0.0
    %5292 = vmatprep.subr.mxu0 0.0
    %5293 = vmatpush2.msra.mxu0 0.0
    %5294 = vmatprep.subr.mxu0 0.0
    %5295 = vmatpush2.msra.mxu0 0.0
    %5296 = vmatprep.subr.mxu0 0.0
    %5297 = vmatpush2.msra.mxu0 0.0
    %5298 = vmatprep.subr.mxu0 0.0
    %5299 = vmatpush2.msra.mxu0 0.0
    %5300 = vmatprep.subr.mxu0 0.0
    %5301 = vmatpush2.msra.mxu0 0.0
    %5302 = vmatprep.subr.mxu0 0.0
    %5303 = vmatpush2.msra.mxu0 0.0
    %5304 = vmatprep.subr.mxu0 0.0
    %5305 = vmatpush2.msra.mxu0 0.0
    %5306 = vmatprep.subr.mxu0 0.0
    %5307 = vmatpush2.msra.mxu0 0.0
    %5308 = vmatprep.subr.mxu0 0.0
    %5309 = vmatpush2.msra.mxu0 0.0
    %5310 = vmatprep.subr.mxu0 0.0
    %5311 = vmatpush2.msra.mxu0 0.0
    %5312 = vmatprep.subr.mxu0 0.0
    %5313 = vmatpush2.msra.mxu0 0.0
    %5314 = vmatprep.subr.mxu0 0.0
    %5315 = vmatpush2.msra.mxu0 0.0
    %5316 = vmatprep.subr.mxu0 0.0
    %5317 = vmatpush2.msra.mxu0 0.0
    %5318 = vmatprep.subr.mxu0 0.0
    %5319 = vmatpush2.msra.mxu0 0.0
    %5320 = vmatprep.subr.mxu0 0.0
    %5321 = vmatpush2.msra.mxu0 0.0
    %5322 = vmatprep.mubr.f32.mxu0 0.0
    %5323 = vmatmul.mubr.f32.gmra.mxu0 %v5256
    %v5324 = vpop.f32.mrf.mxu0
    %v5325 = vadd.f32 %v175, %v5324
    %v5326 = vpop.f32.mrf.mxu0
    %5327 = vdwg.mxu0
    %v5329 = vcombine.high %v5325, %v5325
    %v5331 = vunpack.c.l.s4 1966171168
    %v5332 = vunpack.c.0.s8 %v5331
    %v5333 = vlaneseq
    %v5334 = vshrl.u32 %v5333, 7
    %v5335 = vsub.s32 %v5332, %v5334
    %v5336 = vrot.slane %v5325, %v5335
    %v5338 = vunpack.c.l.s4 1966171168
    %v5339 = vunpack.c.0.s8 %v5338
    %v5340 = vlaneseq
    %v5341 = vshrl.u32 %v5340, 7
    %v5342 = vsub.s32 %v5339, %v5341
    %v5343 = vrot.slane %v5329, %v5342
    %v5344 = vcombine.high %v5336, %v5336
    %v5345 = vcombine.high %v5343, %v5343
    %v5347 = vunpack.c.l.s4 1966171168
    %v5348 = vunpack.c.0.s8 %v5347
    %v5349 = vlaneseq
    %v5350 = vshrl.u32 %v5349, 7
    %v5351 = vsub.s32 %v5348, %v5350
    %v5352 = vrot.slane %v5336, %v5351
    %v5354 = vunpack.c.l.s4 1966171168
    %v5355 = vunpack.c.0.s8 %v5354
    %v5356 = vlaneseq
    %v5357 = vshrl.u32 %v5356, 7
    %v5358 = vsub.s32 %v5355, %v5357
    %v5359 = vrot.slane %v5343, %v5358
    %v5361 = vunpack.c.l.s4 1966171168
    %v5362 = vunpack.c.0.s8 %v5361
    %v5363 = vlaneseq
    %v5364 = vshrl.u32 %v5363, 7
    %v5365 = vsub.s32 %v5362, %v5364
    %v5366 = vrot.slane %v5344, %v5365
    %v5368 = vunpack.c.l.s4 1966171168
    %v5369 = vunpack.c.0.s8 %v5368
    %v5370 = vlaneseq
    %v5371 = vshrl.u32 %v5370, 7
    %v5372 = vsub.s32 %v5369, %v5371
    %v5373 = vrot.slane %v5345, %v5372
    %v5374 = vcombine.high %v5352, %v5352
    %v5375 = vcombine.high %v5359, %v5359
    %v5376 = vcombine.high %v5366, %v5366
    %v5377 = vcombine.high %v5373, %v5373
    %v5378 = vlaneseq
    %v5379 = vshrl.u32 %v5378, 7
    %v5380 = vsub.s32 0, %v5379
    %v5381 = vrot.slane %v5352, %v5380
    %v5382 = vlaneseq
    %v5383 = vshrl.u32 %v5382, 7
    %v5384 = vsub.s32 0, %v5383
    %v5385 = vrot.slane %v5366, %v5384
    %v5386 = vlaneseq
    %v5387 = vshrl.u32 %v5386, 7
    %v5388 = vsub.s32 0, %v5387
    %v5389 = vrot.slane %v5374, %v5388
    %v5390 = vlaneseq
    %v5391 = vshrl.u32 %v5390, 7
    %v5392 = vsub.s32 0, %v5391
    %v5393 = vrot.slane %v5376, %v5392
    %v5394 = vlaneseq
    %v5395 = vshrl.u32 %v5394, 7
    %v5396 = vsub.s32 0, %v5395
    %v5397 = vrot.slane %v5359, %v5396
    %v5398 = vlaneseq
    %v5399 = vshrl.u32 %v5398, 7
    %v5400 = vsub.s32 0, %v5399
    %v5401 = vrot.slane %v5373, %v5400
    %v5402 = vlaneseq
    %v5403 = vshrl.u32 %v5402, 7
    %v5404 = vsub.s32 0, %v5403
    %v5405 = vrot.slane %v5375, %v5404
    %v5406 = vlaneseq
    %v5407 = vshrl.u32 %v5406, 7
    %v5408 = vsub.s32 0, %v5407
    %v5409 = vrot.slane %v5377, %v5408
    %v5418 = vmul.f32 %v5381, %v132
    %v5419 = vmul.f32 %v5385, %v133
    %v5420 = vmul.f32 %v5389, %v134
    %v5421 = vmul.f32 %v5393, %v135
    %v5422 = vmul.f32 %v5397, %v136
    %v5423 = vmul.f32 %v5401, %v137
    %v5424 = vmul.f32 %v5405, %v138
    %v5425 = vmul.f32 %v5409, %v139
    %v5426 = vsel %vm298, %v5418, 0.0
    %5427 = vadd.xlane.f32.xlu0 %v5426
    %v5428 = vpop.xlane.xlu0 %5427
    %v5429 = vsel %vm298, %v5419, 0.0
    %5430 = vadd.xlane.f32.xlu0 %v5429
    %v5431 = vpop.xlane.xlu0 %5430
    %v5432 = vsel %vm298, %v5420, 0.0
    %5433 = vadd.xlane.f32.xlu0 %v5432
    %v5434 = vpop.xlane.xlu0 %5433
    %v5435 = vsel %vm298, %v5421, 0.0
    %5436 = vadd.xlane.f32.xlu0 %v5435
    %v5437 = vpop.xlane.xlu0 %5436
    %v5438 = vsel %vm298, %v5422, 0.0
    %5439 = vadd.xlane.f32.xlu0 %v5438
    %v5440 = vpop.xlane.xlu0 %5439
    %v5441 = vsel %vm298, %v5423, 0.0
    %5442 = vadd.xlane.f32.xlu0 %v5441
    %v5443 = vpop.xlane.xlu0 %5442
    %v5444 = vsel %vm298, %v5424, 0.0
    %5445 = vadd.xlane.f32.xlu0 %v5444
    %v5446 = vpop.xlane.xlu0 %5445
    %v5447 = vsel %vm298, %v5425, 0.0
    %5448 = vadd.xlane.f32.xlu0 %v5447
    %v5449 = vpop.xlane.xlu0 %5448
    %v5450 = vadd.f32 %v5428, %v500
    %v5451 = vadd.f32 %v5431, %v507
    %v5452 = vadd.f32 %v5434, %v514
    %v5453 = vadd.f32 %v5437, %v521
    %v5454 = vadd.f32 %v5440, %v528
    %v5455 = vadd.f32 %v5443, %v535
    %v5456 = vadd.f32 %v5446, %v542
    %v5457 = vadd.f32 %v5449, %v549
    %5466 = vset.pattern.permute.xlu0 0
    %5467 = vperm.xlu0 %5466, %v5450
    %v5468 = vpop.permute.xlu0 %5467
    %5469 = vset.pattern.permute.xlu0 0
    %5470 = vperm.xlu0 %5469, %v5451
    %v5471 = vpop.permute.xlu0 %5470
    %5472 = vset.pattern.permute.xlu0 0
    %5473 = vperm.xlu0 %5472, %v5452
    %v5474 = vpop.permute.xlu0 %5473
    %5475 = vset.pattern.permute.xlu0 0
    %5476 = vperm.xlu0 %5475, %v5453
    %v5477 = vpop.permute.xlu0 %5476
    %5478 = vset.pattern.permute.xlu0 0
    %5479 = vperm.xlu0 %5478, %v5454
    %v5480 = vpop.permute.xlu0 %5479
    %5481 = vset.pattern.permute.xlu0 0
    %5482 = vperm.xlu0 %5481, %v5455
    %v5483 = vpop.permute.xlu0 %5482
    %5484 = vset.pattern.permute.xlu0 0
    %5485 = vperm.xlu0 %5484, %v5456
    %v5486 = vpop.permute.xlu0 %5485
    %5487 = vset.pattern.permute.xlu0 0
    %5488 = vperm.xlu0 %5487, %v5457
    %v5489 = vpop.permute.xlu0 %5488
    %v5490 = vlaneseq
    %v5491 = vshrl.u32 %v5490, 7
    %v5492 = vsub.s32 %v599, %v5491
    %v5493 = vrot.slane %v5468, %v5492
    %v5494 = vlaneseq
    %v5495 = vshrl.u32 %v5494, 7
    %v5496 = vsub.s32 %v599, %v5495
    %v5497 = vrot.slane %v5471, %v5496
    %v5498 = vlaneseq
    %v5499 = vshrl.u32 %v5498, 7
    %v5500 = vsub.s32 %v599, %v5499
    %v5501 = vrot.slane %v5474, %v5500
    %v5502 = vlaneseq
    %v5503 = vshrl.u32 %v5502, 7
    %v5504 = vsub.s32 %v599, %v5503
    %v5505 = vrot.slane %v5477, %v5504
    %v5506 = vlaneseq
    %v5507 = vshrl.u32 %v5506, 7
    %v5508 = vsub.s32 %v599, %v5507
    %v5509 = vrot.slane %v5480, %v5508
    %v5510 = vlaneseq
    %v5511 = vshrl.u32 %v5510, 7
    %v5512 = vsub.s32 %v599, %v5511
    %v5513 = vrot.slane %v5483, %v5512
    %v5514 = vlaneseq
    %v5515 = vshrl.u32 %v5514, 7
    %v5516 = vsub.s32 %v599, %v5515
    %v5517 = vrot.slane %v5486, %v5516
    %v5518 = vlaneseq
    %v5519 = vshrl.u32 %v5518, 7
    %v5520 = vsub.s32 %v599, %v5519
    %v5521 = vrot.slane %v5489, %v5520
    %v5522 = vsel %vm632, %v5497, %v5493
    %v5523 = vsel %vm634, %v5501, %v5522
    %v5524 = vsel %vm636, %v5505, %v5523
    %v5525 = vsel %vm638, %v5509, %v5524
    %v5526 = vsel %vm640, %v5513, %v5525
    %v5527 = vsel %vm642, %v5517, %v5526
    %v5528 = vsel %vm644, %v5521, %v5527
    %v5530 = vsel %vm647, %v5528, -inf
    %5531 = vmax.xlane.f32.xlu0 %v5530
    %v5532 = vpop.xlane.xlu0 %5531
    %v5534 = vlaneseq
    %v5535 = vshrl.u32 %v5534, 7
    %v5536 = vsub.s32 0, %v5535
    %v5537 = vrot.slane %v5532, %v5536
    %v5538 = vlaneseq
    %v5539 = vshrl.u32 %v5538, 7
    %v5540 = vsub.s32 1, %v5539
    %v5541 = vrot.slane %v5532, %v5540
    %v5542 = vlaneseq
    %v5543 = vshrl.u32 %v5542, 7
    %v5544 = vsub.s32 2, %v5543
    %v5545 = vrot.slane %v5532, %v5544
    %v5546 = vlaneseq
    %v5547 = vshrl.u32 %v5546, 7
    %v5548 = vsub.s32 3, %v5547
    %v5549 = vrot.slane %v5532, %v5548
    %v5550 = vlaneseq
    %v5551 = vshrl.u32 %v5550, 7
    %v5552 = vsub.s32 4, %v5551
    %v5553 = vrot.slane %v5532, %v5552
    %v5554 = vlaneseq
    %v5555 = vshrl.u32 %v5554, 7
    %v5556 = vsub.s32 5, %v5555
    %v5557 = vrot.slane %v5532, %v5556
    %v5558 = vlaneseq
    %v5559 = vshrl.u32 %v5558, 7
    %v5560 = vsub.s32 6, %v5559
    %v5561 = vrot.slane %v5532, %v5560
    %v5562 = vlaneseq
    %v5563 = vshrl.u32 %v5562, 7
    %v5564 = vsub.s32 7, %v5563
    %v5565 = vrot.slane %v5532, %v5564
    %v5574 = vsub.f32 %v5450, %v5537
    %v5575 = vsub.f32 %v5451, %v5541
    %v5576 = vsub.f32 %v5452, %v5545
    %v5577 = vsub.f32 %v5453, %v5549
    %v5578 = vsub.f32 %v5454, %v5553
    %v5579 = vsub.f32 %v5455, %v5557
    %v5580 = vsub.f32 %v5456, %v5561
    %v5581 = vsub.f32 %v5457, %v5565
    %v5582 = vmul.f32 %v5574, 1.442695
    %v5583 = vpow.pop %v5582
    %v5584 = vmul.f32 %v5575, 1.442695
    %v5585 = vpow.pop %v5584
    %v5586 = vmul.f32 %v5576, 1.442695
    %v5587 = vpow.pop %v5586
    %v5588 = vmul.f32 %v5577, 1.442695
    %v5589 = vpow.pop %v5588
    %v5590 = vmul.f32 %v5578, 1.442695
    %v5591 = vpow.pop %v5590
    %v5592 = vmul.f32 %v5579, 1.442695
    %v5593 = vpow.pop %v5592
    %v5594 = vmul.f32 %v5580, 1.442695
    %v5595 = vpow.pop %v5594
    %v5596 = vmul.f32 %v5581, 1.442695
    %v5597 = vpow.pop %v5596
    %5606 = vset.pattern.permute.xlu0 0
    %5607 = vperm.xlu0 %5606, %v5583
    %v5608 = vpop.permute.xlu0 %5607
    %5609 = vset.pattern.permute.xlu0 0
    %5610 = vperm.xlu0 %5609, %v5585
    %v5611 = vpop.permute.xlu0 %5610
    %5612 = vset.pattern.permute.xlu0 0
    %5613 = vperm.xlu0 %5612, %v5587
    %v5614 = vpop.permute.xlu0 %5613
    %5615 = vset.pattern.permute.xlu0 0
    %5616 = vperm.xlu0 %5615, %v5589
    %v5617 = vpop.permute.xlu0 %5616
    %5618 = vset.pattern.permute.xlu0 0
    %5619 = vperm.xlu0 %5618, %v5591
    %v5620 = vpop.permute.xlu0 %5619
    %5621 = vset.pattern.permute.xlu0 0
    %5622 = vperm.xlu0 %5621, %v5593
    %v5623 = vpop.permute.xlu0 %5622
    %5624 = vset.pattern.permute.xlu0 0
    %5625 = vperm.xlu0 %5624, %v5595
    %v5626 = vpop.permute.xlu0 %5625
    %5627 = vset.pattern.permute.xlu0 0
    %5628 = vperm.xlu0 %5627, %v5597
    %v5629 = vpop.permute.xlu0 %5628
    %v5630 = vlaneseq
    %v5631 = vshrl.u32 %v5630, 7
    %v5632 = vsub.s32 %v599, %v5631
    %v5633 = vrot.slane %v5608, %v5632
    %v5634 = vlaneseq
    %v5635 = vshrl.u32 %v5634, 7
    %v5636 = vsub.s32 %v599, %v5635
    %v5637 = vrot.slane %v5611, %v5636
    %v5638 = vlaneseq
    %v5639 = vshrl.u32 %v5638, 7
    %v5640 = vsub.s32 %v599, %v5639
    %v5641 = vrot.slane %v5614, %v5640
    %v5642 = vlaneseq
    %v5643 = vshrl.u32 %v5642, 7
    %v5644 = vsub.s32 %v599, %v5643
    %v5645 = vrot.slane %v5617, %v5644
    %v5646 = vlaneseq
    %v5647 = vshrl.u32 %v5646, 7
    %v5648 = vsub.s32 %v599, %v5647
    %v5649 = vrot.slane %v5620, %v5648
    %v5650 = vlaneseq
    %v5651 = vshrl.u32 %v5650, 7
    %v5652 = vsub.s32 %v599, %v5651
    %v5653 = vrot.slane %v5623, %v5652
    %v5654 = vlaneseq
    %v5655 = vshrl.u32 %v5654, 7
    %v5656 = vsub.s32 %v599, %v5655
    %v5657 = vrot.slane %v5626, %v5656
    %v5658 = vlaneseq
    %v5659 = vshrl.u32 %v5658, 7
    %v5660 = vsub.s32 %v599, %v5659
    %v5661 = vrot.slane %v5629, %v5660
    %v5662 = vsel %vm632, %v5637, %v5633
    %v5663 = vsel %vm634, %v5641, %v5662
    %v5664 = vsel %vm636, %v5645, %v5663
    %v5665 = vsel %vm638, %v5649, %v5664
    %v5666 = vsel %vm640, %v5653, %v5665
    %v5667 = vsel %vm642, %v5657, %v5666
    %v5668 = vsel %vm644, %v5661, %v5667
    %v5670 = vsel %vm647, %v5668, 0.0
    %5671 = vadd.xlane.f32.xlu0 %v5670
    %v5672 = vpop.xlane.xlu0 %5671
    %v5674 = vlaneseq
    %v5675 = vshrl.u32 %v5674, 7
    %v5676 = vsub.s32 0, %v5675
    %v5677 = vrot.slane %v5672, %v5676
    %v5678 = vlaneseq
    %v5679 = vshrl.u32 %v5678, 7
    %v5680 = vsub.s32 1, %v5679
    %v5681 = vrot.slane %v5672, %v5680
    %v5682 = vlaneseq
    %v5683 = vshrl.u32 %v5682, 7
    %v5684 = vsub.s32 2, %v5683
    %v5685 = vrot.slane %v5672, %v5684
    %v5686 = vlaneseq
    %v5687 = vshrl.u32 %v5686, 7
    %v5688 = vsub.s32 3, %v5687
    %v5689 = vrot.slane %v5672, %v5688
    %v5690 = vlaneseq
    %v5691 = vshrl.u32 %v5690, 7
    %v5692 = vsub.s32 4, %v5691
    %v5693 = vrot.slane %v5672, %v5692
    %v5694 = vlaneseq
    %v5695 = vshrl.u32 %v5694, 7
    %v5696 = vsub.s32 5, %v5695
    %v5697 = vrot.slane %v5672, %v5696
    %v5698 = vlaneseq
    %v5699 = vshrl.u32 %v5698, 7
    %v5700 = vsub.s32 6, %v5699
    %v5701 = vrot.slane %v5672, %v5700
    %v5702 = vlaneseq
    %v5703 = vshrl.u32 %v5702, 7
    %v5704 = vsub.s32 7, %v5703
    %v5705 = vrot.slane %v5672, %v5704
    %v5714 = vrcp.pop %v5677
    %v5715 = vmul.f32 %v5583, %v5714
    %v5716 = vrcp.pop %v5681
    %v5717 = vmul.f32 %v5585, %v5716
    %v5718 = vrcp.pop %v5685
    %v5719 = vmul.f32 %v5587, %v5718
    %v5720 = vrcp.pop %v5689
    %v5721 = vmul.f32 %v5589, %v5720
    %v5722 = vrcp.pop %v5693
    %v5723 = vmul.f32 %v5591, %v5722
    %v5724 = vrcp.pop %v5697
    %v5725 = vmul.f32 %v5593, %v5724
    %v5726 = vrcp.pop %v5701
    %v5727 = vmul.f32 %v5595, %v5726
    %v5728 = vrcp.pop %v5705
    %v5729 = vmul.f32 %v5597, %v5728
    %5731 = vset.pattern.permute.xlu0 0
    %5732 = vperm.xlu0 %5731, %v5715
    %v5733 = vpop.permute.xlu0 %5732
    %5736 = vset.pattern.permute.xlu0 0
    %5737 = vperm.xlu0 %5736, %v5717
    %v5738 = vpop.permute.xlu0 %5737
    %5741 = vset.pattern.permute.xlu0 0
    %5742 = vperm.xlu0 %5741, %v5719
    %v5743 = vpop.permute.xlu0 %5742
    %5746 = vset.pattern.permute.xlu0 0
    %5747 = vperm.xlu0 %5746, %v5721
    %v5748 = vpop.permute.xlu0 %5747
    %5751 = vset.pattern.permute.xlu0 0
    %5752 = vperm.xlu0 %5751, %v5723
    %v5753 = vpop.permute.xlu0 %5752
    %5756 = vset.pattern.permute.xlu0 0
    %5757 = vperm.xlu0 %5756, %v5725
    %v5758 = vpop.permute.xlu0 %5757
    %5761 = vset.pattern.permute.xlu0 0
    %5762 = vperm.xlu0 %5761, %v5727
    %v5763 = vpop.permute.xlu0 %5762
    %5766 = vset.pattern.permute.xlu0 0
    %5767 = vperm.xlu0 %5766, %v5729
    %v5768 = vpop.permute.xlu0 %5767
    %v5770 = vmul.f32 %v5733, %v140
    %v5771 = vmul.f32 %v5738, %v141
    %v5772 = vmul.f32 %v5743, %v142
    %v5773 = vmul.f32 %v5748, %v143
    %v5774 = vmul.f32 %v5753, %v144
    %v5775 = vmul.f32 %v5758, %v145
    %v5776 = vmul.f32 %v5763, %v146
    %v5777 = vmul.f32 %v5768, %v147
    %v5778 = vsel %vm298, %v5770, 0.0
    %v5779 = vrot.slane %v5778, 4
    %v5780 = vadd.f32 %v5778, %v5779
    %v5781 = vrot.slane %v5780, 2
    %v5782 = vadd.f32 %v5780, %v5781
    %v5783 = vrot.slane %v5782, 1
    %v5784 = vadd.f32 %v5782, %v5783
    %v5785 = vsel %vm298, %v5771, 0.0
    %v5786 = vrot.slane %v5785, 4
    %v5787 = vadd.f32 %v5785, %v5786
    %v5788 = vrot.slane %v5787, 2
    %v5789 = vadd.f32 %v5787, %v5788
    %v5790 = vrot.slane %v5789, 1
    %v5791 = vadd.f32 %v5789, %v5790
    %v5792 = vsel %vm298, %v5772, 0.0
    %v5793 = vrot.slane %v5792, 4
    %v5794 = vadd.f32 %v5792, %v5793
    %v5795 = vrot.slane %v5794, 2
    %v5796 = vadd.f32 %v5794, %v5795
    %v5797 = vrot.slane %v5796, 1
    %v5798 = vadd.f32 %v5796, %v5797
    %v5799 = vsel %vm298, %v5773, 0.0
    %v5800 = vrot.slane %v5799, 4
    %v5801 = vadd.f32 %v5799, %v5800
    %v5802 = vrot.slane %v5801, 2
    %v5803 = vadd.f32 %v5801, %v5802
    %v5804 = vrot.slane %v5803, 1
    %v5805 = vadd.f32 %v5803, %v5804
    %v5806 = vsel %vm298, %v5774, 0.0
    %v5807 = vrot.slane %v5806, 4
    %v5808 = vadd.f32 %v5806, %v5807
    %v5809 = vrot.slane %v5808, 2
    %v5810 = vadd.f32 %v5808, %v5809
    %v5811 = vrot.slane %v5810, 1
    %v5812 = vadd.f32 %v5810, %v5811
    %v5813 = vsel %vm298, %v5775, 0.0
    %v5814 = vrot.slane %v5813, 4
    %v5815 = vadd.f32 %v5813, %v5814
    %v5816 = vrot.slane %v5815, 2
    %v5817 = vadd.f32 %v5815, %v5816
    %v5818 = vrot.slane %v5817, 1
    %v5819 = vadd.f32 %v5817, %v5818
    %v5820 = vsel %vm298, %v5776, 0.0
    %v5821 = vrot.slane %v5820, 4
    %v5822 = vadd.f32 %v5820, %v5821
    %v5823 = vrot.slane %v5822, 2
    %v5824 = vadd.f32 %v5822, %v5823
    %v5825 = vrot.slane %v5824, 1
    %v5826 = vadd.f32 %v5824, %v5825
    %v5827 = vsel %vm298, %v5777, 0.0
    %v5828 = vrot.slane %v5827, 4
    %v5829 = vadd.f32 %v5827, %v5828
    %v5830 = vrot.slane %v5829, 2
    %v5831 = vadd.f32 %v5829, %v5830
    %v5832 = vrot.slane %v5831, 1
    %v5833 = vadd.f32 %v5831, %v5832
    %v5842 = vsel %vm632, %v5791, %v5784
    %v5843 = vsel %vm634, %v5798, %v5842
    %v5844 = vsel %vm636, %v5805, %v5843
    %v5845 = vsel %vm638, %v5812, %v5844
    %v5846 = vsel %vm640, %v5819, %v5845
    %v5847 = vsel %vm642, %v5826, %v5846
    %v5848 = vsel %vm644, %v5833, %v5847
    %v5849 = vsel %vm298, %v5848, 0
    %5851 = vmatprep.subr.mxu0 0.0
    %5852 = vmatpush1.msra.mxu0 0.0
    %5853 = vmatprep.subr.mxu0 0.0
    %5854 = vmatpush1.msra.mxu0 0.0
    %5855 = vmatprep.subr.mxu0 0.0
    %5856 = vmatpush1.msra.mxu0 0.0
    %5857 = vmatprep.subr.mxu0 0.0
    %5858 = vmatpush1.msra.mxu0 0.0
    %5859 = vmatprep.subr.mxu0 0.0
    %5860 = vmatpush1.msra.mxu0 0.0
    %5861 = vmatprep.subr.mxu0 0.0
    %5862 = vmatpush1.msra.mxu0 0.0
    %5863 = vmatprep.subr.mxu0 0.0
    %5864 = vmatpush1.msra.mxu0 0.0
    %5865 = vmatprep.subr.mxu0 0.0
    %5866 = vmatpush1.msra.mxu0 0.0
    %5867 = vmatprep.subr.mxu0 0.0
    %5868 = vmatpush1.msra.mxu0 0.0
    %5869 = vmatprep.subr.mxu0 0.0
    %5870 = vmatpush1.msra.mxu0 0.0
    %5871 = vmatprep.subr.mxu0 0.0
    %5872 = vmatpush1.msra.mxu0 0.0
    %5873 = vmatprep.subr.mxu0 0.0
    %5874 = vmatpush1.msra.mxu0 0.0
    %5875 = vmatprep.subr.mxu0 0.0
    %5876 = vmatpush1.msra.mxu0 %v162
    %5877 = vmatprep.subr.mxu0 0.0
    %5878 = vmatpush1.msra.mxu0 %v161
    %5879 = vmatprep.subr.mxu0 0.0
    %5880 = vmatpush1.msra.mxu0 %v160
    %5881 = vmatprep.subr.mxu0 0.0
    %5882 = vmatpush1.msra.mxu0 %v159
    %5883 = vmatprep.subr.mxu0 0.0
    %5884 = vmatpush2.msra.mxu0 0.0
    %5885 = vmatprep.subr.mxu0 0.0
    %5886 = vmatpush2.msra.mxu0 0.0
    %5887 = vmatprep.subr.mxu0 0.0
    %5888 = vmatpush2.msra.mxu0 0.0
    %5889 = vmatprep.subr.mxu0 0.0
    %5890 = vmatpush2.msra.mxu0 0.0
    %5891 = vmatprep.subr.mxu0 0.0
    %5892 = vmatpush2.msra.mxu0 0.0
    %5893 = vmatprep.subr.mxu0 0.0
    %5894 = vmatpush2.msra.mxu0 0.0
    %5895 = vmatprep.subr.mxu0 0.0
    %5896 = vmatpush2.msra.mxu0 0.0
    %5897 = vmatprep.subr.mxu0 0.0
    %5898 = vmatpush2.msra.mxu0 0.0
    %5899 = vmatprep.subr.mxu0 0.0
    %5900 = vmatpush2.msra.mxu0 0.0
    %5901 = vmatprep.subr.mxu0 0.0
    %5902 = vmatpush2.msra.mxu0 0.0
    %5903 = vmatprep.subr.mxu0 0.0
    %5904 = vmatpush2.msra.mxu0 0.0
    %5905 = vmatprep.subr.mxu0 0.0
    %5906 = vmatpush2.msra.mxu0 0.0
    %5907 = vmatprep.subr.mxu0 0.0
    %5908 = vmatpush2.msra.mxu0 0.0
    %5909 = vmatprep.subr.mxu0 0.0
    %5910 = vmatpush2.msra.mxu0 0.0
    %5911 = vmatprep.subr.mxu0 0.0
    %5912 = vmatpush2.msra.mxu0 0.0
    %5913 = vmatprep.subr.mxu0 0.0
    %5914 = vmatpush2.msra.mxu0 0.0
    %5915 = vmatprep.mubr.f32.mxu0 0.0
    %5916 = vmatmul.mubr.f32.gmra.mxu0 %v5849
    %v5917 = vpop.f32.mrf.mxu0
    %v5918 = vadd.f32 %v182, %v5917
    %v5919 = vpop.f32.mrf.mxu0
    %5920 = vdwg.mxu0
    %v5921 = vmax.f32 %v5918, 0.0
    %s5922 = scalar_lea.vmem [#allocation14], 48
    %5923 = vst.msk [vmem:[%s5922] sm:$0xff] %vm191, %v5921
    %v5924 = vlaneseq
    %v5925 = vshrl.u32 %v5924, 7
    %v5926 = vsub.s32 %v599, %v5925
    %v5927 = vrot.slane %v5733, %v5926
    %v5928 = vlaneseq
    %v5929 = vshrl.u32 %v5928, 7
    %v5930 = vsub.s32 %v599, %v5929
    %v5931 = vrot.slane %v5738, %v5930
    %v5932 = vlaneseq
    %v5933 = vshrl.u32 %v5932, 7
    %v5934 = vsub.s32 %v599, %v5933
    %v5935 = vrot.slane %v5743, %v5934
    %v5936 = vlaneseq
    %v5937 = vshrl.u32 %v5936, 7
    %v5938 = vsub.s32 %v599, %v5937
    %v5939 = vrot.slane %v5748, %v5938
    %v5940 = vlaneseq
    %v5941 = vshrl.u32 %v5940, 7
    %v5942 = vsub.s32 %v599, %v5941
    %v5943 = vrot.slane %v5753, %v5942
    %v5944 = vlaneseq
    %v5945 = vshrl.u32 %v5944, 7
    %v5946 = vsub.s32 %v599, %v5945
    %v5947 = vrot.slane %v5758, %v5946
    %v5948 = vlaneseq
    %v5949 = vshrl.u32 %v5948, 7
    %v5950 = vsub.s32 %v599, %v5949
    %v5951 = vrot.slane %v5763, %v5950
    %v5952 = vlaneseq
    %v5953 = vshrl.u32 %v5952, 7
    %v5954 = vsub.s32 %v599, %v5953
    %v5955 = vrot.slane %v5768, %v5954
    %v5956 = vsel %vm632, %v5931, %v5927
    %v5957 = vsel %vm634, %v5935, %v5956
    %v5958 = vsel %vm636, %v5939, %v5957
    %v5959 = vsel %vm638, %v5943, %v5958
    %v5960 = vsel %vm640, %v5947, %v5959
    %v5961 = vsel %vm642, %v5951, %v5960
    %v5962 = vsel %vm644, %v5955, %v5961
    %s5964 = scalar_lea.vmem [#allocation15], 48
    %5965 = vst.msk [vmem:[%s5964] sm:$0xff] %vm647, %v5962
    %5966 = vrot.lane.b32.xlu0 %v5252, 48
    %v5967 = vpop.permute.xlu0 %5966
    %v5969 = vsel %vm191, %v5921, %v5967
    %v5971 = vsel %vm193, %v5969, 0
    %5973 = vmatprep.subr.mxu0 0.0
    %5974 = vmatpush1.msra.mxu0 0.0
    %5975 = vmatprep.subr.mxu0 0.0
    %5976 = vmatpush1.msra.mxu0 0.0
    %5977 = vmatprep.subr.mxu0 0.0
    %5978 = vmatpush1.msra.mxu0 0.0
    %5979 = vmatprep.subr.mxu0 0.0
    %5980 = vmatpush1.msra.mxu0 0.0
    %5981 = vmatprep.subr.mxu0 0.0
    %5982 = vmatpush1.msra.mxu0 0.0
    %5983 = vmatprep.subr.mxu0 0.0
    %5984 = vmatpush1.msra.mxu0 0.0
    %5985 = vmatprep.subr.mxu0 0.0
    %5986 = vmatpush1.msra.mxu0 0.0
    %5987 = vmatprep.subr.mxu0 0.0
    %5988 = vmatpush1.msra.mxu0 0.0
    %5989 = vmatprep.subr.mxu0 0.0
    %5990 = vmatpush1.msra.mxu0 0.0
    %5991 = vmatprep.subr.mxu0 0.0
    %5992 = vmatpush1.msra.mxu0 0.0
    %5993 = vmatprep.subr.mxu0 0.0
    %5994 = vmatpush1.msra.mxu0 %v154
    %5995 = vmatprep.subr.mxu0 0.0
    %5996 = vmatpush1.msra.mxu0 %v153
    %5997 = vmatprep.subr.mxu0 0.0
    %5998 = vmatpush1.msra.mxu0 %v152
    %5999 = vmatprep.subr.mxu0 0.0
    %6000 = vmatpush1.msra.mxu0 %v151
    %6001 = vmatprep.subr.mxu0 0.0
    %6002 = vmatpush1.msra.mxu0 %v150
    %6003 = vmatprep.subr.mxu0 0.0
    %6004 = vmatpush1.msra.mxu0 %v149
    %6005 = vmatprep.subr.mxu0 0.0
    %6006 = vmatpush2.msra.mxu0 0.0
    %6007 = vmatprep.subr.mxu0 0.0
    %6008 = vmatpush2.msra.mxu0 0.0
    %6009 = vmatprep.subr.mxu0 0.0
    %6010 = vmatpush2.msra.mxu0 0.0
    %6011 = vmatprep.subr.mxu0 0.0
    %6012 = vmatpush2.msra.mxu0 0.0
    %6013 = vmatprep.subr.mxu0 0.0
    %6014 = vmatpush2.msra.mxu0 0.0
    %6015 = vmatprep.subr.mxu0 0.0
    %6016 = vmatpush2.msra.mxu0 0.0
    %6017 = vmatprep.subr.mxu0 0.0
    %6018 = vmatpush2.msra.mxu0 0.0
    %6019 = vmatprep.subr.mxu0 0.0
    %6020 = vmatpush2.msra.mxu0 0.0
    %6021 = vmatprep.subr.mxu0 0.0
    %6022 = vmatpush2.msra.mxu0 0.0
    %6023 = vmatprep.subr.mxu0 0.0
    %6024 = vmatpush2.msra.mxu0 0.0
    %6025 = vmatprep.subr.mxu0 0.0
    %6026 = vmatpush2.msra.mxu0 0.0
    %6027 = vmatprep.subr.mxu0 0.0
    %6028 = vmatpush2.msra.mxu0 0.0
    %6029 = vmatprep.subr.mxu0 0.0
    %6030 = vmatpush2.msra.mxu0 0.0
    %6031 = vmatprep.subr.mxu0 0.0
    %6032 = vmatpush2.msra.mxu0 0.0
    %6033 = vmatprep.subr.mxu0 0.0
    %6034 = vmatpush2.msra.mxu0 0.0
    %6035 = vmatprep.subr.mxu0 0.0
    %6036 = vmatpush2.msra.mxu0 0.0
    %6037 = vmatprep.mubr.f32.mxu0 0.0
    %6038 = vmatmul.mubr.f32.gmra.mxu0 %v5971
    %v6039 = vpop.f32.mrf.mxu0
    %v6040 = vadd.f32 %v168, %v6039
    %v6041 = vpop.f32.mrf.mxu0
    %6042 = vdwg.mxu0
    %v6043 = vxor.u32 %v6040, 2147483648
    %v6044 = vmul.f32 %v6043, 1.442695
    %v6045 = vpow.pop %v6044
    %v6046 = vadd.f32 %v6045, 1.0
    %v6047 = vrcp.pop %v6046
    %v6048 = vmul.f32 1.0, %v6047
    %v6049 = vtanh.pop %v6040
    %v6050 = vmul.f32 %v6048, %v5246
    %6052 = vrot.lane.b32.xlu0 %v6049, 64
    %v6053 = vpop.permute.xlu0 %6052
    %v6055 = vmul.f32 %v6048, %v6053
    %6057 = vrot.lane.b32.xlu0 %v6055, 32
    %v6058 = vpop.permute.xlu0 %6057
    %v6060 = vadd.f32 %v6050, %v6058
    %v6061 = vtanh.pop %v6060
    %6063 = vrot.lane.b32.xlu0 %v6061, 64
    %v6064 = vpop.permute.xlu0 %6063
    %v6066 = vmul.f32 %v6048, %v6064
    %6068 = vrot.lane.b32.xlu0 %v6066, 32
    %v6069 = vpop.permute.xlu0 %6068
    %v6070 = vsel %vm298, %v6069, 0
    %6072 = vmatprep.subr.mxu0 0.0
    %6073 = vmatpush1.msra.mxu0 0.0
    %6074 = vmatprep.subr.mxu0 0.0
    %6075 = vmatpush1.msra.mxu0 0.0
    %6076 = vmatprep.subr.mxu0 0.0
    %6077 = vmatpush1.msra.mxu0 0.0
    %6078 = vmatprep.subr.mxu0 0.0
    %6079 = vmatpush1.msra.mxu0 0.0
    %6080 = vmatprep.subr.mxu0 0.0
    %6081 = vmatpush1.msra.mxu0 0.0
    %6082 = vmatprep.subr.mxu0 0.0
    %6083 = vmatpush1.msra.mxu0 0.0
    %6084 = vmatprep.subr.mxu0 0.0
    %6085 = vmatpush1.msra.mxu0 0.0
    %6086 = vmatprep.subr.mxu0 0.0
    %6087 = vmatpush1.msra.mxu0 0.0
    %6088 = vmatprep.subr.mxu0 0.0
    %6089 = vmatpush1.msra.mxu0 0.0
    %6090 = vmatprep.subr.mxu0 0.0
    %6091 = vmatpush1.msra.mxu0 0.0
    %6092 = vmatprep.subr.mxu0 0.0
    %6093 = vmatpush1.msra.mxu0 0.0
    %6094 = vmatprep.subr.mxu0 0.0
    %6095 = vmatpush1.msra.mxu0 0.0
    %6096 = vmatprep.subr.mxu0 0.0
    %6097 = vmatpush1.msra.mxu0 %v158
    %6098 = vmatprep.subr.mxu0 0.0
    %6099 = vmatpush1.msra.mxu0 %v157
    %6100 = vmatprep.subr.mxu0 0.0
    %6101 = vmatpush1.msra.mxu0 %v156
    %6102 = vmatprep.subr.mxu0 0.0
    %6103 = vmatpush1.msra.mxu0 %v155
    %6104 = vmatprep.subr.mxu0 0.0
    %6105 = vmatpush2.msra.mxu0 0.0
    %6106 = vmatprep.subr.mxu0 0.0
    %6107 = vmatpush2.msra.mxu0 0.0
    %6108 = vmatprep.subr.mxu0 0.0
    %6109 = vmatpush2.msra.mxu0 0.0
    %6110 = vmatprep.subr.mxu0 0.0
    %6111 = vmatpush2.msra.mxu0 0.0
    %6112 = vmatprep.subr.mxu0 0.0
    %6113 = vmatpush2.msra.mxu0 0.0
    %6114 = vmatprep.subr.mxu0 0.0
    %6115 = vmatpush2.msra.mxu0 0.0
    %6116 = vmatprep.subr.mxu0 0.0
    %6117 = vmatpush2.msra.mxu0 0.0
    %6118 = vmatprep.subr.mxu0 0.0
    %6119 = vmatpush2.msra.mxu0 0.0
    %6120 = vmatprep.subr.mxu0 0.0
    %6121 = vmatpush2.msra.mxu0 0.0
    %6122 = vmatprep.subr.mxu0 0.0
    %6123 = vmatpush2.msra.mxu0 0.0
    %6124 = vmatprep.subr.mxu0 0.0
    %6125 = vmatpush2.msra.mxu0 0.0
    %6126 = vmatprep.subr.mxu0 0.0
    %6127 = vmatpush2.msra.mxu0 0.0
    %6128 = vmatprep.subr.mxu0 0.0
    %6129 = vmatpush2.msra.mxu0 0.0
    %6130 = vmatprep.subr.mxu0 0.0
    %6131 = vmatpush2.msra.mxu0 0.0
    %6132 = vmatprep.subr.mxu0 0.0
    %6133 = vmatpush2.msra.mxu0 0.0
    %6134 = vmatprep.subr.mxu0 0.0
    %6135 = vmatpush2.msra.mxu0 0.0
    %6136 = vmatprep.mubr.f32.mxu0 0.0
    %6137 = vmatmul.mubr.f32.gmra.mxu0 %v6070
    %v6138 = vpop.f32.mrf.mxu0
    %v6139 = vadd.f32 %v175, %v6138
    %v6140 = vpop.f32.mrf.mxu0
    %6141 = vdwg.mxu0
    %v6143 = vcombine.high %v6139, %v6139
    %v6145 = vunpack.c.l.s4 1966171168
    %v6146 = vunpack.c.0.s8 %v6145
    %v6147 = vlaneseq
    %v6148 = vshrl.u32 %v6147, 7
    %v6149 = vsub.s32 %v6146, %v6148
    %v6150 = vrot.slane %v6139, %v6149
    %v6152 = vunpack.c.l.s4 1966171168
    %v6153 = vunpack.c.0.s8 %v6152
    %v6154 = vlaneseq
    %v6155 = vshrl.u32 %v6154, 7
    %v6156 = vsub.s32 %v6153, %v6155
    %v6157 = vrot.slane %v6143, %v6156
    %v6158 = vcombine.high %v6150, %v6150
    %v6159 = vcombine.high %v6157, %v6157
    %v6161 = vunpack.c.l.s4 1966171168
    %v6162 = vunpack.c.0.s8 %v6161
    %v6163 = vlaneseq
    %v6164 = vshrl.u32 %v6163, 7
    %v6165 = vsub.s32 %v6162, %v6164
    %v6166 = vrot.slane %v6150, %v6165
    %v6168 = vunpack.c.l.s4 1966171168
    %v6169 = vunpack.c.0.s8 %v6168
    %v6170 = vlaneseq
    %v6171 = vshrl.u32 %v6170, 7
    %v6172 = vsub.s32 %v6169, %v6171
    %v6173 = vrot.slane %v6157, %v6172
    %v6175 = vunpack.c.l.s4 1966171168
    %v6176 = vunpack.c.0.s8 %v6175
    %v6177 = vlaneseq
    %v6178 = vshrl.u32 %v6177, 7
    %v6179 = vsub.s32 %v6176, %v6178
    %v6180 = vrot.slane %v6158, %v6179
    %v6182 = vunpack.c.l.s4 1966171168
    %v6183 = vunpack.c.0.s8 %v6182
    %v6184 = vlaneseq
    %v6185 = vshrl.u32 %v6184, 7
    %v6186 = vsub.s32 %v6183, %v6185
    %v6187 = vrot.slane %v6159, %v6186
    %v6188 = vcombine.high %v6166, %v6166
    %v6189 = vcombine.high %v6173, %v6173
    %v6190 = vcombine.high %v6180, %v6180
    %v6191 = vcombine.high %v6187, %v6187
    %v6192 = vlaneseq
    %v6193 = vshrl.u32 %v6192, 7
    %v6194 = vsub.s32 0, %v6193
    %v6195 = vrot.slane %v6166, %v6194
    %v6196 = vlaneseq
    %v6197 = vshrl.u32 %v6196, 7
    %v6198 = vsub.s32 0, %v6197
    %v6199 = vrot.slane %v6180, %v6198
    %v6200 = vlaneseq
    %v6201 = vshrl.u32 %v6200, 7
    %v6202 = vsub.s32 0, %v6201
    %v6203 = vrot.slane %v6188, %v6202
    %v6204 = vlaneseq
    %v6205 = vshrl.u32 %v6204, 7
    %v6206 = vsub.s32 0, %v6205
    %v6207 = vrot.slane %v6190, %v6206
    %v6208 = vlaneseq
    %v6209 = vshrl.u32 %v6208, 7
    %v6210 = vsub.s32 0, %v6209
    %v6211 = vrot.slane %v6173, %v6210
    %v6212 = vlaneseq
    %v6213 = vshrl.u32 %v6212, 7
    %v6214 = vsub.s32 0, %v6213
    %v6215 = vrot.slane %v6187, %v6214
    %v6216 = vlaneseq
    %v6217 = vshrl.u32 %v6216, 7
    %v6218 = vsub.s32 0, %v6217
    %v6219 = vrot.slane %v6189, %v6218
    %v6220 = vlaneseq
    %v6221 = vshrl.u32 %v6220, 7
    %v6222 = vsub.s32 0, %v6221
    %v6223 = vrot.slane %v6191, %v6222
    %v6232 = vmul.f32 %v6195, %v132
    %v6233 = vmul.f32 %v6199, %v133
    %v6234 = vmul.f32 %v6203, %v134
    %v6235 = vmul.f32 %v6207, %v135
    %v6236 = vmul.f32 %v6211, %v136
    %v6237 = vmul.f32 %v6215, %v137
    %v6238 = vmul.f32 %v6219, %v138
    %v6239 = vmul.f32 %v6223, %v139
    %v6240 = vsel %vm298, %v6232, 0.0
    %6241 = vadd.xlane.f32.xlu0 %v6240
    %v6242 = vpop.xlane.xlu0 %6241
    %v6243 = vsel %vm298, %v6233, 0.0
    %6244 = vadd.xlane.f32.xlu0 %v6243
    %v6245 = vpop.xlane.xlu0 %6244
    %v6246 = vsel %vm298, %v6234, 0.0
    %6247 = vadd.xlane.f32.xlu0 %v6246
    %v6248 = vpop.xlane.xlu0 %6247
    %v6249 = vsel %vm298, %v6235, 0.0
    %6250 = vadd.xlane.f32.xlu0 %v6249
    %v6251 = vpop.xlane.xlu0 %6250
    %v6252 = vsel %vm298, %v6236, 0.0
    %6253 = vadd.xlane.f32.xlu0 %v6252
    %v6254 = vpop.xlane.xlu0 %6253
    %v6255 = vsel %vm298, %v6237, 0.0
    %6256 = vadd.xlane.f32.xlu0 %v6255
    %v6257 = vpop.xlane.xlu0 %6256
    %v6258 = vsel %vm298, %v6238, 0.0
    %6259 = vadd.xlane.f32.xlu0 %v6258
    %v6260 = vpop.xlane.xlu0 %6259
    %v6261 = vsel %vm298, %v6239, 0.0
    %6262 = vadd.xlane.f32.xlu0 %v6261
    %v6263 = vpop.xlane.xlu0 %6262
    %v6264 = vadd.f32 %v6242, %v500
    %v6265 = vadd.f32 %v6245, %v507
    %v6266 = vadd.f32 %v6248, %v514
    %v6267 = vadd.f32 %v6251, %v521
    %v6268 = vadd.f32 %v6254, %v528
    %v6269 = vadd.f32 %v6257, %v535
    %v6270 = vadd.f32 %v6260, %v542
    %v6271 = vadd.f32 %v6263, %v549
    %6280 = vset.pattern.permute.xlu0 0
    %6281 = vperm.xlu0 %6280, %v6264
    %v6282 = vpop.permute.xlu0 %6281
    %6283 = vset.pattern.permute.xlu0 0
    %6284 = vperm.xlu0 %6283, %v6265
    %v6285 = vpop.permute.xlu0 %6284
    %6286 = vset.pattern.permute.xlu0 0
    %6287 = vperm.xlu0 %6286, %v6266
    %v6288 = vpop.permute.xlu0 %6287
    %6289 = vset.pattern.permute.xlu0 0
    %6290 = vperm.xlu0 %6289, %v6267
    %v6291 = vpop.permute.xlu0 %6290
    %6292 = vset.pattern.permute.xlu0 0
    %6293 = vperm.xlu0 %6292, %v6268
    %v6294 = vpop.permute.xlu0 %6293
    %6295 = vset.pattern.permute.xlu0 0
    %6296 = vperm.xlu0 %6295, %v6269
    %v6297 = vpop.permute.xlu0 %6296
    %6298 = vset.pattern.permute.xlu0 0
    %6299 = vperm.xlu0 %6298, %v6270
    %v6300 = vpop.permute.xlu0 %6299
    %6301 = vset.pattern.permute.xlu0 0
    %6302 = vperm.xlu0 %6301, %v6271
    %v6303 = vpop.permute.xlu0 %6302
    %v6304 = vlaneseq
    %v6305 = vshrl.u32 %v6304, 7
    %v6306 = vsub.s32 %v599, %v6305
    %v6307 = vrot.slane %v6282, %v6306
    %v6308 = vlaneseq
    %v6309 = vshrl.u32 %v6308, 7
    %v6310 = vsub.s32 %v599, %v6309
    %v6311 = vrot.slane %v6285, %v6310
    %v6312 = vlaneseq
    %v6313 = vshrl.u32 %v6312, 7
    %v6314 = vsub.s32 %v599, %v6313
    %v6315 = vrot.slane %v6288, %v6314
    %v6316 = vlaneseq
    %v6317 = vshrl.u32 %v6316, 7
    %v6318 = vsub.s32 %v599, %v6317
    %v6319 = vrot.slane %v6291, %v6318
    %v6320 = vlaneseq
    %v6321 = vshrl.u32 %v6320, 7
    %v6322 = vsub.s32 %v599, %v6321
    %v6323 = vrot.slane %v6294, %v6322
    %v6324 = vlaneseq
    %v6325 = vshrl.u32 %v6324, 7
    %v6326 = vsub.s32 %v599, %v6325
    %v6327 = vrot.slane %v6297, %v6326
    %v6328 = vlaneseq
    %v6329 = vshrl.u32 %v6328, 7
    %v6330 = vsub.s32 %v599, %v6329
    %v6331 = vrot.slane %v6300, %v6330
    %v6332 = vlaneseq
    %v6333 = vshrl.u32 %v6332, 7
    %v6334 = vsub.s32 %v599, %v6333
    %v6335 = vrot.slane %v6303, %v6334
    %v6336 = vsel %vm632, %v6311, %v6307
    %v6337 = vsel %vm634, %v6315, %v6336
    %v6338 = vsel %vm636, %v6319, %v6337
    %v6339 = vsel %vm638, %v6323, %v6338
    %v6340 = vsel %vm640, %v6327, %v6339
    %v6341 = vsel %vm642, %v6331, %v6340
    %v6342 = vsel %vm644, %v6335, %v6341
    %v6344 = vsel %vm647, %v6342, -inf
    %6345 = vmax.xlane.f32.xlu0 %v6344
    %v6346 = vpop.xlane.xlu0 %6345
    %v6348 = vlaneseq
    %v6349 = vshrl.u32 %v6348, 7
    %v6350 = vsub.s32 0, %v6349
    %v6351 = vrot.slane %v6346, %v6350
    %v6352 = vlaneseq
    %v6353 = vshrl.u32 %v6352, 7
    %v6354 = vsub.s32 1, %v6353
    %v6355 = vrot.slane %v6346, %v6354
    %v6356 = vlaneseq
    %v6357 = vshrl.u32 %v6356, 7
    %v6358 = vsub.s32 2, %v6357
    %v6359 = vrot.slane %v6346, %v6358
    %v6360 = vlaneseq
    %v6361 = vshrl.u32 %v6360, 7
    %v6362 = vsub.s32 3, %v6361
    %v6363 = vrot.slane %v6346, %v6362
    %v6364 = vlaneseq
    %v6365 = vshrl.u32 %v6364, 7
    %v6366 = vsub.s32 4, %v6365
    %v6367 = vrot.slane %v6346, %v6366
    %v6368 = vlaneseq
    %v6369 = vshrl.u32 %v6368, 7
    %v6370 = vsub.s32 5, %v6369
    %v6371 = vrot.slane %v6346, %v6370
    %v6372 = vlaneseq
    %v6373 = vshrl.u32 %v6372, 7
    %v6374 = vsub.s32 6, %v6373
    %v6375 = vrot.slane %v6346, %v6374
    %v6376 = vlaneseq
    %v6377 = vshrl.u32 %v6376, 7
    %v6378 = vsub.s32 7, %v6377
    %v6379 = vrot.slane %v6346, %v6378
    %v6388 = vsub.f32 %v6264, %v6351
    %v6389 = vsub.f32 %v6265, %v6355
    %v6390 = vsub.f32 %v6266, %v6359
    %v6391 = vsub.f32 %v6267, %v6363
    %v6392 = vsub.f32 %v6268, %v6367
    %v6393 = vsub.f32 %v6269, %v6371
    %v6394 = vsub.f32 %v6270, %v6375
    %v6395 = vsub.f32 %v6271, %v6379
    %v6396 = vmul.f32 %v6388, 1.442695
    %v6397 = vpow.pop %v6396
    %v6398 = vmul.f32 %v6389, 1.442695
    %v6399 = vpow.pop %v6398
    %v6400 = vmul.f32 %v6390, 1.442695
    %v6401 = vpow.pop %v6400
    %v6402 = vmul.f32 %v6391, 1.442695
    %v6403 = vpow.pop %v6402
    %v6404 = vmul.f32 %v6392, 1.442695
    %v6405 = vpow.pop %v6404
    %v6406 = vmul.f32 %v6393, 1.442695
    %v6407 = vpow.pop %v6406
    %v6408 = vmul.f32 %v6394, 1.442695
    %v6409 = vpow.pop %v6408
    %v6410 = vmul.f32 %v6395, 1.442695
    %v6411 = vpow.pop %v6410
    %6420 = vset.pattern.permute.xlu0 0
    %6421 = vperm.xlu0 %6420, %v6397
    %v6422 = vpop.permute.xlu0 %6421
    %6423 = vset.pattern.permute.xlu0 0
    %6424 = vperm.xlu0 %6423, %v6399
    %v6425 = vpop.permute.xlu0 %6424
    %6426 = vset.pattern.permute.xlu0 0
    %6427 = vperm.xlu0 %6426, %v6401
    %v6428 = vpop.permute.xlu0 %6427
    %6429 = vset.pattern.permute.xlu0 0
    %6430 = vperm.xlu0 %6429, %v6403
    %v6431 = vpop.permute.xlu0 %6430
    %6432 = vset.pattern.permute.xlu0 0
    %6433 = vperm.xlu0 %6432, %v6405
    %v6434 = vpop.permute.xlu0 %6433
    %6435 = vset.pattern.permute.xlu0 0
    %6436 = vperm.xlu0 %6435, %v6407
    %v6437 = vpop.permute.xlu0 %6436
    %6438 = vset.pattern.permute.xlu0 0
    %6439 = vperm.xlu0 %6438, %v6409
    %v6440 = vpop.permute.xlu0 %6439
    %6441 = vset.pattern.permute.xlu0 0
    %6442 = vperm.xlu0 %6441, %v6411
    %v6443 = vpop.permute.xlu0 %6442
    %v6444 = vlaneseq
    %v6445 = vshrl.u32 %v6444, 7
    %v6446 = vsub.s32 %v599, %v6445
    %v6447 = vrot.slane %v6422, %v6446
    %v6448 = vlaneseq
    %v6449 = vshrl.u32 %v6448, 7
    %v6450 = vsub.s32 %v599, %v6449
    %v6451 = vrot.slane %v6425, %v6450
    %v6452 = vlaneseq
    %v6453 = vshrl.u32 %v6452, 7
    %v6454 = vsub.s32 %v599, %v6453
    %v6455 = vrot.slane %v6428, %v6454
    %v6456 = vlaneseq
    %v6457 = vshrl.u32 %v6456, 7
    %v6458 = vsub.s32 %v599, %v6457
    %v6459 = vrot.slane %v6431, %v6458
    %v6460 = vlaneseq
    %v6461 = vshrl.u32 %v6460, 7
    %v6462 = vsub.s32 %v599, %v6461
    %v6463 = vrot.slane %v6434, %v6462
    %v6464 = vlaneseq
    %v6465 = vshrl.u32 %v6464, 7
    %v6466 = vsub.s32 %v599, %v6465
    %v6467 = vrot.slane %v6437, %v6466
    %v6468 = vlaneseq
    %v6469 = vshrl.u32 %v6468, 7
    %v6470 = vsub.s32 %v599, %v6469
    %v6471 = vrot.slane %v6440, %v6470
    %v6472 = vlaneseq
    %v6473 = vshrl.u32 %v6472, 7
    %v6474 = vsub.s32 %v599, %v6473
    %v6475 = vrot.slane %v6443, %v6474
    %v6476 = vsel %vm632, %v6451, %v6447
    %v6477 = vsel %vm634, %v6455, %v6476
    %v6478 = vsel %vm636, %v6459, %v6477
    %v6479 = vsel %vm638, %v6463, %v6478
    %v6480 = vsel %vm640, %v6467, %v6479
    %v6481 = vsel %vm642, %v6471, %v6480
    %v6482 = vsel %vm644, %v6475, %v6481
    %v6484 = vsel %vm647, %v6482, 0.0
    %6485 = vadd.xlane.f32.xlu0 %v6484
    %v6486 = vpop.xlane.xlu0 %6485
    %v6488 = vlaneseq
    %v6489 = vshrl.u32 %v6488, 7
    %v6490 = vsub.s32 0, %v6489
    %v6491 = vrot.slane %v6486, %v6490
    %v6492 = vlaneseq
    %v6493 = vshrl.u32 %v6492, 7
    %v6494 = vsub.s32 1, %v6493
    %v6495 = vrot.slane %v6486, %v6494
    %v6496 = vlaneseq
    %v6497 = vshrl.u32 %v6496, 7
    %v6498 = vsub.s32 2, %v6497
    %v6499 = vrot.slane %v6486, %v6498
    %v6500 = vlaneseq
    %v6501 = vshrl.u32 %v6500, 7
    %v6502 = vsub.s32 3, %v6501
    %v6503 = vrot.slane %v6486, %v6502
    %v6504 = vlaneseq
    %v6505 = vshrl.u32 %v6504, 7
    %v6506 = vsub.s32 4, %v6505
    %v6507 = vrot.slane %v6486, %v6506
    %v6508 = vlaneseq
    %v6509 = vshrl.u32 %v6508, 7
    %v6510 = vsub.s32 5, %v6509
    %v6511 = vrot.slane %v6486, %v6510
    %v6512 = vlaneseq
    %v6513 = vshrl.u32 %v6512, 7
    %v6514 = vsub.s32 6, %v6513
    %v6515 = vrot.slane %v6486, %v6514
    %v6516 = vlaneseq
    %v6517 = vshrl.u32 %v6516, 7
    %v6518 = vsub.s32 7, %v6517
    %v6519 = vrot.slane %v6486, %v6518
    %v6528 = vrcp.pop %v6491
    %v6529 = vmul.f32 %v6397, %v6528
    %v6530 = vrcp.pop %v6495
    %v6531 = vmul.f32 %v6399, %v6530
    %v6532 = vrcp.pop %v6499
    %v6533 = vmul.f32 %v6401, %v6532
    %v6534 = vrcp.pop %v6503
    %v6535 = vmul.f32 %v6403, %v6534
    %v6536 = vrcp.pop %v6507
    %v6537 = vmul.f32 %v6405, %v6536
    %v6538 = vrcp.pop %v6511
    %v6539 = vmul.f32 %v6407, %v6538
    %v6540 = vrcp.pop %v6515
    %v6541 = vmul.f32 %v6409, %v6540
    %v6542 = vrcp.pop %v6519
    %v6543 = vmul.f32 %v6411, %v6542
    %6545 = vset.pattern.permute.xlu0 0
    %6546 = vperm.xlu0 %6545, %v6529
    %v6547 = vpop.permute.xlu0 %6546
    %6550 = vset.pattern.permute.xlu0 0
    %6551 = vperm.xlu0 %6550, %v6531
    %v6552 = vpop.permute.xlu0 %6551
    %6555 = vset.pattern.permute.xlu0 0
    %6556 = vperm.xlu0 %6555, %v6533
    %v6557 = vpop.permute.xlu0 %6556
    %6560 = vset.pattern.permute.xlu0 0
    %6561 = vperm.xlu0 %6560, %v6535
    %v6562 = vpop.permute.xlu0 %6561
    %6565 = vset.pattern.permute.xlu0 0
    %6566 = vperm.xlu0 %6565, %v6537
    %v6567 = vpop.permute.xlu0 %6566
    %6570 = vset.pattern.permute.xlu0 0
    %6571 = vperm.xlu0 %6570, %v6539
    %v6572 = vpop.permute.xlu0 %6571
    %6575 = vset.pattern.permute.xlu0 0
    %6576 = vperm.xlu0 %6575, %v6541
    %v6577 = vpop.permute.xlu0 %6576
    %6580 = vset.pattern.permute.xlu0 0
    %6581 = vperm.xlu0 %6580, %v6543
    %v6582 = vpop.permute.xlu0 %6581
    %v6584 = vmul.f32 %v6547, %v140
    %v6585 = vmul.f32 %v6552, %v141
    %v6586 = vmul.f32 %v6557, %v142
    %v6587 = vmul.f32 %v6562, %v143
    %v6588 = vmul.f32 %v6567, %v144
    %v6589 = vmul.f32 %v6572, %v145
    %v6590 = vmul.f32 %v6577, %v146
    %v6591 = vmul.f32 %v6582, %v147
    %v6592 = vsel %vm298, %v6584, 0.0
    %v6593 = vrot.slane %v6592, 4
    %v6594 = vadd.f32 %v6592, %v6593
    %v6595 = vrot.slane %v6594, 2
    %v6596 = vadd.f32 %v6594, %v6595
    %v6597 = vrot.slane %v6596, 1
    %v6598 = vadd.f32 %v6596, %v6597
    %v6599 = vsel %vm298, %v6585, 0.0
    %v6600 = vrot.slane %v6599, 4
    %v6601 = vadd.f32 %v6599, %v6600
    %v6602 = vrot.slane %v6601, 2
    %v6603 = vadd.f32 %v6601, %v6602
    %v6604 = vrot.slane %v6603, 1
    %v6605 = vadd.f32 %v6603, %v6604
    %v6606 = vsel %vm298, %v6586, 0.0
    %v6607 = vrot.slane %v6606, 4
    %v6608 = vadd.f32 %v6606, %v6607
    %v6609 = vrot.slane %v6608, 2
    %v6610 = vadd.f32 %v6608, %v6609
    %v6611 = vrot.slane %v6610, 1
    %v6612 = vadd.f32 %v6610, %v6611
    %v6613 = vsel %vm298, %v6587, 0.0
    %v6614 = vrot.slane %v6613, 4
    %v6615 = vadd.f32 %v6613, %v6614
    %v6616 = vrot.slane %v6615, 2
    %v6617 = vadd.f32 %v6615, %v6616
    %v6618 = vrot.slane %v6617, 1
    %v6619 = vadd.f32 %v6617, %v6618
    %v6620 = vsel %vm298, %v6588, 0.0
    %v6621 = vrot.slane %v6620, 4
    %v6622 = vadd.f32 %v6620, %v6621
    %v6623 = vrot.slane %v6622, 2
    %v6624 = vadd.f32 %v6622, %v6623
    %v6625 = vrot.slane %v6624, 1
    %v6626 = vadd.f32 %v6624, %v6625
    %v6627 = vsel %vm298, %v6589, 0.0
    %v6628 = vrot.slane %v6627, 4
    %v6629 = vadd.f32 %v6627, %v6628
    %v6630 = vrot.slane %v6629, 2
    %v6631 = vadd.f32 %v6629, %v6630
    %v6632 = vrot.slane %v6631, 1
    %v6633 = vadd.f32 %v6631, %v6632
    %v6634 = vsel %vm298, %v6590, 0.0
    %v6635 = vrot.slane %v6634, 4
    %v6636 = vadd.f32 %v6634, %v6635
    %v6637 = vrot.slane %v6636, 2
    %v6638 = vadd.f32 %v6636, %v6637
    %v6639 = vrot.slane %v6638, 1
    %v6640 = vadd.f32 %v6638, %v6639
    %v6641 = vsel %vm298, %v6591, 0.0
    %v6642 = vrot.slane %v6641, 4
    %v6643 = vadd.f32 %v6641, %v6642
    %v6644 = vrot.slane %v6643, 2
    %v6645 = vadd.f32 %v6643, %v6644
    %v6646 = vrot.slane %v6645, 1
    %v6647 = vadd.f32 %v6645, %v6646
    %v6656 = vsel %vm632, %v6605, %v6598
    %v6657 = vsel %vm634, %v6612, %v6656
    %v6658 = vsel %vm636, %v6619, %v6657
    %v6659 = vsel %vm638, %v6626, %v6658
    %v6660 = vsel %vm640, %v6633, %v6659
    %v6661 = vsel %vm642, %v6640, %v6660
    %v6662 = vsel %vm644, %v6647, %v6661
    %v6663 = vsel %vm298, %v6662, 0
    %6665 = vmatprep.subr.mxu0 0.0
    %6666 = vmatpush1.msra.mxu0 0.0
    %6667 = vmatprep.subr.mxu0 0.0
    %6668 = vmatpush1.msra.mxu0 0.0
    %6669 = vmatprep.subr.mxu0 0.0
    %6670 = vmatpush1.msra.mxu0 0.0
    %6671 = vmatprep.subr.mxu0 0.0
    %6672 = vmatpush1.msra.mxu0 0.0
    %6673 = vmatprep.subr.mxu0 0.0
    %6674 = vmatpush1.msra.mxu0 0.0
    %6675 = vmatprep.subr.mxu0 0.0
    %6676 = vmatpush1.msra.mxu0 0.0
    %6677 = vmatprep.subr.mxu0 0.0
    %6678 = vmatpush1.msra.mxu0 0.0
    %6679 = vmatprep.subr.mxu0 0.0
    %6680 = vmatpush1.msra.mxu0 0.0
    %6681 = vmatprep.subr.mxu0 0.0
    %6682 = vmatpush1.msra.mxu0 0.0
    %6683 = vmatprep.subr.mxu0 0.0
    %6684 = vmatpush1.msra.mxu0 0.0
    %6685 = vmatprep.subr.mxu0 0.0
    %6686 = vmatpush1.msra.mxu0 0.0
    %6687 = vmatprep.subr.mxu0 0.0
    %6688 = vmatpush1.msra.mxu0 0.0
    %6689 = vmatprep.subr.mxu0 0.0
    %6690 = vmatpush1.msra.mxu0 %v162
    %6691 = vmatprep.subr.mxu0 0.0
    %6692 = vmatpush1.msra.mxu0 %v161
    %6693 = vmatprep.subr.mxu0 0.0
    %6694 = vmatpush1.msra.mxu0 %v160
    %6695 = vmatprep.subr.mxu0 0.0
    %6696 = vmatpush1.msra.mxu0 %v159
    %6697 = vmatprep.subr.mxu0 0.0
    %6698 = vmatpush2.msra.mxu0 0.0
    %6699 = vmatprep.subr.mxu0 0.0
    %6700 = vmatpush2.msra.mxu0 0.0
    %6701 = vmatprep.subr.mxu0 0.0
    %6702 = vmatpush2.msra.mxu0 0.0
    %6703 = vmatprep.subr.mxu0 0.0
    %6704 = vmatpush2.msra.mxu0 0.0
    %6705 = vmatprep.subr.mxu0 0.0
    %6706 = vmatpush2.msra.mxu0 0.0
    %6707 = vmatprep.subr.mxu0 0.0
    %6708 = vmatpush2.msra.mxu0 0.0
    %6709 = vmatprep.subr.mxu0 0.0
    %6710 = vmatpush2.msra.mxu0 0.0
    %6711 = vmatprep.subr.mxu0 0.0
    %6712 = vmatpush2.msra.mxu0 0.0
    %6713 = vmatprep.subr.mxu0 0.0
    %6714 = vmatpush2.msra.mxu0 0.0
    %6715 = vmatprep.subr.mxu0 0.0
    %6716 = vmatpush2.msra.mxu0 0.0
    %6717 = vmatprep.subr.mxu0 0.0
    %6718 = vmatpush2.msra.mxu0 0.0
    %6719 = vmatprep.subr.mxu0 0.0
    %6720 = vmatpush2.msra.mxu0 0.0
    %6721 = vmatprep.subr.mxu0 0.0
    %6722 = vmatpush2.msra.mxu0 0.0
    %6723 = vmatprep.subr.mxu0 0.0
    %6724 = vmatpush2.msra.mxu0 0.0
    %6725 = vmatprep.subr.mxu0 0.0
    %6726 = vmatpush2.msra.mxu0 0.0
    %6727 = vmatprep.subr.mxu0 0.0
    %6728 = vmatpush2.msra.mxu0 0.0
    %6729 = vmatprep.mubr.f32.mxu0 0.0
    %6730 = vmatmul.mubr.f32.gmra.mxu0 %v6663
    %v6731 = vpop.f32.mrf.mxu0
    %v6732 = vadd.f32 %v182, %v6731
    %v6733 = vpop.f32.mrf.mxu0
    %6734 = vdwg.mxu0
    %v6735 = vmax.f32 %v6732, 0.0
    %s6736 = scalar_lea.vmem [#allocation14], 56
    %6737 = vst.msk [vmem:[%s6736] sm:$0xff] %vm191, %v6735
    %v6738 = vlaneseq
    %v6739 = vshrl.u32 %v6738, 7
    %v6740 = vsub.s32 %v599, %v6739
    %v6741 = vrot.slane %v6547, %v6740
    %v6742 = vlaneseq
    %v6743 = vshrl.u32 %v6742, 7
    %v6744 = vsub.s32 %v599, %v6743
    %v6745 = vrot.slane %v6552, %v6744
    %v6746 = vlaneseq
    %v6747 = vshrl.u32 %v6746, 7
    %v6748 = vsub.s32 %v599, %v6747
    %v6749 = vrot.slane %v6557, %v6748
    %v6750 = vlaneseq
    %v6751 = vshrl.u32 %v6750, 7
    %v6752 = vsub.s32 %v599, %v6751
    %v6753 = vrot.slane %v6562, %v6752
    %v6754 = vlaneseq
    %v6755 = vshrl.u32 %v6754, 7
    %v6756 = vsub.s32 %v599, %v6755
    %v6757 = vrot.slane %v6567, %v6756
    %v6758 = vlaneseq
    %v6759 = vshrl.u32 %v6758, 7
    %v6760 = vsub.s32 %v599, %v6759
    %v6761 = vrot.slane %v6572, %v6760
    %v6762 = vlaneseq
    %v6763 = vshrl.u32 %v6762, 7
    %v6764 = vsub.s32 %v599, %v6763
    %v6765 = vrot.slane %v6577, %v6764
    %v6766 = vlaneseq
    %v6767 = vshrl.u32 %v6766, 7
    %v6768 = vsub.s32 %v599, %v6767
    %v6769 = vrot.slane %v6582, %v6768
    %v6770 = vsel %vm632, %v6745, %v6741
    %v6771 = vsel %vm634, %v6749, %v6770
    %v6772 = vsel %vm636, %v6753, %v6771
    %v6773 = vsel %vm638, %v6757, %v6772
    %v6774 = vsel %vm640, %v6761, %v6773
    %v6775 = vsel %vm642, %v6765, %v6774
    %v6776 = vsel %vm644, %v6769, %v6775
    %s6778 = scalar_lea.vmem [#allocation15], 56
    %6779 = vst.msk [vmem:[%s6778] sm:$0xff] %vm647, %v6776
    // Predicated region
    $region78: #{tpu_custom_call.1} parent=1 // pred_check
      _
    $region79: #{tpu_custom_call.1} parent=1 // pred_check_branch
      %6781 = sbr.rel (0) target = $region81
    $region80: #{tpu_custom_call.1} parent=1 // pred_region
      %s6783 = ssub.s32 1024, 1024
      %6784 = vsyncadd [#allocation4], %s6783
      %s6785 = sshll.u32 [#allocation14], 4
      %s6786 = int_to_ptr.vmem [resolvable:$true] %s6785
      %6791 = dma.vmem_to_hbm [thread:$0]  %s6786, 1024, %s12, [#allocation4], 128, 128, 8
    $region81: #{tpu_custom_call.1} parent=1 // pred_fallthru
      _
    // Predicated region
    $region82: #{tpu_custom_call.1} parent=1 // pred_check
      _
    $region83: #{tpu_custom_call.1} parent=1 // pred_check_branch
      %6793 = sbr.rel (0) target = $region85
    $region84: #{tpu_custom_call.1} parent=1 // pred_region
      %s6795 = ssub.s32 1024, 1024
      %6796 = vsyncadd [#allocation16], %s6795
      %s6797 = sshll.u32 [#allocation15], 4
      %s6798 = int_to_ptr.vmem [resolvable:$true] %s6797
      %6803 = dma.vmem_to_hbm [thread:$0]  %s6798, 1024, %s13, [#allocation16], 128, 128, 8
    $region85: #{tpu_custom_call.1} parent=1 // pred_fallthru
      _
    // Predicated region
    $region86: #{tpu_custom_call.1} parent=1 // pred_check
      _
    $region87: #{tpu_custom_call.1} parent=1 // pred_check_branch
      %6805 = sbr.rel (0) target = $region89
    $region88: #{tpu_custom_call.1} parent=1 // pred_region
      %6806 = dma.done [#allocation4], 1024
    $region89: #{tpu_custom_call.1} parent=1 // pred_fallthru
      _
    // Predicated region
    $region90: #{tpu_custom_call.1} parent=1 // pred_check
      _
    $region91: #{tpu_custom_call.1} parent=1 // pred_check_branch
      %6808 = sbr.rel (0) target = $region93
    $region92: #{tpu_custom_call.1} parent=1 // pred_region
      %6809 = dma.done [#allocation16], 1024
    $region93: #{tpu_custom_call.1} parent=1 // pred_fallthru
      _
    %6810 = vsyncpa [#allocation3], 1
    %6811 = vsyncpa [#allocation6], 1
    %6812 = vsyncpa [#allocation9], 1
    %6813 = vsyncpa [#allocation12], 1
    %6814 = vsyncpa [#allocation4], 1
    %6815 = vsyncpa [#allocation16], 1

</llo_original>
